<compile_context>
chip_gen: v5e
topology: v5e:2x2
jax: 0.10.0
libtpu: 0.0.40
codegen_flags: <defaults>
</compile_context>

<pallas_src>
import functools
import math

import jax
import jax.numpy as jnp
from jax.experimental import pallas as pl
from jax.experimental.pallas import tpu as pltpu


# ----------------------------- helpers ---------------------------------------

def _round_up(x, m):
    return (x + m - 1) // m * m


def _pick_tile(dim, pref, align):
    """Largest tile <= pref that is a multiple of `align` and divides `dim`;
    falls back to the full dimension (always a legal BlockSpec block)."""
    if dim <= pref:
        return dim
    t = (pref // align) * align
    while t >= align:
        if dim % t == 0:
            return t
        t -= align
    return dim


# ----------------------------- tiled linear ----------------------------------

def _matmul_kernel(x_ref, w_ref, b_ref, o_ref, *scratch, activation, n_k):
    # f32 accumulation: directly into o_ref when it is f32 (its block index is
    # independent of k, so it stays resident across the K axis), otherwise
    # into a VMEM scratch (bf16 outputs).
    acc_ref = scratch[0] if scratch else o_ref

    @pl.when(pl.program_id(2) == 0)
    def _():
        acc_ref[...] = jnp.zeros_like(acc_ref)

    x = x_ref[...]
    if x.dtype != jnp.bfloat16:
        x = x.astype(jnp.bfloat16)
    acc_ref[...] += jnp.dot(x, w_ref[...], preferred_element_type=jnp.float32)

    @pl.when(pl.program_id(2) == n_k - 1)
    def _():
        y = acc_ref[...] + b_ref[...]
        if activation == "gelu":
            # exact (erf-based) GELU, matching torch.nn.functional.gelu default
            y = 0.5 * y * (1.0 + jax.lax.erf(y * 0.7071067811865475))
        o_ref[...] = y.astype(o_ref.dtype)


def linear(x, w, b, activation=None, out_dtype=jnp.float32,
           tm=512, tn=512, tk=256):
    """y = act(x @ w + b).  x: (M, K) f32/bf16, w: (K, N) bf16 (pre-transposed),
    b: (N,) f32.  Use out_dtype=bf16 for streams that only feed another matmul."""
    M, K = x.shape
    N0 = w.shape[1]
    # Pad N to a multiple of 128 (e.g. large vocab) so the output tiles stay
    # lane-aligned and VMEM-bounded instead of one full-width fallback tile.
    N = N0 if N0 <= 128 else _round_up(N0, 128)
    if N != N0:
        w = jnp.pad(w, ((0, 0), (0, N - N0)))
        b = jnp.pad(b, ((0, N - N0),))
    tm = _pick_tile(M, tm, 8)
    tn = _pick_tile(N, tn, 128)
    tk = _pick_tile(K, tk, 128)
    n_k = K // tk
    scratch = ([] if out_dtype == jnp.float32
               else [pltpu.VMEM((tm, tn), jnp.float32)])
    # TODO(synk): for the small-M (weight-DMA-bound) regime, deeper buffering
    # of the weight stream (pl.Buffered) would hide more exposed DMA latency.
    out = pl.pallas_call(
        functools.partial(_matmul_kernel, activation=activation, n_k=n_k),
        out_shape=jax.ShapeDtypeStruct((M, N), out_dtype),
        grid=(M // tm, N // tn, n_k),
        in_specs=[
            pl.BlockSpec((tm, tk), lambda i, j, k: (i, k)),
            pl.BlockSpec((tk, tn), lambda i, j, k: (k, j)),
            pl.BlockSpec((1, tn), lambda i, j, k: (0, j)),
        ],
        out_specs=pl.BlockSpec((tm, tn), lambda i, j, k: (i, j)),
        scratch_shapes=scratch,
        compiler_params=pltpu.CompilerParams(
            dimension_semantics=("parallel", "parallel", "arbitrary")),
    )(x, w, b.reshape(1, N))
    return out if N == N0 else out[:, :N0]


# -------------------- matmul fused with residual-add + LayerNorm -------------

def _linear_add_ln_kernel(x_ref, w_ref, b_ref, r_ref, g_ref, bb_ref, o_ref,
                          *, n_k):
    # f32 output is resident across the K axis -> accumulate directly into it.
    @pl.when(pl.program_id(1) == 0)
    def _():
        o_ref[...] = jnp.zeros_like(o_ref)

    x = x_ref[...]
    if x.dtype != jnp.bfloat16:
        x = x.astype(jnp.bfloat16)
    o_ref[...] += jnp.dot(x, w_ref[...], preferred_element_type=jnp.float32)

    @pl.when(pl.program_id(1) == n_k - 1)
    def _():
        # post-norm residual: LayerNorm(residual + (x @ W + b)), eps = 1e-5
        y = o_ref[...] + b_ref[...] + r_ref[...]
        mu = jnp.mean(y, axis=-1, keepdims=True)
        var = jnp.mean(jnp.square(y - mu), axis=-1, keepdims=True)
        yn = (y - mu) * jax.lax.rsqrt(var + 1e-5)
        o_ref[...] = yn * g_ref[...] + bb_ref[...]


def linear_add_ln(x, w, b, res, gamma, beta, tm=128, tk=256):
    """LayerNorm(res + x @ w + b) in f32.  Full output width N in one tile so
    the row statistics are computed in the matmul finalize step; tm defaults
    to 128 so the full-width residual/out/weight buffers fit v7x VMEM too."""
    M, K = x.shape
    N = w.shape[1]
    tm = _pick_tile(M, tm, 8)
    tk = _pick_tile(K, tk, 128)
    n_k = K // tk
    return pl.pallas_call(
        functools.partial(_linear_add_ln_kernel, n_k=n_k),
        out_shape=jax.ShapeDtypeStruct((M, N), jnp.float32),
        grid=(M // tm, n_k),
        in_specs=[
            pl.BlockSpec((tm, tk), lambda i, k: (i, k)),
            pl.BlockSpec((tk, N), lambda i, k: (k, 0)),
            pl.BlockSpec((1, N), lambda i, k: (0, 0)),
            pl.BlockSpec((tm, N), lambda i, k: (i, 0)),
            pl.BlockSpec((1, N), lambda i, k: (0, 0)),
            pl.BlockSpec((1, N), lambda i, k: (0, 0)),
        ],
        out_specs=pl.BlockSpec((tm, N), lambda i, k: (i, 0)),
        compiler_params=pltpu.CompilerParams(
            dimension_semantics=("parallel", "arbitrary")),
    )(x, w, b.reshape(1, N), res, gamma.reshape(1, N), beta.reshape(1, N))


# ------------- fused attention + out-projection + residual + LayerNorm -------

def _attn_bias(pad_ref, sq, sk, causal):
    # Additive mask built in-kernel from the (1, Sk) pad vector; finite -1e9
    # (Python literal -> nothing is captured as an array constant).
    bias = jnp.where(pad_ref[0] != 0, -1e9, 0.0).astype(jnp.float32)   # (1, Sk)
    if causal:
        qi = jax.lax.broadcasted_iota(jnp.int32, (sq, sk), 0)
        ki = jax.lax.broadcasted_iota(jnp.int32, (sq, sk), 1)
        bias = bias + jnp.where(ki > qi, -1e9, 0.0)                     # (Sq, Sk)
    return bias


def _mha(q_all, k_all, v_all, bias, nheads, scale):
    """q_all (Sq, E), k_all/v_all (Sk, E) bf16 -> (Sq, E) f32 attention output.
    Heads are split with static lane slices; no HBM transposes anywhere."""
    # TODO(synk): for long sequences switch to a flash-style online softmax
    # with a KV grid axis (and a (B, H) grid for v7x megacore) so the
    # (Sq, Sk) score tile never exceeds VMEM.
    e = q_all.shape[-1]
    dh = e // nheads
    outs = []
    for h in range(nheads):
        qh = q_all[:, h * dh:(h + 1) * dh]
        kh = k_all[:, h * dh:(h + 1) * dh]
        vh = v_all[:, h * dh:(h + 1) * dh]
        s = jax.lax.dot_general(qh, kh, (((1,), (1,)), ((), ())),
                                preferred_element_type=jnp.float32) * scale
        s = s + bias
        m = jnp.max(s, axis=-1, keepdims=True)
        p = jnp.exp(s - m)
        p = p / jnp.sum(p, axis=-1, keepdims=True)
        outs.append(jnp.dot(p.astype(jnp.bfloat16), vh,
                            preferred_element_type=jnp.float32))
    return jnp.concatenate(outs, axis=-1)                                # (Sq, E)


def _outproj_ln(attn, wo_ref, bo_ref, r_ref, g_ref, bb_ref, o_ref):
    y = jnp.dot(attn.astype(jnp.bfloat16), wo_ref[...],
                preferred_element_type=jnp.float32)
    y = y + bo_ref[...] + r_ref[0]
    mu = jnp.mean(y, axis=-1, keepdims=True)
    var = jnp.mean(jnp.square(y - mu), axis=-1, keepdims=True)
    yn = (y - mu) * jax.lax.rsqrt(var + 1e-5)
    o_ref[0] = (yn * g_ref[...] + bb_ref[...]).astype(o_ref.dtype)


def _self_attn_kernel(pad_ref, qkv_ref, wo_ref, bo_ref, r_ref, g_ref, bb_ref,
                      o_ref, *, nheads, causal, scale):
    e = o_ref.shape[-1]
    s = qkv_ref.shape[1]
    qkv = qkv_ref[0]                                   # (S, 3E) bf16
    bias = _attn_bias(pad_ref, s, s, causal)
    attn = _mha(qkv[:, :e], qkv[:, e:2 * e], qkv[:, 2 * e:], bias,
                nheads, scale)
    _outproj_ln(attn, wo_ref, bo_ref, r_ref, g_ref, bb_ref, o_ref)


def _cross_attn_kernel(pad_ref, q_ref, kv_ref, wo_ref, bo_ref, r_ref, g_ref,
                       bb_ref, o_ref, *, nheads, scale):
    e = o_ref.shape[-1]
    sq = q_ref.shape[1]
    sk = kv_ref.shape[1]
    kv = kv_ref[0]                                     # (Sk, 2E) bf16
    bias = _attn_bias(pad_ref, sq, sk, False)
    attn = _mha(q_ref[0], kv[:, :e], kv[:, e:], bias, nheads, scale)
    _outproj_ln(attn, wo_ref, bo_ref, r_ref, g_ref, bb_ref, o_ref)


def self_attention_block(qkv, pad, wo, bo, res, gamma, beta, *, nheads, causal):
    """Fused MHA + out-projection + residual + LayerNorm.
    qkv: (B, S, 3E) bf16 (lane-dense, no head transposes), pad: (B, 1, S) int32
    (1 = padding key), res: (B, S, E) f32.  Returns (B, S, E) f32."""
    B, S, E3 = qkv.shape
    E = E3 // 3
    scale = 1.0 / math.sqrt(E // nheads)
    return pl.pallas_call(
        functools.partial(_self_attn_kernel, nheads=nheads, causal=causal,
                          scale=scale),
        out_shape=jax.ShapeDtypeStruct((B, S, E), jnp.float32),
        grid=(B,),
        in_specs=[
            pl.BlockSpec((1, 1, S), lambda b: (b, 0, 0)),
            pl.BlockSpec((1, S, E3), lambda b: (b, 0, 0)),
            pl.BlockSpec((E, E), lambda b: (0, 0)),
            pl.BlockSpec((1, E), lambda b: (0, 0)),
            pl.BlockSpec((1, S, E), lambda b: (b, 0, 0)),
            pl.BlockSpec((1, E), lambda b: (0, 0)),
            pl.BlockSpec((1, E), lambda b: (0, 0)),
        ],
        out_specs=pl.BlockSpec((1, S, E), lambda b: (b, 0, 0)),
        compiler_params=pltpu.CompilerParams(
            dimension_semantics=("parallel",)),
    )(pad, qkv, wo, bo.reshape(1, E), res, gamma.reshape(1, E),
      beta.reshape(1, E))


def cross_attention_block(q, kv, pad, wo, bo, res, gamma, beta, *, nheads):
    """Fused cross-attention + out-projection + residual + LayerNorm.
    q: (B, Sq, E) bf16, kv: (B, Sk, 2E) bf16, pad: (B, 1, Sk) int32."""
    B, Sq, E = q.shape
    Sk = kv.shape[1]
    scale = 1.0 / math.sqrt(E // nheads)
    return pl.pallas_call(
        functools.partial(_cross_attn_kernel, nheads=nheads, scale=scale),
        out_shape=jax.ShapeDtypeStruct((B, Sq, E), jnp.float32),
        grid=(B,),
        in_specs=[
            pl.BlockSpec((1, 1, Sk), lambda b: (b, 0, 0)),
            pl.BlockSpec((1, Sq, E), lambda b: (b, 0, 0)),
            pl.BlockSpec((1, Sk, 2 * E), lambda b: (b, 0, 0)),
            pl.BlockSpec((E, E), lambda b: (0, 0)),
            pl.BlockSpec((1, E), lambda b: (0, 0)),
            pl.BlockSpec((1, Sq, E), lambda b: (b, 0, 0)),
            pl.BlockSpec((1, E), lambda b: (0, 0)),
            pl.BlockSpec((1, E), lambda b: (0, 0)),
        ],
        out_specs=pl.BlockSpec((1, Sq, E), lambda b: (b, 0, 0)),
        compiler_params=pltpu.CompilerParams(
            dimension_semantics=("parallel",)),
    )(pad, q, kv, wo, bo.reshape(1, E), res, gamma.reshape(1, E),
      beta.reshape(1, E))


# ----------------------------- rotary ----------------------------------------

def _rotary_kernel(x_ref, xr_ref, cos_ref, sin_ref, o_ref):
    o_ref[0] = x_ref[0] * cos_ref[...] + xr_ref[0] * sin_ref[...]


def apply_rotary_pallas(x, x_rh, cos_e, sin_e):
    """x, x_rh: (B, S, E) f32; cos_e/sin_e: (S, E) reused across batch."""
    B, S, E = x.shape
    return pl.pallas_call(
        _rotary_kernel,
        out_shape=jax.ShapeDtypeStruct((B, S, E), jnp.float32),
        grid=(B,),
        in_specs=[
            pl.BlockSpec((1, S, E), lambda b: (b, 0, 0)),
            pl.BlockSpec((1, S, E), lambda b: (b, 0, 0)),
            pl.BlockSpec((S, E), lambda b: (0, 0)),
            pl.BlockSpec((S, E), lambda b: (0, 0)),
        ],
        out_specs=pl.BlockSpec((1, S, E), lambda b: (b, 0, 0)),
        compiler_params=pltpu.CompilerParams(
            dimension_semantics=("parallel",)),
    )(x, x_rh, cos_e, sin_e)


def rotary_tables(S, E, base=10000.0):
    # Faithful to the reference: emb = cat([sin(freqs), cos(freqs)]), then the
    # rotary uses cos(emb) and sin(emb).
    inv_freq = 1.0 / (base ** (jnp.arange(0, E, 2, dtype=jnp.float32) / E))
    t = jnp.arange(S, dtype=jnp.float32)
    freqs = jnp.einsum("i,j->ij", t, inv_freq)                    # (S, E/2)
    emb = jnp.concatenate([jnp.sin(freqs), jnp.cos(freqs)], -1)   # (S, E)
    return jnp.cos(emb), jnp.sin(emb)


# ----------------------------- model glue ------------------------------------

def encoder_layer(x, src_pad, p, num_heads):
    B, S, E = x.shape
    xf = x.reshape(B * S, E)
    a = p["self_attn"]
    qkv = linear(xf, a["qkv_w"], a["qkv_b"], out_dtype=jnp.bfloat16)
    x1 = self_attention_block(qkv.reshape(B, S, 3 * E), src_pad,
                              a["out_w"], a["out_b"], x,
                              p["ln1_w"], p["ln1_b"],
                              nheads=num_heads, causal=False)
    x1f = x1.reshape(B * S, E)
    h = linear(x1f, p["lin1_w"], p["lin1_b"], activation="gelu",
               out_dtype=jnp.bfloat16)
    x2 = linear_add_ln(h, p["lin2_w"], p["lin2_b"], x1f,
                       p["ln2_w"], p["ln2_b"])
    return x2.reshape(B, S, E)


def decoder_layer(y, mem, tgt_pad, src_pad, p, num_heads):
    B, St, E = y.shape
    Ss = mem.shape[1]
    yf = y.reshape(B * St, E)
    a = p["self_attn"]
    qkv = linear(yf, a["qkv_w"], a["qkv_b"], out_dtype=jnp.bfloat16)
    x1 = self_attention_block(qkv.reshape(B, St, 3 * E), tgt_pad,
                              a["out_w"], a["out_b"], y,
                              p["ln1_w"], p["ln1_b"],
                              nheads=num_heads, causal=True)
    c = p["cross_attn"]
    q = linear(x1.reshape(B * St, E), c["q_w"], c["q_b"],
               out_dtype=jnp.bfloat16)
    kv = linear(mem.reshape(B * Ss, E), c["kv_w"], c["kv_b"],
                out_dtype=jnp.bfloat16)
    x2 = cross_attention_block(q.reshape(B, St, E), kv.reshape(B, Ss, 2 * E),
                               src_pad, c["out_w"], c["out_b"], x1,
                               p["ln2_w"], p["ln2_b"], nheads=num_heads)
    x2f = x2.reshape(B * St, E)
    h = linear(x2f, p["lin1_w"], p["lin1_b"], activation="gelu",
               out_dtype=jnp.bfloat16)
    x3 = linear_add_ln(h, p["lin2_w"], p["lin2_b"], x2f,
                       p["ln3_w"], p["ln3_b"])
    return x3.reshape(B, St, E)


def transformer_forward(params, src, tgt_ids, *, num_heads):
    """Equivalent of Transformer_Model.forward(src, tgt_ids) in eval mode."""
    B, Ss = src.shape
    St = tgt_ids.shape[1]
    E = params["embed"].shape[1]

    src_pad = (src == 0).astype(jnp.int32).reshape(B, 1, Ss)   # pad_token_id==0
    tgt_pad = (tgt_ids == 0).astype(jnp.int32).reshape(B, 1, St)

    cos = params["rot_cos"]
    sin = params["rot_sin"]

    # encoder side
    # TODO(synk): embedding lookup is a data-dependent gather; done in XLA glue.
    src_emb = params["embed"][src]
    src_emb_rh = params["embed_rh"][src]      # rotate_half pre-applied to table
    x = apply_rotary_pallas(src_emb, src_emb_rh, cos[:Ss], sin[:Ss])
    for p in params["enc"]:
        x = encoder_layer(x, src_pad, p, num_heads)
    memory = x

    # decoder side
    tgt_emb = params["embed"][tgt_ids]
    tgt_emb_rh = params["embed_rh"][tgt_ids]
    y = apply_rotary_pallas(tgt_emb, tgt_emb_rh, cos[:St], sin[:St])
    for p in params["dec"]:
        y = decoder_layer(y, memory, tgt_pad, src_pad, p, num_heads)

    V = params["fc_b"].shape[0]
    logits = linear(y.reshape(B * St, E), params["fc_w"], params["fc_b"])
    return logits.reshape(B, St, V)


# ----------------------------- parameters ------------------------------------

def init_params(key, vocab, E, num_layers):
    """Parameters in torch layout: Linear weights are (out_features, in_features)."""
    keys = iter(jax.random.split(key, 512))

    def dense(o, i):
        return 0.02 * jax.random.normal(next(keys), (o, i), jnp.float32)

    def attn():
        return dict(in_w=dense(3 * E, E), in_b=jnp.zeros((3 * E,), jnp.float32),
                    out_w=dense(E, E), out_b=jnp.zeros((E,), jnp.float32))

    def enc():
        return dict(self_attn=attn(),
                    lin1_w=dense(E, E), lin1_b=jnp.zeros((E,), jnp.float32),
                    lin2_w=dense(E, E), lin2_b=jnp.zeros((E,), jnp.float32),
                    ln1_w=jnp.ones((E,), jnp.float32),
                    ln1_b=jnp.zeros((E,), jnp.float32),
                    ln2_w=jnp.ones((E,), jnp.float32),
                    ln2_b=jnp.zeros((E,), jnp.float32))

    def dec():
        d = enc()
        d["cross_attn"] = attn()
        d["ln3_w"] = jnp.ones((E,), jnp.float32)
        d["ln3_b"] = jnp.zeros((E,), jnp.float32)
        return d

    return dict(embed=0.02 * jax.random.normal(next(keys), (vocab, E),
                                               jnp.float32),
                enc=[enc() for _ in range(num_layers)],
                dec=[dec() for _ in range(num_layers)],
                fc_w=dense(vocab, E),
                fc_b=jnp.zeros((vocab,), jnp.float32))


def prepare_params(raw, max_seq):
    """One-time conversion: transpose torch-layout weights to (in, out), fuse
    QKV / KV projections, cast MXU weights to bf16, precompute rotate_half of
    the embedding table and the rotary cos/sin tables."""
    wdt = jnp.bfloat16

    def prep_self(a):
        return dict(qkv_w=a["in_w"].T.astype(wdt), qkv_b=a["in_b"],
                    out_w=a["out_w"].T.astype(wdt), out_b=a["out_b"])

    def prep_cross(a):
        wq, wk, wv = jnp.split(a["in_w"], 3, axis=0)
        bq, bk, bv = jnp.split(a["in_b"], 3)
        return dict(q_w=wq.T.astype(wdt), q_b=bq,
                    kv_w=jnp.concatenate([wk.T, wv.T], axis=1).astype(wdt),
                    kv_b=jnp.concatenate([bk, bv]),
                    out_w=a["out_w"].T.astype(wdt), out_b=a["out_b"])

    def prep_enc(p):
        return dict(self_attn=prep_self(p["self_attn"]),
                    lin1_w=p["lin1_w"].T.astype(wdt), lin1_b=p["lin1_b"],
                    lin2_w=p["lin2_w"].T.astype(wdt), lin2_b=p["lin2_b"],
                    ln1_w=p["ln1_w"], ln1_b=p["ln1_b"],
                    ln2_w=p["ln2_w"], ln2_b=p["ln2_b"])

    def prep_dec(p):
        d = prep_enc(p)
        d["cross_attn"] = prep_cross(p["cross_attn"])
        d["ln3_w"] = p["ln3_w"]
        d["ln3_b"] = p["ln3_b"]
        return d

    emb = raw["embed"]
    E = emb.shape[1]
    # rotate_half(x)[..., :E/2] = -x[..., 1::2]; [..., E/2:] = x[..., 0::2]
    emb_rh = jnp.concatenate([-emb[:, 1::2], emb[:, 0::2]], axis=-1)
    cos, sin = rotary_tables(max_seq, E)

    return dict(embed=emb, embed_rh=emb_rh, rot_cos=cos, rot_sin=sin,
                enc=[prep_enc(p) for p in raw["enc"]],
                dec=[prep_dec(p) for p in raw["dec"]],
                fc_w=raw["fc_w"].T.astype(wdt), fc_b=raw["fc_b"])


# ----------------------------- main -------------------------------------------

if __name__ == "__main__":
    vocab_size = 64
    embedding_dim = 32
    num_layers = 2
    num_heads = 4
    seq_length = 8
    batch = 2

    key = jax.random.PRNGKey(0)
    kparam, ksrc, ktgt = jax.random.split(key, 3)
    params = prepare_params(
        init_params(kparam, vocab_size, embedding_dim, num_layers),
        max_seq=seq_length)

    src = jax.random.randint(ksrc, (batch, seq_length), 0, vocab_size,
                             dtype=jnp.int32)
    tgt_ids = jax.random.randint(ktgt, (batch, seq_length), 0, vocab_size,
                                 dtype=jnp.int32)

    fwd = jax.jit(functools.partial(transformer_forward, num_heads=num_heads))
    logits = fwd(params, src, tgt_ids)
    jax.block_until_ready(logits)
    assert logits.shape == (batch, seq_length, vocab_size)
    print("KERNEL_OK")
</pallas_src>

<mosaic_0001>
module attributes {stable_mosaic.version = 11 : i64} {
  func.func @_self_attn_kernel(%arg0: i32, %arg1: memref<1x1x8xi32, #tpu.memory_space<vmem>>, %arg2: memref<1x8x96xbf16, #tpu.memory_space<vmem>>, %arg3: memref<32x32xbf16, #tpu.memory_space<vmem>>, %arg4: memref<1x32xf32, #tpu.memory_space<vmem>>, %arg5: memref<1x8x32xf32, #tpu.memory_space<vmem>>, %arg6: memref<1x32xf32, #tpu.memory_space<vmem>>, %arg7: memref<1x32xf32, #tpu.memory_space<vmem>>, %arg8: memref<1x8x32xf32, #tpu.memory_space<vmem>>) attributes {dimension_semantics = [#tpu.dimension_semantics<parallel>], iteration_bounds = array<i64: 2>, scalar_prefetch = 0 : i64, scratch_operands = 0 : i64, tpu.core_type = #tpu.core_type<tc>, window_params = [{transform_indices = @transform_0, window_bounds = array<i64: 1, 1, 8>}, {transform_indices = @transform_1, window_bounds = array<i64: 1, 8, 96>}, {pipeline_mode = #tpu.pipeline_mode<synchronous>, transform_indices = @transform_2, window_bounds = array<i64: 32, 32>}, {pipeline_mode = #tpu.pipeline_mode<synchronous>, transform_indices = @transform_3, window_bounds = array<i64: 1, 32>}, {transform_indices = @transform_4, window_bounds = array<i64: 1, 8, 32>}, {pipeline_mode = #tpu.pipeline_mode<synchronous>, transform_indices = @transform_5, window_bounds = array<i64: 1, 32>}, {pipeline_mode = #tpu.pipeline_mode<synchronous>, transform_indices = @transform_6, window_bounds = array<i64: 1, 32>}, {transform_indices = @transform_7, window_bounds = array<i64: 1, 8, 32>}]} {
    %c0 = arith.constant 0 : index
    %c0_0 = arith.constant 0 : index
    %c0_1 = arith.constant 0 : index
    %0 = vector.load %arg2[%c0, %c0_0, %c0_1] : memref<1x8x96xbf16, #tpu.memory_space<vmem>>, vector<1x8x96xbf16>
    %1 = vector.shape_cast %0 : vector<1x8x96xbf16> to vector<8x96xbf16>
    %c0_2 = arith.constant 0 : index
    %c0_3 = arith.constant 0 : index
    %c0_4 = arith.constant 0 : index
    %2 = vector.load %arg1[%c0_2, %c0_3, %c0_4] : memref<1x1x8xi32, #tpu.memory_space<vmem>>, vector<1x1x8xi32>
    %3 = vector.shape_cast %2 : vector<1x1x8xi32> to vector<1x8xi32>
    %c0_i32 = arith.constant 0 : i32
    %4 = vector.broadcast %c0_i32 : i32 to vector<1x8xi32>
    %5 = arith.cmpi ne, %3, %4 : vector<1x8xi32>
    %cst = arith.constant -1.000000e+09 : f32
    %cst_5 = arith.constant 0.000000e+00 : f32
    %6 = vector.broadcast %cst : f32 to vector<1x8xf32>
    %7 = vector.broadcast %cst_5 : f32 to vector<1x8xf32>
    %8 = arith.select %5, %6, %7 : vector<1x8xi1>, vector<1x8xf32>
    %9 = vector.extract_strided_slice %1 {offsets = [0, 0], sizes = [8, 32], strides = [1, 1]} : vector<8x96xbf16> to vector<8x32xbf16>
    %10 = vector.extract_strided_slice %1 {offsets = [0, 32], sizes = [8, 32], strides = [1, 1]} : vector<8x96xbf16> to vector<8x32xbf16>
    %11 = vector.extract_strided_slice %1 {offsets = [0, 64], sizes = [8, 32], strides = [1, 1]} : vector<8x96xbf16> to vector<8x32xbf16>
    %12 = vector.extract_strided_slice %9 {offsets = [0, 0], sizes = [8, 8], strides = [1, 1]} : vector<8x32xbf16> to vector<8x8xbf16>
    %13 = vector.extract_strided_slice %10 {offsets = [0, 0], sizes = [8, 8], strides = [1, 1]} : vector<8x32xbf16> to vector<8x8xbf16>
    %14 = vector.extract_strided_slice %11 {offsets = [0, 0], sizes = [8, 8], strides = [1, 1]} : vector<8x32xbf16> to vector<8x8xbf16>
    %cst_6 = arith.constant dense<0.000000e+00> : vector<8x8xf32>
    %15 = tpu.matmul %12, %13, %cst_6 {dimension_numbers = #tpu.dot_dimension_numbers<[1], [1], [0], [0], [0, 0, 1, 0], [], []>} : vector<8x8xbf16>, vector<8x8xbf16>, vector<8x8xf32> -> vector<8x8xf32>
    %cst_7 = arith.constant 0.353553385 : f32
    %16 = vector.broadcast %cst_7 : f32 to vector<8x8xf32>
    %17 = arith.mulf %15, %16 : vector<8x8xf32>
    %18 = vector.broadcast %8 : vector<1x8xf32> to vector<8x8xf32>
    %19 = arith.addf %17, %18 : vector<8x8xf32>
    %cst_8 = arith.constant dense<0xFF800000> : vector<8xf32>
    %20 = vector.multi_reduction <maximumf>, %19, %cst_8 [1] : vector<8x8xf32> to vector<8xf32>
    %21 = vector.shape_cast %20 : vector<8xf32> to vector<8x1xf32>
    %22 = vector.broadcast %21 : vector<8x1xf32> to vector<8x8xf32>
    %23 = arith.subf %19, %22 : vector<8x8xf32>
    %24 = math.exp %23 : vector<8x8xf32>
    %cst_9 = arith.constant dense<0.000000e+00> : vector<8xf32>
    %25 = vector.multi_reduction <add>, %24, %cst_9 [1] : vector<8x8xf32> to vector<8xf32>
    %26 = vector.shape_cast %25 : vector<8xf32> to vector<8x1xf32>
    %27 = vector.broadcast %26 : vector<8x1xf32> to vector<8x8xf32>
    %28 = arith.divf %24, %27 : vector<8x8xf32>
    %29 = arith.truncf %28 : vector<8x8xf32> to vector<8x8xbf16>
    %cst_10 = arith.constant dense<0.000000e+00> : vector<8x8xf32>
    %30 = tpu.matmul %29, %14, %cst_10 {dimension_numbers = #tpu.dot_dimension_numbers<[1], [0], [0], [1], [0, 0, 1, 1], [], []>} : vector<8x8xbf16>, vector<8x8xbf16>, vector<8x8xf32> -> vector<8x8xf32>
    %31 = vector.extract_strided_slice %9 {offsets = [0, 8], sizes = [8, 8], strides = [1, 1]} : vector<8x32xbf16> to vector<8x8xbf16>
    %32 = vector.extract_strided_slice %10 {offsets = [0, 8], sizes = [8, 8], strides = [1, 1]} : vector<8x32xbf16> to vector<8x8xbf16>
    %33 = vector.extract_strided_slice %11 {offsets = [0, 8], sizes = [8, 8], strides = [1, 1]} : vector<8x32xbf16> to vector<8x8xbf16>
    %cst_11 = arith.constant dense<0.000000e+00> : vector<8x8xf32>
    %34 = tpu.matmul %31, %32, %cst_11 {dimension_numbers = #tpu.dot_dimension_numbers<[1], [1], [0], [0], [0, 0, 1, 0], [], []>} : vector<8x8xbf16>, vector<8x8xbf16>, vector<8x8xf32> -> vector<8x8xf32>
    %cst_12 = arith.constant 0.353553385 : f32
    %35 = vector.broadcast %cst_12 : f32 to vector<8x8xf32>
    %36 = arith.mulf %34, %35 : vector<8x8xf32>
    %37 = vector.broadcast %8 : vector<1x8xf32> to vector<8x8xf32>
    %38 = arith.addf %36, %37 : vector<8x8xf32>
    %cst_13 = arith.constant dense<0xFF800000> : vector<8xf32>
    %39 = vector.multi_reduction <maximumf>, %38, %cst_13 [1] : vector<8x8xf32> to vector<8xf32>
    %40 = vector.shape_cast %39 : vector<8xf32> to vector<8x1xf32>
    %41 = vector.broadcast %40 : vector<8x1xf32> to vector<8x8xf32>
    %42 = arith.subf %38, %41 : vector<8x8xf32>
    %43 = math.exp %42 : vector<8x8xf32>
    %cst_14 = arith.constant dense<0.000000e+00> : vector<8xf32>
    %44 = vector.multi_reduction <add>, %43, %cst_14 [1] : vector<8x8xf32> to vector<8xf32>
    %45 = vector.shape_cast %44 : vector<8xf32> to vector<8x1xf32>
    %46 = vector.broadcast %45 : vector<8x1xf32> to vector<8x8xf32>
    %47 = arith.divf %43, %46 : vector<8x8xf32>
    %48 = arith.truncf %47 : vector<8x8xf32> to vector<8x8xbf16>
    %cst_15 = arith.constant dense<0.000000e+00> : vector<8x8xf32>
    %49 = tpu.matmul %48, %33, %cst_15 {dimension_numbers = #tpu.dot_dimension_numbers<[1], [0], [0], [1], [0, 0, 1, 1], [], []>} : vector<8x8xbf16>, vector<8x8xbf16>, vector<8x8xf32> -> vector<8x8xf32>
    %50 = vector.extract_strided_slice %9 {offsets = [0, 16], sizes = [8, 8], strides = [1, 1]} : vector<8x32xbf16> to vector<8x8xbf16>
    %51 = vector.extract_strided_slice %10 {offsets = [0, 16], sizes = [8, 8], strides = [1, 1]} : vector<8x32xbf16> to vector<8x8xbf16>
    %52 = vector.extract_strided_slice %11 {offsets = [0, 16], sizes = [8, 8], strides = [1, 1]} : vector<8x32xbf16> to vector<8x8xbf16>
    %cst_16 = arith.constant dense<0.000000e+00> : vector<8x8xf32>
    %53 = tpu.matmul %50, %51, %cst_16 {dimension_numbers = #tpu.dot_dimension_numbers<[1], [1], [0], [0], [0, 0, 1, 0], [], []>} : vector<8x8xbf16>, vector<8x8xbf16>, vector<8x8xf32> -> vector<8x8xf32>
    %cst_17 = arith.constant 0.353553385 : f32
    %54 = vector.broadcast %cst_17 : f32 to vector<8x8xf32>
    %55 = arith.mulf %53, %54 : vector<8x8xf32>
    %56 = vector.broadcast %8 : vector<1x8xf32> to vector<8x8xf32>
    %57 = arith.addf %55, %56 : vector<8x8xf32>
    %cst_18 = arith.constant dense<0xFF800000> : vector<8xf32>
    %58 = vector.multi_reduction <maximumf>, %57, %cst_18 [1] : vector<8x8xf32> to vector<8xf32>
    %59 = vector.shape_cast %58 : vector<8xf32> to vector<8x1xf32>
    %60 = vector.broadcast %59 : vector<8x1xf32> to vector<8x8xf32>
    %61 = arith.subf %57, %60 : vector<8x8xf32>
    %62 = math.exp %61 : vector<8x8xf32>
    %cst_19 = arith.constant dense<0.000000e+00> : vector<8xf32>
    %63 = vector.multi_reduction <add>, %62, %cst_19 [1] : vector<8x8xf32> to vector<8xf32>
    %64 = vector.shape_cast %63 : vector<8xf32> to vector<8x1xf32>
    %65 = vector.broadcast %64 : vector<8x1xf32> to vector<8x8xf32>
    %66 = arith.divf %62, %65 : vector<8x8xf32>
    %67 = arith.truncf %66 : vector<8x8xf32> to vector<8x8xbf16>
    %cst_20 = arith.constant dense<0.000000e+00> : vector<8x8xf32>
    %68 = tpu.matmul %67, %52, %cst_20 {dimension_numbers = #tpu.dot_dimension_numbers<[1], [0], [0], [1], [0, 0, 1, 1], [], []>} : vector<8x8xbf16>, vector<8x8xbf16>, vector<8x8xf32> -> vector<8x8xf32>
    %69 = vector.extract_strided_slice %9 {offsets = [0, 24], sizes = [8, 8], strides = [1, 1]} : vector<8x32xbf16> to vector<8x8xbf16>
    %70 = vector.extract_strided_slice %10 {offsets = [0, 24], sizes = [8, 8], strides = [1, 1]} : vector<8x32xbf16> to vector<8x8xbf16>
    %71 = vector.extract_strided_slice %11 {offsets = [0, 24], sizes = [8, 8], strides = [1, 1]} : vector<8x32xbf16> to vector<8x8xbf16>
    %cst_21 = arith.constant dense<0.000000e+00> : vector<8x8xf32>
    %72 = tpu.matmul %69, %70, %cst_21 {dimension_numbers = #tpu.dot_dimension_numbers<[1], [1], [0], [0], [0, 0, 1, 0], [], []>} : vector<8x8xbf16>, vector<8x8xbf16>, vector<8x8xf32> -> vector<8x8xf32>
    %cst_22 = arith.constant 0.353553385 : f32
    %73 = vector.broadcast %cst_22 : f32 to vector<8x8xf32>
    %74 = arith.mulf %72, %73 : vector<8x8xf32>
    %75 = vector.broadcast %8 : vector<1x8xf32> to vector<8x8xf32>
    %76 = arith.addf %74, %75 : vector<8x8xf32>
    %cst_23 = arith.constant dense<0xFF800000> : vector<8xf32>
    %77 = vector.multi_reduction <maximumf>, %76, %cst_23 [1] : vector<8x8xf32> to vector<8xf32>
    %78 = vector.shape_cast %77 : vector<8xf32> to vector<8x1xf32>
    %79 = vector.broadcast %78 : vector<8x1xf32> to vector<8x8xf32>
    %80 = arith.subf %76, %79 : vector<8x8xf32>
    %81 = math.exp %80 : vector<8x8xf32>
    %cst_24 = arith.constant dense<0.000000e+00> : vector<8xf32>
    %82 = vector.multi_reduction <add>, %81, %cst_24 [1] : vector<8x8xf32> to vector<8xf32>
    %83 = vector.shape_cast %82 : vector<8xf32> to vector<8x1xf32>
    %84 = vector.broadcast %83 : vector<8x1xf32> to vector<8x8xf32>
    %85 = arith.divf %81, %84 : vector<8x8xf32>
    %86 = arith.truncf %85 : vector<8x8xf32> to vector<8x8xbf16>
    %cst_25 = arith.constant dense<0.000000e+00> : vector<8x8xf32>
    %87 = tpu.matmul %86, %71, %cst_25 {dimension_numbers = #tpu.dot_dimension_numbers<[1], [0], [0], [1], [0, 0, 1, 1], [], []>} : vector<8x8xbf16>, vector<8x8xbf16>, vector<8x8xf32> -> vector<8x8xf32>
    %88 = tpu.concatenate %30, %49, %68, %87 in 1 : vector<8x8xf32>, vector<8x8xf32>, vector<8x8xf32>, vector<8x8xf32> -> vector<8x32xf32>
    %89 = arith.truncf %88 : vector<8x32xf32> to vector<8x32xbf16>
    %c0_26 = arith.constant 0 : index
    %c0_27 = arith.constant 0 : index
    %90 = vector.load %arg3[%c0_26, %c0_27] : memref<32x32xbf16, #tpu.memory_space<vmem>>, vector<32x32xbf16>
    %cst_28 = arith.constant dense<0.000000e+00> : vector<8x32xf32>
    %91 = tpu.matmul %89, %90, %cst_28 {dimension_numbers = #tpu.dot_dimension_numbers<[1], [0], [0], [1], [0, 0, 1, 1], [], []>} : vector<8x32xbf16>, vector<32x32xbf16>, vector<8x32xf32> -> vector<8x32xf32>
    %c0_29 = arith.constant 0 : index
    %c0_30 = arith.constant 0 : index
    %92 = vector.load %arg4[%c0_29, %c0_30] : memref<1x32xf32, #tpu.memory_space<vmem>>, vector<1x32xf32>
    %93 = vector.broadcast %92 : vector<1x32xf32> to vector<8x32xf32>
    %94 = arith.addf %91, %93 : vector<8x32xf32>
    %c0_31 = arith.constant 0 : index
    %c0_32 = arith.constant 0 : index
    %c0_33 = arith.constant 0 : index
    %95 = vector.load %arg5[%c0_31, %c0_32, %c0_33] : memref<1x8x32xf32, #tpu.memory_space<vmem>>, vector<1x8x32xf32>
    %96 = vector.shape_cast %95 : vector<1x8x32xf32> to vector<8x32xf32>
    %97 = arith.addf %94, %96 : vector<8x32xf32>
    %cst_34 = arith.constant dense<0.000000e+00> : vector<8xf32>
    %98 = vector.multi_reduction <add>, %97, %cst_34 [1] : vector<8x32xf32> to vector<8xf32>
    %99 = vector.shape_cast %98 : vector<8xf32> to vector<8x1xf32>
    %cst_35 = arith.constant 3.200000e+01 : f32
    %100 = vector.broadcast %cst_35 : f32 to vector<8x1xf32>
    %101 = arith.divf %99, %100 : vector<8x1xf32>
    %102 = vector.broadcast %101 : vector<8x1xf32> to vector<8x32xf32>
    %103 = arith.subf %97, %102 : vector<8x32xf32>
    %104 = arith.mulf %103, %103 : vector<8x32xf32>
    %cst_36 = arith.constant dense<0.000000e+00> : vector<8xf32>
    %105 = vector.multi_reduction <add>, %104, %cst_36 [1] : vector<8x32xf32> to vector<8xf32>
    %106 = vector.shape_cast %105 : vector<8xf32> to vector<8x1xf32>
    %cst_37 = arith.constant 3.200000e+01 : f32
    %107 = vector.broadcast %cst_37 : f32 to vector<8x1xf32>
    %108 = arith.divf %106, %107 : vector<8x1xf32>
    %109 = vector.broadcast %101 : vector<8x1xf32> to vector<8x32xf32>
    %110 = arith.subf %97, %109 : vector<8x32xf32>
    %cst_38 = arith.constant 9.99999974E-6 : f32
    %111 = vector.broadcast %cst_38 : f32 to vector<8x1xf32>
    %112 = arith.addf %108, %111 : vector<8x1xf32>
    %113 = math.rsqrt %112 : vector<8x1xf32>
    %114 = vector.broadcast %113 : vector<8x1xf32> to vector<8x32xf32>
    %115 = arith.mulf %110, %114 : vector<8x32xf32>
    %c0_39 = arith.constant 0 : index
    %c0_40 = arith.constant 0 : index
    %116 = vector.load %arg6[%c0_39, %c0_40] : memref<1x32xf32, #tpu.memory_space<vmem>>, vector<1x32xf32>
    %117 = vector.broadcast %116 : vector<1x32xf32> to vector<8x32xf32>
    %118 = arith.mulf %115, %117 : vector<8x32xf32>
    %c0_41 = arith.constant 0 : index
    %c0_42 = arith.constant 0 : index
    %119 = vector.load %arg7[%c0_41, %c0_42] : memref<1x32xf32, #tpu.memory_space<vmem>>, vector<1x32xf32>
    %120 = vector.broadcast %119 : vector<1x32xf32> to vector<8x32xf32>
    %121 = arith.addf %118, %120 : vector<8x32xf32>
    %c0_43 = arith.constant 0 : index
    %c0_44 = arith.constant 0 : index
    %c0_45 = arith.constant 0 : index
    %122 = vector.load %arg8[%c0_43, %c0_44, %c0_45] : memref<1x8x32xf32, #tpu.memory_space<vmem>>, vector<1x8x32xf32>
    %123 = vector.shape_cast %122 : vector<1x8x32xf32> to vector<8x32xf32>
    %124 = vector.shape_cast %121 : vector<8x32xf32> to vector<1x8x32xf32>
    tpu.vector_store %arg8[%c0_43, %c0_44, %c0_45], %124 {strides = array<i32>} : memref<1x8x32xf32, #tpu.memory_space<vmem>>, vector<1x8x32xf32>,
    return
  }
  func.func @transform_0(%arg0: i32) -> (i32, i32, i32) {
    %c0_i32 = arith.constant 0 : i32
    %c0_i32_0 = arith.constant 0 : i32
    %c0_i32_1 = arith.constant 0 : i32
    return %arg0, %c0_i32, %c0_i32_0 : i32, i32, i32
  }
  func.func @transform_1(%arg0: i32) -> (i32, i32, i32) {
    %c0_i32 = arith.constant 0 : i32
    %c0_i32_0 = arith.constant 0 : i32
    %c0_i32_1 = arith.constant 0 : i32
    return %arg0, %c0_i32, %c0_i32_0 : i32, i32, i32
  }
  func.func @transform_2(%arg0: i32) -> (i32, i32) {
    %c0_i32 = arith.constant 0 : i32
    %c0_i32_0 = arith.constant 0 : i32
    %c0_i32_1 = arith.constant 0 : i32
    return %c0_i32, %c0_i32_0 : i32, i32
  }
  func.func @transform_3(%arg0: i32) -> (i32, i32) {
    %c0_i32 = arith.constant 0 : i32
    %c0_i32_0 = arith.constant 0 : i32
    %c0_i32_1 = arith.constant 0 : i32
    return %c0_i32, %c0_i32_0 : i32, i32
  }
  func.func @transform_4(%arg0: i32) -> (i32, i32, i32) {
    %c0_i32 = arith.constant 0 : i32
    %c0_i32_0 = arith.constant 0 : i32
    %c0_i32_1 = arith.constant 0 : i32
    return %arg0, %c0_i32, %c0_i32_0 : i32, i32, i32
  }
  func.func @transform_5(%arg0: i32) -> (i32, i32) {
    %c0_i32 = arith.constant 0 : i32
    %c0_i32_0 = arith.constant 0 : i32
    %c0_i32_1 = arith.constant 0 : i32
    return %c0_i32, %c0_i32_0 : i32, i32
  }
  func.func @transform_6(%arg0: i32) -> (i32, i32) {
    %c0_i32 = arith.constant 0 : i32
    %c0_i32_0 = arith.constant 0 : i32
    %c0_i32_1 = arith.constant 0 : i32
    return %c0_i32, %c0_i32_0 : i32, i32
  }
  func.func @transform_7(%arg0: i32) -> (i32, i32, i32) {
    %c0_i32 = arith.constant 0 : i32
    %c0_i32_0 = arith.constant 0 : i32
    %c0_i32_1 = arith.constant 0 : i32
    return %arg0, %c0_i32, %c0_i32_0 : i32, i32, i32
  }
}

module attributes {stable_mosaic.version = 11 : i64} {
  func.func @_rotary_kernel(%arg0: i32, %arg1: memref<1x8x32xf32, #tpu.memory_space<vmem>>, %arg2: memref<1x8x32xf32, #tpu.memory_space<vmem>>, %arg3: memref<8x32xf32, #tpu.memory_space<vmem>>, %arg4: memref<8x32xf32, #tpu.memory_space<vmem>>, %arg5: memref<1x8x32xf32, #tpu.memory_space<vmem>>) attributes {dimension_semantics = [#tpu.dimension_semantics<parallel>], iteration_bounds = array<i64: 2>, scalar_prefetch = 0 : i64, scratch_operands = 0 : i64, tpu.core_type = #tpu.core_type<tc>, window_params = [{transform_indices = @transform_0, window_bounds = array<i64: 1, 8, 32>}, {transform_indices = @transform_1, window_bounds = array<i64: 1, 8, 32>}, {pipeline_mode = #tpu.pipeline_mode<synchronous>, transform_indices = @transform_2, window_bounds = array<i64: 8, 32>}, {pipeline_mode = #tpu.pipeline_mode<synchronous>, transform_indices = @transform_3, window_bounds = array<i64: 8, 32>}, {transform_indices = @transform_4, window_bounds = array<i64: 1, 8, 32>}]} {
    %c0 = arith.constant 0 : index
    %c0_0 = arith.constant 0 : index
    %c0_1 = arith.constant 0 : index
    %0 = vector.load %arg1[%c0, %c0_0, %c0_1] : memref<1x8x32xf32, #tpu.memory_space<vmem>>, vector<1x8x32xf32>
    %1 = vector.shape_cast %0 : vector<1x8x32xf32> to vector<8x32xf32>
    %c0_2 = arith.constant 0 : index
    %c0_3 = arith.constant 0 : index
    %2 = vector.load %arg3[%c0_2, %c0_3] : memref<8x32xf32, #tpu.memory_space<vmem>>, vector<8x32xf32>
    %3 = arith.mulf %1, %2 : vector<8x32xf32>
    %c0_4 = arith.constant 0 : index
    %c0_5 = arith.constant 0 : index
    %c0_6 = arith.constant 0 : index
    %4 = vector.load %arg2[%c0_4, %c0_5, %c0_6] : memref<1x8x32xf32, #tpu.memory_space<vmem>>, vector<1x8x32xf32>
    %5 = vector.shape_cast %4 : vector<1x8x32xf32> to vector<8x32xf32>
    %c0_7 = arith.constant 0 : index
    %c0_8 = arith.constant 0 : index
    %6 = vector.load %arg4[%c0_7, %c0_8] : memref<8x32xf32, #tpu.memory_space<vmem>>, vector<8x32xf32>
    %7 = arith.mulf %5, %6 : vector<8x32xf32>
    %8 = arith.addf %3, %7 : vector<8x32xf32>
    %c0_9 = arith.constant 0 : index
    %c0_10 = arith.constant 0 : index
    %c0_11 = arith.constant 0 : index
    %9 = vector.load %arg5[%c0_9, %c0_10, %c0_11] : memref<1x8x32xf32, #tpu.memory_space<vmem>>, vector<1x8x32xf32>
    %10 = vector.shape_cast %9 : vector<1x8x32xf32> to vector<8x32xf32>
    %11 = vector.shape_cast %8 : vector<8x32xf32> to vector<1x8x32xf32>
    tpu.vector_store %arg5[%c0_9, %c0_10, %c0_11], %11 {strides = array<i32>} : memref<1x8x32xf32, #tpu.memory_space<vmem>>, vector<1x8x32xf32>,
    return
  }
  func.func @transform_0(%arg0: i32) -> (i32, i32, i32) {
    %c0_i32 = arith.constant 0 : i32
    %c0_i32_0 = arith.constant 0 : i32
    %c0_i32_1 = arith.constant 0 : i32
    return %arg0, %c0_i32, %c0_i32_0 : i32, i32, i32
  }
  func.func @transform_1(%arg0: i32) -> (i32, i32, i32) {
    %c0_i32 = arith.constant 0 : i32
    %c0_i32_0 = arith.constant 0 : i32
    %c0_i32_1 = arith.constant 0 : i32
    return %arg0, %c0_i32, %c0_i32_0 : i32, i32, i32
  }
  func.func @transform_2(%arg0: i32) -> (i32, i32) {
    %c0_i32 = arith.constant 0 : i32
    %c0_i32_0 = arith.constant 0 : i32
    %c0_i32_1 = arith.constant 0 : i32
    return %c0_i32, %c0_i32_0 : i32, i32
  }
  func.func @transform_3(%arg0: i32) -> (i32, i32) {
    %c0_i32 = arith.constant 0 : i32
    %c0_i32_0 = arith.constant 0 : i32
    %c0_i32_1 = arith.constant 0 : i32
    return %c0_i32, %c0_i32_0 : i32, i32
  }
  func.func @transform_4(%arg0: i32) -> (i32, i32, i32) {
    %c0_i32 = arith.constant 0 : i32
    %c0_i32_0 = arith.constant 0 : i32
    %c0_i32_1 = arith.constant 0 : i32
    return %arg0, %c0_i32, %c0_i32_0 : i32, i32, i32
  }
}

module attributes {stable_mosaic.version = 11 : i64} {
  func.func @_matmul_kernel(%arg0: i32, %arg1: i32, %arg2: i32, %arg3: memref<16x32xf32, #tpu.memory_space<vmem>>, %arg4: memref<32x96xbf16, #tpu.memory_space<vmem>>, %arg5: memref<1x96xf32, #tpu.memory_space<vmem>>, %arg6: memref<16x96xbf16, #tpu.memory_space<vmem>>, %arg7: memref<16x96xf32, #tpu.memory_space<vmem>>) attributes {dimension_semantics = [#tpu.dimension_semantics<parallel>, #tpu.dimension_semantics<parallel>, #tpu.dimension_semantics<arbitrary>], iteration_bounds = array<i64: 1, 1, 1>, scalar_prefetch = 0 : i64, scratch_operands = 1 : i64, tpu.core_type = #tpu.core_type<tc>, window_params = [{transform_indices = @transform_0, window_bounds = array<i64: 16, 32>}, {transform_indices = @transform_1, window_bounds = array<i64: 32, 96>}, {transform_indices = @transform_2, window_bounds = array<i64: 1, 96>}, {transform_indices = @transform_3, window_bounds = array<i64: 16, 96>}]} {
    %c0_i32 = arith.constant 0 : i32
    %0 = arith.cmpi eq, %arg2, %c0_i32 : i32
    %1 = arith.extui %0 : i1 to i32
    %c0_i32_0 = arith.constant 0 : i32
    %2 = arith.cmpi ne, %1, %c0_i32_0 : i32
    scf.if %2 {
      %cst_10 = arith.constant 0.000000e+00 : f32
      %13 = vector.broadcast %cst_10 : f32 to vector<16x96xf32>
      %c0_11 = arith.constant 0 : index
      %c0_12 = arith.constant 0 : index
      %14 = vector.load %arg7[%c0_11, %c0_12] : memref<16x96xf32, #tpu.memory_space<vmem>>, vector<16x96xf32>
      tpu.vector_store %arg7[%c0_11, %c0_12], %13 {strides = array<i32>} : memref<16x96xf32, #tpu.memory_space<vmem>>, vector<16x96xf32>,
    } else {
    }
    %c0 = arith.constant 0 : index
    %c0_1 = arith.constant 0 : index
    %3 = vector.load %arg3[%c0, %c0_1] : memref<16x32xf32, #tpu.memory_space<vmem>>, vector<16x32xf32>
    %4 = arith.truncf %3 : vector<16x32xf32> to vector<16x32xbf16>
    %c0_2 = arith.constant 0 : index
    %c0_3 = arith.constant 0 : index
    %5 = vector.load %arg7[%c0_2, %c0_3] : memref<16x96xf32, #tpu.memory_space<vmem>>, vector<16x96xf32>
    %c0_4 = arith.constant 0 : index
    %c0_5 = arith.constant 0 : index
    %6 = vector.load %arg4[%c0_4, %c0_5] : memref<32x96xbf16, #tpu.memory_space<vmem>>, vector<32x96xbf16>
    %cst = arith.constant dense<0.000000e+00> : vector<16x96xf32>
    %7 = tpu.matmul %4, %6, %cst {dimension_numbers = #tpu.dot_dimension_numbers<[1], [0], [0], [1], [0, 0, 1, 1], [], []>} : vector<16x32xbf16>, vector<32x96xbf16>, vector<16x96xf32> -> vector<16x96xf32>
    %8 = arith.addf %5, %7 : vector<16x96xf32>
    %c0_6 = arith.constant 0 : index
    %c0_7 = arith.constant 0 : index
    %9 = vector.load %arg7[%c0_6, %c0_7] : memref<16x96xf32, #tpu.memory_space<vmem>>, vector<16x96xf32>
    tpu.vector_store %arg7[%c0_6, %c0_7], %8 {strides = array<i32>} : memref<16x96xf32, #tpu.memory_space<vmem>>, vector<16x96xf32>,
    %c0_i32_8 = arith.constant 0 : i32
    %10 = arith.cmpi eq, %arg2, %c0_i32_8 : i32
    %11 = arith.extui %10 : i1 to i32
    %c0_i32_9 = arith.constant 0 : i32
    %12 = arith.cmpi ne, %11, %c0_i32_9 : i32
    scf.if %12 {
      %c0_10 = arith.constant 0 : index
      %c0_11 = arith.constant 0 : index
      %13 = vector.load %arg7[%c0_10, %c0_11] : memref<16x96xf32, #tpu.memory_space<vmem>>, vector<16x96xf32>
      %c0_12 = arith.constant 0 : index
      %c0_13 = arith.constant 0 : index
      %14 = vector.load %arg5[%c0_12, %c0_13] : memref<1x96xf32, #tpu.memory_space<vmem>>, vector<1x96xf32>
      %15 = vector.broadcast %14 : vector<1x96xf32> to vector<16x96xf32>
      %16 = arith.addf %13, %15 : vector<16x96xf32>
      %17 = arith.truncf %16 : vector<16x96xf32> to vector<16x96xbf16>
      %c0_14 = arith.constant 0 : index
      %c0_15 = arith.constant 0 : index
      %18 = vector.load %arg6[%c0_14, %c0_15] : memref<16x96xbf16, #tpu.memory_space<vmem>>, vector<16x96xbf16>
      tpu.vector_store %arg6[%c0_14, %c0_15], %17 {strides = array<i32>} : memref<16x96xbf16, #tpu.memory_space<vmem>>, vector<16x96xbf16>,
    } else {
    }
    return
  }
  func.func @transform_0(%arg0: i32, %arg1: i32, %arg2: i32) -> (i32, i32) {
    %c0_i32 = arith.constant 0 : i32
    return %arg0, %arg2 : i32, i32
  }
  func.func @transform_1(%arg0: i32, %arg1: i32, %arg2: i32) -> (i32, i32) {
    %c0_i32 = arith.constant 0 : i32
    return %arg2, %arg1 : i32, i32
  }
  func.func @transform_2(%arg0: i32, %arg1: i32, %arg2: i32) -> (i32, i32) {
    %c0_i32 = arith.constant 0 : i32
    %c0_i32_0 = arith.constant 0 : i32
    return %c0_i32, %arg1 : i32, i32
  }
  func.func @transform_3(%arg0: i32, %arg1: i32, %arg2: i32) -> (i32, i32) {
    %c0_i32 = arith.constant 0 : i32
    return %arg0, %arg1 : i32, i32
  }
}

module attributes {stable_mosaic.version = 11 : i64} {
  func.func @_matmul_kernel(%arg0: i32, %arg1: i32, %arg2: i32, %arg3: memref<16x32xf32, #tpu.memory_space<vmem>>, %arg4: memref<32x32xbf16, #tpu.memory_space<vmem>>, %arg5: memref<1x32xf32, #tpu.memory_space<vmem>>, %arg6: memref<16x32xbf16, #tpu.memory_space<vmem>>, %arg7: memref<16x32xf32, #tpu.memory_space<vmem>>) attributes {dimension_semantics = [#tpu.dimension_semantics<parallel>, #tpu.dimension_semantics<parallel>, #tpu.dimension_semantics<arbitrary>], iteration_bounds = array<i64: 1, 1, 1>, scalar_prefetch = 0 : i64, scratch_operands = 1 : i64, tpu.core_type = #tpu.core_type<tc>, window_params = [{transform_indices = @transform_0, window_bounds = array<i64: 16, 32>}, {transform_indices = @transform_1, window_bounds = array<i64: 32, 32>}, {transform_indices = @transform_2, window_bounds = array<i64: 1, 32>}, {transform_indices = @transform_3, window_bounds = array<i64: 16, 32>}]} {
    %c0_i32 = arith.constant 0 : i32
    %0 = arith.cmpi eq, %arg2, %c0_i32 : i32
    %1 = arith.extui %0 : i1 to i32
    %c0_i32_0 = arith.constant 0 : i32
    %2 = arith.cmpi ne, %1, %c0_i32_0 : i32
    scf.if %2 {
      %cst_10 = arith.constant 0.000000e+00 : f32
      %13 = vector.broadcast %cst_10 : f32 to vector<16x32xf32>
      %c0_11 = arith.constant 0 : index
      %c0_12 = arith.constant 0 : index
      %14 = vector.load %arg7[%c0_11, %c0_12] : memref<16x32xf32, #tpu.memory_space<vmem>>, vector<16x32xf32>
      tpu.vector_store %arg7[%c0_11, %c0_12], %13 {strides = array<i32>} : memref<16x32xf32, #tpu.memory_space<vmem>>, vector<16x32xf32>,
    } else {
    }
    %c0 = arith.constant 0 : index
    %c0_1 = arith.constant 0 : index
    %3 = vector.load %arg3[%c0, %c0_1] : memref<16x32xf32, #tpu.memory_space<vmem>>, vector<16x32xf32>
    %4 = arith.truncf %3 : vector<16x32xf32> to vector<16x32xbf16>
    %c0_2 = arith.constant 0 : index
    %c0_3 = arith.constant 0 : index
    %5 = vector.load %arg7[%c0_2, %c0_3] : memref<16x32xf32, #tpu.memory_space<vmem>>, vector<16x32xf32>
    %c0_4 = arith.constant 0 : index
    %c0_5 = arith.constant 0 : index
    %6 = vector.load %arg4[%c0_4, %c0_5] : memref<32x32xbf16, #tpu.memory_space<vmem>>, vector<32x32xbf16>
    %cst = arith.constant dense<0.000000e+00> : vector<16x32xf32>
    %7 = tpu.matmul %4, %6, %cst {dimension_numbers = #tpu.dot_dimension_numbers<[1], [0], [0], [1], [0, 0, 1, 1], [], []>} : vector<16x32xbf16>, vector<32x32xbf16>, vector<16x32xf32> -> vector<16x32xf32>
    %8 = arith.addf %5, %7 : vector<16x32xf32>
    %c0_6 = arith.constant 0 : index
    %c0_7 = arith.constant 0 : index
    %9 = vector.load %arg7[%c0_6, %c0_7] : memref<16x32xf32, #tpu.memory_space<vmem>>, vector<16x32xf32>
    tpu.vector_store %arg7[%c0_6, %c0_7], %8 {strides = array<i32>} : memref<16x32xf32, #tpu.memory_space<vmem>>, vector<16x32xf32>,
    %c0_i32_8 = arith.constant 0 : i32
    %10 = arith.cmpi eq, %arg2, %c0_i32_8 : i32
    %11 = arith.extui %10 : i1 to i32
    %c0_i32_9 = arith.constant 0 : i32
    %12 = arith.cmpi ne, %11, %c0_i32_9 : i32
    scf.if %12 {
      %c0_10 = arith.constant 0 : index
      %c0_11 = arith.constant 0 : index
      %13 = vector.load %arg7[%c0_10, %c0_11] : memref<16x32xf32, #tpu.memory_space<vmem>>, vector<16x32xf32>
      %c0_12 = arith.constant 0 : index
      %c0_13 = arith.constant 0 : index
      %14 = vector.load %arg5[%c0_12, %c0_13] : memref<1x32xf32, #tpu.memory_space<vmem>>, vector<1x32xf32>
      %15 = vector.broadcast %14 : vector<1x32xf32> to vector<16x32xf32>
      %16 = arith.addf %13, %15 : vector<16x32xf32>
      %cst_14 = arith.constant 5.000000e-01 : f32
      %17 = vector.broadcast %cst_14 : f32 to vector<16x32xf32>
      %18 = arith.mulf %17, %16 : vector<16x32xf32>
      %cst_15 = arith.constant 0.707106769 : f32
      %19 = vector.broadcast %cst_15 : f32 to vector<16x32xf32>
      %20 = arith.mulf %16, %19 : vector<16x32xf32>
      %21 = math.erf %20 : vector<16x32xf32>
      %cst_16 = arith.constant 1.000000e+00 : f32
      %22 = vector.broadcast %cst_16 : f32 to vector<16x32xf32>
      %23 = arith.addf %22, %21 : vector<16x32xf32>
      %24 = arith.mulf %18, %23 : vector<16x32xf32>
      %25 = arith.truncf %24 : vector<16x32xf32> to vector<16x32xbf16>
      %c0_17 = arith.constant 0 : index
      %c0_18 = arith.constant 0 : index
      %26 = vector.load %arg6[%c0_17, %c0_18] : memref<16x32xbf16, #tpu.memory_space<vmem>>, vector<16x32xbf16>
      tpu.vector_store %arg6[%c0_17, %c0_18], %25 {strides = array<i32>} : memref<16x32xbf16, #tpu.memory_space<vmem>>, vector<16x32xbf16>,
    } else {
    }
    return
  }
  func.func @transform_0(%arg0: i32, %arg1: i32, %arg2: i32) -> (i32, i32) {
    %c0_i32 = arith.constant 0 : i32
    return %arg0, %arg2 : i32, i32
  }
  func.func @transform_1(%arg0: i32, %arg1: i32, %arg2: i32) -> (i32, i32) {
    %c0_i32 = arith.constant 0 : i32
    return %arg2, %arg1 : i32, i32
  }
  func.func @transform_2(%arg0: i32, %arg1: i32, %arg2: i32) -> (i32, i32) {
    %c0_i32 = arith.constant 0 : i32
    %c0_i32_0 = arith.constant 0 : i32
    return %c0_i32, %arg1 : i32, i32
  }
  func.func @transform_3(%arg0: i32, %arg1: i32, %arg2: i32) -> (i32, i32) {
    %c0_i32 = arith.constant 0 : i32
    return %arg0, %arg1 : i32, i32
  }
}

module attributes {stable_mosaic.version = 11 : i64} {
  func.func @_linear_add_ln_kernel(%arg0: i32, %arg1: i32, %arg2: memref<16x32xbf16, #tpu.memory_space<vmem>>, %arg3: memref<32x32xbf16, #tpu.memory_space<vmem>>, %arg4: memref<1x32xf32, #tpu.memory_space<vmem>>, %arg5: memref<16x32xf32, #tpu.memory_space<vmem>>, %arg6: memref<1x32xf32, #tpu.memory_space<vmem>>, %arg7: memref<1x32xf32, #tpu.memory_space<vmem>>, %arg8: memref<16x32xf32, #tpu.memory_space<vmem>>) attributes {dimension_semantics = [#tpu.dimension_semantics<parallel>, #tpu.dimension_semantics<arbitrary>], iteration_bounds = array<i64: 1, 1>, scalar_prefetch = 0 : i64, scratch_operands = 0 : i64, tpu.core_type = #tpu.core_type<tc>, window_params = [{transform_indices = @transform_0, window_bounds = array<i64: 16, 32>}, {transform_indices = @transform_1, window_bounds = array<i64: 32, 32>}, {pipeline_mode = #tpu.pipeline_mode<synchronous>, transform_indices = @transform_2, window_bounds = array<i64: 1, 32>}, {transform_indices = @transform_3, window_bounds = array<i64: 16, 32>}, {pipeline_mode = #tpu.pipeline_mode<synchronous>, transform_indices = @transform_4, window_bounds = array<i64: 1, 32>}, {pipeline_mode = #tpu.pipeline_mode<synchronous>, transform_indices = @transform_5, window_bounds = array<i64: 1, 32>}, {transform_indices = @transform_6, window_bounds = array<i64: 16, 32>}]} {
    %c0_i32 = arith.constant 0 : i32
    %0 = arith.cmpi eq, %arg1, %c0_i32 : i32
    %1 = arith.extui %0 : i1 to i32
    %c0_i32_0 = arith.constant 0 : i32
    %2 = arith.cmpi ne, %1, %c0_i32_0 : i32
    scf.if %2 {
      %cst_10 = arith.constant 0.000000e+00 : f32
      %12 = vector.broadcast %cst_10 : f32 to vector<16x32xf32>
      %c0_11 = arith.constant 0 : index
      %c0_12 = arith.constant 0 : index
      %13 = vector.load %arg8[%c0_11, %c0_12] : memref<16x32xf32, #tpu.memory_space<vmem>>, vector<16x32xf32>
      tpu.vector_store %arg8[%c0_11, %c0_12], %12 {strides = array<i32>} : memref<16x32xf32, #tpu.memory_space<vmem>>, vector<16x32xf32>,
    } else {
    }
    %c0 = arith.constant 0 : index
    %c0_1 = arith.constant 0 : index
    %3 = vector.load %arg2[%c0, %c0_1] : memref<16x32xbf16, #tpu.memory_space<vmem>>, vector<16x32xbf16>
    %c0_2 = arith.constant 0 : index
    %c0_3 = arith.constant 0 : index
    %4 = vector.load %arg8[%c0_2, %c0_3] : memref<16x32xf32, #tpu.memory_space<vmem>>, vector<16x32xf32>
    %c0_4 = arith.constant 0 : index
    %c0_5 = arith.constant 0 : index
    %5 = vector.load %arg3[%c0_4, %c0_5] : memref<32x32xbf16, #tpu.memory_space<vmem>>, vector<32x32xbf16>
    %cst = arith.constant dense<0.000000e+00> : vector<16x32xf32>
    %6 = tpu.matmul %3, %5, %cst {dimension_numbers = #tpu.dot_dimension_numbers<[1], [0], [0], [1], [0, 0, 1, 1], [], []>} : vector<16x32xbf16>, vector<32x32xbf16>, vector<16x32xf32> -> vector<16x32xf32>
    %7 = arith.addf %4, %6 : vector<16x32xf32>
    %c0_6 = arith.constant 0 : index
    %c0_7 = arith.constant 0 : index
    %8 = vector.load %arg8[%c0_6, %c0_7] : memref<16x32xf32, #tpu.memory_space<vmem>>, vector<16x32xf32>
    tpu.vector_store %arg8[%c0_6, %c0_7], %7 {strides = array<i32>} : memref<16x32xf32, #tpu.memory_space<vmem>>, vector<16x32xf32>,
    %c0_i32_8 = arith.constant 0 : i32
    %9 = arith.cmpi eq, %arg1, %c0_i32_8 : i32
    %10 = arith.extui %9 : i1 to i32
    %c0_i32_9 = arith.constant 0 : i32
    %11 = arith.cmpi ne, %10, %c0_i32_9 : i32
    scf.if %11 {
      %c0_10 = arith.constant 0 : index
      %c0_11 = arith.constant 0 : index
      %12 = vector.load %arg8[%c0_10, %c0_11] : memref<16x32xf32, #tpu.memory_space<vmem>>, vector<16x32xf32>
      %c0_12 = arith.constant 0 : index
      %c0_13 = arith.constant 0 : index
      %13 = vector.load %arg4[%c0_12, %c0_13] : memref<1x32xf32, #tpu.memory_space<vmem>>, vector<1x32xf32>
      %14 = vector.broadcast %13 : vector<1x32xf32> to vector<16x32xf32>
      %15 = arith.addf %12, %14 : vector<16x32xf32>
      %c0_14 = arith.constant 0 : index
      %c0_15 = arith.constant 0 : index
      %16 = vector.load %arg5[%c0_14, %c0_15] : memref<16x32xf32, #tpu.memory_space<vmem>>, vector<16x32xf32>
      %17 = arith.addf %15, %16 : vector<16x32xf32>
      %cst_16 = arith.constant dense<0.000000e+00> : vector<16xf32>
      %18 = vector.multi_reduction <add>, %17, %cst_16 [1] : vector<16x32xf32> to vector<16xf32>
      %19 = vector.shape_cast %18 : vector<16xf32> to vector<16x1xf32>
      %cst_17 = arith.constant 3.200000e+01 : f32
      %20 = vector.broadcast %cst_17 : f32 to vector<16x1xf32>
      %21 = arith.divf %19, %20 : vector<16x1xf32>
      %22 = vector.broadcast %21 : vector<16x1xf32> to vector<16x32xf32>
      %23 = arith.subf %17, %22 : vector<16x32xf32>
      %24 = arith.mulf %23, %23 : vector<16x32xf32>
      %cst_18 = arith.constant dense<0.000000e+00> : vector<16xf32>
      %25 = vector.multi_reduction <add>, %24, %cst_18 [1] : vector<16x32xf32> to vector<16xf32>
      %26 = vector.shape_cast %25 : vector<16xf32> to vector<16x1xf32>
      %cst_19 = arith.constant 3.200000e+01 : f32
      %27 = vector.broadcast %cst_19 : f32 to vector<16x1xf32>
      %28 = arith.divf %26, %27 : vector<16x1xf32>
      %29 = vector.broadcast %21 : vector<16x1xf32> to vector<16x32xf32>
      %30 = arith.subf %17, %29 : vector<16x32xf32>
      %cst_20 = arith.constant 9.99999974E-6 : f32
      %31 = vector.broadcast %cst_20 : f32 to vector<16x1xf32>
      %32 = arith.addf %28, %31 : vector<16x1xf32>
      %33 = math.rsqrt %32 : vector<16x1xf32>
      %34 = vector.broadcast %33 : vector<16x1xf32> to vector<16x32xf32>
      %35 = arith.mulf %30, %34 : vector<16x32xf32>
      %c0_21 = arith.constant 0 : index
      %c0_22 = arith.constant 0 : index
      %36 = vector.load %arg6[%c0_21, %c0_22] : memref<1x32xf32, #tpu.memory_space<vmem>>, vector<1x32xf32>
      %37 = vector.broadcast %36 : vector<1x32xf32> to vector<16x32xf32>
      %38 = arith.mulf %35, %37 : vector<16x32xf32>
      %c0_23 = arith.constant 0 : index
      %c0_24 = arith.constant 0 : index
      %39 = vector.load %arg7[%c0_23, %c0_24] : memref<1x32xf32, #tpu.memory_space<vmem>>, vector<1x32xf32>
      %40 = vector.broadcast %39 : vector<1x32xf32> to vector<16x32xf32>
      %41 = arith.addf %38, %40 : vector<16x32xf32>
      %c0_25 = arith.constant 0 : index
      %c0_26 = arith.constant 0 : index
      %42 = vector.load %arg8[%c0_25, %c0_26] : memref<16x32xf32, #tpu.memory_space<vmem>>, vector<16x32xf32>
      tpu.vector_store %arg8[%c0_25, %c0_26], %41 {strides = array<i32>} : memref<16x32xf32, #tpu.memory_space<vmem>>, vector<16x32xf32>,
    } else {
    }
    return
  }
  func.func @transform_0(%arg0: i32, %arg1: i32) -> (i32, i32) {
    %c0_i32 = arith.constant 0 : i32
    return %arg0, %arg1 : i32, i32
  }
  func.func @transform_1(%arg0: i32, %arg1: i32) -> (i32, i32) {
    %c0_i32 = arith.constant 0 : i32
    %c0_i32_0 = arith.constant 0 : i32
    return %arg1, %c0_i32 : i32, i32
  }
  func.func @transform_2(%arg0: i32, %arg1: i32) -> (i32, i32) {
    %c0_i32 = arith.constant 0 : i32
    %c0_i32_0 = arith.constant 0 : i32
    %c0_i32_1 = arith.constant 0 : i32
    return %c0_i32, %c0_i32_0 : i32, i32
  }
  func.func @transform_3(%arg0: i32, %arg1: i32) -> (i32, i32) {
    %c0_i32 = arith.constant 0 : i32
    %c0_i32_0 = arith.constant 0 : i32
    return %arg0, %c0_i32 : i32, i32
  }
  func.func @transform_4(%arg0: i32, %arg1: i32) -> (i32, i32) {
    %c0_i32 = arith.constant 0 : i32
    %c0_i32_0 = arith.constant 0 : i32
    %c0_i32_1 = arith.constant 0 : i32
    return %c0_i32, %c0_i32_0 : i32, i32
  }
  func.func @transform_5(%arg0: i32, %arg1: i32) -> (i32, i32) {
    %c0_i32 = arith.constant 0 : i32
    %c0_i32_0 = arith.constant 0 : i32
    %c0_i32_1 = arith.constant 0 : i32
    return %c0_i32, %c0_i32_0 : i32, i32
  }
  func.func @transform_6(%arg0: i32, %arg1: i32) -> (i32, i32) {
    %c0_i32 = arith.constant 0 : i32
    %c0_i32_0 = arith.constant 0 : i32
    return %arg0, %c0_i32 : i32, i32
  }
}

module attributes {stable_mosaic.version = 11 : i64} {
  func.func @_linear_add_ln_kernel(%arg0: i32, %arg1: i32, %arg2: memref<16x32xbf16, #tpu.memory_space<vmem>>, %arg3: memref<32x32xbf16, #tpu.memory_space<vmem>>, %arg4: memref<1x32xf32, #tpu.memory_space<vmem>>, %arg5: memref<16x32xf32, #tpu.memory_space<vmem>>, %arg6: memref<1x32xf32, #tpu.memory_space<vmem>>, %arg7: memref<1x32xf32, #tpu.memory_space<vmem>>, %arg8: memref<16x32xf32, #tpu.memory_space<vmem>>) attributes {dimension_semantics = [#tpu.dimension_semantics<parallel>, #tpu.dimension_semantics<arbitrary>], iteration_bounds = array<i64: 1, 1>, scalar_prefetch = 0 : i64, scratch_operands = 0 : i64, tpu.core_type = #tpu.core_type<tc>, window_params = [{transform_indices = @transform_0, window_bounds = array<i64: 16, 32>}, {transform_indices = @transform_1, window_bounds = array<i64: 32, 32>}, {pipeline_mode = #tpu.pipeline_mode<synchronous>, transform_indices = @transform_2, window_bounds = array<i64: 1, 32>}, {transform_indices = @transform_3, window_bounds = array<i64: 16, 32>}, {pipeline_mode = #tpu.pipeline_mode<synchronous>, transform_indices = @transform_4, window_bounds = array<i64: 1, 32>}, {pipeline_mode = #tpu.pipeline_mode<synchronous>, transform_indices = @transform_5, window_bounds = array<i64: 1, 32>}, {transform_indices = @transform_6, window_bounds = array<i64: 16, 32>}]} {
    %c0_i32 = arith.constant 0 : i32
    %0 = arith.cmpi eq, %arg1, %c0_i32 : i32
    %1 = arith.extui %0 : i1 to i32
    %c0_i32_0 = arith.constant 0 : i32
    %2 = arith.cmpi ne, %1, %c0_i32_0 : i32
    scf.if %2 {
      %cst_10 = arith.constant 0.000000e+00 : f32
      %12 = vector.broadcast %cst_10 : f32 to vector<16x32xf32>
      %c0_11 = arith.constant 0 : index
      %c0_12 = arith.constant 0 : index
      %13 = vector.load %arg8[%c0_11, %c0_12] : memref<16x32xf32, #tpu.memory_space<vmem>>, vector<16x32xf32>
      tpu.vector_store %arg8[%c0_11, %c0_12], %12 {strides = array<i32>} : memref<16x32xf32, #tpu.memory_space<vmem>>, vector<16x32xf32>,
    } else {
    }
    %c0 = arith.constant 0 : index
    %c0_1 = arith.constant 0 : index
    %3 = vector.load %arg2[%c0, %c0_1] : memref<16x32xbf16, #tpu.memory_space<vmem>>, vector<16x32xbf16>
    %c0_2 = arith.constant 0 : index
    %c0_3 = arith.constant 0 : index
    %4 = vector.load %arg8[%c0_2, %c0_3] : memref<16x32xf32, #tpu.memory_space<vmem>>, vector<16x32xf32>
    %c0_4 = arith.constant 0 : index
    %c0_5 = arith.constant 0 : index
    %5 = vector.load %arg3[%c0_4, %c0_5] : memref<32x32xbf16, #tpu.memory_space<vmem>>, vector<32x32xbf16>
    %cst = arith.constant dense<0.000000e+00> : vector<16x32xf32>
    %6 = tpu.matmul %3, %5, %cst {dimension_numbers = #tpu.dot_dimension_numbers<[1], [0], [0], [1], [0, 0, 1, 1], [], []>} : vector<16x32xbf16>, vector<32x32xbf16>, vector<16x32xf32> -> vector<16x32xf32>
    %7 = arith.addf %4, %6 : vector<16x32xf32>
    %c0_6 = arith.constant 0 : index
    %c0_7 = arith.constant 0 : index
    %8 = vector.load %arg8[%c0_6, %c0_7] : memref<16x32xf32, #tpu.memory_space<vmem>>, vector<16x32xf32>
    tpu.vector_store %arg8[%c0_6, %c0_7], %7 {strides = array<i32>} : memref<16x32xf32, #tpu.memory_space<vmem>>, vector<16x32xf32>,
    %c0_i32_8 = arith.constant 0 : i32
    %9 = arith.cmpi eq, %arg1, %c0_i32_8 : i32
    %10 = arith.extui %9 : i1 to i32
    %c0_i32_9 = arith.constant 0 : i32
    %11 = arith.cmpi ne, %10, %c0_i32_9 : i32
    scf.if %11 {
      %c0_10 = arith.constant 0 : index
      %c0_11 = arith.constant 0 : index
      %12 = vector.load %arg8[%c0_10, %c0_11] : memref<16x32xf32, #tpu.memory_space<vmem>>, vector<16x32xf32>
      %c0_12 = arith.constant 0 : index
      %c0_13 = arith.constant 0 : index
      %13 = vector.load %arg4[%c0_12, %c0_13] : memref<1x32xf32, #tpu.memory_space<vmem>>, vector<1x32xf32>
      %14 = vector.broadcast %13 : vector<1x32xf32> to vector<16x32xf32>
      %15 = arith.addf %12, %14 : vector<16x32xf32>
      %c0_14 = arith.constant 0 : index
      %c0_15 = arith.constant 0 : index
      %16 = vector.load %arg5[%c0_14, %c0_15] : memref<16x32xf32, #tpu.memory_space<vmem>>, vector<16x32xf32>
      %17 = arith.addf %15, %16 : vector<16x32xf32>
      %cst_16 = arith.constant dense<0.000000e+00> : vector<16xf32>
      %18 = vector.multi_reduction <add>, %17, %cst_16 [1] : vector<16x32xf32> to vector<16xf32>
      %19 = vector.shape_cast %18 : vector<16xf32> to vector<16x1xf32>
      %cst_17 = arith.constant 3.200000e+01 : f32
      %20 = vector.broadcast %cst_17 : f32 to vector<16x1xf32>
      %21 = arith.divf %19, %20 : vector<16x1xf32>
      %22 = vector.broadcast %21 : vector<16x1xf32> to vector<16x32xf32>
      %23 = arith.subf %17, %22 : vector<16x32xf32>
      %24 = arith.mulf %23, %23 : vector<16x32xf32>
      %cst_18 = arith.constant dense<0.000000e+00> : vector<16xf32>
      %25 = vector.multi_reduction <add>, %24, %cst_18 [1] : vector<16x32xf32> to vector<16xf32>
      %26 = vector.shape_cast %25 : vector<16xf32> to vector<16x1xf32>
      %cst_19 = arith.constant 3.200000e+01 : f32
      %27 = vector.broadcast %cst_19 : f32 to vector<16x1xf32>
      %28 = arith.divf %26, %27 : vector<16x1xf32>
      %29 = vector.broadcast %21 : vector<16x1xf32> to vector<16x32xf32>
      %30 = arith.subf %17, %29 : vector<16x32xf32>
      %cst_20 = arith.constant 9.99999974E-6 : f32
      %31 = vector.broadcast %cst_20 : f32 to vector<16x1xf32>
      %32 = arith.addf %28, %31 : vector<16x1xf32>
      %33 = math.rsqrt %32 : vector<16x1xf32>
      %34 = vector.broadcast %33 : vector<16x1xf32> to vector<16x32xf32>
      %35 = arith.mulf %30, %34 : vector<16x32xf32>
      %c0_21 = arith.constant 0 : index
      %c0_22 = arith.constant 0 : index
      %36 = vector.load %arg6[%c0_21, %c0_22] : memref<1x32xf32, #tpu.memory_space<vmem>>, vector<1x32xf32>
      %37 = vector.broadcast %36 : vector<1x32xf32> to vector<16x32xf32>
      %38 = arith.mulf %35, %37 : vector<16x32xf32>
      %c0_23 = arith.constant 0 : index
      %c0_24 = arith.constant 0 : index
      %39 = vector.load %arg7[%c0_23, %c0_24] : memref<1x32xf32, #tpu.memory_space<vmem>>, vector<1x32xf32>
      %40 = vector.broadcast %39 : vector<1x32xf32> to vector<16x32xf32>
      %41 = arith.addf %38, %40 : vector<16x32xf32>
      %c0_25 = arith.constant 0 : index
      %c0_26 = arith.constant 0 : index
      %42 = vector.load %arg8[%c0_25, %c0_26] : memref<16x32xf32, #tpu.memory_space<vmem>>, vector<16x32xf32>
      tpu.vector_store %arg8[%c0_25, %c0_26], %41 {strides = array<i32>} : memref<16x32xf32, #tpu.memory_space<vmem>>, vector<16x32xf32>,
    } else {
    }
    return
  }
  func.func @transform_0(%arg0: i32, %arg1: i32) -> (i32, i32) {
    %c0_i32 = arith.constant 0 : i32
    return %arg0, %arg1 : i32, i32
  }
  func.func @transform_1(%arg0: i32, %arg1: i32) -> (i32, i32) {
    %c0_i32 = arith.constant 0 : i32
    %c0_i32_0 = arith.constant 0 : i32
    return %arg1, %c0_i32 : i32, i32
  }
  func.func @transform_2(%arg0: i32, %arg1: i32) -> (i32, i32) {
    %c0_i32 = arith.constant 0 : i32
    %c0_i32_0 = arith.constant 0 : i32
    %c0_i32_1 = arith.constant 0 : i32
    return %c0_i32, %c0_i32_0 : i32, i32
  }
  func.func @transform_3(%arg0: i32, %arg1: i32) -> (i32, i32) {
    %c0_i32 = arith.constant 0 : i32
    %c0_i32_0 = arith.constant 0 : i32
    return %arg0, %c0_i32 : i32, i32
  }
  func.func @transform_4(%arg0: i32, %arg1: i32) -> (i32, i32) {
    %c0_i32 = arith.constant 0 : i32
    %c0_i32_0 = arith.constant 0 : i32
    %c0_i32_1 = arith.constant 0 : i32
    return %c0_i32, %c0_i32_0 : i32, i32
  }
  func.func @transform_5(%arg0: i32, %arg1: i32) -> (i32, i32) {
    %c0_i32 = arith.constant 0 : i32
    %c0_i32_0 = arith.constant 0 : i32
    %c0_i32_1 = arith.constant 0 : i32
    return %c0_i32, %c0_i32_0 : i32, i32
  }
  func.func @transform_6(%arg0: i32, %arg1: i32) -> (i32, i32) {
    %c0_i32 = arith.constant 0 : i32
    %c0_i32_0 = arith.constant 0 : i32
    return %arg0, %c0_i32 : i32, i32
  }
}

module attributes {stable_mosaic.version = 11 : i64} {
  func.func @_matmul_kernel(%arg0: i32, %arg1: i32, %arg2: i32, %arg3: memref<16x32xf32, #tpu.memory_space<vmem>>, %arg4: memref<32x64xbf16, #tpu.memory_space<vmem>>, %arg5: memref<1x64xf32, #tpu.memory_space<vmem>>, %arg6: memref<16x64xbf16, #tpu.memory_space<vmem>>, %arg7: memref<16x64xf32, #tpu.memory_space<vmem>>) attributes {dimension_semantics = [#tpu.dimension_semantics<parallel>, #tpu.dimension_semantics<parallel>, #tpu.dimension_semantics<arbitrary>], iteration_bounds = array<i64: 1, 1, 1>, scalar_prefetch = 0 : i64, scratch_operands = 1 : i64, tpu.core_type = #tpu.core_type<tc>, window_params = [{transform_indices = @transform_0, window_bounds = array<i64: 16, 32>}, {transform_indices = @transform_1, window_bounds = array<i64: 32, 64>}, {transform_indices = @transform_2, window_bounds = array<i64: 1, 64>}, {transform_indices = @transform_3, window_bounds = array<i64: 16, 64>}]} {
    %c0_i32 = arith.constant 0 : i32
    %0 = arith.cmpi eq, %arg2, %c0_i32 : i32
    %1 = arith.extui %0 : i1 to i32
    %c0_i32_0 = arith.constant 0 : i32
    %2 = arith.cmpi ne, %1, %c0_i32_0 : i32
    scf.if %2 {
      %cst_10 = arith.constant 0.000000e+00 : f32
      %13 = vector.broadcast %cst_10 : f32 to vector<16x64xf32>
      %c0_11 = arith.constant 0 : index
      %c0_12 = arith.constant 0 : index
      %14 = vector.load %arg7[%c0_11, %c0_12] : memref<16x64xf32, #tpu.memory_space<vmem>>, vector<16x64xf32>
      tpu.vector_store %arg7[%c0_11, %c0_12], %13 {strides = array<i32>} : memref<16x64xf32, #tpu.memory_space<vmem>>, vector<16x64xf32>,
    } else {
    }
    %c0 = arith.constant 0 : index
    %c0_1 = arith.constant 0 : index
    %3 = vector.load %arg3[%c0, %c0_1] : memref<16x32xf32, #tpu.memory_space<vmem>>, vector<16x32xf32>
    %4 = arith.truncf %3 : vector<16x32xf32> to vector<16x32xbf16>
    %c0_2 = arith.constant 0 : index
    %c0_3 = arith.constant 0 : index
    %5 = vector.load %arg7[%c0_2, %c0_3] : memref<16x64xf32, #tpu.memory_space<vmem>>, vector<16x64xf32>
    %c0_4 = arith.constant 0 : index
    %c0_5 = arith.constant 0 : index
    %6 = vector.load %arg4[%c0_4, %c0_5] : memref<32x64xbf16, #tpu.memory_space<vmem>>, vector<32x64xbf16>
    %cst = arith.constant dense<0.000000e+00> : vector<16x64xf32>
    %7 = tpu.matmul %4, %6, %cst {dimension_numbers = #tpu.dot_dimension_numbers<[1], [0], [0], [1], [0, 0, 1, 1], [], []>} : vector<16x32xbf16>, vector<32x64xbf16>, vector<16x64xf32> -> vector<16x64xf32>
    %8 = arith.addf %5, %7 : vector<16x64xf32>
    %c0_6 = arith.constant 0 : index
    %c0_7 = arith.constant 0 : index
    %9 = vector.load %arg7[%c0_6, %c0_7] : memref<16x64xf32, #tpu.memory_space<vmem>>, vector<16x64xf32>
    tpu.vector_store %arg7[%c0_6, %c0_7], %8 {strides = array<i32>} : memref<16x64xf32, #tpu.memory_space<vmem>>, vector<16x64xf32>,
    %c0_i32_8 = arith.constant 0 : i32
    %10 = arith.cmpi eq, %arg2, %c0_i32_8 : i32
    %11 = arith.extui %10 : i1 to i32
    %c0_i32_9 = arith.constant 0 : i32
    %12 = arith.cmpi ne, %11, %c0_i32_9 : i32
    scf.if %12 {
      %c0_10 = arith.constant 0 : index
      %c0_11 = arith.constant 0 : index
      %13 = vector.load %arg7[%c0_10, %c0_11] : memref<16x64xf32, #tpu.memory_space<vmem>>, vector<16x64xf32>
      %c0_12 = arith.constant 0 : index
      %c0_13 = arith.constant 0 : index
      %14 = vector.load %arg5[%c0_12, %c0_13] : memref<1x64xf32, #tpu.memory_space<vmem>>, vector<1x64xf32>
      %15 = vector.broadcast %14 : vector<1x64xf32> to vector<16x64xf32>
      %16 = arith.addf %13, %15 : vector<16x64xf32>
      %17 = arith.truncf %16 : vector<16x64xf32> to vector<16x64xbf16>
      %c0_14 = arith.constant 0 : index
      %c0_15 = arith.constant 0 : index
      %18 = vector.load %arg6[%c0_14, %c0_15] : memref<16x64xbf16, #tpu.memory_space<vmem>>, vector<16x64xbf16>
      tpu.vector_store %arg6[%c0_14, %c0_15], %17 {strides = array<i32>} : memref<16x64xbf16, #tpu.memory_space<vmem>>, vector<16x64xbf16>,
    } else {
    }
    return
  }
  func.func @transform_0(%arg0: i32, %arg1: i32, %arg2: i32) -> (i32, i32) {
    %c0_i32 = arith.constant 0 : i32
    return %arg0, %arg2 : i32, i32
  }
  func.func @transform_1(%arg0: i32, %arg1: i32, %arg2: i32) -> (i32, i32) {
    %c0_i32 = arith.constant 0 : i32
    return %arg2, %arg1 : i32, i32
  }
  func.func @transform_2(%arg0: i32, %arg1: i32, %arg2: i32) -> (i32, i32) {
    %c0_i32 = arith.constant 0 : i32
    %c0_i32_0 = arith.constant 0 : i32
    return %c0_i32, %arg1 : i32, i32
  }
  func.func @transform_3(%arg0: i32, %arg1: i32, %arg2: i32) -> (i32, i32) {
    %c0_i32 = arith.constant 0 : i32
    return %arg0, %arg1 : i32, i32
  }
}

module attributes {stable_mosaic.version = 11 : i64} {
  func.func @_matmul_kernel(%arg0: i32, %arg1: i32, %arg2: i32, %arg3: memref<16x32xf32, #tpu.memory_space<vmem>>, %arg4: memref<32x96xbf16, #tpu.memory_space<vmem>>, %arg5: memref<1x96xf32, #tpu.memory_space<vmem>>, %arg6: memref<16x96xbf16, #tpu.memory_space<vmem>>, %arg7: memref<16x96xf32, #tpu.memory_space<vmem>>) attributes {dimension_semantics = [#tpu.dimension_semantics<parallel>, #tpu.dimension_semantics<parallel>, #tpu.dimension_semantics<arbitrary>], iteration_bounds = array<i64: 1, 1, 1>, scalar_prefetch = 0 : i64, scratch_operands = 1 : i64, tpu.core_type = #tpu.core_type<tc>, window_params = [{transform_indices = @transform_0, window_bounds = array<i64: 16, 32>}, {transform_indices = @transform_1, window_bounds = array<i64: 32, 96>}, {transform_indices = @transform_2, window_bounds = array<i64: 1, 96>}, {transform_indices = @transform_3, window_bounds = array<i64: 16, 96>}]} {
    %c0_i32 = arith.constant 0 : i32
    %0 = arith.cmpi eq, %arg2, %c0_i32 : i32
    %1 = arith.extui %0 : i1 to i32
    %c0_i32_0 = arith.constant 0 : i32
    %2 = arith.cmpi ne, %1, %c0_i32_0 : i32
    scf.if %2 {
      %cst_10 = arith.constant 0.000000e+00 : f32
      %13 = vector.broadcast %cst_10 : f32 to vector<16x96xf32>
      %c0_11 = arith.constant 0 : index
      %c0_12 = arith.constant 0 : index
      %14 = vector.load %arg7[%c0_11, %c0_12] : memref<16x96xf32, #tpu.memory_space<vmem>>, vector<16x96xf32>
      tpu.vector_store %arg7[%c0_11, %c0_12], %13 {strides = array<i32>} : memref<16x96xf32, #tpu.memory_space<vmem>>, vector<16x96xf32>,
    } else {
    }
    %c0 = arith.constant 0 : index
    %c0_1 = arith.constant 0 : index
    %3 = vector.load %arg3[%c0, %c0_1] : memref<16x32xf32, #tpu.memory_space<vmem>>, vector<16x32xf32>
    %4 = arith.truncf %3 : vector<16x32xf32> to vector<16x32xbf16>
    %c0_2 = arith.constant 0 : index
    %c0_3 = arith.constant 0 : index
    %5 = vector.load %arg7[%c0_2, %c0_3] : memref<16x96xf32, #tpu.memory_space<vmem>>, vector<16x96xf32>
    %c0_4 = arith.constant 0 : index
    %c0_5 = arith.constant 0 : index
    %6 = vector.load %arg4[%c0_4, %c0_5] : memref<32x96xbf16, #tpu.memory_space<vmem>>, vector<32x96xbf16>
    %cst = arith.constant dense<0.000000e+00> : vector<16x96xf32>
    %7 = tpu.matmul %4, %6, %cst {dimension_numbers = #tpu.dot_dimension_numbers<[1], [0], [0], [1], [0, 0, 1, 1], [], []>} : vector<16x32xbf16>, vector<32x96xbf16>, vector<16x96xf32> -> vector<16x96xf32>
    %8 = arith.addf %5, %7 : vector<16x96xf32>
    %c0_6 = arith.constant 0 : index
    %c0_7 = arith.constant 0 : index
    %9 = vector.load %arg7[%c0_6, %c0_7] : memref<16x96xf32, #tpu.memory_space<vmem>>, vector<16x96xf32>
    tpu.vector_store %arg7[%c0_6, %c0_7], %8 {strides = array<i32>} : memref<16x96xf32, #tpu.memory_space<vmem>>, vector<16x96xf32>,
    %c0_i32_8 = arith.constant 0 : i32
    %10 = arith.cmpi eq, %arg2, %c0_i32_8 : i32
    %11 = arith.extui %10 : i1 to i32
    %c0_i32_9 = arith.constant 0 : i32
    %12 = arith.cmpi ne, %11, %c0_i32_9 : i32
    scf.if %12 {
      %c0_10 = arith.constant 0 : index
      %c0_11 = arith.constant 0 : index
      %13 = vector.load %arg7[%c0_10, %c0_11] : memref<16x96xf32, #tpu.memory_space<vmem>>, vector<16x96xf32>
      %c0_12 = arith.constant 0 : index
      %c0_13 = arith.constant 0 : index
      %14 = vector.load %arg5[%c0_12, %c0_13] : memref<1x96xf32, #tpu.memory_space<vmem>>, vector<1x96xf32>
      %15 = vector.broadcast %14 : vector<1x96xf32> to vector<16x96xf32>
      %16 = arith.addf %13, %15 : vector<16x96xf32>
      %17 = arith.truncf %16 : vector<16x96xf32> to vector<16x96xbf16>
      %c0_14 = arith.constant 0 : index
      %c0_15 = arith.constant 0 : index
      %18 = vector.load %arg6[%c0_14, %c0_15] : memref<16x96xbf16, #tpu.memory_space<vmem>>, vector<16x96xbf16>
      tpu.vector_store %arg6[%c0_14, %c0_15], %17 {strides = array<i32>} : memref<16x96xbf16, #tpu.memory_space<vmem>>, vector<16x96xbf16>,
    } else {
    }
    return
  }
  func.func @transform_0(%arg0: i32, %arg1: i32, %arg2: i32) -> (i32, i32) {
    %c0_i32 = arith.constant 0 : i32
    return %arg0, %arg2 : i32, i32
  }
  func.func @transform_1(%arg0: i32, %arg1: i32, %arg2: i32) -> (i32, i32) {
    %c0_i32 = arith.constant 0 : i32
    return %arg2, %arg1 : i32, i32
  }
  func.func @transform_2(%arg0: i32, %arg1: i32, %arg2: i32) -> (i32, i32) {
    %c0_i32 = arith.constant 0 : i32
    %c0_i32_0 = arith.constant 0 : i32
    return %c0_i32, %arg1 : i32, i32
  }
  func.func @transform_3(%arg0: i32, %arg1: i32, %arg2: i32) -> (i32, i32) {
    %c0_i32 = arith.constant 0 : i32
    return %arg0, %arg1 : i32, i32
  }
}

module attributes {stable_mosaic.version = 11 : i64} {
  func.func @_self_attn_kernel(%arg0: i32, %arg1: memref<1x1x8xi32, #tpu.memory_space<vmem>>, %arg2: memref<1x8x96xbf16, #tpu.memory_space<vmem>>, %arg3: memref<32x32xbf16, #tpu.memory_space<vmem>>, %arg4: memref<1x32xf32, #tpu.memory_space<vmem>>, %arg5: memref<1x8x32xf32, #tpu.memory_space<vmem>>, %arg6: memref<1x32xf32, #tpu.memory_space<vmem>>, %arg7: memref<1x32xf32, #tpu.memory_space<vmem>>, %arg8: memref<1x8x32xf32, #tpu.memory_space<vmem>>) attributes {dimension_semantics = [#tpu.dimension_semantics<parallel>], iteration_bounds = array<i64: 2>, scalar_prefetch = 0 : i64, scratch_operands = 0 : i64, tpu.core_type = #tpu.core_type<tc>, window_params = [{transform_indices = @transform_0, window_bounds = array<i64: 1, 1, 8>}, {transform_indices = @transform_1, window_bounds = array<i64: 1, 8, 96>}, {pipeline_mode = #tpu.pipeline_mode<synchronous>, transform_indices = @transform_2, window_bounds = array<i64: 32, 32>}, {pipeline_mode = #tpu.pipeline_mode<synchronous>, transform_indices = @transform_3, window_bounds = array<i64: 1, 32>}, {transform_indices = @transform_4, window_bounds = array<i64: 1, 8, 32>}, {pipeline_mode = #tpu.pipeline_mode<synchronous>, transform_indices = @transform_5, window_bounds = array<i64: 1, 32>}, {pipeline_mode = #tpu.pipeline_mode<synchronous>, transform_indices = @transform_6, window_bounds = array<i64: 1, 32>}, {transform_indices = @transform_7, window_bounds = array<i64: 1, 8, 32>}]} {
    %c0 = arith.constant 0 : index
    %c0_0 = arith.constant 0 : index
    %c0_1 = arith.constant 0 : index
    %0 = vector.load %arg2[%c0, %c0_0, %c0_1] : memref<1x8x96xbf16, #tpu.memory_space<vmem>>, vector<1x8x96xbf16>
    %1 = vector.shape_cast %0 : vector<1x8x96xbf16> to vector<8x96xbf16>
    %c0_2 = arith.constant 0 : index
    %c0_3 = arith.constant 0 : index
    %c0_4 = arith.constant 0 : index
    %2 = vector.load %arg1[%c0_2, %c0_3, %c0_4] : memref<1x1x8xi32, #tpu.memory_space<vmem>>, vector<1x1x8xi32>
    %3 = vector.shape_cast %2 : vector<1x1x8xi32> to vector<1x8xi32>
    %c0_i32 = arith.constant 0 : i32
    %4 = vector.broadcast %c0_i32 : i32 to vector<1x8xi32>
    %5 = arith.cmpi ne, %3, %4 : vector<1x8xi32>
    %cst = arith.constant -1.000000e+09 : f32
    %cst_5 = arith.constant 0.000000e+00 : f32
    %6 = vector.broadcast %cst : f32 to vector<1x8xf32>
    %7 = vector.broadcast %cst_5 : f32 to vector<1x8xf32>
    %8 = arith.select %5, %6, %7 : vector<1x8xi1>, vector<1x8xf32>
    %9 = tpu.iota {dimensions = array<i32: 0>} : vector<8x8xi32>
    %10 = tpu.iota {dimensions = array<i32: 1>} : vector<8x8xi32>
    %11 = arith.cmpi sgt, %10, %9 : vector<8x8xi32>
    %cst_6 = arith.constant -1.000000e+09 : f32
    %cst_7 = arith.constant 0.000000e+00 : f32
    %12 = vector.broadcast %cst_6 : f32 to vector<8x8xf32>
    %13 = vector.broadcast %cst_7 : f32 to vector<8x8xf32>
    %14 = arith.select %11, %12, %13 : vector<8x8xi1>, vector<8x8xf32>
    %15 = vector.broadcast %8 : vector<1x8xf32> to vector<8x8xf32>
    %16 = arith.addf %15, %14 : vector<8x8xf32>
    %17 = vector.extract_strided_slice %1 {offsets = [0, 0], sizes = [8, 32], strides = [1, 1]} : vector<8x96xbf16> to vector<8x32xbf16>
    %18 = vector.extract_strided_slice %1 {offsets = [0, 32], sizes = [8, 32], strides = [1, 1]} : vector<8x96xbf16> to vector<8x32xbf16>
    %19 = vector.extract_strided_slice %1 {offsets = [0, 64], sizes = [8, 32], strides = [1, 1]} : vector<8x96xbf16> to vector<8x32xbf16>
    %20 = vector.extract_strided_slice %17 {offsets = [0, 0], sizes = [8, 8], strides = [1, 1]} : vector<8x32xbf16> to vector<8x8xbf16>
    %21 = vector.extract_strided_slice %18 {offsets = [0, 0], sizes = [8, 8], strides = [1, 1]} : vector<8x32xbf16> to vector<8x8xbf16>
    %22 = vector.extract_strided_slice %19 {offsets = [0, 0], sizes = [8, 8], strides = [1, 1]} : vector<8x32xbf16> to vector<8x8xbf16>
    %cst_8 = arith.constant dense<0.000000e+00> : vector<8x8xf32>
    %23 = tpu.matmul %20, %21, %cst_8 {dimension_numbers = #tpu.dot_dimension_numbers<[1], [1], [0], [0], [0, 0, 1, 0], [], []>} : vector<8x8xbf16>, vector<8x8xbf16>, vector<8x8xf32> -> vector<8x8xf32>
    %cst_9 = arith.constant 0.353553385 : f32
    %24 = vector.broadcast %cst_9 : f32 to vector<8x8xf32>
    %25 = arith.mulf %23, %24 : vector<8x8xf32>
    %26 = arith.addf %25, %16 : vector<8x8xf32>
    %cst_10 = arith.constant dense<0xFF800000> : vector<8xf32>
    %27 = vector.multi_reduction <maximumf>, %26, %cst_10 [1] : vector<8x8xf32> to vector<8xf32>
    %28 = vector.shape_cast %27 : vector<8xf32> to vector<8x1xf32>
    %29 = vector.broadcast %28 : vector<8x1xf32> to vector<8x8xf32>
    %30 = arith.subf %26, %29 : vector<8x8xf32>
    %31 = math.exp %30 : vector<8x8xf32>
    %cst_11 = arith.constant dense<0.000000e+00> : vector<8xf32>
    %32 = vector.multi_reduction <add>, %31, %cst_11 [1] : vector<8x8xf32> to vector<8xf32>
    %33 = vector.shape_cast %32 : vector<8xf32> to vector<8x1xf32>
    %34 = vector.broadcast %33 : vector<8x1xf32> to vector<8x8xf32>
    %35 = arith.divf %31, %34 : vector<8x8xf32>
    %36 = arith.truncf %35 : vector<8x8xf32> to vector<8x8xbf16>
    %cst_12 = arith.constant dense<0.000000e+00> : vector<8x8xf32>
    %37 = tpu.matmul %36, %22, %cst_12 {dimension_numbers = #tpu.dot_dimension_numbers<[1], [0], [0], [1], [0, 0, 1, 1], [], []>} : vector<8x8xbf16>, vector<8x8xbf16>, vector<8x8xf32> -> vector<8x8xf32>
    %38 = vector.extract_strided_slice %17 {offsets = [0, 8], sizes = [8, 8], strides = [1, 1]} : vector<8x32xbf16> to vector<8x8xbf16>
    %39 = vector.extract_strided_slice %18 {offsets = [0, 8], sizes = [8, 8], strides = [1, 1]} : vector<8x32xbf16> to vector<8x8xbf16>
    %40 = vector.extract_strided_slice %19 {offsets = [0, 8], sizes = [8, 8], strides = [1, 1]} : vector<8x32xbf16> to vector<8x8xbf16>
    %cst_13 = arith.constant dense<0.000000e+00> : vector<8x8xf32>
    %41 = tpu.matmul %38, %39, %cst_13 {dimension_numbers = #tpu.dot_dimension_numbers<[1], [1], [0], [0], [0, 0, 1, 0], [], []>} : vector<8x8xbf16>, vector<8x8xbf16>, vector<8x8xf32> -> vector<8x8xf32>
    %cst_14 = arith.constant 0.353553385 : f32
    %42 = vector.broadcast %cst_14 : f32 to vector<8x8xf32>
    %43 = arith.mulf %41, %42 : vector<8x8xf32>
    %44 = arith.addf %43, %16 : vector<8x8xf32>
    %cst_15 = arith.constant dense<0xFF800000> : vector<8xf32>
    %45 = vector.multi_reduction <maximumf>, %44, %cst_15 [1] : vector<8x8xf32> to vector<8xf32>
    %46 = vector.shape_cast %45 : vector<8xf32> to vector<8x1xf32>
    %47 = vector.broadcast %46 : vector<8x1xf32> to vector<8x8xf32>
    %48 = arith.subf %44, %47 : vector<8x8xf32>
    %49 = math.exp %48 : vector<8x8xf32>
    %cst_16 = arith.constant dense<0.000000e+00> : vector<8xf32>
    %50 = vector.multi_reduction <add>, %49, %cst_16 [1] : vector<8x8xf32> to vector<8xf32>
    %51 = vector.shape_cast %50 : vector<8xf32> to vector<8x1xf32>
    %52 = vector.broadcast %51 : vector<8x1xf32> to vector<8x8xf32>
    %53 = arith.divf %49, %52 : vector<8x8xf32>
    %54 = arith.truncf %53 : vector<8x8xf32> to vector<8x8xbf16>
    %cst_17 = arith.constant dense<0.000000e+00> : vector<8x8xf32>
    %55 = tpu.matmul %54, %40, %cst_17 {dimension_numbers = #tpu.dot_dimension_numbers<[1], [0], [0], [1], [0, 0, 1, 1], [], []>} : vector<8x8xbf16>, vector<8x8xbf16>, vector<8x8xf32> -> vector<8x8xf32>
    %56 = vector.extract_strided_slice %17 {offsets = [0, 16], sizes = [8, 8], strides = [1, 1]} : vector<8x32xbf16> to vector<8x8xbf16>
    %57 = vector.extract_strided_slice %18 {offsets = [0, 16], sizes = [8, 8], strides = [1, 1]} : vector<8x32xbf16> to vector<8x8xbf16>
    %58 = vector.extract_strided_slice %19 {offsets = [0, 16], sizes = [8, 8], strides = [1, 1]} : vector<8x32xbf16> to vector<8x8xbf16>
    %cst_18 = arith.constant dense<0.000000e+00> : vector<8x8xf32>
    %59 = tpu.matmul %56, %57, %cst_18 {dimension_numbers = #tpu.dot_dimension_numbers<[1], [1], [0], [0], [0, 0, 1, 0], [], []>} : vector<8x8xbf16>, vector<8x8xbf16>, vector<8x8xf32> -> vector<8x8xf32>
    %cst_19 = arith.constant 0.353553385 : f32
    %60 = vector.broadcast %cst_19 : f32 to vector<8x8xf32>
    %61 = arith.mulf %59, %60 : vector<8x8xf32>
    %62 = arith.addf %61, %16 : vector<8x8xf32>
    %cst_20 = arith.constant dense<0xFF800000> : vector<8xf32>
    %63 = vector.multi_reduction <maximumf>, %62, %cst_20 [1] : vector<8x8xf32> to vector<8xf32>
    %64 = vector.shape_cast %63 : vector<8xf32> to vector<8x1xf32>
    %65 = vector.broadcast %64 : vector<8x1xf32> to vector<8x8xf32>
    %66 = arith.subf %62, %65 : vector<8x8xf32>
    %67 = math.exp %66 : vector<8x8xf32>
    %cst_21 = arith.constant dense<0.000000e+00> : vector<8xf32>
    %68 = vector.multi_reduction <add>, %67, %cst_21 [1] : vector<8x8xf32> to vector<8xf32>
    %69 = vector.shape_cast %68 : vector<8xf32> to vector<8x1xf32>
    %70 = vector.broadcast %69 : vector<8x1xf32> to vector<8x8xf32>
    %71 = arith.divf %67, %70 : vector<8x8xf32>
    %72 = arith.truncf %71 : vector<8x8xf32> to vector<8x8xbf16>
    %cst_22 = arith.constant dense<0.000000e+00> : vector<8x8xf32>
    %73 = tpu.matmul %72, %58, %cst_22 {dimension_numbers = #tpu.dot_dimension_numbers<[1], [0], [0], [1], [0, 0, 1, 1], [], []>} : vector<8x8xbf16>, vector<8x8xbf16>, vector<8x8xf32> -> vector<8x8xf32>
    %74 = vector.extract_strided_slice %17 {offsets = [0, 24], sizes = [8, 8], strides = [1, 1]} : vector<8x32xbf16> to vector<8x8xbf16>
    %75 = vector.extract_strided_slice %18 {offsets = [0, 24], sizes = [8, 8], strides = [1, 1]} : vector<8x32xbf16> to vector<8x8xbf16>
    %76 = vector.extract_strided_slice %19 {offsets = [0, 24], sizes = [8, 8], strides = [1, 1]} : vector<8x32xbf16> to vector<8x8xbf16>
    %cst_23 = arith.constant dense<0.000000e+00> : vector<8x8xf32>
    %77 = tpu.matmul %74, %75, %cst_23 {dimension_numbers = #tpu.dot_dimension_numbers<[1], [1], [0], [0], [0, 0, 1, 0], [], []>} : vector<8x8xbf16>, vector<8x8xbf16>, vector<8x8xf32> -> vector<8x8xf32>
    %cst_24 = arith.constant 0.353553385 : f32
    %78 = vector.broadcast %cst_24 : f32 to vector<8x8xf32>
    %79 = arith.mulf %77, %78 : vector<8x8xf32>
    %80 = arith.addf %79, %16 : vector<8x8xf32>
    %cst_25 = arith.constant dense<0xFF800000> : vector<8xf32>
    %81 = vector.multi_reduction <maximumf>, %80, %cst_25 [1] : vector<8x8xf32> to vector<8xf32>
    %82 = vector.shape_cast %81 : vector<8xf32> to vector<8x1xf32>
    %83 = vector.broadcast %82 : vector<8x1xf32> to vector<8x8xf32>
    %84 = arith.subf %80, %83 : vector<8x8xf32>
    %85 = math.exp %84 : vector<8x8xf32>
    %cst_26 = arith.constant dense<0.000000e+00> : vector<8xf32>
    %86 = vector.multi_reduction <add>, %85, %cst_26 [1] : vector<8x8xf32> to vector<8xf32>
    %87 = vector.shape_cast %86 : vector<8xf32> to vector<8x1xf32>
    %88 = vector.broadcast %87 : vector<8x1xf32> to vector<8x8xf32>
    %89 = arith.divf %85, %88 : vector<8x8xf32>
    %90 = arith.truncf %89 : vector<8x8xf32> to vector<8x8xbf16>
    %cst_27 = arith.constant dense<0.000000e+00> : vector<8x8xf32>
    %91 = tpu.matmul %90, %76, %cst_27 {dimension_numbers = #tpu.dot_dimension_numbers<[1], [0], [0], [1], [0, 0, 1, 1], [], []>} : vector<8x8xbf16>, vector<8x8xbf16>, vector<8x8xf32> -> vector<8x8xf32>
    %92 = tpu.concatenate %37, %55, %73, %91 in 1 : vector<8x8xf32>, vector<8x8xf32>, vector<8x8xf32>, vector<8x8xf32> -> vector<8x32xf32>
    %93 = arith.truncf %92 : vector<8x32xf32> to vector<8x32xbf16>
    %c0_28 = arith.constant 0 : index
    %c0_29 = arith.constant 0 : index
    %94 = vector.load %arg3[%c0_28, %c0_29] : memref<32x32xbf16, #tpu.memory_space<vmem>>, vector<32x32xbf16>
    %cst_30 = arith.constant dense<0.000000e+00> : vector<8x32xf32>
    %95 = tpu.matmul %93, %94, %cst_30 {dimension_numbers = #tpu.dot_dimension_numbers<[1], [0], [0], [1], [0, 0, 1, 1], [], []>} : vector<8x32xbf16>, vector<32x32xbf16>, vector<8x32xf32> -> vector<8x32xf32>
    %c0_31 = arith.constant 0 : index
    %c0_32 = arith.constant 0 : index
    %96 = vector.load %arg4[%c0_31, %c0_32] : memref<1x32xf32, #tpu.memory_space<vmem>>, vector<1x32xf32>
    %97 = vector.broadcast %96 : vector<1x32xf32> to vector<8x32xf32>
    %98 = arith.addf %95, %97 : vector<8x32xf32>
    %c0_33 = arith.constant 0 : index
    %c0_34 = arith.constant 0 : index
    %c0_35 = arith.constant 0 : index
    %99 = vector.load %arg5[%c0_33, %c0_34, %c0_35] : memref<1x8x32xf32, #tpu.memory_space<vmem>>, vector<1x8x32xf32>
    %100 = vector.shape_cast %99 : vector<1x8x32xf32> to vector<8x32xf32>
    %101 = arith.addf %98, %100 : vector<8x32xf32>
    %cst_36 = arith.constant dense<0.000000e+00> : vector<8xf32>
    %102 = vector.multi_reduction <add>, %101, %cst_36 [1] : vector<8x32xf32> to vector<8xf32>
    %103 = vector.shape_cast %102 : vector<8xf32> to vector<8x1xf32>
    %cst_37 = arith.constant 3.200000e+01 : f32
    %104 = vector.broadcast %cst_37 : f32 to vector<8x1xf32>
    %105 = arith.divf %103, %104 : vector<8x1xf32>
    %106 = vector.broadcast %105 : vector<8x1xf32> to vector<8x32xf32>
    %107 = arith.subf %101, %106 : vector<8x32xf32>
    %108 = arith.mulf %107, %107 : vector<8x32xf32>
    %cst_38 = arith.constant dense<0.000000e+00> : vector<8xf32>
    %109 = vector.multi_reduction <add>, %108, %cst_38 [1] : vector<8x32xf32> to vector<8xf32>
    %110 = vector.shape_cast %109 : vector<8xf32> to vector<8x1xf32>
    %cst_39 = arith.constant 3.200000e+01 : f32
    %111 = vector.broadcast %cst_39 : f32 to vector<8x1xf32>
    %112 = arith.divf %110, %111 : vector<8x1xf32>
    %113 = vector.broadcast %105 : vector<8x1xf32> to vector<8x32xf32>
    %114 = arith.subf %101, %113 : vector<8x32xf32>
    %cst_40 = arith.constant 9.99999974E-6 : f32
    %115 = vector.broadcast %cst_40 : f32 to vector<8x1xf32>
    %116 = arith.addf %112, %115 : vector<8x1xf32>
    %117 = math.rsqrt %116 : vector<8x1xf32>
    %118 = vector.broadcast %117 : vector<8x1xf32> to vector<8x32xf32>
    %119 = arith.mulf %114, %118 : vector<8x32xf32>
    %c0_41 = arith.constant 0 : index
    %c0_42 = arith.constant 0 : index
    %120 = vector.load %arg6[%c0_41, %c0_42] : memref<1x32xf32, #tpu.memory_space<vmem>>, vector<1x32xf32>
    %121 = vector.broadcast %120 : vector<1x32xf32> to vector<8x32xf32>
    %122 = arith.mulf %119, %121 : vector<8x32xf32>
    %c0_43 = arith.constant 0 : index
    %c0_44 = arith.constant 0 : index
    %123 = vector.load %arg7[%c0_43, %c0_44] : memref<1x32xf32, #tpu.memory_space<vmem>>, vector<1x32xf32>
    %124 = vector.broadcast %123 : vector<1x32xf32> to vector<8x32xf32>
    %125 = arith.addf %122, %124 : vector<8x32xf32>
    %c0_45 = arith.constant 0 : index
    %c0_46 = arith.constant 0 : index
    %c0_47 = arith.constant 0 : index
    %126 = vector.load %arg8[%c0_45, %c0_46, %c0_47] : memref<1x8x32xf32, #tpu.memory_space<vmem>>, vector<1x8x32xf32>
    %127 = vector.shape_cast %126 : vector<1x8x32xf32> to vector<8x32xf32>
    %128 = vector.shape_cast %125 : vector<8x32xf32> to vector<1x8x32xf32>
    tpu.vector_store %arg8[%c0_45, %c0_46, %c0_47], %128 {strides = array<i32>} : memref<1x8x32xf32, #tpu.memory_space<vmem>>, vector<1x8x32xf32>,
    return
  }
  func.func @transform_0(%arg0: i32) -> (i32, i32, i32) {
    %c0_i32 = arith.constant 0 : i32
    %c0_i32_0 = arith.constant 0 : i32
    %c0_i32_1 = arith.constant 0 : i32
    return %arg0, %c0_i32, %c0_i32_0 : i32, i32, i32
  }
  func.func @transform_1(%arg0: i32) -> (i32, i32, i32) {
    %c0_i32 = arith.constant 0 : i32
    %c0_i32_0 = arith.constant 0 : i32
    %c0_i32_1 = arith.constant 0 : i32
    return %arg0, %c0_i32, %c0_i32_0 : i32, i32, i32
  }
  func.func @transform_2(%arg0: i32) -> (i32, i32) {
    %c0_i32 = arith.constant 0 : i32
    %c0_i32_0 = arith.constant 0 : i32
    %c0_i32_1 = arith.constant 0 : i32
    return %c0_i32, %c0_i32_0 : i32, i32
  }
  func.func @transform_3(%arg0: i32) -> (i32, i32) {
    %c0_i32 = arith.constant 0 : i32
    %c0_i32_0 = arith.constant 0 : i32
    %c0_i32_1 = arith.constant 0 : i32
    return %c0_i32, %c0_i32_0 : i32, i32
  }
  func.func @transform_4(%arg0: i32) -> (i32, i32, i32) {
    %c0_i32 = arith.constant 0 : i32
    %c0_i32_0 = arith.constant 0 : i32
    %c0_i32_1 = arith.constant 0 : i32
    return %arg0, %c0_i32, %c0_i32_0 : i32, i32, i32
  }
  func.func @transform_5(%arg0: i32) -> (i32, i32) {
    %c0_i32 = arith.constant 0 : i32
    %c0_i32_0 = arith.constant 0 : i32
    %c0_i32_1 = arith.constant 0 : i32
    return %c0_i32, %c0_i32_0 : i32, i32
  }
  func.func @transform_6(%arg0: i32) -> (i32, i32) {
    %c0_i32 = arith.constant 0 : i32
    %c0_i32_0 = arith.constant 0 : i32
    %c0_i32_1 = arith.constant 0 : i32
    return %c0_i32, %c0_i32_0 : i32, i32
  }
  func.func @transform_7(%arg0: i32) -> (i32, i32, i32) {
    %c0_i32 = arith.constant 0 : i32
    %c0_i32_0 = arith.constant 0 : i32
    %c0_i32_1 = arith.constant 0 : i32
    return %arg0, %c0_i32, %c0_i32_0 : i32, i32, i32
  }
}

module attributes {stable_mosaic.version = 11 : i64} {
  func.func @_cross_attn_kernel(%arg0: i32, %arg1: memref<1x1x8xi32, #tpu.memory_space<vmem>>, %arg2: memref<1x8x32xbf16, #tpu.memory_space<vmem>>, %arg3: memref<1x8x64xbf16, #tpu.memory_space<vmem>>, %arg4: memref<32x32xbf16, #tpu.memory_space<vmem>>, %arg5: memref<1x32xf32, #tpu.memory_space<vmem>>, %arg6: memref<1x8x32xf32, #tpu.memory_space<vmem>>, %arg7: memref<1x32xf32, #tpu.memory_space<vmem>>, %arg8: memref<1x32xf32, #tpu.memory_space<vmem>>, %arg9: memref<1x8x32xf32, #tpu.memory_space<vmem>>) attributes {dimension_semantics = [#tpu.dimension_semantics<parallel>], iteration_bounds = array<i64: 2>, scalar_prefetch = 0 : i64, scratch_operands = 0 : i64, tpu.core_type = #tpu.core_type<tc>, window_params = [{transform_indices = @transform_0, window_bounds = array<i64: 1, 1, 8>}, {transform_indices = @transform_1, window_bounds = array<i64: 1, 8, 32>}, {transform_indices = @transform_2, window_bounds = array<i64: 1, 8, 64>}, {pipeline_mode = #tpu.pipeline_mode<synchronous>, transform_indices = @transform_3, window_bounds = array<i64: 32, 32>}, {pipeline_mode = #tpu.pipeline_mode<synchronous>, transform_indices = @transform_4, window_bounds = array<i64: 1, 32>}, {transform_indices = @transform_5, window_bounds = array<i64: 1, 8, 32>}, {pipeline_mode = #tpu.pipeline_mode<synchronous>, transform_indices = @transform_6, window_bounds = array<i64: 1, 32>}, {pipeline_mode = #tpu.pipeline_mode<synchronous>, transform_indices = @transform_7, window_bounds = array<i64: 1, 32>}, {transform_indices = @transform_8, window_bounds = array<i64: 1, 8, 32>}]} {
    %c0 = arith.constant 0 : index
    %c0_0 = arith.constant 0 : index
    %c0_1 = arith.constant 0 : index
    %0 = vector.load %arg3[%c0, %c0_0, %c0_1] : memref<1x8x64xbf16, #tpu.memory_space<vmem>>, vector<1x8x64xbf16>
    %1 = vector.shape_cast %0 : vector<1x8x64xbf16> to vector<8x64xbf16>
    %c0_2 = arith.constant 0 : index
    %c0_3 = arith.constant 0 : index
    %c0_4 = arith.constant 0 : index
    %2 = vector.load %arg1[%c0_2, %c0_3, %c0_4] : memref<1x1x8xi32, #tpu.memory_space<vmem>>, vector<1x1x8xi32>
    %3 = vector.shape_cast %2 : vector<1x1x8xi32> to vector<1x8xi32>
    %c0_i32 = arith.constant 0 : i32
    %4 = vector.broadcast %c0_i32 : i32 to vector<1x8xi32>
    %5 = arith.cmpi ne, %3, %4 : vector<1x8xi32>
    %cst = arith.constant -1.000000e+09 : f32
    %cst_5 = arith.constant 0.000000e+00 : f32
    %6 = vector.broadcast %cst : f32 to vector<1x8xf32>
    %7 = vector.broadcast %cst_5 : f32 to vector<1x8xf32>
    %8 = arith.select %5, %6, %7 : vector<1x8xi1>, vector<1x8xf32>
    %c0_6 = arith.constant 0 : index
    %c0_7 = arith.constant 0 : index
    %c0_8 = arith.constant 0 : index
    %9 = vector.load %arg2[%c0_6, %c0_7, %c0_8] : memref<1x8x32xbf16, #tpu.memory_space<vmem>>, vector<1x8x32xbf16>
    %10 = vector.shape_cast %9 : vector<1x8x32xbf16> to vector<8x32xbf16>
    %11 = vector.extract_strided_slice %1 {offsets = [0, 0], sizes = [8, 32], strides = [1, 1]} : vector<8x64xbf16> to vector<8x32xbf16>
    %12 = vector.extract_strided_slice %1 {offsets = [0, 32], sizes = [8, 32], strides = [1, 1]} : vector<8x64xbf16> to vector<8x32xbf16>
    %13 = vector.extract_strided_slice %10 {offsets = [0, 0], sizes = [8, 8], strides = [1, 1]} : vector<8x32xbf16> to vector<8x8xbf16>
    %14 = vector.extract_strided_slice %11 {offsets = [0, 0], sizes = [8, 8], strides = [1, 1]} : vector<8x32xbf16> to vector<8x8xbf16>
    %15 = vector.extract_strided_slice %12 {offsets = [0, 0], sizes = [8, 8], strides = [1, 1]} : vector<8x32xbf16> to vector<8x8xbf16>
    %cst_9 = arith.constant dense<0.000000e+00> : vector<8x8xf32>
    %16 = tpu.matmul %13, %14, %cst_9 {dimension_numbers = #tpu.dot_dimension_numbers<[1], [1], [0], [0], [0, 0, 1, 0], [], []>} : vector<8x8xbf16>, vector<8x8xbf16>, vector<8x8xf32> -> vector<8x8xf32>
    %cst_10 = arith.constant 0.353553385 : f32
    %17 = vector.broadcast %cst_10 : f32 to vector<8x8xf32>
    %18 = arith.mulf %16, %17 : vector<8x8xf32>
    %19 = vector.broadcast %8 : vector<1x8xf32> to vector<8x8xf32>
    %20 = arith.addf %18, %19 : vector<8x8xf32>
    %cst_11 = arith.constant dense<0xFF800000> : vector<8xf32>
    %21 = vector.multi_reduction <maximumf>, %20, %cst_11 [1] : vector<8x8xf32> to vector<8xf32>
    %22 = vector.shape_cast %21 : vector<8xf32> to vector<8x1xf32>
    %23 = vector.broadcast %22 : vector<8x1xf32> to vector<8x8xf32>
    %24 = arith.subf %20, %23 : vector<8x8xf32>
    %25 = math.exp %24 : vector<8x8xf32>
    %cst_12 = arith.constant dense<0.000000e+00> : vector<8xf32>
    %26 = vector.multi_reduction <add>, %25, %cst_12 [1] : vector<8x8xf32> to vector<8xf32>
    %27 = vector.shape_cast %26 : vector<8xf32> to vector<8x1xf32>
    %28 = vector.broadcast %27 : vector<8x1xf32> to vector<8x8xf32>
    %29 = arith.divf %25, %28 : vector<8x8xf32>
    %30 = arith.truncf %29 : vector<8x8xf32> to vector<8x8xbf16>
    %cst_13 = arith.constant dense<0.000000e+00> : vector<8x8xf32>
    %31 = tpu.matmul %30, %15, %cst_13 {dimension_numbers = #tpu.dot_dimension_numbers<[1], [0], [0], [1], [0, 0, 1, 1], [], []>} : vector<8x8xbf16>, vector<8x8xbf16>, vector<8x8xf32> -> vector<8x8xf32>
    %32 = vector.extract_strided_slice %10 {offsets = [0, 8], sizes = [8, 8], strides = [1, 1]} : vector<8x32xbf16> to vector<8x8xbf16>
    %33 = vector.extract_strided_slice %11 {offsets = [0, 8], sizes = [8, 8], strides = [1, 1]} : vector<8x32xbf16> to vector<8x8xbf16>
    %34 = vector.extract_strided_slice %12 {offsets = [0, 8], sizes = [8, 8], strides = [1, 1]} : vector<8x32xbf16> to vector<8x8xbf16>
    %cst_14 = arith.constant dense<0.000000e+00> : vector<8x8xf32>
    %35 = tpu.matmul %32, %33, %cst_14 {dimension_numbers = #tpu.dot_dimension_numbers<[1], [1], [0], [0], [0, 0, 1, 0], [], []>} : vector<8x8xbf16>, vector<8x8xbf16>, vector<8x8xf32> -> vector<8x8xf32>
    %cst_15 = arith.constant 0.353553385 : f32
    %36 = vector.broadcast %cst_15 : f32 to vector<8x8xf32>
    %37 = arith.mulf %35, %36 : vector<8x8xf32>
    %38 = vector.broadcast %8 : vector<1x8xf32> to vector<8x8xf32>
    %39 = arith.addf %37, %38 : vector<8x8xf32>
    %cst_16 = arith.constant dense<0xFF800000> : vector<8xf32>
    %40 = vector.multi_reduction <maximumf>, %39, %cst_16 [1] : vector<8x8xf32> to vector<8xf32>
    %41 = vector.shape_cast %40 : vector<8xf32> to vector<8x1xf32>
    %42 = vector.broadcast %41 : vector<8x1xf32> to vector<8x8xf32>
    %43 = arith.subf %39, %42 : vector<8x8xf32>
    %44 = math.exp %43 : vector<8x8xf32>
    %cst_17 = arith.constant dense<0.000000e+00> : vector<8xf32>
    %45 = vector.multi_reduction <add>, %44, %cst_17 [1] : vector<8x8xf32> to vector<8xf32>
    %46 = vector.shape_cast %45 : vector<8xf32> to vector<8x1xf32>
    %47 = vector.broadcast %46 : vector<8x1xf32> to vector<8x8xf32>
    %48 = arith.divf %44, %47 : vector<8x8xf32>
    %49 = arith.truncf %48 : vector<8x8xf32> to vector<8x8xbf16>
    %cst_18 = arith.constant dense<0.000000e+00> : vector<8x8xf32>
    %50 = tpu.matmul %49, %34, %cst_18 {dimension_numbers = #tpu.dot_dimension_numbers<[1], [0], [0], [1], [0, 0, 1, 1], [], []>} : vector<8x8xbf16>, vector<8x8xbf16>, vector<8x8xf32> -> vector<8x8xf32>
    %51 = vector.extract_strided_slice %10 {offsets = [0, 16], sizes = [8, 8], strides = [1, 1]} : vector<8x32xbf16> to vector<8x8xbf16>
    %52 = vector.extract_strided_slice %11 {offsets = [0, 16], sizes = [8, 8], strides = [1, 1]} : vector<8x32xbf16> to vector<8x8xbf16>
    %53 = vector.extract_strided_slice %12 {offsets = [0, 16], sizes = [8, 8], strides = [1, 1]} : vector<8x32xbf16> to vector<8x8xbf16>
    %cst_19 = arith.constant dense<0.000000e+00> : vector<8x8xf32>
    %54 = tpu.matmul %51, %52, %cst_19 {dimension_numbers = #tpu.dot_dimension_numbers<[1], [1], [0], [0], [0, 0, 1, 0], [], []>} : vector<8x8xbf16>, vector<8x8xbf16>, vector<8x8xf32> -> vector<8x8xf32>
    %cst_20 = arith.constant 0.353553385 : f32
    %55 = vector.broadcast %cst_20 : f32 to vector<8x8xf32>
    %56 = arith.mulf %54, %55 : vector<8x8xf32>
    %57 = vector.broadcast %8 : vector<1x8xf32> to vector<8x8xf32>
    %58 = arith.addf %56, %57 : vector<8x8xf32>
    %cst_21 = arith.constant dense<0xFF800000> : vector<8xf32>
    %59 = vector.multi_reduction <maximumf>, %58, %cst_21 [1] : vector<8x8xf32> to vector<8xf32>
    %60 = vector.shape_cast %59 : vector<8xf32> to vector<8x1xf32>
    %61 = vector.broadcast %60 : vector<8x1xf32> to vector<8x8xf32>
    %62 = arith.subf %58, %61 : vector<8x8xf32>
    %63 = math.exp %62 : vector<8x8xf32>
    %cst_22 = arith.constant dense<0.000000e+00> : vector<8xf32>
    %64 = vector.multi_reduction <add>, %63, %cst_22 [1] : vector<8x8xf32> to vector<8xf32>
    %65 = vector.shape_cast %64 : vector<8xf32> to vector<8x1xf32>
    %66 = vector.broadcast %65 : vector<8x1xf32> to vector<8x8xf32>
    %67 = arith.divf %63, %66 : vector<8x8xf32>
    %68 = arith.truncf %67 : vector<8x8xf32> to vector<8x8xbf16>
    %cst_23 = arith.constant dense<0.000000e+00> : vector<8x8xf32>
    %69 = tpu.matmul %68, %53, %cst_23 {dimension_numbers = #tpu.dot_dimension_numbers<[1], [0], [0], [1], [0, 0, 1, 1], [], []>} : vector<8x8xbf16>, vector<8x8xbf16>, vector<8x8xf32> -> vector<8x8xf32>
    %70 = vector.extract_strided_slice %10 {offsets = [0, 24], sizes = [8, 8], strides = [1, 1]} : vector<8x32xbf16> to vector<8x8xbf16>
    %71 = vector.extract_strided_slice %11 {offsets = [0, 24], sizes = [8, 8], strides = [1, 1]} : vector<8x32xbf16> to vector<8x8xbf16>
    %72 = vector.extract_strided_slice %12 {offsets = [0, 24], sizes = [8, 8], strides = [1, 1]} : vector<8x32xbf16> to vector<8x8xbf16>
    %cst_24 = arith.constant dense<0.000000e+00> : vector<8x8xf32>
    %73 = tpu.matmul %70, %71, %cst_24 {dimension_numbers = #tpu.dot_dimension_numbers<[1], [1], [0], [0], [0, 0, 1, 0], [], []>} : vector<8x8xbf16>, vector<8x8xbf16>, vector<8x8xf32> -> vector<8x8xf32>
    %cst_25 = arith.constant 0.353553385 : f32
    %74 = vector.broadcast %cst_25 : f32 to vector<8x8xf32>
    %75 = arith.mulf %73, %74 : vector<8x8xf32>
    %76 = vector.broadcast %8 : vector<1x8xf32> to vector<8x8xf32>
    %77 = arith.addf %75, %76 : vector<8x8xf32>
    %cst_26 = arith.constant dense<0xFF800000> : vector<8xf32>
    %78 = vector.multi_reduction <maximumf>, %77, %cst_26 [1] : vector<8x8xf32> to vector<8xf32>
    %79 = vector.shape_cast %78 : vector<8xf32> to vector<8x1xf32>
    %80 = vector.broadcast %79 : vector<8x1xf32> to vector<8x8xf32>
    %81 = arith.subf %77, %80 : vector<8x8xf32>
    %82 = math.exp %81 : vector<8x8xf32>
    %cst_27 = arith.constant dense<0.000000e+00> : vector<8xf32>
    %83 = vector.multi_reduction <add>, %82, %cst_27 [1] : vector<8x8xf32> to vector<8xf32>
    %84 = vector.shape_cast %83 : vector<8xf32> to vector<8x1xf32>
    %85 = vector.broadcast %84 : vector<8x1xf32> to vector<8x8xf32>
    %86 = arith.divf %82, %85 : vector<8x8xf32>
    %87 = arith.truncf %86 : vector<8x8xf32> to vector<8x8xbf16>
    %cst_28 = arith.constant dense<0.000000e+00> : vector<8x8xf32>
    %88 = tpu.matmul %87, %72, %cst_28 {dimension_numbers = #tpu.dot_dimension_numbers<[1], [0], [0], [1], [0, 0, 1, 1], [], []>} : vector<8x8xbf16>, vector<8x8xbf16>, vector<8x8xf32> -> vector<8x8xf32>
    %89 = tpu.concatenate %31, %50, %69, %88 in 1 : vector<8x8xf32>, vector<8x8xf32>, vector<8x8xf32>, vector<8x8xf32> -> vector<8x32xf32>
    %90 = arith.truncf %89 : vector<8x32xf32> to vector<8x32xbf16>
    %c0_29 = arith.constant 0 : index
    %c0_30 = arith.constant 0 : index
    %91 = vector.load %arg4[%c0_29, %c0_30] : memref<32x32xbf16, #tpu.memory_space<vmem>>, vector<32x32xbf16>
    %cst_31 = arith.constant dense<0.000000e+00> : vector<8x32xf32>
    %92 = tpu.matmul %90, %91, %cst_31 {dimension_numbers = #tpu.dot_dimension_numbers<[1], [0], [0], [1], [0, 0, 1, 1], [], []>} : vector<8x32xbf16>, vector<32x32xbf16>, vector<8x32xf32> -> vector<8x32xf32>
    %c0_32 = arith.constant 0 : index
    %c0_33 = arith.constant 0 : index
    %93 = vector.load %arg5[%c0_32, %c0_33] : memref<1x32xf32, #tpu.memory_space<vmem>>, vector<1x32xf32>
    %94 = vector.broadcast %93 : vector<1x32xf32> to vector<8x32xf32>
    %95 = arith.addf %92, %94 : vector<8x32xf32>
    %c0_34 = arith.constant 0 : index
    %c0_35 = arith.constant 0 : index
    %c0_36 = arith.constant 0 : index
    %96 = vector.load %arg6[%c0_34, %c0_35, %c0_36] : memref<1x8x32xf32, #tpu.memory_space<vmem>>, vector<1x8x32xf32>
    %97 = vector.shape_cast %96 : vector<1x8x32xf32> to vector<8x32xf32>
    %98 = arith.addf %95, %97 : vector<8x32xf32>
    %cst_37 = arith.constant dense<0.000000e+00> : vector<8xf32>
    %99 = vector.multi_reduction <add>, %98, %cst_37 [1] : vector<8x32xf32> to vector<8xf32>
    %100 = vector.shape_cast %99 : vector<8xf32> to vector<8x1xf32>
    %cst_38 = arith.constant 3.200000e+01 : f32
    %101 = vector.broadcast %cst_38 : f32 to vector<8x1xf32>
    %102 = arith.divf %100, %101 : vector<8x1xf32>
    %103 = vector.broadcast %102 : vector<8x1xf32> to vector<8x32xf32>
    %104 = arith.subf %98, %103 : vector<8x32xf32>
    %105 = arith.mulf %104, %104 : vector<8x32xf32>
    %cst_39 = arith.constant dense<0.000000e+00> : vector<8xf32>
    %106 = vector.multi_reduction <add>, %105, %cst_39 [1] : vector<8x32xf32> to vector<8xf32>
    %107 = vector.shape_cast %106 : vector<8xf32> to vector<8x1xf32>
    %cst_40 = arith.constant 3.200000e+01 : f32
    %108 = vector.broadcast %cst_40 : f32 to vector<8x1xf32>
    %109 = arith.divf %107, %108 : vector<8x1xf32>
    %110 = vector.broadcast %102 : vector<8x1xf32> to vector<8x32xf32>
    %111 = arith.subf %98, %110 : vector<8x32xf32>
    %cst_41 = arith.constant 9.99999974E-6 : f32
    %112 = vector.broadcast %cst_41 : f32 to vector<8x1xf32>
    %113 = arith.addf %109, %112 : vector<8x1xf32>
    %114 = math.rsqrt %113 : vector<8x1xf32>
    %115 = vector.broadcast %114 : vector<8x1xf32> to vector<8x32xf32>
    %116 = arith.mulf %111, %115 : vector<8x32xf32>
    %c0_42 = arith.constant 0 : index
    %c0_43 = arith.constant 0 : index
    %117 = vector.load %arg7[%c0_42, %c0_43] : memref<1x32xf32, #tpu.memory_space<vmem>>, vector<1x32xf32>
    %118 = vector.broadcast %117 : vector<1x32xf32> to vector<8x32xf32>
    %119 = arith.mulf %116, %118 : vector<8x32xf32>
    %c0_44 = arith.constant 0 : index
    %c0_45 = arith.constant 0 : index
    %120 = vector.load %arg8[%c0_44, %c0_45] : memref<1x32xf32, #tpu.memory_space<vmem>>, vector<1x32xf32>
    %121 = vector.broadcast %120 : vector<1x32xf32> to vector<8x32xf32>
    %122 = arith.addf %119, %121 : vector<8x32xf32>
    %c0_46 = arith.constant 0 : index
    %c0_47 = arith.constant 0 : index
    %c0_48 = arith.constant 0 : index
    %123 = vector.load %arg9[%c0_46, %c0_47, %c0_48] : memref<1x8x32xf32, #tpu.memory_space<vmem>>, vector<1x8x32xf32>
    %124 = vector.shape_cast %123 : vector<1x8x32xf32> to vector<8x32xf32>
    %125 = vector.shape_cast %122 : vector<8x32xf32> to vector<1x8x32xf32>
    tpu.vector_store %arg9[%c0_46, %c0_47, %c0_48], %125 {strides = array<i32>} : memref<1x8x32xf32, #tpu.memory_space<vmem>>, vector<1x8x32xf32>,
    return
  }
  func.func @transform_0(%arg0: i32) -> (i32, i32, i32) {
    %c0_i32 = arith.constant 0 : i32
    %c0_i32_0 = arith.constant 0 : i32
    %c0_i32_1 = arith.constant 0 : i32
    return %arg0, %c0_i32, %c0_i32_0 : i32, i32, i32
  }
  func.func @transform_1(%arg0: i32) -> (i32, i32, i32) {
    %c0_i32 = arith.constant 0 : i32
    %c0_i32_0 = arith.constant 0 : i32
    %c0_i32_1 = arith.constant 0 : i32
    return %arg0, %c0_i32, %c0_i32_0 : i32, i32, i32
  }
  func.func @transform_2(%arg0: i32) -> (i32, i32, i32) {
    %c0_i32 = arith.constant 0 : i32
    %c0_i32_0 = arith.constant 0 : i32
    %c0_i32_1 = arith.constant 0 : i32
    return %arg0, %c0_i32, %c0_i32_0 : i32, i32, i32
  }
  func.func @transform_3(%arg0: i32) -> (i32, i32) {
    %c0_i32 = arith.constant 0 : i32
    %c0_i32_0 = arith.constant 0 : i32
    %c0_i32_1 = arith.constant 0 : i32
    return %c0_i32, %c0_i32_0 : i32, i32
  }
  func.func @transform_4(%arg0: i32) -> (i32, i32) {
    %c0_i32 = arith.constant 0 : i32
    %c0_i32_0 = arith.constant 0 : i32
    %c0_i32_1 = arith.constant 0 : i32
    return %c0_i32, %c0_i32_0 : i32, i32
  }
  func.func @transform_5(%arg0: i32) -> (i32, i32, i32) {
    %c0_i32 = arith.constant 0 : i32
    %c0_i32_0 = arith.constant 0 : i32
    %c0_i32_1 = arith.constant 0 : i32
    return %arg0, %c0_i32, %c0_i32_0 : i32, i32, i32
  }
  func.func @transform_6(%arg0: i32) -> (i32, i32) {
    %c0_i32 = arith.constant 0 : i32
    %c0_i32_0 = arith.constant 0 : i32
    %c0_i32_1 = arith.constant 0 : i32
    return %c0_i32, %c0_i32_0 : i32, i32
  }
  func.func @transform_7(%arg0: i32) -> (i32, i32) {
    %c0_i32 = arith.constant 0 : i32
    %c0_i32_0 = arith.constant 0 : i32
    %c0_i32_1 = arith.constant 0 : i32
    return %c0_i32, %c0_i32_0 : i32, i32
  }
  func.func @transform_8(%arg0: i32) -> (i32, i32, i32) {
    %c0_i32 = arith.constant 0 : i32
    %c0_i32_0 = arith.constant 0 : i32
    %c0_i32_1 = arith.constant 0 : i32
    return %arg0, %c0_i32, %c0_i32_0 : i32, i32, i32
  }
}

module attributes {stable_mosaic.version = 11 : i64} {
  func.func @_matmul_kernel(%arg0: i32, %arg1: i32, %arg2: i32, %arg3: memref<16x32xf32, #tpu.memory_space<vmem>>, %arg4: memref<32x32xbf16, #tpu.memory_space<vmem>>, %arg5: memref<1x32xf32, #tpu.memory_space<vmem>>, %arg6: memref<16x32xbf16, #tpu.memory_space<vmem>>, %arg7: memref<16x32xf32, #tpu.memory_space<vmem>>) attributes {dimension_semantics = [#tpu.dimension_semantics<parallel>, #tpu.dimension_semantics<parallel>, #tpu.dimension_semantics<arbitrary>], iteration_bounds = array<i64: 1, 1, 1>, scalar_prefetch = 0 : i64, scratch_operands = 1 : i64, tpu.core_type = #tpu.core_type<tc>, window_params = [{transform_indices = @transform_0, window_bounds = array<i64: 16, 32>}, {transform_indices = @transform_1, window_bounds = array<i64: 32, 32>}, {transform_indices = @transform_2, window_bounds = array<i64: 1, 32>}, {transform_indices = @transform_3, window_bounds = array<i64: 16, 32>}]} {
    %c0_i32 = arith.constant 0 : i32
    %0 = arith.cmpi eq, %arg2, %c0_i32 : i32
    %1 = arith.extui %0 : i1 to i32
    %c0_i32_0 = arith.constant 0 : i32
    %2 = arith.cmpi ne, %1, %c0_i32_0 : i32
    scf.if %2 {
      %cst_10 = arith.constant 0.000000e+00 : f32
      %13 = vector.broadcast %cst_10 : f32 to vector<16x32xf32>
      %c0_11 = arith.constant 0 : index
      %c0_12 = arith.constant 0 : index
      %14 = vector.load %arg7[%c0_11, %c0_12] : memref<16x32xf32, #tpu.memory_space<vmem>>, vector<16x32xf32>
      tpu.vector_store %arg7[%c0_11, %c0_12], %13 {strides = array<i32>} : memref<16x32xf32, #tpu.memory_space<vmem>>, vector<16x32xf32>,
    } else {
    }
    %c0 = arith.constant 0 : index
    %c0_1 = arith.constant 0 : index
    %3 = vector.load %arg3[%c0, %c0_1] : memref<16x32xf32, #tpu.memory_space<vmem>>, vector<16x32xf32>
    %4 = arith.truncf %3 : vector<16x32xf32> to vector<16x32xbf16>
    %c0_2 = arith.constant 0 : index
    %c0_3 = arith.constant 0 : index
    %5 = vector.load %arg7[%c0_2, %c0_3] : memref<16x32xf32, #tpu.memory_space<vmem>>, vector<16x32xf32>
    %c0_4 = arith.constant 0 : index
    %c0_5 = arith.constant 0 : index
    %6 = vector.load %arg4[%c0_4, %c0_5] : memref<32x32xbf16, #tpu.memory_space<vmem>>, vector<32x32xbf16>
    %cst = arith.constant dense<0.000000e+00> : vector<16x32xf32>
    %7 = tpu.matmul %4, %6, %cst {dimension_numbers = #tpu.dot_dimension_numbers<[1], [0], [0], [1], [0, 0, 1, 1], [], []>} : vector<16x32xbf16>, vector<32x32xbf16>, vector<16x32xf32> -> vector<16x32xf32>
    %8 = arith.addf %5, %7 : vector<16x32xf32>
    %c0_6 = arith.constant 0 : index
    %c0_7 = arith.constant 0 : index
    %9 = vector.load %arg7[%c0_6, %c0_7] : memref<16x32xf32, #tpu.memory_space<vmem>>, vector<16x32xf32>
    tpu.vector_store %arg7[%c0_6, %c0_7], %8 {strides = array<i32>} : memref<16x32xf32, #tpu.memory_space<vmem>>, vector<16x32xf32>,
    %c0_i32_8 = arith.constant 0 : i32
    %10 = arith.cmpi eq, %arg2, %c0_i32_8 : i32
    %11 = arith.extui %10 : i1 to i32
    %c0_i32_9 = arith.constant 0 : i32
    %12 = arith.cmpi ne, %11, %c0_i32_9 : i32
    scf.if %12 {
      %c0_10 = arith.constant 0 : index
      %c0_11 = arith.constant 0 : index
      %13 = vector.load %arg7[%c0_10, %c0_11] : memref<16x32xf32, #tpu.memory_space<vmem>>, vector<16x32xf32>
      %c0_12 = arith.constant 0 : index
      %c0_13 = arith.constant 0 : index
      %14 = vector.load %arg5[%c0_12, %c0_13] : memref<1x32xf32, #tpu.memory_space<vmem>>, vector<1x32xf32>
      %15 = vector.broadcast %14 : vector<1x32xf32> to vector<16x32xf32>
      %16 = arith.addf %13, %15 : vector<16x32xf32>
      %17 = arith.truncf %16 : vector<16x32xf32> to vector<16x32xbf16>
      %c0_14 = arith.constant 0 : index
      %c0_15 = arith.constant 0 : index
      %18 = vector.load %arg6[%c0_14, %c0_15] : memref<16x32xbf16, #tpu.memory_space<vmem>>, vector<16x32xbf16>
      tpu.vector_store %arg6[%c0_14, %c0_15], %17 {strides = array<i32>} : memref<16x32xbf16, #tpu.memory_space<vmem>>, vector<16x32xbf16>,
    } else {
    }
    return
  }
  func.func @transform_0(%arg0: i32, %arg1: i32, %arg2: i32) -> (i32, i32) {
    %c0_i32 = arith.constant 0 : i32
    return %arg0, %arg2 : i32, i32
  }
  func.func @transform_1(%arg0: i32, %arg1: i32, %arg2: i32) -> (i32, i32) {
    %c0_i32 = arith.constant 0 : i32
    return %arg2, %arg1 : i32, i32
  }
  func.func @transform_2(%arg0: i32, %arg1: i32, %arg2: i32) -> (i32, i32) {
    %c0_i32 = arith.constant 0 : i32
    %c0_i32_0 = arith.constant 0 : i32
    return %c0_i32, %arg1 : i32, i32
  }
  func.func @transform_3(%arg0: i32, %arg1: i32, %arg2: i32) -> (i32, i32) {
    %c0_i32 = arith.constant 0 : i32
    return %arg0, %arg1 : i32, i32
  }
}

module attributes {stable_mosaic.version = 11 : i64} {
  func.func @_matmul_kernel(%arg0: i32, %arg1: i32, %arg2: i32, %arg3: memref<16x32xf32, #tpu.memory_space<vmem>>, %arg4: memref<32x32xbf16, #tpu.memory_space<vmem>>, %arg5: memref<1x32xf32, #tpu.memory_space<vmem>>, %arg6: memref<16x32xbf16, #tpu.memory_space<vmem>>, %arg7: memref<16x32xf32, #tpu.memory_space<vmem>>) attributes {dimension_semantics = [#tpu.dimension_semantics<parallel>, #tpu.dimension_semantics<parallel>, #tpu.dimension_semantics<arbitrary>], iteration_bounds = array<i64: 1, 1, 1>, scalar_prefetch = 0 : i64, scratch_operands = 1 : i64, tpu.core_type = #tpu.core_type<tc>, window_params = [{transform_indices = @transform_0, window_bounds = array<i64: 16, 32>}, {transform_indices = @transform_1, window_bounds = array<i64: 32, 32>}, {transform_indices = @transform_2, window_bounds = array<i64: 1, 32>}, {transform_indices = @transform_3, window_bounds = array<i64: 16, 32>}]} {
    %c0_i32 = arith.constant 0 : i32
    %0 = arith.cmpi eq, %arg2, %c0_i32 : i32
    %1 = arith.extui %0 : i1 to i32
    %c0_i32_0 = arith.constant 0 : i32
    %2 = arith.cmpi ne, %1, %c0_i32_0 : i32
    scf.if %2 {
      %cst_10 = arith.constant 0.000000e+00 : f32
      %13 = vector.broadcast %cst_10 : f32 to vector<16x32xf32>
      %c0_11 = arith.constant 0 : index
      %c0_12 = arith.constant 0 : index
      %14 = vector.load %arg7[%c0_11, %c0_12] : memref<16x32xf32, #tpu.memory_space<vmem>>, vector<16x32xf32>
      tpu.vector_store %arg7[%c0_11, %c0_12], %13 {strides = array<i32>} : memref<16x32xf32, #tpu.memory_space<vmem>>, vector<16x32xf32>,
    } else {
    }
    %c0 = arith.constant 0 : index
    %c0_1 = arith.constant 0 : index
    %3 = vector.load %arg3[%c0, %c0_1] : memref<16x32xf32, #tpu.memory_space<vmem>>, vector<16x32xf32>
    %4 = arith.truncf %3 : vector<16x32xf32> to vector<16x32xbf16>
    %c0_2 = arith.constant 0 : index
    %c0_3 = arith.constant 0 : index
    %5 = vector.load %arg7[%c0_2, %c0_3] : memref<16x32xf32, #tpu.memory_space<vmem>>, vector<16x32xf32>
    %c0_4 = arith.constant 0 : index
    %c0_5 = arith.constant 0 : index
    %6 = vector.load %arg4[%c0_4, %c0_5] : memref<32x32xbf16, #tpu.memory_space<vmem>>, vector<32x32xbf16>
    %cst = arith.constant dense<0.000000e+00> : vector<16x32xf32>
    %7 = tpu.matmul %4, %6, %cst {dimension_numbers = #tpu.dot_dimension_numbers<[1], [0], [0], [1], [0, 0, 1, 1], [], []>} : vector<16x32xbf16>, vector<32x32xbf16>, vector<16x32xf32> -> vector<16x32xf32>
    %8 = arith.addf %5, %7 : vector<16x32xf32>
    %c0_6 = arith.constant 0 : index
    %c0_7 = arith.constant 0 : index
    %9 = vector.load %arg7[%c0_6, %c0_7] : memref<16x32xf32, #tpu.memory_space<vmem>>, vector<16x32xf32>
    tpu.vector_store %arg7[%c0_6, %c0_7], %8 {strides = array<i32>} : memref<16x32xf32, #tpu.memory_space<vmem>>, vector<16x32xf32>,
    %c0_i32_8 = arith.constant 0 : i32
    %10 = arith.cmpi eq, %arg2, %c0_i32_8 : i32
    %11 = arith.extui %10 : i1 to i32
    %c0_i32_9 = arith.constant 0 : i32
    %12 = arith.cmpi ne, %11, %c0_i32_9 : i32
    scf.if %12 {
      %c0_10 = arith.constant 0 : index
      %c0_11 = arith.constant 0 : index
      %13 = vector.load %arg7[%c0_10, %c0_11] : memref<16x32xf32, #tpu.memory_space<vmem>>, vector<16x32xf32>
      %c0_12 = arith.constant 0 : index
      %c0_13 = arith.constant 0 : index
      %14 = vector.load %arg5[%c0_12, %c0_13] : memref<1x32xf32, #tpu.memory_space<vmem>>, vector<1x32xf32>
      %15 = vector.broadcast %14 : vector<1x32xf32> to vector<16x32xf32>
      %16 = arith.addf %13, %15 : vector<16x32xf32>
      %cst_14 = arith.constant 5.000000e-01 : f32
      %17 = vector.broadcast %cst_14 : f32 to vector<16x32xf32>
      %18 = arith.mulf %17, %16 : vector<16x32xf32>
      %cst_15 = arith.constant 0.707106769 : f32
      %19 = vector.broadcast %cst_15 : f32 to vector<16x32xf32>
      %20 = arith.mulf %16, %19 : vector<16x32xf32>
      %21 = math.erf %20 : vector<16x32xf32>
      %cst_16 = arith.constant 1.000000e+00 : f32
      %22 = vector.broadcast %cst_16 : f32 to vector<16x32xf32>
      %23 = arith.addf %22, %21 : vector<16x32xf32>
      %24 = arith.mulf %18, %23 : vector<16x32xf32>
      %25 = arith.truncf %24 : vector<16x32xf32> to vector<16x32xbf16>
      %c0_17 = arith.constant 0 : index
      %c0_18 = arith.constant 0 : index
      %26 = vector.load %arg6[%c0_17, %c0_18] : memref<16x32xbf16, #tpu.memory_space<vmem>>, vector<16x32xbf16>
      tpu.vector_store %arg6[%c0_17, %c0_18], %25 {strides = array<i32>} : memref<16x32xbf16, #tpu.memory_space<vmem>>, vector<16x32xbf16>,
    } else {
    }
    return
  }
  func.func @transform_0(%arg0: i32, %arg1: i32, %arg2: i32) -> (i32, i32) {
    %c0_i32 = arith.constant 0 : i32
    return %arg0, %arg2 : i32, i32
  }
  func.func @transform_1(%arg0: i32, %arg1: i32, %arg2: i32) -> (i32, i32) {
    %c0_i32 = arith.constant 0 : i32
    return %arg2, %arg1 : i32, i32
  }
  func.func @transform_2(%arg0: i32, %arg1: i32, %arg2: i32) -> (i32, i32) {
    %c0_i32 = arith.constant 0 : i32
    %c0_i32_0 = arith.constant 0 : i32
    return %c0_i32, %arg1 : i32, i32
  }
  func.func @transform_3(%arg0: i32, %arg1: i32, %arg2: i32) -> (i32, i32) {
    %c0_i32 = arith.constant 0 : i32
    return %arg0, %arg1 : i32, i32
  }
}

module attributes {stable_mosaic.version = 11 : i64} {
  func.func @_linear_add_ln_kernel(%arg0: i32, %arg1: i32, %arg2: memref<16x32xbf16, #tpu.memory_space<vmem>>, %arg3: memref<32x32xbf16, #tpu.memory_space<vmem>>, %arg4: memref<1x32xf32, #tpu.memory_space<vmem>>, %arg5: memref<16x32xf32, #tpu.memory_space<vmem>>, %arg6: memref<1x32xf32, #tpu.memory_space<vmem>>, %arg7: memref<1x32xf32, #tpu.memory_space<vmem>>, %arg8: memref<16x32xf32, #tpu.memory_space<vmem>>) attributes {dimension_semantics = [#tpu.dimension_semantics<parallel>, #tpu.dimension_semantics<arbitrary>], iteration_bounds = array<i64: 1, 1>, scalar_prefetch = 0 : i64, scratch_operands = 0 : i64, tpu.core_type = #tpu.core_type<tc>, window_params = [{transform_indices = @transform_0, window_bounds = array<i64: 16, 32>}, {transform_indices = @transform_1, window_bounds = array<i64: 32, 32>}, {pipeline_mode = #tpu.pipeline_mode<synchronous>, transform_indices = @transform_2, window_bounds = array<i64: 1, 32>}, {transform_indices = @transform_3, window_bounds = array<i64: 16, 32>}, {pipeline_mode = #tpu.pipeline_mode<synchronous>, transform_indices = @transform_4, window_bounds = array<i64: 1, 32>}, {pipeline_mode = #tpu.pipeline_mode<synchronous>, transform_indices = @transform_5, window_bounds = array<i64: 1, 32>}, {transform_indices = @transform_6, window_bounds = array<i64: 16, 32>}]} {
    %c0_i32 = arith.constant 0 : i32
    %0 = arith.cmpi eq, %arg1, %c0_i32 : i32
    %1 = arith.extui %0 : i1 to i32
    %c0_i32_0 = arith.constant 0 : i32
    %2 = arith.cmpi ne, %1, %c0_i32_0 : i32
    scf.if %2 {
      %cst_10 = arith.constant 0.000000e+00 : f32
      %12 = vector.broadcast %cst_10 : f32 to vector<16x32xf32>
      %c0_11 = arith.constant 0 : index
      %c0_12 = arith.constant 0 : index
      %13 = vector.load %arg8[%c0_11, %c0_12] : memref<16x32xf32, #tpu.memory_space<vmem>>, vector<16x32xf32>
      tpu.vector_store %arg8[%c0_11, %c0_12], %12 {strides = array<i32>} : memref<16x32xf32, #tpu.memory_space<vmem>>, vector<16x32xf32>,
    } else {
    }
    %c0 = arith.constant 0 : index
    %c0_1 = arith.constant 0 : index
    %3 = vector.load %arg2[%c0, %c0_1] : memref<16x32xbf16, #tpu.memory_space<vmem>>, vector<16x32xbf16>
    %c0_2 = arith.constant 0 : index
    %c0_3 = arith.constant 0 : index
    %4 = vector.load %arg8[%c0_2, %c0_3] : memref<16x32xf32, #tpu.memory_space<vmem>>, vector<16x32xf32>
    %c0_4 = arith.constant 0 : index
    %c0_5 = arith.constant 0 : index
    %5 = vector.load %arg3[%c0_4, %c0_5] : memref<32x32xbf16, #tpu.memory_space<vmem>>, vector<32x32xbf16>
    %cst = arith.constant dense<0.000000e+00> : vector<16x32xf32>
    %6 = tpu.matmul %3, %5, %cst {dimension_numbers = #tpu.dot_dimension_numbers<[1], [0], [0], [1], [0, 0, 1, 1], [], []>} : vector<16x32xbf16>, vector<32x32xbf16>, vector<16x32xf32> -> vector<16x32xf32>
    %7 = arith.addf %4, %6 : vector<16x32xf32>
    %c0_6 = arith.constant 0 : index
    %c0_7 = arith.constant 0 : index
    %8 = vector.load %arg8[%c0_6, %c0_7] : memref<16x32xf32, #tpu.memory_space<vmem>>, vector<16x32xf32>
    tpu.vector_store %arg8[%c0_6, %c0_7], %7 {strides = array<i32>} : memref<16x32xf32, #tpu.memory_space<vmem>>, vector<16x32xf32>,
    %c0_i32_8 = arith.constant 0 : i32
    %9 = arith.cmpi eq, %arg1, %c0_i32_8 : i32
    %10 = arith.extui %9 : i1 to i32
    %c0_i32_9 = arith.constant 0 : i32
    %11 = arith.cmpi ne, %10, %c0_i32_9 : i32
    scf.if %11 {
      %c0_10 = arith.constant 0 : index
      %c0_11 = arith.constant 0 : index
      %12 = vector.load %arg8[%c0_10, %c0_11] : memref<16x32xf32, #tpu.memory_space<vmem>>, vector<16x32xf32>
      %c0_12 = arith.constant 0 : index
      %c0_13 = arith.constant 0 : index
      %13 = vector.load %arg4[%c0_12, %c0_13] : memref<1x32xf32, #tpu.memory_space<vmem>>, vector<1x32xf32>
      %14 = vector.broadcast %13 : vector<1x32xf32> to vector<16x32xf32>
      %15 = arith.addf %12, %14 : vector<16x32xf32>
      %c0_14 = arith.constant 0 : index
      %c0_15 = arith.constant 0 : index
      %16 = vector.load %arg5[%c0_14, %c0_15] : memref<16x32xf32, #tpu.memory_space<vmem>>, vector<16x32xf32>
      %17 = arith.addf %15, %16 : vector<16x32xf32>
      %cst_16 = arith.constant dense<0.000000e+00> : vector<16xf32>
      %18 = vector.multi_reduction <add>, %17, %cst_16 [1] : vector<16x32xf32> to vector<16xf32>
      %19 = vector.shape_cast %18 : vector<16xf32> to vector<16x1xf32>
      %cst_17 = arith.constant 3.200000e+01 : f32
      %20 = vector.broadcast %cst_17 : f32 to vector<16x1xf32>
      %21 = arith.divf %19, %20 : vector<16x1xf32>
      %22 = vector.broadcast %21 : vector<16x1xf32> to vector<16x32xf32>
      %23 = arith.subf %17, %22 : vector<16x32xf32>
      %24 = arith.mulf %23, %23 : vector<16x32xf32>
      %cst_18 = arith.constant dense<0.000000e+00> : vector<16xf32>
      %25 = vector.multi_reduction <add>, %24, %cst_18 [1] : vector<16x32xf32> to vector<16xf32>
      %26 = vector.shape_cast %25 : vector<16xf32> to vector<16x1xf32>
      %cst_19 = arith.constant 3.200000e+01 : f32
      %27 = vector.broadcast %cst_19 : f32 to vector<16x1xf32>
      %28 = arith.divf %26, %27 : vector<16x1xf32>
      %29 = vector.broadcast %21 : vector<16x1xf32> to vector<16x32xf32>
      %30 = arith.subf %17, %29 : vector<16x32xf32>
      %cst_20 = arith.constant 9.99999974E-6 : f32
      %31 = vector.broadcast %cst_20 : f32 to vector<16x1xf32>
      %32 = arith.addf %28, %31 : vector<16x1xf32>
      %33 = math.rsqrt %32 : vector<16x1xf32>
      %34 = vector.broadcast %33 : vector<16x1xf32> to vector<16x32xf32>
      %35 = arith.mulf %30, %34 : vector<16x32xf32>
      %c0_21 = arith.constant 0 : index
      %c0_22 = arith.constant 0 : index
      %36 = vector.load %arg6[%c0_21, %c0_22] : memref<1x32xf32, #tpu.memory_space<vmem>>, vector<1x32xf32>
      %37 = vector.broadcast %36 : vector<1x32xf32> to vector<16x32xf32>
      %38 = arith.mulf %35, %37 : vector<16x32xf32>
      %c0_23 = arith.constant 0 : index
      %c0_24 = arith.constant 0 : index
      %39 = vector.load %arg7[%c0_23, %c0_24] : memref<1x32xf32, #tpu.memory_space<vmem>>, vector<1x32xf32>
      %40 = vector.broadcast %39 : vector<1x32xf32> to vector<16x32xf32>
      %41 = arith.addf %38, %40 : vector<16x32xf32>
      %c0_25 = arith.constant 0 : index
      %c0_26 = arith.constant 0 : index
      %42 = vector.load %arg8[%c0_25, %c0_26] : memref<16x32xf32, #tpu.memory_space<vmem>>, vector<16x32xf32>
      tpu.vector_store %arg8[%c0_25, %c0_26], %41 {strides = array<i32>} : memref<16x32xf32, #tpu.memory_space<vmem>>, vector<16x32xf32>,
    } else {
    }
    return
  }
  func.func @transform_0(%arg0: i32, %arg1: i32) -> (i32, i32) {
    %c0_i32 = arith.constant 0 : i32
    return %arg0, %arg1 : i32, i32
  }
  func.func @transform_1(%arg0: i32, %arg1: i32) -> (i32, i32) {
    %c0_i32 = arith.constant 0 : i32
    %c0_i32_0 = arith.constant 0 : i32
    return %arg1, %c0_i32 : i32, i32
  }
  func.func @transform_2(%arg0: i32, %arg1: i32) -> (i32, i32) {
    %c0_i32 = arith.constant 0 : i32
    %c0_i32_0 = arith.constant 0 : i32
    %c0_i32_1 = arith.constant 0 : i32
    return %c0_i32, %c0_i32_0 : i32, i32
  }
  func.func @transform_3(%arg0: i32, %arg1: i32) -> (i32, i32) {
    %c0_i32 = arith.constant 0 : i32
    %c0_i32_0 = arith.constant 0 : i32
    return %arg0, %c0_i32 : i32, i32
  }
  func.func @transform_4(%arg0: i32, %arg1: i32) -> (i32, i32) {
    %c0_i32 = arith.constant 0 : i32
    %c0_i32_0 = arith.constant 0 : i32
    %c0_i32_1 = arith.constant 0 : i32
    return %c0_i32, %c0_i32_0 : i32, i32
  }
  func.func @transform_5(%arg0: i32, %arg1: i32) -> (i32, i32) {
    %c0_i32 = arith.constant 0 : i32
    %c0_i32_0 = arith.constant 0 : i32
    %c0_i32_1 = arith.constant 0 : i32
    return %c0_i32, %c0_i32_0 : i32, i32
  }
  func.func @transform_6(%arg0: i32, %arg1: i32) -> (i32, i32) {
    %c0_i32 = arith.constant 0 : i32
    %c0_i32_0 = arith.constant 0 : i32
    return %arg0, %c0_i32 : i32, i32
  }
}

module attributes {stable_mosaic.version = 11 : i64} {
  func.func @_matmul_kernel(%arg0: i32, %arg1: i32, %arg2: i32, %arg3: memref<16x32xf32, #tpu.memory_space<vmem>>, %arg4: memref<32x32xbf16, #tpu.memory_space<vmem>>, %arg5: memref<1x32xf32, #tpu.memory_space<vmem>>, %arg6: memref<16x32xbf16, #tpu.memory_space<vmem>>, %arg7: memref<16x32xf32, #tpu.memory_space<vmem>>) attributes {dimension_semantics = [#tpu.dimension_semantics<parallel>, #tpu.dimension_semantics<parallel>, #tpu.dimension_semantics<arbitrary>], iteration_bounds = array<i64: 1, 1, 1>, scalar_prefetch = 0 : i64, scratch_operands = 1 : i64, tpu.core_type = #tpu.core_type<tc>, window_params = [{transform_indices = @transform_0, window_bounds = array<i64: 16, 32>}, {transform_indices = @transform_1, window_bounds = array<i64: 32, 32>}, {transform_indices = @transform_2, window_bounds = array<i64: 1, 32>}, {transform_indices = @transform_3, window_bounds = array<i64: 16, 32>}]} {
    %c0_i32 = arith.constant 0 : i32
    %0 = arith.cmpi eq, %arg2, %c0_i32 : i32
    %1 = arith.extui %0 : i1 to i32
    %c0_i32_0 = arith.constant 0 : i32
    %2 = arith.cmpi ne, %1, %c0_i32_0 : i32
    scf.if %2 {
      %cst_10 = arith.constant 0.000000e+00 : f32
      %13 = vector.broadcast %cst_10 : f32 to vector<16x32xf32>
      %c0_11 = arith.constant 0 : index
      %c0_12 = arith.constant 0 : index
      %14 = vector.load %arg7[%c0_11, %c0_12] : memref<16x32xf32, #tpu.memory_space<vmem>>, vector<16x32xf32>
      tpu.vector_store %arg7[%c0_11, %c0_12], %13 {strides = array<i32>} : memref<16x32xf32, #tpu.memory_space<vmem>>, vector<16x32xf32>,
    } else {
    }
    %c0 = arith.constant 0 : index
    %c0_1 = arith.constant 0 : index
    %3 = vector.load %arg3[%c0, %c0_1] : memref<16x32xf32, #tpu.memory_space<vmem>>, vector<16x32xf32>
    %4 = arith.truncf %3 : vector<16x32xf32> to vector<16x32xbf16>
    %c0_2 = arith.constant 0 : index
    %c0_3 = arith.constant 0 : index
    %5 = vector.load %arg7[%c0_2, %c0_3] : memref<16x32xf32, #tpu.memory_space<vmem>>, vector<16x32xf32>
    %c0_4 = arith.constant 0 : index
    %c0_5 = arith.constant 0 : index
    %6 = vector.load %arg4[%c0_4, %c0_5] : memref<32x32xbf16, #tpu.memory_space<vmem>>, vector<32x32xbf16>
    %cst = arith.constant dense<0.000000e+00> : vector<16x32xf32>
    %7 = tpu.matmul %4, %6, %cst {dimension_numbers = #tpu.dot_dimension_numbers<[1], [0], [0], [1], [0, 0, 1, 1], [], []>} : vector<16x32xbf16>, vector<32x32xbf16>, vector<16x32xf32> -> vector<16x32xf32>
    %8 = arith.addf %5, %7 : vector<16x32xf32>
    %c0_6 = arith.constant 0 : index
    %c0_7 = arith.constant 0 : index
    %9 = vector.load %arg7[%c0_6, %c0_7] : memref<16x32xf32, #tpu.memory_space<vmem>>, vector<16x32xf32>
    tpu.vector_store %arg7[%c0_6, %c0_7], %8 {strides = array<i32>} : memref<16x32xf32, #tpu.memory_space<vmem>>, vector<16x32xf32>,
    %c0_i32_8 = arith.constant 0 : i32
    %10 = arith.cmpi eq, %arg2, %c0_i32_8 : i32
    %11 = arith.extui %10 : i1 to i32
    %c0_i32_9 = arith.constant 0 : i32
    %12 = arith.cmpi ne, %11, %c0_i32_9 : i32
    scf.if %12 {
      %c0_10 = arith.constant 0 : index
      %c0_11 = arith.constant 0 : index
      %13 = vector.load %arg7[%c0_10, %c0_11] : memref<16x32xf32, #tpu.memory_space<vmem>>, vector<16x32xf32>
      %c0_12 = arith.constant 0 : index
      %c0_13 = arith.constant 0 : index
      %14 = vector.load %arg5[%c0_12, %c0_13] : memref<1x32xf32, #tpu.memory_space<vmem>>, vector<1x32xf32>
      %15 = vector.broadcast %14 : vector<1x32xf32> to vector<16x32xf32>
      %16 = arith.addf %13, %15 : vector<16x32xf32>
      %17 = arith.truncf %16 : vector<16x32xf32> to vector<16x32xbf16>
      %c0_14 = arith.constant 0 : index
      %c0_15 = arith.constant 0 : index
      %18 = vector.load %arg6[%c0_14, %c0_15] : memref<16x32xbf16, #tpu.memory_space<vmem>>, vector<16x32xbf16>
      tpu.vector_store %arg6[%c0_14, %c0_15], %17 {strides = array<i32>} : memref<16x32xbf16, #tpu.memory_space<vmem>>, vector<16x32xbf16>,
    } else {
    }
    return
  }
  func.func @transform_0(%arg0: i32, %arg1: i32, %arg2: i32) -> (i32, i32) {
    %c0_i32 = arith.constant 0 : i32
    return %arg0, %arg2 : i32, i32
  }
  func.func @transform_1(%arg0: i32, %arg1: i32, %arg2: i32) -> (i32, i32) {
    %c0_i32 = arith.constant 0 : i32
    return %arg2, %arg1 : i32, i32
  }
  func.func @transform_2(%arg0: i32, %arg1: i32, %arg2: i32) -> (i32, i32) {
    %c0_i32 = arith.constant 0 : i32
    %c0_i32_0 = arith.constant 0 : i32
    return %c0_i32, %arg1 : i32, i32
  }
  func.func @transform_3(%arg0: i32, %arg1: i32, %arg2: i32) -> (i32, i32) {
    %c0_i32 = arith.constant 0 : i32
    return %arg0, %arg1 : i32, i32
  }
}

module attributes {stable_mosaic.version = 11 : i64} {
  func.func @_self_attn_kernel(%arg0: i32, %arg1: memref<1x1x8xi32, #tpu.memory_space<vmem>>, %arg2: memref<1x8x96xbf16, #tpu.memory_space<vmem>>, %arg3: memref<32x32xbf16, #tpu.memory_space<vmem>>, %arg4: memref<1x32xf32, #tpu.memory_space<vmem>>, %arg5: memref<1x8x32xf32, #tpu.memory_space<vmem>>, %arg6: memref<1x32xf32, #tpu.memory_space<vmem>>, %arg7: memref<1x32xf32, #tpu.memory_space<vmem>>, %arg8: memref<1x8x32xf32, #tpu.memory_space<vmem>>) attributes {dimension_semantics = [#tpu.dimension_semantics<parallel>], iteration_bounds = array<i64: 2>, scalar_prefetch = 0 : i64, scratch_operands = 0 : i64, tpu.core_type = #tpu.core_type<tc>, window_params = [{transform_indices = @transform_0, window_bounds = array<i64: 1, 1, 8>}, {transform_indices = @transform_1, window_bounds = array<i64: 1, 8, 96>}, {pipeline_mode = #tpu.pipeline_mode<synchronous>, transform_indices = @transform_2, window_bounds = array<i64: 32, 32>}, {pipeline_mode = #tpu.pipeline_mode<synchronous>, transform_indices = @transform_3, window_bounds = array<i64: 1, 32>}, {transform_indices = @transform_4, window_bounds = array<i64: 1, 8, 32>}, {pipeline_mode = #tpu.pipeline_mode<synchronous>, transform_indices = @transform_5, window_bounds = array<i64: 1, 32>}, {pipeline_mode = #tpu.pipeline_mode<synchronous>, transform_indices = @transform_6, window_bounds = array<i64: 1, 32>}, {transform_indices = @transform_7, window_bounds = array<i64: 1, 8, 32>}]} {
    %c0 = arith.constant 0 : index
    %c0_0 = arith.constant 0 : index
    %c0_1 = arith.constant 0 : index
    %0 = vector.load %arg2[%c0, %c0_0, %c0_1] : memref<1x8x96xbf16, #tpu.memory_space<vmem>>, vector<1x8x96xbf16>
    %1 = vector.shape_cast %0 : vector<1x8x96xbf16> to vector<8x96xbf16>
    %c0_2 = arith.constant 0 : index
    %c0_3 = arith.constant 0 : index
    %c0_4 = arith.constant 0 : index
    %2 = vector.load %arg1[%c0_2, %c0_3, %c0_4] : memref<1x1x8xi32, #tpu.memory_space<vmem>>, vector<1x1x8xi32>
    %3 = vector.shape_cast %2 : vector<1x1x8xi32> to vector<1x8xi32>
    %c0_i32 = arith.constant 0 : i32
    %4 = vector.broadcast %c0_i32 : i32 to vector<1x8xi32>
    %5 = arith.cmpi ne, %3, %4 : vector<1x8xi32>
    %cst = arith.constant -1.000000e+09 : f32
    %cst_5 = arith.constant 0.000000e+00 : f32
    %6 = vector.broadcast %cst : f32 to vector<1x8xf32>
    %7 = vector.broadcast %cst_5 : f32 to vector<1x8xf32>
    %8 = arith.select %5, %6, %7 : vector<1x8xi1>, vector<1x8xf32>
    %9 = tpu.iota {dimensions = array<i32: 0>} : vector<8x8xi32>
    %10 = tpu.iota {dimensions = array<i32: 1>} : vector<8x8xi32>
    %11 = arith.cmpi sgt, %10, %9 : vector<8x8xi32>
    %cst_6 = arith.constant -1.000000e+09 : f32
    %cst_7 = arith.constant 0.000000e+00 : f32
    %12 = vector.broadcast %cst_6 : f32 to vector<8x8xf32>
    %13 = vector.broadcast %cst_7 : f32 to vector<8x8xf32>
    %14 = arith.select %11, %12, %13 : vector<8x8xi1>, vector<8x8xf32>
    %15 = vector.broadcast %8 : vector<1x8xf32> to vector<8x8xf32>
    %16 = arith.addf %15, %14 : vector<8x8xf32>
    %17 = vector.extract_strided_slice %1 {offsets = [0, 0], sizes = [8, 32], strides = [1, 1]} : vector<8x96xbf16> to vector<8x32xbf16>
    %18 = vector.extract_strided_slice %1 {offsets = [0, 32], sizes = [8, 32], strides = [1, 1]} : vector<8x96xbf16> to vector<8x32xbf16>
    %19 = vector.extract_strided_slice %1 {offsets = [0, 64], sizes = [8, 32], strides = [1, 1]} : vector<8x96xbf16> to vector<8x32xbf16>
    %20 = vector.extract_strided_slice %17 {offsets = [0, 0], sizes = [8, 8], strides = [1, 1]} : vector<8x32xbf16> to vector<8x8xbf16>
    %21 = vector.extract_strided_slice %18 {offsets = [0, 0], sizes = [8, 8], strides = [1, 1]} : vector<8x32xbf16> to vector<8x8xbf16>
    %22 = vector.extract_strided_slice %19 {offsets = [0, 0], sizes = [8, 8], strides = [1, 1]} : vector<8x32xbf16> to vector<8x8xbf16>
    %cst_8 = arith.constant dense<0.000000e+00> : vector<8x8xf32>
    %23 = tpu.matmul %20, %21, %cst_8 {dimension_numbers = #tpu.dot_dimension_numbers<[1], [1], [0], [0], [0, 0, 1, 0], [], []>} : vector<8x8xbf16>, vector<8x8xbf16>, vector<8x8xf32> -> vector<8x8xf32>
    %cst_9 = arith.constant 0.353553385 : f32
    %24 = vector.broadcast %cst_9 : f32 to vector<8x8xf32>
    %25 = arith.mulf %23, %24 : vector<8x8xf32>
    %26 = arith.addf %25, %16 : vector<8x8xf32>
    %cst_10 = arith.constant dense<0xFF800000> : vector<8xf32>
    %27 = vector.multi_reduction <maximumf>, %26, %cst_10 [1] : vector<8x8xf32> to vector<8xf32>
    %28 = vector.shape_cast %27 : vector<8xf32> to vector<8x1xf32>
    %29 = vector.broadcast %28 : vector<8x1xf32> to vector<8x8xf32>
    %30 = arith.subf %26, %29 : vector<8x8xf32>
    %31 = math.exp %30 : vector<8x8xf32>
    %cst_11 = arith.constant dense<0.000000e+00> : vector<8xf32>
    %32 = vector.multi_reduction <add>, %31, %cst_11 [1] : vector<8x8xf32> to vector<8xf32>
    %33 = vector.shape_cast %32 : vector<8xf32> to vector<8x1xf32>
    %34 = vector.broadcast %33 : vector<8x1xf32> to vector<8x8xf32>
    %35 = arith.divf %31, %34 : vector<8x8xf32>
    %36 = arith.truncf %35 : vector<8x8xf32> to vector<8x8xbf16>
    %cst_12 = arith.constant dense<0.000000e+00> : vector<8x8xf32>
    %37 = tpu.matmul %36, %22, %cst_12 {dimension_numbers = #tpu.dot_dimension_numbers<[1], [0], [0], [1], [0, 0, 1, 1], [], []>} : vector<8x8xbf16>, vector<8x8xbf16>, vector<8x8xf32> -> vector<8x8xf32>
    %38 = vector.extract_strided_slice %17 {offsets = [0, 8], sizes = [8, 8], strides = [1, 1]} : vector<8x32xbf16> to vector<8x8xbf16>
    %39 = vector.extract_strided_slice %18 {offsets = [0, 8], sizes = [8, 8], strides = [1, 1]} : vector<8x32xbf16> to vector<8x8xbf16>
    %40 = vector.extract_strided_slice %19 {offsets = [0, 8], sizes = [8, 8], strides = [1, 1]} : vector<8x32xbf16> to vector<8x8xbf16>
    %cst_13 = arith.constant dense<0.000000e+00> : vector<8x8xf32>
    %41 = tpu.matmul %38, %39, %cst_13 {dimension_numbers = #tpu.dot_dimension_numbers<[1], [1], [0], [0], [0, 0, 1, 0], [], []>} : vector<8x8xbf16>, vector<8x8xbf16>, vector<8x8xf32> -> vector<8x8xf32>
    %cst_14 = arith.constant 0.353553385 : f32
    %42 = vector.broadcast %cst_14 : f32 to vector<8x8xf32>
    %43 = arith.mulf %41, %42 : vector<8x8xf32>
    %44 = arith.addf %43, %16 : vector<8x8xf32>
    %cst_15 = arith.constant dense<0xFF800000> : vector<8xf32>
    %45 = vector.multi_reduction <maximumf>, %44, %cst_15 [1] : vector<8x8xf32> to vector<8xf32>
    %46 = vector.shape_cast %45 : vector<8xf32> to vector<8x1xf32>
    %47 = vector.broadcast %46 : vector<8x1xf32> to vector<8x8xf32>
    %48 = arith.subf %44, %47 : vector<8x8xf32>
    %49 = math.exp %48 : vector<8x8xf32>
    %cst_16 = arith.constant dense<0.000000e+00> : vector<8xf32>
    %50 = vector.multi_reduction <add>, %49, %cst_16 [1] : vector<8x8xf32> to vector<8xf32>
    %51 = vector.shape_cast %50 : vector<8xf32> to vector<8x1xf32>
    %52 = vector.broadcast %51 : vector<8x1xf32> to vector<8x8xf32>
    %53 = arith.divf %49, %52 : vector<8x8xf32>
    %54 = arith.truncf %53 : vector<8x8xf32> to vector<8x8xbf16>
    %cst_17 = arith.constant dense<0.000000e+00> : vector<8x8xf32>
    %55 = tpu.matmul %54, %40, %cst_17 {dimension_numbers = #tpu.dot_dimension_numbers<[1], [0], [0], [1], [0, 0, 1, 1], [], []>} : vector<8x8xbf16>, vector<8x8xbf16>, vector<8x8xf32> -> vector<8x8xf32>
    %56 = vector.extract_strided_slice %17 {offsets = [0, 16], sizes = [8, 8], strides = [1, 1]} : vector<8x32xbf16> to vector<8x8xbf16>
    %57 = vector.extract_strided_slice %18 {offsets = [0, 16], sizes = [8, 8], strides = [1, 1]} : vector<8x32xbf16> to vector<8x8xbf16>
    %58 = vector.extract_strided_slice %19 {offsets = [0, 16], sizes = [8, 8], strides = [1, 1]} : vector<8x32xbf16> to vector<8x8xbf16>
    %cst_18 = arith.constant dense<0.000000e+00> : vector<8x8xf32>
    %59 = tpu.matmul %56, %57, %cst_18 {dimension_numbers = #tpu.dot_dimension_numbers<[1], [1], [0], [0], [0, 0, 1, 0], [], []>} : vector<8x8xbf16>, vector<8x8xbf16>, vector<8x8xf32> -> vector<8x8xf32>
    %cst_19 = arith.constant 0.353553385 : f32
    %60 = vector.broadcast %cst_19 : f32 to vector<8x8xf32>
    %61 = arith.mulf %59, %60 : vector<8x8xf32>
    %62 = arith.addf %61, %16 : vector<8x8xf32>
    %cst_20 = arith.constant dense<0xFF800000> : vector<8xf32>
    %63 = vector.multi_reduction <maximumf>, %62, %cst_20 [1] : vector<8x8xf32> to vector<8xf32>
    %64 = vector.shape_cast %63 : vector<8xf32> to vector<8x1xf32>
    %65 = vector.broadcast %64 : vector<8x1xf32> to vector<8x8xf32>
    %66 = arith.subf %62, %65 : vector<8x8xf32>
    %67 = math.exp %66 : vector<8x8xf32>
    %cst_21 = arith.constant dense<0.000000e+00> : vector<8xf32>
    %68 = vector.multi_reduction <add>, %67, %cst_21 [1] : vector<8x8xf32> to vector<8xf32>
    %69 = vector.shape_cast %68 : vector<8xf32> to vector<8x1xf32>
    %70 = vector.broadcast %69 : vector<8x1xf32> to vector<8x8xf32>
    %71 = arith.divf %67, %70 : vector<8x8xf32>
    %72 = arith.truncf %71 : vector<8x8xf32> to vector<8x8xbf16>
    %cst_22 = arith.constant dense<0.000000e+00> : vector<8x8xf32>
    %73 = tpu.matmul %72, %58, %cst_22 {dimension_numbers = #tpu.dot_dimension_numbers<[1], [0], [0], [1], [0, 0, 1, 1], [], []>} : vector<8x8xbf16>, vector<8x8xbf16>, vector<8x8xf32> -> vector<8x8xf32>
    %74 = vector.extract_strided_slice %17 {offsets = [0, 24], sizes = [8, 8], strides = [1, 1]} : vector<8x32xbf16> to vector<8x8xbf16>
    %75 = vector.extract_strided_slice %18 {offsets = [0, 24], sizes = [8, 8], strides = [1, 1]} : vector<8x32xbf16> to vector<8x8xbf16>
    %76 = vector.extract_strided_slice %19 {offsets = [0, 24], sizes = [8, 8], strides = [1, 1]} : vector<8x32xbf16> to vector<8x8xbf16>
    %cst_23 = arith.constant dense<0.000000e+00> : vector<8x8xf32>
    %77 = tpu.matmul %74, %75, %cst_23 {dimension_numbers = #tpu.dot_dimension_numbers<[1], [1], [0], [0], [0, 0, 1, 0], [], []>} : vector<8x8xbf16>, vector<8x8xbf16>, vector<8x8xf32> -> vector<8x8xf32>
    %cst_24 = arith.constant 0.353553385 : f32
    %78 = vector.broadcast %cst_24 : f32 to vector<8x8xf32>
    %79 = arith.mulf %77, %78 : vector<8x8xf32>
    %80 = arith.addf %79, %16 : vector<8x8xf32>
    %cst_25 = arith.constant dense<0xFF800000> : vector<8xf32>
    %81 = vector.multi_reduction <maximumf>, %80, %cst_25 [1] : vector<8x8xf32> to vector<8xf32>
    %82 = vector.shape_cast %81 : vector<8xf32> to vector<8x1xf32>
    %83 = vector.broadcast %82 : vector<8x1xf32> to vector<8x8xf32>
    %84 = arith.subf %80, %83 : vector<8x8xf32>
    %85 = math.exp %84 : vector<8x8xf32>
    %cst_26 = arith.constant dense<0.000000e+00> : vector<8xf32>
    %86 = vector.multi_reduction <add>, %85, %cst_26 [1] : vector<8x8xf32> to vector<8xf32>
    %87 = vector.shape_cast %86 : vector<8xf32> to vector<8x1xf32>
    %88 = vector.broadcast %87 : vector<8x1xf32> to vector<8x8xf32>
    %89 = arith.divf %85, %88 : vector<8x8xf32>
    %90 = arith.truncf %89 : vector<8x8xf32> to vector<8x8xbf16>
    %cst_27 = arith.constant dense<0.000000e+00> : vector<8x8xf32>
    %91 = tpu.matmul %90, %76, %cst_27 {dimension_numbers = #tpu.dot_dimension_numbers<[1], [0], [0], [1], [0, 0, 1, 1], [], []>} : vector<8x8xbf16>, vector<8x8xbf16>, vector<8x8xf32> -> vector<8x8xf32>
    %92 = tpu.concatenate %37, %55, %73, %91 in 1 : vector<8x8xf32>, vector<8x8xf32>, vector<8x8xf32>, vector<8x8xf32> -> vector<8x32xf32>
    %93 = arith.truncf %92 : vector<8x32xf32> to vector<8x32xbf16>
    %c0_28 = arith.constant 0 : index
    %c0_29 = arith.constant 0 : index
    %94 = vector.load %arg3[%c0_28, %c0_29] : memref<32x32xbf16, #tpu.memory_space<vmem>>, vector<32x32xbf16>
    %cst_30 = arith.constant dense<0.000000e+00> : vector<8x32xf32>
    %95 = tpu.matmul %93, %94, %cst_30 {dimension_numbers = #tpu.dot_dimension_numbers<[1], [0], [0], [1], [0, 0, 1, 1], [], []>} : vector<8x32xbf16>, vector<32x32xbf16>, vector<8x32xf32> -> vector<8x32xf32>
    %c0_31 = arith.constant 0 : index
    %c0_32 = arith.constant 0 : index
    %96 = vector.load %arg4[%c0_31, %c0_32] : memref<1x32xf32, #tpu.memory_space<vmem>>, vector<1x32xf32>
    %97 = vector.broadcast %96 : vector<1x32xf32> to vector<8x32xf32>
    %98 = arith.addf %95, %97 : vector<8x32xf32>
    %c0_33 = arith.constant 0 : index
    %c0_34 = arith.constant 0 : index
    %c0_35 = arith.constant 0 : index
    %99 = vector.load %arg5[%c0_33, %c0_34, %c0_35] : memref<1x8x32xf32, #tpu.memory_space<vmem>>, vector<1x8x32xf32>
    %100 = vector.shape_cast %99 : vector<1x8x32xf32> to vector<8x32xf32>
    %101 = arith.addf %98, %100 : vector<8x32xf32>
    %cst_36 = arith.constant dense<0.000000e+00> : vector<8xf32>
    %102 = vector.multi_reduction <add>, %101, %cst_36 [1] : vector<8x32xf32> to vector<8xf32>
    %103 = vector.shape_cast %102 : vector<8xf32> to vector<8x1xf32>
    %cst_37 = arith.constant 3.200000e+01 : f32
    %104 = vector.broadcast %cst_37 : f32 to vector<8x1xf32>
    %105 = arith.divf %103, %104 : vector<8x1xf32>
    %106 = vector.broadcast %105 : vector<8x1xf32> to vector<8x32xf32>
    %107 = arith.subf %101, %106 : vector<8x32xf32>
    %108 = arith.mulf %107, %107 : vector<8x32xf32>
    %cst_38 = arith.constant dense<0.000000e+00> : vector<8xf32>
    %109 = vector.multi_reduction <add>, %108, %cst_38 [1] : vector<8x32xf32> to vector<8xf32>
    %110 = vector.shape_cast %109 : vector<8xf32> to vector<8x1xf32>
    %cst_39 = arith.constant 3.200000e+01 : f32
    %111 = vector.broadcast %cst_39 : f32 to vector<8x1xf32>
    %112 = arith.divf %110, %111 : vector<8x1xf32>
    %113 = vector.broadcast %105 : vector<8x1xf32> to vector<8x32xf32>
    %114 = arith.subf %101, %113 : vector<8x32xf32>
    %cst_40 = arith.constant 9.99999974E-6 : f32
    %115 = vector.broadcast %cst_40 : f32 to vector<8x1xf32>
    %116 = arith.addf %112, %115 : vector<8x1xf32>
    %117 = math.rsqrt %116 : vector<8x1xf32>
    %118 = vector.broadcast %117 : vector<8x1xf32> to vector<8x32xf32>
    %119 = arith.mulf %114, %118 : vector<8x32xf32>
    %c0_41 = arith.constant 0 : index
    %c0_42 = arith.constant 0 : index
    %120 = vector.load %arg6[%c0_41, %c0_42] : memref<1x32xf32, #tpu.memory_space<vmem>>, vector<1x32xf32>
    %121 = vector.broadcast %120 : vector<1x32xf32> to vector<8x32xf32>
    %122 = arith.mulf %119, %121 : vector<8x32xf32>
    %c0_43 = arith.constant 0 : index
    %c0_44 = arith.constant 0 : index
    %123 = vector.load %arg7[%c0_43, %c0_44] : memref<1x32xf32, #tpu.memory_space<vmem>>, vector<1x32xf32>
    %124 = vector.broadcast %123 : vector<1x32xf32> to vector<8x32xf32>
    %125 = arith.addf %122, %124 : vector<8x32xf32>
    %c0_45 = arith.constant 0 : index
    %c0_46 = arith.constant 0 : index
    %c0_47 = arith.constant 0 : index
    %126 = vector.load %arg8[%c0_45, %c0_46, %c0_47] : memref<1x8x32xf32, #tpu.memory_space<vmem>>, vector<1x8x32xf32>
    %127 = vector.shape_cast %126 : vector<1x8x32xf32> to vector<8x32xf32>
    %128 = vector.shape_cast %125 : vector<8x32xf32> to vector<1x8x32xf32>
    tpu.vector_store %arg8[%c0_45, %c0_46, %c0_47], %128 {strides = array<i32>} : memref<1x8x32xf32, #tpu.memory_space<vmem>>, vector<1x8x32xf32>,
    return
  }
  func.func @transform_0(%arg0: i32) -> (i32, i32, i32) {
    %c0_i32 = arith.constant 0 : i32
    %c0_i32_0 = arith.constant 0 : i32
    %c0_i32_1 = arith.constant 0 : i32
    return %arg0, %c0_i32, %c0_i32_0 : i32, i32, i32
  }
  func.func @transform_1(%arg0: i32) -> (i32, i32, i32) {
    %c0_i32 = arith.constant 0 : i32
    %c0_i32_0 = arith.constant 0 : i32
    %c0_i32_1 = arith.constant 0 : i32
    return %arg0, %c0_i32, %c0_i32_0 : i32, i32, i32
  }
  func.func @transform_2(%arg0: i32) -> (i32, i32) {
    %c0_i32 = arith.constant 0 : i32
    %c0_i32_0 = arith.constant 0 : i32
    %c0_i32_1 = arith.constant 0 : i32
    return %c0_i32, %c0_i32_0 : i32, i32
  }
  func.func @transform_3(%arg0: i32) -> (i32, i32) {
    %c0_i32 = arith.constant 0 : i32
    %c0_i32_0 = arith.constant 0 : i32
    %c0_i32_1 = arith.constant 0 : i32
    return %c0_i32, %c0_i32_0 : i32, i32
  }
  func.func @transform_4(%arg0: i32) -> (i32, i32, i32) {
    %c0_i32 = arith.constant 0 : i32
    %c0_i32_0 = arith.constant 0 : i32
    %c0_i32_1 = arith.constant 0 : i32
    return %arg0, %c0_i32, %c0_i32_0 : i32, i32, i32
  }
  func.func @transform_5(%arg0: i32) -> (i32, i32) {
    %c0_i32 = arith.constant 0 : i32
    %c0_i32_0 = arith.constant 0 : i32
    %c0_i32_1 = arith.constant 0 : i32
    return %c0_i32, %c0_i32_0 : i32, i32
  }
  func.func @transform_6(%arg0: i32) -> (i32, i32) {
    %c0_i32 = arith.constant 0 : i32
    %c0_i32_0 = arith.constant 0 : i32
    %c0_i32_1 = arith.constant 0 : i32
    return %c0_i32, %c0_i32_0 : i32, i32
  }
  func.func @transform_7(%arg0: i32) -> (i32, i32, i32) {
    %c0_i32 = arith.constant 0 : i32
    %c0_i32_0 = arith.constant 0 : i32
    %c0_i32_1 = arith.constant 0 : i32
    return %arg0, %c0_i32, %c0_i32_0 : i32, i32, i32
  }
}

module attributes {stable_mosaic.version = 11 : i64} {
  func.func @_cross_attn_kernel(%arg0: i32, %arg1: memref<1x1x8xi32, #tpu.memory_space<vmem>>, %arg2: memref<1x8x32xbf16, #tpu.memory_space<vmem>>, %arg3: memref<1x8x64xbf16, #tpu.memory_space<vmem>>, %arg4: memref<32x32xbf16, #tpu.memory_space<vmem>>, %arg5: memref<1x32xf32, #tpu.memory_space<vmem>>, %arg6: memref<1x8x32xf32, #tpu.memory_space<vmem>>, %arg7: memref<1x32xf32, #tpu.memory_space<vmem>>, %arg8: memref<1x32xf32, #tpu.memory_space<vmem>>, %arg9: memref<1x8x32xf32, #tpu.memory_space<vmem>>) attributes {dimension_semantics = [#tpu.dimension_semantics<parallel>], iteration_bounds = array<i64: 2>, scalar_prefetch = 0 : i64, scratch_operands = 0 : i64, tpu.core_type = #tpu.core_type<tc>, window_params = [{transform_indices = @transform_0, window_bounds = array<i64: 1, 1, 8>}, {transform_indices = @transform_1, window_bounds = array<i64: 1, 8, 32>}, {transform_indices = @transform_2, window_bounds = array<i64: 1, 8, 64>}, {pipeline_mode = #tpu.pipeline_mode<synchronous>, transform_indices = @transform_3, window_bounds = array<i64: 32, 32>}, {pipeline_mode = #tpu.pipeline_mode<synchronous>, transform_indices = @transform_4, window_bounds = array<i64: 1, 32>}, {transform_indices = @transform_5, window_bounds = array<i64: 1, 8, 32>}, {pipeline_mode = #tpu.pipeline_mode<synchronous>, transform_indices = @transform_6, window_bounds = array<i64: 1, 32>}, {pipeline_mode = #tpu.pipeline_mode<synchronous>, transform_indices = @transform_7, window_bounds = array<i64: 1, 32>}, {transform_indices = @transform_8, window_bounds = array<i64: 1, 8, 32>}]} {
    %c0 = arith.constant 0 : index
    %c0_0 = arith.constant 0 : index
    %c0_1 = arith.constant 0 : index
    %0 = vector.load %arg3[%c0, %c0_0, %c0_1] : memref<1x8x64xbf16, #tpu.memory_space<vmem>>, vector<1x8x64xbf16>
    %1 = vector.shape_cast %0 : vector<1x8x64xbf16> to vector<8x64xbf16>
    %c0_2 = arith.constant 0 : index
    %c0_3 = arith.constant 0 : index
    %c0_4 = arith.constant 0 : index
    %2 = vector.load %arg1[%c0_2, %c0_3, %c0_4] : memref<1x1x8xi32, #tpu.memory_space<vmem>>, vector<1x1x8xi32>
    %3 = vector.shape_cast %2 : vector<1x1x8xi32> to vector<1x8xi32>
    %c0_i32 = arith.constant 0 : i32
    %4 = vector.broadcast %c0_i32 : i32 to vector<1x8xi32>
    %5 = arith.cmpi ne, %3, %4 : vector<1x8xi32>
    %cst = arith.constant -1.000000e+09 : f32
    %cst_5 = arith.constant 0.000000e+00 : f32
    %6 = vector.broadcast %cst : f32 to vector<1x8xf32>
    %7 = vector.broadcast %cst_5 : f32 to vector<1x8xf32>
    %8 = arith.select %5, %6, %7 : vector<1x8xi1>, vector<1x8xf32>
    %c0_6 = arith.constant 0 : index
    %c0_7 = arith.constant 0 : index
    %c0_8 = arith.constant 0 : index
    %9 = vector.load %arg2[%c0_6, %c0_7, %c0_8] : memref<1x8x32xbf16, #tpu.memory_space<vmem>>, vector<1x8x32xbf16>
    %10 = vector.shape_cast %9 : vector<1x8x32xbf16> to vector<8x32xbf16>
    %11 = vector.extract_strided_slice %1 {offsets = [0, 0], sizes = [8, 32], strides = [1, 1]} : vector<8x64xbf16> to vector<8x32xbf16>
    %12 = vector.extract_strided_slice %1 {offsets = [0, 32], sizes = [8, 32], strides = [1, 1]} : vector<8x64xbf16> to vector<8x32xbf16>
    %13 = vector.extract_strided_slice %10 {offsets = [0, 0], sizes = [8, 8], strides = [1, 1]} : vector<8x32xbf16> to vector<8x8xbf16>
    %14 = vector.extract_strided_slice %11 {offsets = [0, 0], sizes = [8, 8], strides = [1, 1]} : vector<8x32xbf16> to vector<8x8xbf16>
    %15 = vector.extract_strided_slice %12 {offsets = [0, 0], sizes = [8, 8], strides = [1, 1]} : vector<8x32xbf16> to vector<8x8xbf16>
    %cst_9 = arith.constant dense<0.000000e+00> : vector<8x8xf32>
    %16 = tpu.matmul %13, %14, %cst_9 {dimension_numbers = #tpu.dot_dimension_numbers<[1], [1], [0], [0], [0, 0, 1, 0], [], []>} : vector<8x8xbf16>, vector<8x8xbf16>, vector<8x8xf32> -> vector<8x8xf32>
    %cst_10 = arith.constant 0.353553385 : f32
    %17 = vector.broadcast %cst_10 : f32 to vector<8x8xf32>
    %18 = arith.mulf %16, %17 : vector<8x8xf32>
    %19 = vector.broadcast %8 : vector<1x8xf32> to vector<8x8xf32>
    %20 = arith.addf %18, %19 : vector<8x8xf32>
    %cst_11 = arith.constant dense<0xFF800000> : vector<8xf32>
    %21 = vector.multi_reduction <maximumf>, %20, %cst_11 [1] : vector<8x8xf32> to vector<8xf32>
    %22 = vector.shape_cast %21 : vector<8xf32> to vector<8x1xf32>
    %23 = vector.broadcast %22 : vector<8x1xf32> to vector<8x8xf32>
    %24 = arith.subf %20, %23 : vector<8x8xf32>
    %25 = math.exp %24 : vector<8x8xf32>
    %cst_12 = arith.constant dense<0.000000e+00> : vector<8xf32>
    %26 = vector.multi_reduction <add>, %25, %cst_12 [1] : vector<8x8xf32> to vector<8xf32>
    %27 = vector.shape_cast %26 : vector<8xf32> to vector<8x1xf32>
    %28 = vector.broadcast %27 : vector<8x1xf32> to vector<8x8xf32>
    %29 = arith.divf %25, %28 : vector<8x8xf32>
    %30 = arith.truncf %29 : vector<8x8xf32> to vector<8x8xbf16>
    %cst_13 = arith.constant dense<0.000000e+00> : vector<8x8xf32>
    %31 = tpu.matmul %30, %15, %cst_13 {dimension_numbers = #tpu.dot_dimension_numbers<[1], [0], [0], [1], [0, 0, 1, 1], [], []>} : vector<8x8xbf16>, vector<8x8xbf16>, vector<8x8xf32> -> vector<8x8xf32>
    %32 = vector.extract_strided_slice %10 {offsets = [0, 8], sizes = [8, 8], strides = [1, 1]} : vector<8x32xbf16> to vector<8x8xbf16>
    %33 = vector.extract_strided_slice %11 {offsets = [0, 8], sizes = [8, 8], strides = [1, 1]} : vector<8x32xbf16> to vector<8x8xbf16>
    %34 = vector.extract_strided_slice %12 {offsets = [0, 8], sizes = [8, 8], strides = [1, 1]} : vector<8x32xbf16> to vector<8x8xbf16>
    %cst_14 = arith.constant dense<0.000000e+00> : vector<8x8xf32>
    %35 = tpu.matmul %32, %33, %cst_14 {dimension_numbers = #tpu.dot_dimension_numbers<[1], [1], [0], [0], [0, 0, 1, 0], [], []>} : vector<8x8xbf16>, vector<8x8xbf16>, vector<8x8xf32> -> vector<8x8xf32>
    %cst_15 = arith.constant 0.353553385 : f32
    %36 = vector.broadcast %cst_15 : f32 to vector<8x8xf32>
    %37 = arith.mulf %35, %36 : vector<8x8xf32>
    %38 = vector.broadcast %8 : vector<1x8xf32> to vector<8x8xf32>
    %39 = arith.addf %37, %38 : vector<8x8xf32>
    %cst_16 = arith.constant dense<0xFF800000> : vector<8xf32>
    %40 = vector.multi_reduction <maximumf>, %39, %cst_16 [1] : vector<8x8xf32> to vector<8xf32>
    %41 = vector.shape_cast %40 : vector<8xf32> to vector<8x1xf32>
    %42 = vector.broadcast %41 : vector<8x1xf32> to vector<8x8xf32>
    %43 = arith.subf %39, %42 : vector<8x8xf32>
    %44 = math.exp %43 : vector<8x8xf32>
    %cst_17 = arith.constant dense<0.000000e+00> : vector<8xf32>
    %45 = vector.multi_reduction <add>, %44, %cst_17 [1] : vector<8x8xf32> to vector<8xf32>
    %46 = vector.shape_cast %45 : vector<8xf32> to vector<8x1xf32>
    %47 = vector.broadcast %46 : vector<8x1xf32> to vector<8x8xf32>
    %48 = arith.divf %44, %47 : vector<8x8xf32>
    %49 = arith.truncf %48 : vector<8x8xf32> to vector<8x8xbf16>
    %cst_18 = arith.constant dense<0.000000e+00> : vector<8x8xf32>
    %50 = tpu.matmul %49, %34, %cst_18 {dimension_numbers = #tpu.dot_dimension_numbers<[1], [0], [0], [1], [0, 0, 1, 1], [], []>} : vector<8x8xbf16>, vector<8x8xbf16>, vector<8x8xf32> -> vector<8x8xf32>
    %51 = vector.extract_strided_slice %10 {offsets = [0, 16], sizes = [8, 8], strides = [1, 1]} : vector<8x32xbf16> to vector<8x8xbf16>
    %52 = vector.extract_strided_slice %11 {offsets = [0, 16], sizes = [8, 8], strides = [1, 1]} : vector<8x32xbf16> to vector<8x8xbf16>
    %53 = vector.extract_strided_slice %12 {offsets = [0, 16], sizes = [8, 8], strides = [1, 1]} : vector<8x32xbf16> to vector<8x8xbf16>
    %cst_19 = arith.constant dense<0.000000e+00> : vector<8x8xf32>
    %54 = tpu.matmul %51, %52, %cst_19 {dimension_numbers = #tpu.dot_dimension_numbers<[1], [1], [0], [0], [0, 0, 1, 0], [], []>} : vector<8x8xbf16>, vector<8x8xbf16>, vector<8x8xf32> -> vector<8x8xf32>
    %cst_20 = arith.constant 0.353553385 : f32
    %55 = vector.broadcast %cst_20 : f32 to vector<8x8xf32>
    %56 = arith.mulf %54, %55 : vector<8x8xf32>
    %57 = vector.broadcast %8 : vector<1x8xf32> to vector<8x8xf32>
    %58 = arith.addf %56, %57 : vector<8x8xf32>
    %cst_21 = arith.constant dense<0xFF800000> : vector<8xf32>
    %59 = vector.multi_reduction <maximumf>, %58, %cst_21 [1] : vector<8x8xf32> to vector<8xf32>
    %60 = vector.shape_cast %59 : vector<8xf32> to vector<8x1xf32>
    %61 = vector.broadcast %60 : vector<8x1xf32> to vector<8x8xf32>
    %62 = arith.subf %58, %61 : vector<8x8xf32>
    %63 = math.exp %62 : vector<8x8xf32>
    %cst_22 = arith.constant dense<0.000000e+00> : vector<8xf32>
    %64 = vector.multi_reduction <add>, %63, %cst_22 [1] : vector<8x8xf32> to vector<8xf32>
    %65 = vector.shape_cast %64 : vector<8xf32> to vector<8x1xf32>
    %66 = vector.broadcast %65 : vector<8x1xf32> to vector<8x8xf32>
    %67 = arith.divf %63, %66 : vector<8x8xf32>
    %68 = arith.truncf %67 : vector<8x8xf32> to vector<8x8xbf16>
    %cst_23 = arith.constant dense<0.000000e+00> : vector<8x8xf32>
    %69 = tpu.matmul %68, %53, %cst_23 {dimension_numbers = #tpu.dot_dimension_numbers<[1], [0], [0], [1], [0, 0, 1, 1], [], []>} : vector<8x8xbf16>, vector<8x8xbf16>, vector<8x8xf32> -> vector<8x8xf32>
    %70 = vector.extract_strided_slice %10 {offsets = [0, 24], sizes = [8, 8], strides = [1, 1]} : vector<8x32xbf16> to vector<8x8xbf16>
    %71 = vector.extract_strided_slice %11 {offsets = [0, 24], sizes = [8, 8], strides = [1, 1]} : vector<8x32xbf16> to vector<8x8xbf16>
    %72 = vector.extract_strided_slice %12 {offsets = [0, 24], sizes = [8, 8], strides = [1, 1]} : vector<8x32xbf16> to vector<8x8xbf16>
    %cst_24 = arith.constant dense<0.000000e+00> : vector<8x8xf32>
    %73 = tpu.matmul %70, %71, %cst_24 {dimension_numbers = #tpu.dot_dimension_numbers<[1], [1], [0], [0], [0, 0, 1, 0], [], []>} : vector<8x8xbf16>, vector<8x8xbf16>, vector<8x8xf32> -> vector<8x8xf32>
    %cst_25 = arith.constant 0.353553385 : f32
    %74 = vector.broadcast %cst_25 : f32 to vector<8x8xf32>
    %75 = arith.mulf %73, %74 : vector<8x8xf32>
    %76 = vector.broadcast %8 : vector<1x8xf32> to vector<8x8xf32>
    %77 = arith.addf %75, %76 : vector<8x8xf32>
    %cst_26 = arith.constant dense<0xFF800000> : vector<8xf32>
    %78 = vector.multi_reduction <maximumf>, %77, %cst_26 [1] : vector<8x8xf32> to vector<8xf32>
    %79 = vector.shape_cast %78 : vector<8xf32> to vector<8x1xf32>
    %80 = vector.broadcast %79 : vector<8x1xf32> to vector<8x8xf32>
    %81 = arith.subf %77, %80 : vector<8x8xf32>
    %82 = math.exp %81 : vector<8x8xf32>
    %cst_27 = arith.constant dense<0.000000e+00> : vector<8xf32>
    %83 = vector.multi_reduction <add>, %82, %cst_27 [1] : vector<8x8xf32> to vector<8xf32>
    %84 = vector.shape_cast %83 : vector<8xf32> to vector<8x1xf32>
    %85 = vector.broadcast %84 : vector<8x1xf32> to vector<8x8xf32>
    %86 = arith.divf %82, %85 : vector<8x8xf32>
    %87 = arith.truncf %86 : vector<8x8xf32> to vector<8x8xbf16>
    %cst_28 = arith.constant dense<0.000000e+00> : vector<8x8xf32>
    %88 = tpu.matmul %87, %72, %cst_28 {dimension_numbers = #tpu.dot_dimension_numbers<[1], [0], [0], [1], [0, 0, 1, 1], [], []>} : vector<8x8xbf16>, vector<8x8xbf16>, vector<8x8xf32> -> vector<8x8xf32>
    %89 = tpu.concatenate %31, %50, %69, %88 in 1 : vector<8x8xf32>, vector<8x8xf32>, vector<8x8xf32>, vector<8x8xf32> -> vector<8x32xf32>
    %90 = arith.truncf %89 : vector<8x32xf32> to vector<8x32xbf16>
    %c0_29 = arith.constant 0 : index
    %c0_30 = arith.constant 0 : index
    %91 = vector.load %arg4[%c0_29, %c0_30] : memref<32x32xbf16, #tpu.memory_space<vmem>>, vector<32x32xbf16>
    %cst_31 = arith.constant dense<0.000000e+00> : vector<8x32xf32>
    %92 = tpu.matmul %90, %91, %cst_31 {dimension_numbers = #tpu.dot_dimension_numbers<[1], [0], [0], [1], [0, 0, 1, 1], [], []>} : vector<8x32xbf16>, vector<32x32xbf16>, vector<8x32xf32> -> vector<8x32xf32>
    %c0_32 = arith.constant 0 : index
    %c0_33 = arith.constant 0 : index
    %93 = vector.load %arg5[%c0_32, %c0_33] : memref<1x32xf32, #tpu.memory_space<vmem>>, vector<1x32xf32>
    %94 = vector.broadcast %93 : vector<1x32xf32> to vector<8x32xf32>
    %95 = arith.addf %92, %94 : vector<8x32xf32>
    %c0_34 = arith.constant 0 : index
    %c0_35 = arith.constant 0 : index
    %c0_36 = arith.constant 0 : index
    %96 = vector.load %arg6[%c0_34, %c0_35, %c0_36] : memref<1x8x32xf32, #tpu.memory_space<vmem>>, vector<1x8x32xf32>
    %97 = vector.shape_cast %96 : vector<1x8x32xf32> to vector<8x32xf32>
    %98 = arith.addf %95, %97 : vector<8x32xf32>
    %cst_37 = arith.constant dense<0.000000e+00> : vector<8xf32>
    %99 = vector.multi_reduction <add>, %98, %cst_37 [1] : vector<8x32xf32> to vector<8xf32>
    %100 = vector.shape_cast %99 : vector<8xf32> to vector<8x1xf32>
    %cst_38 = arith.constant 3.200000e+01 : f32
    %101 = vector.broadcast %cst_38 : f32 to vector<8x1xf32>
    %102 = arith.divf %100, %101 : vector<8x1xf32>
    %103 = vector.broadcast %102 : vector<8x1xf32> to vector<8x32xf32>
    %104 = arith.subf %98, %103 : vector<8x32xf32>
    %105 = arith.mulf %104, %104 : vector<8x32xf32>
    %cst_39 = arith.constant dense<0.000000e+00> : vector<8xf32>
    %106 = vector.multi_reduction <add>, %105, %cst_39 [1] : vector<8x32xf32> to vector<8xf32>
    %107 = vector.shape_cast %106 : vector<8xf32> to vector<8x1xf32>
    %cst_40 = arith.constant 3.200000e+01 : f32
    %108 = vector.broadcast %cst_40 : f32 to vector<8x1xf32>
    %109 = arith.divf %107, %108 : vector<8x1xf32>
    %110 = vector.broadcast %102 : vector<8x1xf32> to vector<8x32xf32>
    %111 = arith.subf %98, %110 : vector<8x32xf32>
    %cst_41 = arith.constant 9.99999974E-6 : f32
    %112 = vector.broadcast %cst_41 : f32 to vector<8x1xf32>
    %113 = arith.addf %109, %112 : vector<8x1xf32>
    %114 = math.rsqrt %113 : vector<8x1xf32>
    %115 = vector.broadcast %114 : vector<8x1xf32> to vector<8x32xf32>
    %116 = arith.mulf %111, %115 : vector<8x32xf32>
    %c0_42 = arith.constant 0 : index
    %c0_43 = arith.constant 0 : index
    %117 = vector.load %arg7[%c0_42, %c0_43] : memref<1x32xf32, #tpu.memory_space<vmem>>, vector<1x32xf32>
    %118 = vector.broadcast %117 : vector<1x32xf32> to vector<8x32xf32>
    %119 = arith.mulf %116, %118 : vector<8x32xf32>
    %c0_44 = arith.constant 0 : index
    %c0_45 = arith.constant 0 : index
    %120 = vector.load %arg8[%c0_44, %c0_45] : memref<1x32xf32, #tpu.memory_space<vmem>>, vector<1x32xf32>
    %121 = vector.broadcast %120 : vector<1x32xf32> to vector<8x32xf32>
    %122 = arith.addf %119, %121 : vector<8x32xf32>
    %c0_46 = arith.constant 0 : index
    %c0_47 = arith.constant 0 : index
    %c0_48 = arith.constant 0 : index
    %123 = vector.load %arg9[%c0_46, %c0_47, %c0_48] : memref<1x8x32xf32, #tpu.memory_space<vmem>>, vector<1x8x32xf32>
    %124 = vector.shape_cast %123 : vector<1x8x32xf32> to vector<8x32xf32>
    %125 = vector.shape_cast %122 : vector<8x32xf32> to vector<1x8x32xf32>
    tpu.vector_store %arg9[%c0_46, %c0_47, %c0_48], %125 {strides = array<i32>} : memref<1x8x32xf32, #tpu.memory_space<vmem>>, vector<1x8x32xf32>,
    return
  }
  func.func @transform_0(%arg0: i32) -> (i32, i32, i32) {
    %c0_i32 = arith.constant 0 : i32
    %c0_i32_0 = arith.constant 0 : i32
    %c0_i32_1 = arith.constant 0 : i32
    return %arg0, %c0_i32, %c0_i32_0 : i32, i32, i32
  }
  func.func @transform_1(%arg0: i32) -> (i32, i32, i32) {
    %c0_i32 = arith.constant 0 : i32
    %c0_i32_0 = arith.constant 0 : i32
    %c0_i32_1 = arith.constant 0 : i32
    return %arg0, %c0_i32, %c0_i32_0 : i32, i32, i32
  }
  func.func @transform_2(%arg0: i32) -> (i32, i32, i32) {
    %c0_i32 = arith.constant 0 : i32
    %c0_i32_0 = arith.constant 0 : i32
    %c0_i32_1 = arith.constant 0 : i32
    return %arg0, %c0_i32, %c0_i32_0 : i32, i32, i32
  }
  func.func @transform_3(%arg0: i32) -> (i32, i32) {
    %c0_i32 = arith.constant 0 : i32
    %c0_i32_0 = arith.constant 0 : i32
    %c0_i32_1 = arith.constant 0 : i32
    return %c0_i32, %c0_i32_0 : i32, i32
  }
  func.func @transform_4(%arg0: i32) -> (i32, i32) {
    %c0_i32 = arith.constant 0 : i32
    %c0_i32_0 = arith.constant 0 : i32
    %c0_i32_1 = arith.constant 0 : i32
    return %c0_i32, %c0_i32_0 : i32, i32
  }
  func.func @transform_5(%arg0: i32) -> (i32, i32, i32) {
    %c0_i32 = arith.constant 0 : i32
    %c0_i32_0 = arith.constant 0 : i32
    %c0_i32_1 = arith.constant 0 : i32
    return %arg0, %c0_i32, %c0_i32_0 : i32, i32, i32
  }
  func.func @transform_6(%arg0: i32) -> (i32, i32) {
    %c0_i32 = arith.constant 0 : i32
    %c0_i32_0 = arith.constant 0 : i32
    %c0_i32_1 = arith.constant 0 : i32
    return %c0_i32, %c0_i32_0 : i32, i32
  }
  func.func @transform_7(%arg0: i32) -> (i32, i32) {
    %c0_i32 = arith.constant 0 : i32
    %c0_i32_0 = arith.constant 0 : i32
    %c0_i32_1 = arith.constant 0 : i32
    return %c0_i32, %c0_i32_0 : i32, i32
  }
  func.func @transform_8(%arg0: i32) -> (i32, i32, i32) {
    %c0_i32 = arith.constant 0 : i32
    %c0_i32_0 = arith.constant 0 : i32
    %c0_i32_1 = arith.constant 0 : i32
    return %arg0, %c0_i32, %c0_i32_0 : i32, i32, i32
  }
}

module attributes {stable_mosaic.version = 11 : i64} {
  func.func @_matmul_kernel(%arg0: i32, %arg1: i32, %arg2: i32, %arg3: memref<16x32xf32, #tpu.memory_space<vmem>>, %arg4: memref<32x64xbf16, #tpu.memory_space<vmem>>, %arg5: memref<1x64xf32, #tpu.memory_space<vmem>>, %arg6: memref<16x64xf32, #tpu.memory_space<vmem>>) attributes {dimension_semantics = [#tpu.dimension_semantics<parallel>, #tpu.dimension_semantics<parallel>, #tpu.dimension_semantics<arbitrary>], iteration_bounds = array<i64: 1, 1, 1>, scalar_prefetch = 0 : i64, scratch_operands = 0 : i64, tpu.core_type = #tpu.core_type<tc>, window_params = [{transform_indices = @transform_0, window_bounds = array<i64: 16, 32>}, {transform_indices = @transform_1, window_bounds = array<i64: 32, 64>}, {transform_indices = @transform_2, window_bounds = array<i64: 1, 64>}, {transform_indices = @transform_3, window_bounds = array<i64: 16, 64>}]} {
    %c0_i32 = arith.constant 0 : i32
    %0 = arith.cmpi eq, %arg2, %c0_i32 : i32
    %1 = arith.extui %0 : i1 to i32
    %c0_i32_0 = arith.constant 0 : i32
    %2 = arith.cmpi ne, %1, %c0_i32_0 : i32
    scf.if %2 {
      %cst_10 = arith.constant 0.000000e+00 : f32
      %13 = vector.broadcast %cst_10 : f32 to vector<16x64xf32>
      %c0_11 = arith.constant 0 : index
      %c0_12 = arith.constant 0 : index
      %14 = vector.load %arg6[%c0_11, %c0_12] : memref<16x64xf32, #tpu.memory_space<vmem>>, vector<16x64xf32>
      tpu.vector_store %arg6[%c0_11, %c0_12], %13 {strides = array<i32>} : memref<16x64xf32, #tpu.memory_space<vmem>>, vector<16x64xf32>,
    } else {
    }
    %c0 = arith.constant 0 : index
    %c0_1 = arith.constant 0 : index
    %3 = vector.load %arg3[%c0, %c0_1] : memref<16x32xf32, #tpu.memory_space<vmem>>, vector<16x32xf32>
    %4 = arith.truncf %3 : vector<16x32xf32> to vector<16x32xbf16>
    %c0_2 = arith.constant 0 : index
    %c0_3 = arith.constant 0 : index
    %5 = vector.load %arg6[%c0_2, %c0_3] : memref<16x64xf32, #tpu.memory_space<vmem>>, vector<16x64xf32>
    %c0_4 = arith.constant 0 : index
    %c0_5 = arith.constant 0 : index
    %6 = vector.load %arg4[%c0_4, %c0_5] : memref<32x64xbf16, #tpu.memory_space<vmem>>, vector<32x64xbf16>
    %cst = arith.constant dense<0.000000e+00> : vector<16x64xf32>
    %7 = tpu.matmul %4, %6, %cst {dimension_numbers = #tpu.dot_dimension_numbers<[1], [0], [0], [1], [0, 0, 1, 1], [], []>} : vector<16x32xbf16>, vector<32x64xbf16>, vector<16x64xf32> -> vector<16x64xf32>
    %8 = arith.addf %5, %7 : vector<16x64xf32>
    %c0_6 = arith.constant 0 : index
    %c0_7 = arith.constant 0 : index
    %9 = vector.load %arg6[%c0_6, %c0_7] : memref<16x64xf32, #tpu.memory_space<vmem>>, vector<16x64xf32>
    tpu.vector_store %arg6[%c0_6, %c0_7], %8 {strides = array<i32>} : memref<16x64xf32, #tpu.memory_space<vmem>>, vector<16x64xf32>,
    %c0_i32_8 = arith.constant 0 : i32
    %10 = arith.cmpi eq, %arg2, %c0_i32_8 : i32
    %11 = arith.extui %10 : i1 to i32
    %c0_i32_9 = arith.constant 0 : i32
    %12 = arith.cmpi ne, %11, %c0_i32_9 : i32
    scf.if %12 {
      %c0_10 = arith.constant 0 : index
      %c0_11 = arith.constant 0 : index
      %13 = vector.load %arg6[%c0_10, %c0_11] : memref<16x64xf32, #tpu.memory_space<vmem>>, vector<16x64xf32>
      %c0_12 = arith.constant 0 : index
      %c0_13 = arith.constant 0 : index
      %14 = vector.load %arg5[%c0_12, %c0_13] : memref<1x64xf32, #tpu.memory_space<vmem>>, vector<1x64xf32>
      %15 = vector.broadcast %14 : vector<1x64xf32> to vector<16x64xf32>
      %16 = arith.addf %13, %15 : vector<16x64xf32>
      %c0_14 = arith.constant 0 : index
      %c0_15 = arith.constant 0 : index
      %17 = vector.load %arg6[%c0_14, %c0_15] : memref<16x64xf32, #tpu.memory_space<vmem>>, vector<16x64xf32>
      tpu.vector_store %arg6[%c0_14, %c0_15], %16 {strides = array<i32>} : memref<16x64xf32, #tpu.memory_space<vmem>>, vector<16x64xf32>,
    } else {
    }
    return
  }
  func.func @transform_0(%arg0: i32, %arg1: i32, %arg2: i32) -> (i32, i32) {
    %c0_i32 = arith.constant 0 : i32
    return %arg0, %arg2 : i32, i32
  }
  func.func @transform_1(%arg0: i32, %arg1: i32, %arg2: i32) -> (i32, i32) {
    %c0_i32 = arith.constant 0 : i32
    return %arg2, %arg1 : i32, i32
  }
  func.func @transform_2(%arg0: i32, %arg1: i32, %arg2: i32) -> (i32, i32) {
    %c0_i32 = arith.constant 0 : i32
    %c0_i32_0 = arith.constant 0 : i32
    return %c0_i32, %arg1 : i32, i32
  }
  func.func @transform_3(%arg0: i32, %arg1: i32, %arg2: i32) -> (i32, i32) {
    %c0_i32 = arith.constant 0 : i32
    return %arg0, %arg1 : i32, i32
  }
}

</mosaic_0001>

<llo_original>
// kernel: transformer_forward.34
$region0: #{transformer_forward.34}
  #allocation0 [shape = 'u32[]', space=smem, size = 0x4, offset = 0x4, fixed_abs, tag = 'smem constant byte address 0x4 - core index']
  #allocation1 [shape = 'u32[72,128]{1,0:T(1,128)}', space=vmem, size = 0x9000, scoped, tag = 'internal scratch']
  %s0 = inlined_call_operand.vmem [shape: f32[2,8,32], index: 0, kind: input, shape index: {}]
  %s1 = inlined_call_operand.vmem [shape: f32[2,8,32], index: 1, kind: input, shape index: {}]
  %s2 = inlined_call_operand.vmem [shape: f32[8,32], index: 2, kind: input, shape index: {}]
  %s3 = inlined_call_operand.vmem [shape: f32[8,32], index: 3, kind: input, shape index: {}]
  %s4 = inlined_call_operand.vmem [shape: f32[2,8,32], index: 4, kind: output, shape index: {}]
  %s5 = sld [smem:[#allocation0]]
  $region49: #{transformer_forward.34} parent=0
    _
  %s7 = ssub.s32 1, %s5
  %s8 = scalar_select 0, %s7, %s5
  loop: start=0, step=1, limit=4
  $region2: #{transformer_forward.34} parent=0 // loop_pre_header
    _
  $region3: #{transformer_forward.34} parent=0 // loop_header
    %s10 = sphi 0, %s14
    %p11 = scmp.ge.s32.totalorder %s10, 4
    %s20 = sphi 0, %s22
    %s23 = sphi 0, %s20
    %s24 = sphi 0, %s23
    %s40 = sphi 0, %s24
    %s46 = sphi 0, %s48
    %s49 = sphi 0, %s46
    %s50 = sphi 0, %s49
    %s66 = sphi 0, %s50
    %s70 = sphi 0, %s70
    %s72 = sphi 0, %s70
    %s73 = sphi 0, %s72
    %s87 = sphi 0, %s73
    %s91 = sphi 0, %s91
    %s93 = sphi 0, %s91
    %s94 = sphi 0, %s93
    %s108 = sphi 0, %s94
    %s114 = sphi 0, %s116
    %s117 = sphi 0, %s114
    %s118 = sphi 0, %s117
    %s134 = sphi 0, %s118
  $region4: #{transformer_forward.34} parent=0 // loop_header_branch
    %13 = sbr.rel (%p11) target = $region8
  $region5: #{transformer_forward.34} parent=0 // loop_body
    %s15 = ssub.s32 %s10, 1
    %s16 = ssub.s32 %s10, 2
    %s17 = sadd.s32 %s10, 1
    %s18 = ssub.s32 %s10, %s17
    %p19 = scmp.eq.s32.totalorder %s18, 0
    %s21 = sadd.s32 %s20, 1
    %s22 = scalar_select %p19, %s20, %s21
    %p25 = pneg %p19
    %p26 = scmp.eq.s32.totalorder %s10, 1
    %p27 = por %p25, %p26
    %p28 = scmp.ne.s32.totalorder %s20, %s23
    %p29 = scmp.eq.s32.totalorder %s10, 0
    %p30 = por %p28, %p29
    %p31 = scmp.ne.s32.totalorder %s20, %s23
    %p32 = scmp.eq.s32.totalorder %s15, 1
    %p33 = por %p31, %p32
    %p34 = scmp.ne.s32.totalorder %s23, %s24
    %p35 = scmp.eq.s32.totalorder %s15, 0
    %p36 = por %p34, %p35
    %p37 = scmp.ne.s32.totalorder %s23, %s24
    %p38 = scmp.eq.s32.totalorder %s16, 1
    %p39 = por %p37, %p38
    %p41 = scmp.ne.s32.totalorder %s24, %s40
    %p42 = scmp.eq.s32.totalorder %s16, 0
    %p43 = por %p41, %p42
    %s44 = ssub.s32 %s10, %s17
    %p45 = scmp.eq.s32.totalorder %s44, 0
    %s47 = sadd.s32 %s46, 1
    %s48 = scalar_select %p45, %s46, %s47
    %p51 = pneg %p45
    %p52 = scmp.eq.s32.totalorder %s10, 1
    %p53 = por %p51, %p52
    %p54 = scmp.ne.s32.totalorder %s46, %s49
    %p55 = scmp.eq.s32.totalorder %s10, 0
    %p56 = por %p54, %p55
    %p57 = scmp.ne.s32.totalorder %s46, %s49
    %p58 = scmp.eq.s32.totalorder %s15, 1
    %p59 = por %p57, %p58
    %p60 = scmp.ne.s32.totalorder %s49, %s50
    %p61 = scmp.eq.s32.totalorder %s15, 0
    %p62 = por %p60, %p61
    %p63 = scmp.ne.s32.totalorder %s49, %s50
    %p64 = scmp.eq.s32.totalorder %s16, 1
    %p65 = por %p63, %p64
    %p67 = scmp.ne.s32.totalorder %s50, %s66
    %p68 = scmp.eq.s32.totalorder %s16, 0
    %p69 = por %p67, %p68
    %s71 = sadd.s32 %s70, 1
    %p74 = scmp.eq.s32.totalorder %s10, 1
    %p75 = scmp.ne.s32.totalorder %s70, %s72
    %p76 = scmp.eq.s32.totalorder %s10, 0
    %p77 = por %p75, %p76
    %p78 = scmp.ne.s32.totalorder %s70, %s72
    %p79 = scmp.eq.s32.totalorder %s15, 1
    %p80 = por %p78, %p79
    %p81 = scmp.ne.s32.totalorder %s72, %s73
    %p82 = scmp.eq.s32.totalorder %s15, 0
    %p83 = por %p81, %p82
    %p84 = scmp.ne.s32.totalorder %s72, %s73
    %p85 = scmp.eq.s32.totalorder %s16, 1
    %p86 = por %p84, %p85
    %p88 = scmp.ne.s32.totalorder %s73, %s87
    %p89 = scmp.eq.s32.totalorder %s16, 0
    %p90 = por %p88, %p89
    %s92 = sadd.s32 %s91, 1
    %p95 = scmp.eq.s32.totalorder %s10, 1
    %p96 = scmp.ne.s32.totalorder %s91, %s93
    %p97 = scmp.eq.s32.totalorder %s10, 0
    %p98 = por %p96, %p97
    %p99 = scmp.ne.s32.totalorder %s91, %s93
    %p100 = scmp.eq.s32.totalorder %s15, 1
    %p101 = por %p99, %p100
    %p102 = scmp.ne.s32.totalorder %s93, %s94
    %p103 = scmp.eq.s32.totalorder %s15, 0
    %p104 = por %p102, %p103
    %p105 = scmp.ne.s32.totalorder %s93, %s94
    %p106 = scmp.eq.s32.totalorder %s16, 1
    %p107 = por %p105, %p106
    %p109 = scmp.ne.s32.totalorder %s94, %s108
    %p110 = scmp.eq.s32.totalorder %s16, 0
    %p111 = por %p109, %p110
    %s112 = ssub.s32 %s10, %s17
    %p113 = scmp.eq.s32.totalorder %s112, 0
    %s115 = sadd.s32 %s114, 1
    %s116 = scalar_select %p113, %s114, %s115
    %p119 = pneg %p113
    %p120 = scmp.eq.s32.totalorder %s10, 1
    %p121 = por %p119, %p120
    %p122 = scmp.ne.s32.totalorder %s114, %s117
    %p123 = scmp.eq.s32.totalorder %s10, 0
    %p124 = por %p122, %p123
    %p125 = scmp.ne.s32.totalorder %s114, %s117
    %p126 = scmp.eq.s32.totalorder %s15, 1
    %p127 = por %p125, %p126
    %p128 = scmp.ne.s32.totalorder %s117, %s118
    %p129 = scmp.eq.s32.totalorder %s15, 0
    %p130 = por %p128, %p129
    %p131 = scmp.ne.s32.totalorder %s117, %s118
    %p132 = scmp.eq.s32.totalorder %s16, 1
    %p133 = por %p131, %p132
    %p135 = scmp.ne.s32.totalorder %s118, %s134
    %p136 = scmp.eq.s32.totalorder %s16, 0
    %p137 = por %p135, %p136
    %p138 = scmp.le.s32.totalorder 1, %s10
    %p139 = scmp.lt.s32.totalorder %s10, 3
    %p140 = pnand %p138, %p139
    %p141 = pneg %p140
    // Predicated region
    $region9: #{transformer_forward.34} parent=5 // pred_check
      _
    $region10: #{transformer_forward.34} parent=5 // pred_check_branch
      %143 = sbr.rel (%p140) target = $region12
    $region11: #{transformer_forward.34} parent=5 // pred_region
      %s144 = ssub.s32 %s10, 1
      // Predicated region
      $region13: #{transformer_forward.34} parent=11 // pred_check
        %p145 = pneg %p83
      $region14: #{transformer_forward.34} parent=11 // pred_check_branch
        %147 = sbr.rel (%p145) target = $region16
      $region15: #{transformer_forward.34} parent=11 // pred_region
        _
      $region16: #{transformer_forward.34} parent=11 // pred_fallthru
        _
      // Predicated region
      $region17: #{transformer_forward.34} parent=11 // pred_check
        %p148 = pneg %p104
      $region18: #{transformer_forward.34} parent=11 // pred_check_branch
        %150 = sbr.rel (%p148) target = $region20
      $region19: #{transformer_forward.34} parent=11 // pred_region
        _
      $region20: #{transformer_forward.34} parent=11 // pred_fallthru
        _
    $region12: #{transformer_forward.34} parent=5 // pred_fallthru
      _
    %p151 = scmp.lt.s32.totalorder %s10, 2
    // Predicated region
    $region21: #{transformer_forward.34} parent=5 // pred_check
      %p152 = pneg %p151
    $region22: #{transformer_forward.34} parent=5 // pred_check_branch
      %154 = sbr.rel (%p152) target = $region24
    $region23: #{transformer_forward.34} parent=5 // pred_region
      // Predicated region
      $region25: #{transformer_forward.34} parent=23 // pred_check
        %p155 = pneg %p30
      $region26: #{transformer_forward.34} parent=23 // pred_check_branch
        %157 = sbr.rel (%p155) target = $region28
      $region27: #{transformer_forward.34} parent=23 // pred_region
        %p158 = scmp.lt.s32.totalorder %s10, 1
        %s159 = scalar_select %p158, %s10, 1
        %s160 = smul.addr %s159, 8
        %s161 = scalar_lea.vmem %s0, %s160
      $region28: #{transformer_forward.34} parent=23 // pred_fallthru
        _
      // Predicated region
      $region29: #{transformer_forward.34} parent=23 // pred_check
        %p162 = pneg %p56
      $region30: #{transformer_forward.34} parent=23 // pred_check_branch
        %164 = sbr.rel (%p162) target = $region32
      $region31: #{transformer_forward.34} parent=23 // pred_region
        %p165 = scmp.lt.s32.totalorder %s10, 1
        %s166 = scalar_select %p165, %s10, 1
        %s167 = smul.addr %s166, 8
        %s168 = scalar_lea.vmem %s1, %s167
      $region32: #{transformer_forward.34} parent=23 // pred_fallthru
        _
    $region24: #{transformer_forward.34} parent=5 // pred_fallthru
      _
    %p169 = scmp.le.s32.totalorder 1, %s10
    %p170 = scmp.lt.s32.totalorder %s10, 3
    %p171 = pnand %p169, %p170
    %p172 = pneg %p171
    // Predicated region
    $region33: #{transformer_forward.34} parent=5 // pred_check
      _
    $region34: #{transformer_forward.34} parent=5 // pred_check_branch
      %174 = sbr.rel (%p171) target = $region36
    $region35: #{transformer_forward.34} parent=5 // pred_region
      %s175 = ssub.s32 %s10, 1
      %p176 = scmp.lt.s32.totalorder %s15, 1
      %s177 = scalar_select %p176, %s15, 1
      %s178 = smul.addr %s177, 8
      %s179 = scalar_lea.vmem %s0, %s178
      %p180 = pneg %p36
      %p181 = pneg %p33
      %p182 = scmp.lt.s32.totalorder %s15, 1
      %s183 = scalar_select %p182, %s15, 1
      %s184 = smul.addr %s183, 8
      %s185 = scalar_lea.vmem %s1, %s184
      %p186 = pneg %p62
      %p187 = pneg %p59
      %p188 = pneg %p83
      %p189 = pneg %p80
      %p190 = pneg %p104
      %p191 = pneg %p101
      %p192 = pneg %p130
      %p193 = pneg %p127
      %p194 = scmp.lt.s32.totalorder %s15, 1
      %s195 = scalar_select %p194, %s15, 1
      %s196 = smul.addr %s195, 8
      %s197 = scalar_lea.vmem %s4, %s196
      %p198 = scmp.lt.s32.totalorder %s15, 1
      %s199 = scalar_select %p198, %s15, 1
      %s200 = smul.addr %s199, 8
      %s201 = scalar_lea.vmem %s0, %s200
      %p202 = scmp.lt.s32.totalorder %s15, 1
      %s203 = scalar_select %p202, %s15, 1
      %s204 = smul.addr %s203, 8
      %s205 = scalar_lea.vmem %s1, %s204
      %p206 = scmp.lt.s32.totalorder %s15, 1
      %s207 = scalar_select %p206, %s15, 1
      %s208 = smul.addr %s207, 8
      %s209 = scalar_lea.vmem %s4, %s208
      %v210 = vld [vmem:[%s201] sm:$0xff]
      %v211 = vld [vmem:[%s2] sm:$0xff]
      %v212 = vmul.f32 %v210, %v211
      %v213 = vld [vmem:[%s205] sm:$0xff]
      %v214 = vld [vmem:[%s3] sm:$0xff]
      %v215 = vmul.f32 %v213, %v214
      %v216 = vadd.f32 %v212, %v215
      %vm217 = vcmask 261120
      %218 = vst.msk [vmem:[%s209] sm:$0xff] %vm217, %v216
      %p219 = scmp.lt.s32.totalorder %s15, 1
      %s220 = scalar_select %p219, %s15, 1
      %s221 = smul.addr %s220, 8
      %s222 = scalar_lea.vmem %s4, %s221
      // Predicated region
      $region37: #{transformer_forward.34} parent=35 // pred_check
        %p223 = pneg %p127
      $region38: #{transformer_forward.34} parent=35 // pred_check_branch
        %225 = sbr.rel (%p223) target = $region40
      $region39: #{transformer_forward.34} parent=35 // pred_region
        _
      $region40: #{transformer_forward.34} parent=35 // pred_fallthru
        _
    $region36: #{transformer_forward.34} parent=5 // pred_fallthru
      _
    %p226 = scmp.le.s32.totalorder 2, %s10
    // Predicated region
    $region41: #{transformer_forward.34} parent=5 // pred_check
      %p227 = pneg %p226
    $region42: #{transformer_forward.34} parent=5 // pred_check_branch
      %229 = sbr.rel (%p227) target = $region44
    $region43: #{transformer_forward.34} parent=5 // pred_region
      %s230 = ssub.s32 %s10, 2
      // Predicated region
      $region45: #{transformer_forward.34} parent=43 // pred_check
        %p231 = pneg %p133
      $region46: #{transformer_forward.34} parent=43 // pred_check_branch
        %233 = sbr.rel (%p231) target = $region48
      $region47: #{transformer_forward.34} parent=43 // pred_region
        %p234 = scmp.lt.s32.totalorder %s16, 1
        %s235 = scalar_select %p234, %s16, 1
        %s236 = smul.addr %s235, 8
        %s237 = scalar_lea.vmem %s4, %s236
      $region48: #{transformer_forward.34} parent=43 // pred_fallthru
        _
    $region44: #{transformer_forward.34} parent=5 // pred_fallthru
      _
  $region6: #{transformer_forward.34} parent=0 // loop_footer
    %s14 = sadd.s32 1, %s10
  $region7: #{transformer_forward.34} parent=0 // loop_footer_branch
    %9 = sbr.rel target = $region3
  $region8: #{transformer_forward.34} parent=0 // loop_exit
    _

// kernel: transformer_forward.26
$region0: #{transformer_forward.26}
  #allocation0 [shape = 'u32[]', space=smem, size = 0x4, offset = 0x4, fixed_abs, tag = 'smem constant byte address 0x4 - core index']
  #allocation1 [shape = 'u32[72,128]{1,0:T(1,128)}', space=vmem, size = 0x9000, scoped, tag = 'internal scratch']
  #allocation2 [shape = 'f32[16,96]{1,0:T(8,128)}', space=vmem, size = 0x2000, scoped, tag = 'scratch operand']
  %s0 = inlined_call_operand.vmem [shape: f32[16,32], index: 0, kind: input, shape index: {}]
  %s1 = inlined_call_operand.vmem [shape: bf16[32,96], index: 1, kind: input, shape index: {}]
  %s2 = inlined_call_operand.vmem [shape: f32[1,96], index: 2, kind: input, shape index: {}]
  %s3 = inlined_call_operand.vmem [shape: bf16[16,96], index: 3, kind: output, shape index: {}]
  %s4 = sld [smem:[#allocation0]]
  $region30: #{transformer_forward.26} parent=0
    _
  %s6 = ssub.s32 1, %s4
  %s7 = scalar_select 0, %s6, %s4
  // Predicated region
  $region2: #{transformer_forward.26} parent=0 // pred_check
    _
  $region3: #{transformer_forward.26} parent=0 // pred_check_branch
    %9 = sbr.rel (0) target = $region5
  $region4: #{transformer_forward.26} parent=0 // pred_region
    _
  $region5: #{transformer_forward.26} parent=0 // pred_fallthru
    _
  // Predicated region
  $region6: #{transformer_forward.26} parent=0 // pred_check
    _
  $region7: #{transformer_forward.26} parent=0 // pred_check_branch
    %11 = sbr.rel (0) target = $region9
  $region8: #{transformer_forward.26} parent=0 // pred_region
    _
  $region9: #{transformer_forward.26} parent=0 // pred_fallthru
    _
  // Predicated region
  $region10: #{transformer_forward.26} parent=0 // pred_check
    _
  $region11: #{transformer_forward.26} parent=0 // pred_check_branch
    %13 = sbr.rel (0) target = $region13
  $region12: #{transformer_forward.26} parent=0 // pred_region
    _
  $region13: #{transformer_forward.26} parent=0 // pred_fallthru
    _
  %p15 = scmp.eq.s32.totalorder 0, 0
  // Predicated region
  $region14: #{transformer_forward.26} parent=0 // pred_check
    %p16 = pneg %p15
  $region15: #{transformer_forward.26} parent=0 // pred_check_branch
    %18 = sbr.rel (%p16) target = $region17
  $region16: #{transformer_forward.26} parent=0 // pred_region
    %vm19 = vcmask 785408
    %20 = vst.msk [vmem:[#allocation2] sm:$0xff] %vm19, 0.0
    %21 = vst.msk [vmem:[#allocation2 + $0x8] sm:$0xff] %vm19, 0.0
  $region17: #{transformer_forward.26} parent=0 // pred_fallthru
    _
  %v22 = vld [vmem:[%s0] sm:$0xff]
  %v23 = vld [vmem:[%s0 + $0x8] sm:$0xff]
  %v24 = vpack.c.bf16 %v23, %v22
  %v25 = vld [vmem:[#allocation2] sm:$0xff]
  %v26 = vld [vmem:[#allocation2 + $0x8] sm:$0xff]
  %v27 = vld [vmem:[%s1] sm:$0xf]
  %v28 = vld [vmem:[%s1 + $0x4] sm:$0xf]
  %v29 = vld [vmem:[%s1 + $0x8] sm:$0xf]
  %v30 = vld [vmem:[%s1 + $0xc] sm:$0xf]
  %v35 = vunpack.c.l.b16 %v27
  %v36 = vunpack.c.l.b16 %v28
  %v37 = vunpack.c.l.b16 %v29
  %v38 = vunpack.c.l.b16 %v30
  %v39 = vpack.c.b16 %v36, %v35
  %v40 = vpack.c.b16 %v38, %v37
  %vm43 = vcmask 261120
  %v45 = vsel %vm43, %v24, 0
  %47 = vmatpush.bf16.msra.mxu0 0
  %48 = vmatpush.bf16.msra.mxu0 0
  %49 = vmatpush.bf16.msra.mxu0 0
  %50 = vmatpush.bf16.msra.mxu0 0
  %51 = vmatpush.bf16.msra.mxu0 0
  %52 = vmatpush.bf16.msra.mxu0 0
  %53 = vmatpush.bf16.msra.mxu0 %v40
  %54 = vmatpush.bf16.msra.mxu0 %v39
  %55 = vmatmul.bf16.gmra.mxu0 %v45
  %v56 = vpop.f32.mrf.mxu0
  %v57 = vadd.f32 0.0, %v56
  %v58 = vpop.f32.mrf.mxu0
  %v59 = vadd.f32 0.0, %v58
  %60 = vdwg.mxu0
  %v61 = vadd.f32 %v25, %v57
  %v62 = vadd.f32 %v26, %v59
  %vm63 = vcmask 785408
  %64 = vst.msk [vmem:[#allocation2] sm:$0xff] %vm63, %v61
  %65 = vst.msk [vmem:[#allocation2 + $0x8] sm:$0xff] %vm63, %v62
  // Predicated region
  $region18: #{transformer_forward.26} parent=0 // pred_check
    %p66 = pneg %p15
  $region19: #{transformer_forward.26} parent=0 // pred_check_branch
    %68 = sbr.rel (%p66) target = $region21
  $region20: #{transformer_forward.26} parent=0 // pred_region
    %v69 = vld [vmem:[#allocation2] sm:$0xff]
    %v70 = vld [vmem:[#allocation2 + $0x8] sm:$0xff]
    %v71 = vld [vmem:[%s2] sm:$0x1]
    %v73 = vperm.slane %v71, 0
    %v75 = vadd.f32 %v69, %v73
    %v76 = vadd.f32 %v70, %v73
    %v77 = vpack.c.bf16 %v75, %v75
    %v78 = vpack.c.bf16 %v76, %v76
    %vm79 = vcmask 781312
    %80 = vst.msk [vmem:[%s3] sm:$0xf] %vm79, %v77
    %81 = vst.msk [vmem:[%s3 + $0x4] sm:$0xf] %vm79, %v78
  $region21: #{transformer_forward.26} parent=0 // pred_fallthru
    _
  // Predicated region
  $region22: #{transformer_forward.26} parent=0 // pred_check
    _
  $region23: #{transformer_forward.26} parent=0 // pred_check_branch
    %83 = sbr.rel (0) target = $region25
  $region24: #{transformer_forward.26} parent=0 // pred_region
    _
  $region25: #{transformer_forward.26} parent=0 // pred_fallthru
    _
  // Predicated region
  $region26: #{transformer_forward.26} parent=0 // pred_check
    _
  $region27: #{transformer_forward.26} parent=0 // pred_check_branch
    %85 = sbr.rel (0) target = $region29
  $region28: #{transformer_forward.26} parent=0 // pred_region
    _
  $region29: #{transformer_forward.26} parent=0 // pred_fallthru
    _

// kernel: transformer_forward.27
$region0: #{transformer_forward.27}
  #allocation0 [shape = 'u32[]', space=smem, size = 0x4, offset = 0x4, fixed_abs, tag = 'smem constant byte address 0x4 - core index']
  #allocation1 [shape = 'u32[72,128]{1,0:T(1,128)}', space=vmem, size = 0x9000, scoped, tag = 'internal scratch']
  %s0 = inlined_call_operand.vmem [shape: s32[2,1,8], index: 0, kind: input, shape index: {}]
  %s1 = inlined_call_operand.vmem [shape: bf16[2,8,96], index: 1, kind: input, shape index: {}]
  %s2 = inlined_call_operand.vmem [shape: bf16[32,32], index: 2, kind: input, shape index: {}]
  %s3 = inlined_call_operand.vmem [shape: f32[1,32], index: 3, kind: input, shape index: {}]
  %s4 = inlined_call_operand.vmem [shape: f32[2,8,32], index: 4, kind: input, shape index: {}]
  %s5 = inlined_call_operand.vmem [shape: f32[1,32], index: 5, kind: input, shape index: {}]
  %s6 = inlined_call_operand.vmem [shape: f32[1,32], index: 6, kind: input, shape index: {}]
  %s7 = inlined_call_operand.vmem [shape: f32[2,8,32], index: 7, kind: output, shape index: {}]
  %s8 = sld [smem:[#allocation0]]
  $region61: #{transformer_forward.27} parent=0
    _
  %s10 = ssub.s32 1, %s8
  %s11 = scalar_select 0, %s10, %s8
  loop: start=0, step=1, limit=4
  $region2: #{transformer_forward.27} parent=0 // loop_pre_header
    _
  $region3: #{transformer_forward.27} parent=0 // loop_header
    %s13 = sphi 0, %s17
    %p14 = scmp.ge.s32.totalorder %s13, 4
    %s23 = sphi 0, %s25
    %s26 = sphi 0, %s23
    %s27 = sphi 0, %s26
    %s43 = sphi 0, %s27
    %s49 = sphi 0, %s51
    %s52 = sphi 0, %s49
    %s53 = sphi 0, %s52
    %s69 = sphi 0, %s53
    %s73 = sphi 0, %s73
    %s75 = sphi 0, %s73
    %s76 = sphi 0, %s75
    %s90 = sphi 0, %s76
    %s94 = sphi 0, %s94
    %s96 = sphi 0, %s94
    %s97 = sphi 0, %s96
    %s111 = sphi 0, %s97
    %s117 = sphi 0, %s119
    %s120 = sphi 0, %s117
    %s121 = sphi 0, %s120
    %s137 = sphi 0, %s121
    %s141 = sphi 0, %s141
    %s143 = sphi 0, %s141
    %s144 = sphi 0, %s143
    %s158 = sphi 0, %s144
    %s162 = sphi 0, %s162
    %s164 = sphi 0, %s162
    %s165 = sphi 0, %s164
    %s179 = sphi 0, %s165
    %s185 = sphi 0, %s187
    %s188 = sphi 0, %s185
    %s189 = sphi 0, %s188
    %s205 = sphi 0, %s189
  $region4: #{transformer_forward.27} parent=0 // loop_header_branch
    %16 = sbr.rel (%p14) target = $region8
  $region5: #{transformer_forward.27} parent=0 // loop_body
    %s18 = ssub.s32 %s13, 1
    %s19 = ssub.s32 %s13, 2
    %s20 = sadd.s32 %s13, 1
    %s21 = ssub.s32 %s13, %s20
    %p22 = scmp.eq.s32.totalorder %s21, 0
    %s24 = sadd.s32 %s23, 1
    %s25 = scalar_select %p22, %s23, %s24
    %p28 = pneg %p22
    %p29 = scmp.eq.s32.totalorder %s13, 1
    %p30 = por %p28, %p29
    %p31 = scmp.ne.s32.totalorder %s23, %s26
    %p32 = scmp.eq.s32.totalorder %s13, 0
    %p33 = por %p31, %p32
    %p34 = scmp.ne.s32.totalorder %s23, %s26
    %p35 = scmp.eq.s32.totalorder %s18, 1
    %p36 = por %p34, %p35
    %p37 = scmp.ne.s32.totalorder %s26, %s27
    %p38 = scmp.eq.s32.totalorder %s18, 0
    %p39 = por %p37, %p38
    %p40 = scmp.ne.s32.totalorder %s26, %s27
    %p41 = scmp.eq.s32.totalorder %s19, 1
    %p42 = por %p40, %p41
    %p44 = scmp.ne.s32.totalorder %s27, %s43
    %p45 = scmp.eq.s32.totalorder %s19, 0
    %p46 = por %p44, %p45
    %s47 = ssub.s32 %s13, %s20
    %p48 = scmp.eq.s32.totalorder %s47, 0
    %s50 = sadd.s32 %s49, 1
    %s51 = scalar_select %p48, %s49, %s50
    %p54 = pneg %p48
    %p55 = scmp.eq.s32.totalorder %s13, 1
    %p56 = por %p54, %p55
    %p57 = scmp.ne.s32.totalorder %s49, %s52
    %p58 = scmp.eq.s32.totalorder %s13, 0
    %p59 = por %p57, %p58
    %p60 = scmp.ne.s32.totalorder %s49, %s52
    %p61 = scmp.eq.s32.totalorder %s18, 1
    %p62 = por %p60, %p61
    %p63 = scmp.ne.s32.totalorder %s52, %s53
    %p64 = scmp.eq.s32.totalorder %s18, 0
    %p65 = por %p63, %p64
    %p66 = scmp.ne.s32.totalorder %s52, %s53
    %p67 = scmp.eq.s32.totalorder %s19, 1
    %p68 = por %p66, %p67
    %p70 = scmp.ne.s32.totalorder %s53, %s69
    %p71 = scmp.eq.s32.totalorder %s19, 0
    %p72 = por %p70, %p71
    %s74 = sadd.s32 %s73, 1
    %p77 = scmp.eq.s32.totalorder %s13, 1
    %p78 = scmp.ne.s32.totalorder %s73, %s75
    %p79 = scmp.eq.s32.totalorder %s13, 0
    %p80 = por %p78, %p79
    %p81 = scmp.ne.s32.totalorder %s73, %s75
    %p82 = scmp.eq.s32.totalorder %s18, 1
    %p83 = por %p81, %p82
    %p84 = scmp.ne.s32.totalorder %s75, %s76
    %p85 = scmp.eq.s32.totalorder %s18, 0
    %p86 = por %p84, %p85
    %p87 = scmp.ne.s32.totalorder %s75, %s76
    %p88 = scmp.eq.s32.totalorder %s19, 1
    %p89 = por %p87, %p88
    %p91 = scmp.ne.s32.totalorder %s76, %s90
    %p92 = scmp.eq.s32.totalorder %s19, 0
    %p93 = por %p91, %p92
    %s95 = sadd.s32 %s94, 1
    %p98 = scmp.eq.s32.totalorder %s13, 1
    %p99 = scmp.ne.s32.totalorder %s94, %s96
    %p100 = scmp.eq.s32.totalorder %s13, 0
    %p101 = por %p99, %p100
    %p102 = scmp.ne.s32.totalorder %s94, %s96
    %p103 = scmp.eq.s32.totalorder %s18, 1
    %p104 = por %p102, %p103
    %p105 = scmp.ne.s32.totalorder %s96, %s97
    %p106 = scmp.eq.s32.totalorder %s18, 0
    %p107 = por %p105, %p106
    %p108 = scmp.ne.s32.totalorder %s96, %s97
    %p109 = scmp.eq.s32.totalorder %s19, 1
    %p110 = por %p108, %p109
    %p112 = scmp.ne.s32.totalorder %s97, %s111
    %p113 = scmp.eq.s32.totalorder %s19, 0
    %p114 = por %p112, %p113
    %s115 = ssub.s32 %s13, %s20
    %p116 = scmp.eq.s32.totalorder %s115, 0
    %s118 = sadd.s32 %s117, 1
    %s119 = scalar_select %p116, %s117, %s118
    %p122 = pneg %p116
    %p123 = scmp.eq.s32.totalorder %s13, 1
    %p124 = por %p122, %p123
    %p125 = scmp.ne.s32.totalorder %s117, %s120
    %p126 = scmp.eq.s32.totalorder %s13, 0
    %p127 = por %p125, %p126
    %p128 = scmp.ne.s32.totalorder %s117, %s120
    %p129 = scmp.eq.s32.totalorder %s18, 1
    %p130 = por %p128, %p129
    %p131 = scmp.ne.s32.totalorder %s120, %s121
    %p132 = scmp.eq.s32.totalorder %s18, 0
    %p133 = por %p131, %p132
    %p134 = scmp.ne.s32.totalorder %s120, %s121
    %p135 = scmp.eq.s32.totalorder %s19, 1
    %p136 = por %p134, %p135
    %p138 = scmp.ne.s32.totalorder %s121, %s137
    %p139 = scmp.eq.s32.totalorder %s19, 0
    %p140 = por %p138, %p139
    %s142 = sadd.s32 %s141, 1
    %p145 = scmp.eq.s32.totalorder %s13, 1
    %p146 = scmp.ne.s32.totalorder %s141, %s143
    %p147 = scmp.eq.s32.totalorder %s13, 0
    %p148 = por %p146, %p147
    %p149 = scmp.ne.s32.totalorder %s141, %s143
    %p150 = scmp.eq.s32.totalorder %s18, 1
    %p151 = por %p149, %p150
    %p152 = scmp.ne.s32.totalorder %s143, %s144
    %p153 = scmp.eq.s32.totalorder %s18, 0
    %p154 = por %p152, %p153
    %p155 = scmp.ne.s32.totalorder %s143, %s144
    %p156 = scmp.eq.s32.totalorder %s19, 1
    %p157 = por %p155, %p156
    %p159 = scmp.ne.s32.totalorder %s144, %s158
    %p160 = scmp.eq.s32.totalorder %s19, 0
    %p161 = por %p159, %p160
    %s163 = sadd.s32 %s162, 1
    %p166 = scmp.eq.s32.totalorder %s13, 1
    %p167 = scmp.ne.s32.totalorder %s162, %s164
    %p168 = scmp.eq.s32.totalorder %s13, 0
    %p169 = por %p167, %p168
    %p170 = scmp.ne.s32.totalorder %s162, %s164
    %p171 = scmp.eq.s32.totalorder %s18, 1
    %p172 = por %p170, %p171
    %p173 = scmp.ne.s32.totalorder %s164, %s165
    %p174 = scmp.eq.s32.totalorder %s18, 0
    %p175 = por %p173, %p174
    %p176 = scmp.ne.s32.totalorder %s164, %s165
    %p177 = scmp.eq.s32.totalorder %s19, 1
    %p178 = por %p176, %p177
    %p180 = scmp.ne.s32.totalorder %s165, %s179
    %p181 = scmp.eq.s32.totalorder %s19, 0
    %p182 = por %p180, %p181
    %s183 = ssub.s32 %s13, %s20
    %p184 = scmp.eq.s32.totalorder %s183, 0
    %s186 = sadd.s32 %s185, 1
    %s187 = scalar_select %p184, %s185, %s186
    %p190 = pneg %p184
    %p191 = scmp.eq.s32.totalorder %s13, 1
    %p192 = por %p190, %p191
    %p193 = scmp.ne.s32.totalorder %s185, %s188
    %p194 = scmp.eq.s32.totalorder %s13, 0
    %p195 = por %p193, %p194
    %p196 = scmp.ne.s32.totalorder %s185, %s188
    %p197 = scmp.eq.s32.totalorder %s18, 1
    %p198 = por %p196, %p197
    %p199 = scmp.ne.s32.totalorder %s188, %s189
    %p200 = scmp.eq.s32.totalorder %s18, 0
    %p201 = por %p199, %p200
    %p202 = scmp.ne.s32.totalorder %s188, %s189
    %p203 = scmp.eq.s32.totalorder %s19, 1
    %p204 = por %p202, %p203
    %p206 = scmp.ne.s32.totalorder %s189, %s205
    %p207 = scmp.eq.s32.totalorder %s19, 0
    %p208 = por %p206, %p207
    %p209 = scmp.le.s32.totalorder 1, %s13
    %p210 = scmp.lt.s32.totalorder %s13, 3
    %p211 = pnand %p209, %p210
    %p212 = pneg %p211
    // Predicated region
    $region9: #{transformer_forward.27} parent=5 // pred_check
      _
    $region10: #{transformer_forward.27} parent=5 // pred_check_branch
      %214 = sbr.rel (%p211) target = $region12
    $region11: #{transformer_forward.27} parent=5 // pred_region
      %s215 = ssub.s32 %s13, 1
      // Predicated region
      $region13: #{transformer_forward.27} parent=11 // pred_check
        %p216 = pneg %p86
      $region14: #{transformer_forward.27} parent=11 // pred_check_branch
        %218 = sbr.rel (%p216) target = $region16
      $region15: #{transformer_forward.27} parent=11 // pred_region
        _
      $region16: #{transformer_forward.27} parent=11 // pred_fallthru
        _
      // Predicated region
      $region17: #{transformer_forward.27} parent=11 // pred_check
        %p219 = pneg %p107
      $region18: #{transformer_forward.27} parent=11 // pred_check_branch
        %221 = sbr.rel (%p219) target = $region20
      $region19: #{transformer_forward.27} parent=11 // pred_region
        _
      $region20: #{transformer_forward.27} parent=11 // pred_fallthru
        _
      // Predicated region
      $region21: #{transformer_forward.27} parent=11 // pred_check
        %p222 = pneg %p154
      $region22: #{transformer_forward.27} parent=11 // pred_check_branch
        %224 = sbr.rel (%p222) target = $region24
      $region23: #{transformer_forward.27} parent=11 // pred_region
        _
      $region24: #{transformer_forward.27} parent=11 // pred_fallthru
        _
      // Predicated region
      $region25: #{transformer_forward.27} parent=11 // pred_check
        %p225 = pneg %p175
      $region26: #{transformer_forward.27} parent=11 // pred_check_branch
        %227 = sbr.rel (%p225) target = $region28
      $region27: #{transformer_forward.27} parent=11 // pred_region
        _
      $region28: #{transformer_forward.27} parent=11 // pred_fallthru
        _
    $region12: #{transformer_forward.27} parent=5 // pred_fallthru
      _
    %p228 = scmp.lt.s32.totalorder %s13, 2
    // Predicated region
    $region29: #{transformer_forward.27} parent=5 // pred_check
      %p229 = pneg %p228
    $region30: #{transformer_forward.27} parent=5 // pred_check_branch
      %231 = sbr.rel (%p229) target = $region32
    $region31: #{transformer_forward.27} parent=5 // pred_region
      // Predicated region
      $region33: #{transformer_forward.27} parent=31 // pred_check
        %p232 = pneg %p33
      $region34: #{transformer_forward.27} parent=31 // pred_check_branch
        %234 = sbr.rel (%p232) target = $region36
      $region35: #{transformer_forward.27} parent=31 // pred_region
        %p235 = scmp.lt.s32.totalorder %s13, 1
        %s236 = scalar_select %p235, %s13, 1
        %s237 = scalar_lea.vmem %s0, %s236
      $region36: #{transformer_forward.27} parent=31 // pred_fallthru
        _
      // Predicated region
      $region37: #{transformer_forward.27} parent=31 // pred_check
        %p238 = pneg %p59
      $region38: #{transformer_forward.27} parent=31 // pred_check_branch
        %240 = sbr.rel (%p238) target = $region40
      $region39: #{transformer_forward.27} parent=31 // pred_region
        %p241 = scmp.lt.s32.totalorder %s13, 1
        %s242 = scalar_select %p241, %s13, 1
        %s243 = smul.addr %s242, 4
        %s244 = scalar_lea.vmem %s1, %s243
      $region40: #{transformer_forward.27} parent=31 // pred_fallthru
        _
      // Predicated region
      $region41: #{transformer_forward.27} parent=31 // pred_check
        %p245 = pneg %p127
      $region42: #{transformer_forward.27} parent=31 // pred_check_branch
        %247 = sbr.rel (%p245) target = $region44
      $region43: #{transformer_forward.27} parent=31 // pred_region
        %p248 = scmp.lt.s32.totalorder %s13, 1
        %s249 = scalar_select %p248, %s13, 1
        %s250 = smul.addr %s249, 8
        %s251 = scalar_lea.vmem %s4, %s250
      $region44: #{transformer_forward.27} parent=31 // pred_fallthru
        _
    $region32: #{transformer_forward.27} parent=5 // pred_fallthru
      _
    %p252 = scmp.le.s32.totalorder 1, %s13
    %p253 = scmp.lt.s32.totalorder %s13, 3
    %p254 = pnand %p252, %p253
    %p255 = pneg %p254
    // Predicated region
    $region45: #{transformer_forward.27} parent=5 // pred_check
      _
    $region46: #{transformer_forward.27} parent=5 // pred_check_branch
      %257 = sbr.rel (%p254) target = $region48
    $region47: #{transformer_forward.27} parent=5 // pred_region
      %s258 = ssub.s32 %s13, 1
      %p259 = scmp.lt.s32.totalorder %s18, 1
      %s260 = scalar_select %p259, %s18, 1
      %s261 = scalar_lea.vmem %s0, %s260
      %p262 = pneg %p39
      %p263 = pneg %p36
      %p264 = scmp.lt.s32.totalorder %s18, 1
      %s265 = scalar_select %p264, %s18, 1
      %s266 = smul.addr %s265, 4
      %s267 = scalar_lea.vmem %s1, %s266
      %p268 = pneg %p65
      %p269 = pneg %p62
      %p270 = pneg %p86
      %p271 = pneg %p83
      %p272 = pneg %p107
      %p273 = pneg %p104
      %p274 = scmp.lt.s32.totalorder %s18, 1
      %s275 = scalar_select %p274, %s18, 1
      %s276 = smul.addr %s275, 8
      %s277 = scalar_lea.vmem %s4, %s276
      %p278 = pneg %p133
      %p279 = pneg %p130
      %p280 = pneg %p154
      %p281 = pneg %p151
      %p282 = pneg %p175
      %p283 = pneg %p172
      %p284 = pneg %p201
      %p285 = pneg %p198
      %p286 = scmp.lt.s32.totalorder %s18, 1
      %s287 = scalar_select %p286, %s18, 1
      %s288 = smul.addr %s287, 8
      %s289 = scalar_lea.vmem %s7, %s288
      %p290 = scmp.lt.s32.totalorder %s18, 1
      %s291 = scalar_select %p290, %s18, 1
      %s292 = scalar_lea.vmem %s0, %s291
      %p293 = scmp.lt.s32.totalorder %s18, 1
      %s294 = scalar_select %p293, %s18, 1
      %s295 = smul.addr %s294, 4
      %s296 = scalar_lea.vmem %s1, %s295
      %p297 = scmp.lt.s32.totalorder %s18, 1
      %s298 = scalar_select %p297, %s18, 1
      %s299 = smul.addr %s298, 8
      %s300 = scalar_lea.vmem %s4, %s299
      %p301 = scmp.lt.s32.totalorder %s18, 1
      %s302 = scalar_select %p301, %s18, 1
      %s303 = smul.addr %s302, 8
      %s304 = scalar_lea.vmem %s7, %s303
      %v306 = vld [vmem:[%s296] sm:$0xf]
      %v307 = vld [vmem:[%s292] sm:$0x1]
      %vm308 = vcmp.ne.s32.totalorder %v307, 0
      %v309 = vsel %vm308, -1e+09, 0.0
      %v311 = vunpack.c.l.b16 %v306
      %v312 = vpack.c.b16 %v311, %v311
      %313 = vrot.lane.b32.xlu0 %v312, 96
      %v314 = vpop.permute.xlu0 %313
      %vm315 = vcmask 64512
      %v317 = vsel %vm315, %v306, 0
      %v320 = vsel %vm315, %v314, 0
      %322 = vmatpush.bf16.xpose.msra.mxu0 0
      %323 = vmatpush.bf16.xpose.msra.mxu0 0
      %324 = vmatpush.bf16.xpose.msra.mxu0 0
      %325 = vmatpush.bf16.xpose.msra.mxu0 0
      %326 = vmatpush.bf16.xpose.msra.mxu0 0
      %327 = vmatpush.bf16.xpose.msra.mxu0 0
      %328 = vmatpush.bf16.xpose.msra.mxu0 0
      %329 = vmatpush.bf16.xpose.msra.mxu0 %v320
      %330 = vmatmul.bf16.gmra.mxu0 %v317
      %v331 = vpop.f32.mrf.mxu0
      %v332 = vadd.f32 0.0, %v331
      %v333 = vpop.f32.mrf.mxu0
      %334 = vdwg.mxu0
      %v335 = vmul.f32 %v332, 0.35355338
      %v337 = vperm.slane %v309, 0
      %v339 = vadd.f32 %v335, %v337
      %v340 = vsel %vm315, %v339, -inf
      %341 = vmax.xlane.f32.xlu0 %v340
      %v342 = vpop.xlane.xlu0 %341
      %v343 = vsub.f32 %v339, %v342
      %v344 = vmul.f32 %v343, 1.442695
      %v345 = vpow.pop %v344
      %v346 = vsel %vm315, %v345, 0.0
      %347 = vadd.xlane.f32.xlu0 %v346
      %v348 = vpop.xlane.xlu0 %347
      %v349 = vrcp.pop %v348
      %v350 = vmul.f32 %v348, %v349
      %v351 = vsub.f32 1.0, %v350
      %v352 = vmul.f32 %v349, %v351
      %v353 = vadd.f32 %v349, %v352
      %vm354 = vweird.f32 %v348
      %vm355 = vweird.f32 %v349
      %vm356 = vmor %vm354, %vm355
      %v357 = vsel %vm356, %v349, %v353
      %v358 = vand.u32 2147483647, %v348
      %vm359 = vcmp.eq.f32.partialorder %v358, 8.507059e+37
      %v360 = vand.u32 %v348, 2147483648
      %v361 = vor.u32 1.1754944e-38, %v360
      %v362 = vsel %vm359, %v361, %v357
      %v363 = vmul.f32 %v345, %v362
      %v364 = vpack.c.bf16 %v363, %v363
      %365 = vrot.lane.b32.xlu0 %v312, 64
      %v366 = vpop.permute.xlu0 %365
      %v368 = vsel %vm315, %v364, 0
      %vm370 = vcmask 1043456
      %v372 = vsel %vm370, %v366, 0
      %374 = vmatpush.bf16.msra.mxu0 0
      %375 = vmatpush.bf16.msra.mxu0 0
      %376 = vmatpush.bf16.msra.mxu0 0
      %377 = vmatpush.bf16.msra.mxu0 0
      %378 = vmatpush.bf16.msra.mxu0 0
      %379 = vmatpush.bf16.msra.mxu0 0
      %380 = vmatpush.bf16.msra.mxu0 0
      %381 = vmatpush.bf16.msra.mxu0 %v372
      %382 = vmatmul.bf16.gmra.mxu0 %v368
      %v383 = vpop.f32.mrf.mxu0
      %v384 = vadd.f32 0.0, %v383
      %v385 = vpop.f32.mrf.mxu0
      %386 = vdwg.mxu0
      %387 = vrot.lane.b32.xlu0 %v312, 120
      %v388 = vpop.permute.xlu0 %387
      %389 = vrot.lane.b32.xlu0 %v312, 88
      %v390 = vpop.permute.xlu0 %389
      %v392 = vsel %vm315, %v388, 0
      %v395 = vsel %vm315, %v390, 0
      %397 = vmatpush.bf16.xpose.msra.mxu0 0
      %398 = vmatpush.bf16.xpose.msra.mxu0 0
      %399 = vmatpush.bf16.xpose.msra.mxu0 0
      %400 = vmatpush.bf16.xpose.msra.mxu0 0
      %401 = vmatpush.bf16.xpose.msra.mxu0 0
      %402 = vmatpush.bf16.xpose.msra.mxu0 0
      %403 = vmatpush.bf16.xpose.msra.mxu0 0
      %404 = vmatpush.bf16.xpose.msra.mxu0 %v395
      %405 = vmatmul.bf16.gmra.mxu0 %v392
      %v406 = vpop.f32.mrf.mxu0
      %v407 = vadd.f32 0.0, %v406
      %v408 = vpop.f32.mrf.mxu0
      %409 = vdwg.mxu0
      %v410 = vmul.f32 %v407, 0.35355338
      %v411 = vadd.f32 %v410, %v337
      %v412 = vsel %vm315, %v411, -inf
      %413 = vmax.xlane.f32.xlu0 %v412
      %v414 = vpop.xlane.xlu0 %413
      %v415 = vsub.f32 %v411, %v414
      %v416 = vmul.f32 %v415, 1.442695
      %v417 = vpow.pop %v416
      %v418 = vsel %vm315, %v417, 0.0
      %419 = vadd.xlane.f32.xlu0 %v418
      %v420 = vpop.xlane.xlu0 %419
      %v421 = vrcp.pop %v420
      %v422 = vmul.f32 %v420, %v421
      %v423 = vsub.f32 1.0, %v422
      %v424 = vmul.f32 %v421, %v423
      %v425 = vadd.f32 %v421, %v424
      %vm426 = vweird.f32 %v420
      %vm427 = vweird.f32 %v421
      %vm428 = vmor %vm426, %vm427
      %v429 = vsel %vm428, %v421, %v425
      %v430 = vand.u32 2147483647, %v420
      %vm431 = vcmp.eq.f32.partialorder %v430, 8.507059e+37
      %v432 = vand.u32 %v420, 2147483648
      %v433 = vor.u32 1.1754944e-38, %v432
      %v434 = vsel %vm431, %v433, %v429
      %v435 = vmul.f32 %v417, %v434
      %v436 = vpack.c.bf16 %v435, %v435
      %437 = vrot.lane.b32.xlu0 %v312, 56
      %v438 = vpop.permute.xlu0 %437
      %v440 = vsel %vm315, %v436, 0
      %v443 = vsel %vm370, %v438, 0
      %445 = vmatpush.bf16.msra.mxu0 0
      %446 = vmatpush.bf16.msra.mxu0 0
      %447 = vmatpush.bf16.msra.mxu0 0
      %448 = vmatpush.bf16.msra.mxu0 0
      %449 = vmatpush.bf16.msra.mxu0 0
      %450 = vmatpush.bf16.msra.mxu0 0
      %451 = vmatpush.bf16.msra.mxu0 0
      %452 = vmatpush.bf16.msra.mxu0 %v443
      %453 = vmatmul.bf16.gmra.mxu0 %v440
      %v454 = vpop.f32.mrf.mxu0
      %v455 = vadd.f32 0.0, %v454
      %v456 = vpop.f32.mrf.mxu0
      %457 = vdwg.mxu0
      %458 = vrot.lane.b32.xlu0 %v312, 112
      %v459 = vpop.permute.xlu0 %458
      %460 = vrot.lane.b32.xlu0 %v312, 80
      %v461 = vpop.permute.xlu0 %460
      %v463 = vsel %vm315, %v459, 0
      %v466 = vsel %vm315, %v461, 0
      %468 = vmatpush.bf16.xpose.msra.mxu0 0
      %469 = vmatpush.bf16.xpose.msra.mxu0 0
      %470 = vmatpush.bf16.xpose.msra.mxu0 0
      %471 = vmatpush.bf16.xpose.msra.mxu0 0
      %472 = vmatpush.bf16.xpose.msra.mxu0 0
      %473 = vmatpush.bf16.xpose.msra.mxu0 0
      %474 = vmatpush.bf16.xpose.msra.mxu0 0
      %475 = vmatpush.bf16.xpose.msra.mxu0 %v466
      %476 = vmatmul.bf16.gmra.mxu0 %v463
      %v477 = vpop.f32.mrf.mxu0
      %v478 = vadd.f32 0.0, %v477
      %v479 = vpop.f32.mrf.mxu0
      %480 = vdwg.mxu0
      %v481 = vmul.f32 %v478, 0.35355338
      %v482 = vadd.f32 %v481, %v337
      %v483 = vsel %vm315, %v482, -inf
      %484 = vmax.xlane.f32.xlu0 %v483
      %v485 = vpop.xlane.xlu0 %484
      %v486 = vsub.f32 %v482, %v485
      %v487 = vmul.f32 %v486, 1.442695
      %v488 = vpow.pop %v487
      %v489 = vsel %vm315, %v488, 0.0
      %490 = vadd.xlane.f32.xlu0 %v489
      %v491 = vpop.xlane.xlu0 %490
      %v492 = vrcp.pop %v491
      %v493 = vmul.f32 %v491, %v492
      %v494 = vsub.f32 1.0, %v493
      %v495 = vmul.f32 %v492, %v494
      %v496 = vadd.f32 %v492, %v495
      %vm497 = vweird.f32 %v491
      %vm498 = vweird.f32 %v492
      %vm499 = vmor %vm497, %vm498
      %v500 = vsel %vm499, %v492, %v496
      %v501 = vand.u32 2147483647, %v491
      %vm502 = vcmp.eq.f32.partialorder %v501, 8.507059e+37
      %v503 = vand.u32 %v491, 2147483648
      %v504 = vor.u32 1.1754944e-38, %v503
      %v505 = vsel %vm502, %v504, %v500
      %v506 = vmul.f32 %v488, %v505
      %v507 = vpack.c.bf16 %v506, %v506
      %508 = vrot.lane.b32.xlu0 %v312, 48
      %v509 = vpop.permute.xlu0 %508
      %v511 = vsel %vm315, %v507, 0
      %v514 = vsel %vm370, %v509, 0
      %516 = vmatpush.bf16.msra.mxu0 0
      %517 = vmatpush.bf16.msra.mxu0 0
      %518 = vmatpush.bf16.msra.mxu0 0
      %519 = vmatpush.bf16.msra.mxu0 0
      %520 = vmatpush.bf16.msra.mxu0 0
      %521 = vmatpush.bf16.msra.mxu0 0
      %522 = vmatpush.bf16.msra.mxu0 0
      %523 = vmatpush.bf16.msra.mxu0 %v514
      %524 = vmatmul.bf16.gmra.mxu0 %v511
      %v525 = vpop.f32.mrf.mxu0
      %v526 = vadd.f32 0.0, %v525
      %v527 = vpop.f32.mrf.mxu0
      %528 = vdwg.mxu0
      %529 = vrot.lane.b32.xlu0 %v312, 104
      %v530 = vpop.permute.xlu0 %529
      %531 = vrot.lane.b32.xlu0 %v312, 72
      %v532 = vpop.permute.xlu0 %531
      %v534 = vsel %vm315, %v530, 0
      %v537 = vsel %vm315, %v532, 0
      %539 = vmatpush.bf16.xpose.msra.mxu0 0
      %540 = vmatpush.bf16.xpose.msra.mxu0 0
      %541 = vmatpush.bf16.xpose.msra.mxu0 0
      %542 = vmatpush.bf16.xpose.msra.mxu0 0
      %543 = vmatpush.bf16.xpose.msra.mxu0 0
      %544 = vmatpush.bf16.xpose.msra.mxu0 0
      %545 = vmatpush.bf16.xpose.msra.mxu0 0
      %546 = vmatpush.bf16.xpose.msra.mxu0 %v537
      %547 = vmatmul.bf16.gmra.mxu0 %v534
      %v548 = vpop.f32.mrf.mxu0
      %v549 = vadd.f32 0.0, %v548
      %v550 = vpop.f32.mrf.mxu0
      %551 = vdwg.mxu0
      %v552 = vmul.f32 %v549, 0.35355338
      %v553 = vadd.f32 %v552, %v337
      %v554 = vsel %vm315, %v553, -inf
      %555 = vmax.xlane.f32.xlu0 %v554
      %v556 = vpop.xlane.xlu0 %555
      %v557 = vsub.f32 %v553, %v556
      %v558 = vmul.f32 %v557, 1.442695
      %v559 = vpow.pop %v558
      %v560 = vsel %vm315, %v559, 0.0
      %561 = vadd.xlane.f32.xlu0 %v560
      %v562 = vpop.xlane.xlu0 %561
      %v563 = vrcp.pop %v562
      %v564 = vmul.f32 %v562, %v563
      %v565 = vsub.f32 1.0, %v564
      %v566 = vmul.f32 %v563, %v565
      %v567 = vadd.f32 %v563, %v566
      %vm568 = vweird.f32 %v562
      %vm569 = vweird.f32 %v563
      %vm570 = vmor %vm568, %vm569
      %v571 = vsel %vm570, %v563, %v567
      %v572 = vand.u32 2147483647, %v562
      %vm573 = vcmp.eq.f32.partialorder %v572, 8.507059e+37
      %v574 = vand.u32 %v562, 2147483648
      %v575 = vor.u32 1.1754944e-38, %v574
      %v576 = vsel %vm573, %v575, %v571
      %v577 = vmul.f32 %v559, %v576
      %v578 = vpack.c.bf16 %v577, %v577
      %579 = vrot.lane.b32.xlu0 %v312, 40
      %v580 = vpop.permute.xlu0 %579
      %v582 = vsel %vm315, %v578, 0
      %v585 = vsel %vm370, %v580, 0
      %587 = vmatpush.bf16.msra.mxu0 0
      %588 = vmatpush.bf16.msra.mxu0 0
      %589 = vmatpush.bf16.msra.mxu0 0
      %590 = vmatpush.bf16.msra.mxu0 0
      %591 = vmatpush.bf16.msra.mxu0 0
      %592 = vmatpush.bf16.msra.mxu0 0
      %593 = vmatpush.bf16.msra.mxu0 0
      %594 = vmatpush.bf16.msra.mxu0 %v585
      %595 = vmatmul.bf16.gmra.mxu0 %v582
      %v596 = vpop.f32.mrf.mxu0
      %v597 = vadd.f32 0.0, %v596
      %v598 = vpop.f32.mrf.mxu0
      %599 = vdwg.mxu0
      %601 = vrot.lane.b32.xlu0 %v455, 8
      %v602 = vpop.permute.xlu0 %601
      %605 = vrot.lane.b32.xlu0 %v526, 16
      %v606 = vpop.permute.xlu0 %605
      %609 = vrot.lane.b32.xlu0 %v597, 24
      %v610 = vpop.permute.xlu0 %609
      %v612 = vsel %vm315, %v384, %v602
      %vm613 = vcmask 130048
      %v614 = vsel %vm613, %v612, %v606
      %vm615 = vcmask 195584
      %v616 = vsel %vm615, %v614, %v610
      %v617 = vpack.c.bf16 %v616, %v616
      %v618 = vld [vmem:[%s2] sm:$0xf]
      %v619 = vld [vmem:[%s2 + $0x4] sm:$0xf]
      %v620 = vld [vmem:[%s2 + $0x8] sm:$0xf]
      %v621 = vld [vmem:[%s2 + $0xc] sm:$0xf]
      %v622 = vld [vmem:[%s3] sm:$0x1]
      %v624 = vperm.slane %v622, 0
      %v630 = vunpack.c.l.b16 %v618
      %v631 = vunpack.c.l.b16 %v619
      %v632 = vunpack.c.l.b16 %v620
      %v633 = vunpack.c.l.b16 %v621
      %v634 = vpack.c.b16 %v631, %v630
      %v635 = vpack.c.b16 %v633, %v632
      %vm638 = vcmask 261120
      %v640 = vsel %vm638, %v617, 0
      %642 = vmatpush.bf16.msra.mxu0 0
      %643 = vmatpush.bf16.msra.mxu0 0
      %644 = vmatpush.bf16.msra.mxu0 0
      %645 = vmatpush.bf16.msra.mxu0 0
      %646 = vmatpush.bf16.msra.mxu0 0
      %647 = vmatpush.bf16.msra.mxu0 0
      %648 = vmatpush.bf16.msra.mxu0 %v635
      %649 = vmatpush.bf16.msra.mxu0 %v634
      %650 = vmatmul.bf16.gmra.mxu0 %v640
      %v651 = vpop.f32.mrf.mxu0
      %v652 = vadd.f32 %v624, %v651
      %v653 = vpop.f32.mrf.mxu0
      %654 = vdwg.mxu0
      %v655 = vld [vmem:[%s300] sm:$0xff]
      %v656 = vadd.f32 %v652, %v655
      %v657 = vsel %vm638, %v656, 0.0
      %658 = vadd.xlane.f32.xlu0 %v657
      %v659 = vpop.xlane.xlu0 %658
      %v660 = vrcp.pop 32.0
      %v661 = vmul.f32 32.0, %v660
      %v662 = vsub.f32 1.0, %v661
      %v663 = vmul.f32 %v660, %v662
      %v664 = vadd.f32 %v660, %v663
      %vm665 = vweird.f32 %v660
      %v666 = vsel %vm665, %v660, %v664
      %v667 = vmul.f32 %v659, %v666
      %v668 = vsub.f32 %v656, %v667
      %v669 = vmul.f32 %v668, %v668
      %v670 = vsel %vm638, %v669, 0.0
      %671 = vadd.xlane.f32.xlu0 %v670
      %v672 = vpop.xlane.xlu0 %671
      %v673 = vmul.f32 %v672, %v666
      %v674 = vadd.f32 %v673, 1e-05
      %v675 = vrsqrt.pop %v674
      %v676 = vmul.f32 %v675, %v674
      %v677 = vmul.f32 %v676, %v675
      %v678 = vmul.f32 0.5, %v677
      %v679 = vsub.f32 1.5, %v678
      %v680 = vmul.f32 %v675, %v679
      %vm681 = vweird.f32 %v674
      %vm682 = vweird.f32 %v675
      %vm683 = vmor %vm681, %vm682
      %v684 = vsel %vm683, %v675, %v680
      %v685 = vmul.f32 %v668, %v684
      %v686 = vld [vmem:[%s5] sm:$0x1]
      %v688 = vperm.slane %v686, 0
      %v690 = vmul.f32 %v685, %v688
      %v691 = vld [vmem:[%s6] sm:$0x1]
      %v693 = vperm.slane %v691, 0
      %v695 = vadd.f32 %v690, %v693
      %696 = vst.msk [vmem:[%s304] sm:$0xff] %vm638, %v695
      %p697 = scmp.lt.s32.totalorder %s18, 1
      %s698 = scalar_select %p697, %s18, 1
      %s699 = smul.addr %s698, 8
      %s700 = scalar_lea.vmem %s7, %s699
      // Predicated region
      $region49: #{transformer_forward.27} parent=47 // pred_check
        %p701 = pneg %p198
      $region50: #{transformer_forward.27} parent=47 // pred_check_branch
        %703 = sbr.rel (%p701) target = $region52
      $region51: #{transformer_forward.27} parent=47 // pred_region
        _
      $region52: #{transformer_forward.27} parent=47 // pred_fallthru
        _
    $region48: #{transformer_forward.27} parent=5 // pred_fallthru
      _
    %p704 = scmp.le.s32.totalorder 2, %s13
    // Predicated region
    $region53: #{transformer_forward.27} parent=5 // pred_check
      %p705 = pneg %p704
    $region54: #{transformer_forward.27} parent=5 // pred_check_branch
      %707 = sbr.rel (%p705) target = $region56
    $region55: #{transformer_forward.27} parent=5 // pred_region
      %s708 = ssub.s32 %s13, 2
      // Predicated region
      $region57: #{transformer_forward.27} parent=55 // pred_check
        %p709 = pneg %p204
      $region58: #{transformer_forward.27} parent=55 // pred_check_branch
        %711 = sbr.rel (%p709) target = $region60
      $region59: #{transformer_forward.27} parent=55 // pred_region
        %p712 = scmp.lt.s32.totalorder %s19, 1
        %s713 = scalar_select %p712, %s19, 1
        %s714 = smul.addr %s713, 8
        %s715 = scalar_lea.vmem %s7, %s714
      $region60: #{transformer_forward.27} parent=55 // pred_fallthru
        _
    $region56: #{transformer_forward.27} parent=5 // pred_fallthru
      _
  $region6: #{transformer_forward.27} parent=0 // loop_footer
    %s17 = sadd.s32 1, %s13
  $region7: #{transformer_forward.27} parent=0 // loop_footer_branch
    %12 = sbr.rel target = $region3
  $region8: #{transformer_forward.27} parent=0 // loop_exit
    _

// kernel: transformer_forward.28
$region0: #{transformer_forward.28}
  #allocation0 [shape = 'u32[]', space=smem, size = 0x4, offset = 0x4, fixed_abs, tag = 'smem constant byte address 0x4 - core index']
  #allocation1 [shape = 'u32[72,128]{1,0:T(1,128)}', space=vmem, size = 0x9000, scoped, tag = 'internal scratch']
  #allocation2 [shape = 'f32[16,32]{1,0:T(8,128)}', space=vmem, size = 0x2000, scoped, tag = 'scratch operand']
  %s0 = inlined_call_operand.vmem [shape: f32[16,32], index: 0, kind: input, shape index: {}]
  %s1 = inlined_call_operand.vmem [shape: bf16[32,32], index: 1, kind: input, shape index: {}]
  %s2 = inlined_call_operand.vmem [shape: f32[1,32], index: 2, kind: input, shape index: {}]
  %s3 = inlined_call_operand.vmem [shape: bf16[16,32], index: 3, kind: output, shape index: {}]
  %s4 = sld [smem:[#allocation0]]
  $region30: #{transformer_forward.28} parent=0
    _
  %s6 = ssub.s32 1, %s4
  %s7 = scalar_select 0, %s6, %s4
  // Predicated region
  $region2: #{transformer_forward.28} parent=0 // pred_check
    _
  $region3: #{transformer_forward.28} parent=0 // pred_check_branch
    %9 = sbr.rel (0) target = $region5
  $region4: #{transformer_forward.28} parent=0 // pred_region
    _
  $region5: #{transformer_forward.28} parent=0 // pred_fallthru
    _
  // Predicated region
  $region6: #{transformer_forward.28} parent=0 // pred_check
    _
  $region7: #{transformer_forward.28} parent=0 // pred_check_branch
    %11 = sbr.rel (0) target = $region9
  $region8: #{transformer_forward.28} parent=0 // pred_region
    _
  $region9: #{transformer_forward.28} parent=0 // pred_fallthru
    _
  // Predicated region
  $region10: #{transformer_forward.28} parent=0 // pred_check
    _
  $region11: #{transformer_forward.28} parent=0 // pred_check_branch
    %13 = sbr.rel (0) target = $region13
  $region12: #{transformer_forward.28} parent=0 // pred_region
    _
  $region13: #{transformer_forward.28} parent=0 // pred_fallthru
    _
  %p15 = scmp.eq.s32.totalorder 0, 0
  // Predicated region
  $region14: #{transformer_forward.28} parent=0 // pred_check
    %p16 = pneg %p15
  $region15: #{transformer_forward.28} parent=0 // pred_check_branch
    %18 = sbr.rel (%p16) target = $region17
  $region16: #{transformer_forward.28} parent=0 // pred_region
    %vm19 = vcmask 261120
    %20 = vst.msk [vmem:[#allocation2] sm:$0xff] %vm19, 0.0
    %21 = vst.msk [vmem:[#allocation2 + $0x8] sm:$0xff] %vm19, 0.0
  $region17: #{transformer_forward.28} parent=0 // pred_fallthru
    _
  %v22 = vld [vmem:[%s0] sm:$0xff]
  %v23 = vld [vmem:[%s0 + $0x8] sm:$0xff]
  %v24 = vpack.c.bf16 %v23, %v22
  %v25 = vld [vmem:[#allocation2] sm:$0xff]
  %v26 = vld [vmem:[#allocation2 + $0x8] sm:$0xff]
  %v27 = vld [vmem:[%s1] sm:$0xf]
  %v28 = vld [vmem:[%s1 + $0x4] sm:$0xf]
  %v29 = vld [vmem:[%s1 + $0x8] sm:$0xf]
  %v30 = vld [vmem:[%s1 + $0xc] sm:$0xf]
  %v35 = vunpack.c.l.b16 %v27
  %v36 = vunpack.c.l.b16 %v28
  %v37 = vunpack.c.l.b16 %v29
  %v38 = vunpack.c.l.b16 %v30
  %v39 = vpack.c.b16 %v36, %v35
  %v40 = vpack.c.b16 %v38, %v37
  %vm43 = vcmask 261120
  %v45 = vsel %vm43, %v24, 0
  %47 = vmatpush.bf16.msra.mxu0 0
  %48 = vmatpush.bf16.msra.mxu0 0
  %49 = vmatpush.bf16.msra.mxu0 0
  %50 = vmatpush.bf16.msra.mxu0 0
  %51 = vmatpush.bf16.msra.mxu0 0
  %52 = vmatpush.bf16.msra.mxu0 0
  %53 = vmatpush.bf16.msra.mxu0 %v40
  %54 = vmatpush.bf16.msra.mxu0 %v39
  %55 = vmatmul.bf16.gmra.mxu0 %v45
  %v56 = vpop.f32.mrf.mxu0
  %v57 = vadd.f32 0.0, %v56
  %v58 = vpop.f32.mrf.mxu0
  %v59 = vadd.f32 0.0, %v58
  %60 = vdwg.mxu0
  %v61 = vadd.f32 %v25, %v57
  %v62 = vadd.f32 %v26, %v59
  %63 = vst.msk [vmem:[#allocation2] sm:$0xff] %vm43, %v61
  %64 = vst.msk [vmem:[#allocation2 + $0x8] sm:$0xff] %vm43, %v62
  // Predicated region
  $region18: #{transformer_forward.28} parent=0 // pred_check
    %p65 = pneg %p15
  $region19: #{transformer_forward.28} parent=0 // pred_check_branch
    %67 = sbr.rel (%p65) target = $region21
  $region20: #{transformer_forward.28} parent=0 // pred_region
    %v68 = vld [vmem:[#allocation2] sm:$0xff]
    %v69 = vld [vmem:[#allocation2 + $0x8] sm:$0xff]
    %v70 = vld [vmem:[%s2] sm:$0x1]
    %v72 = vperm.slane %v70, 0
    %v74 = vadd.f32 %v68, %v72
    %v75 = vadd.f32 %v69, %v72
    %v76 = vmul.f32 %v74, 0.5
    %v77 = vmul.f32 %v75, 0.5
    %v78 = vmul.f32 %v74, 0.70710677
    %v79 = vmul.f32 %v75, 0.70710677
    %v80 = vmul.f32 %v78, %v78
    %v81 = vmin.f32 16.0, %v80
    %v82 = vmul.f32 %v81, 2.1237322e-06
    %v83 = vadd.f32 %v82, 0.00028619796
    %v84 = vmul.f32 %v81, %v83
    %v85 = vadd.f32 %v84, 0.0036580483
    %v86 = vmul.f32 %v81, %v85
    %v87 = vadd.f32 %v86, 0.05243302
    %v88 = vmul.f32 %v81, %v87
    %v89 = vadd.f32 %v88, 0.18741608
    %v90 = vmul.f32 %v81, %v89
    %v91 = vadd.f32 %v90, 1.1283791
    %v92 = vmul.f32 %v78, %v91
    %v93 = vmul.f32 %v81, 3.8918573e-05
    %v94 = vadd.f32 %v93, 0.001143296
    %v95 = vmul.f32 %v81, %v94
    %v96 = vadd.f32 %v95, 0.014752088
    %v97 = vmul.f32 %v81, %v96
    %v98 = vadd.f32 %v97, 0.112945676
    %v99 = vmul.f32 %v81, %v98
    %v100 = vadd.f32 %v99, 0.4994258
    %v101 = vmul.f32 %v81, %v100
    %v102 = vadd.f32 %v101, 1.0
    %v103 = vrcp.pop %v102
    %v104 = vmul.f32 %v102, %v103
    %v105 = vsub.f32 1.0, %v104
    %v106 = vmul.f32 %v103, %v105
    %v107 = vadd.f32 %v103, %v106
    %vm108 = vweird.f32 %v102
    %vm109 = vweird.f32 %v103
    %vm110 = vmor %vm108, %vm109
    %v111 = vsel %vm110, %v103, %v107
    %v112 = vand.u32 2147483647, %v102
    %vm113 = vcmp.eq.f32.partialorder %v112, 8.507059e+37
    %v114 = vand.u32 %v102, 2147483648
    %v115 = vor.u32 1.1754944e-38, %v114
    %v116 = vsel %vm113, %v115, %v111
    %v117 = vmul.f32 %v92, %v116
    %v118 = vmin.f32 %v117, 1.0
    %v119 = vmax.f32 %v118, -1.0
    %v120 = vmul.f32 %v79, %v79
    %v121 = vmin.f32 16.0, %v120
    %v122 = vmul.f32 %v121, 2.1237322e-06
    %v123 = vadd.f32 %v122, 0.00028619796
    %v124 = vmul.f32 %v121, %v123
    %v125 = vadd.f32 %v124, 0.0036580483
    %v126 = vmul.f32 %v121, %v125
    %v127 = vadd.f32 %v126, 0.05243302
    %v128 = vmul.f32 %v121, %v127
    %v129 = vadd.f32 %v128, 0.18741608
    %v130 = vmul.f32 %v121, %v129
    %v131 = vadd.f32 %v130, 1.1283791
    %v132 = vmul.f32 %v79, %v131
    %v133 = vmul.f32 %v121, 3.8918573e-05
    %v134 = vadd.f32 %v133, 0.001143296
    %v135 = vmul.f32 %v121, %v134
    %v136 = vadd.f32 %v135, 0.014752088
    %v137 = vmul.f32 %v121, %v136
    %v138 = vadd.f32 %v137, 0.112945676
    %v139 = vmul.f32 %v121, %v138
    %v140 = vadd.f32 %v139, 0.4994258
    %v141 = vmul.f32 %v121, %v140
    %v142 = vadd.f32 %v141, 1.0
    %v143 = vrcp.pop %v142
    %v144 = vmul.f32 %v142, %v143
    %v145 = vsub.f32 1.0, %v144
    %v146 = vmul.f32 %v143, %v145
    %v147 = vadd.f32 %v143, %v146
    %vm148 = vweird.f32 %v142
    %vm149 = vweird.f32 %v143
    %vm150 = vmor %vm148, %vm149
    %v151 = vsel %vm150, %v143, %v147
    %v152 = vand.u32 2147483647, %v142
    %vm153 = vcmp.eq.f32.partialorder %v152, 8.507059e+37
    %v154 = vand.u32 %v142, 2147483648
    %v155 = vor.u32 1.1754944e-38, %v154
    %v156 = vsel %vm153, %v155, %v151
    %v157 = vmul.f32 %v132, %v156
    %v158 = vmin.f32 %v157, 1.0
    %v159 = vmax.f32 %v158, -1.0
    %v160 = vadd.f32 %v119, 1.0
    %v161 = vadd.f32 %v159, 1.0
    %v162 = vmul.f32 %v76, %v160
    %v163 = vmul.f32 %v77, %v161
    %v164 = vpack.c.bf16 %v162, %v162
    %v165 = vpack.c.bf16 %v163, %v163
    %vm166 = vcmask 257024
    %167 = vst.msk [vmem:[%s3] sm:$0xf] %vm166, %v164
    %168 = vst.msk [vmem:[%s3 + $0x4] sm:$0xf] %vm166, %v165
  $region21: #{transformer_forward.28} parent=0 // pred_fallthru
    _
  // Predicated region
  $region22: #{transformer_forward.28} parent=0 // pred_check
    _
  $region23: #{transformer_forward.28} parent=0 // pred_check_branch
    %170 = sbr.rel (0) target = $region25
  $region24: #{transformer_forward.28} parent=0 // pred_region
    _
  $region25: #{transformer_forward.28} parent=0 // pred_fallthru
    _
  // Predicated region
  $region26: #{transformer_forward.28} parent=0 // pred_check
    _
  $region27: #{transformer_forward.28} parent=0 // pred_check_branch
    %172 = sbr.rel (0) target = $region29
  $region28: #{transformer_forward.28} parent=0 // pred_region
    _
  $region29: #{transformer_forward.28} parent=0 // pred_fallthru
    _

// kernel: transformer_forward.29
$region0: #{transformer_forward.29}
  #allocation0 [shape = 'u32[]', space=smem, size = 0x4, offset = 0x4, fixed_abs, tag = 'smem constant byte address 0x4 - core index']
  #allocation1 [shape = 'u32[72,128]{1,0:T(1,128)}', space=vmem, size = 0x9000, scoped, tag = 'internal scratch']
  %s0 = inlined_call_operand.vmem [shape: bf16[16,32], index: 0, kind: input, shape index: {}]
  %s1 = inlined_call_operand.vmem [shape: bf16[32,32], index: 1, kind: input, shape index: {}]
  %s2 = inlined_call_operand.vmem [shape: f32[1,32], index: 2, kind: input, shape index: {}]
  %s3 = inlined_call_operand.vmem [shape: f32[16,32], index: 3, kind: input, shape index: {}]
  %s4 = inlined_call_operand.vmem [shape: f32[1,32], index: 4, kind: input, shape index: {}]
  %s5 = inlined_call_operand.vmem [shape: f32[1,32], index: 5, kind: input, shape index: {}]
  %s6 = inlined_call_operand.vmem [shape: f32[16,32], index: 6, kind: output, shape index: {}]
  %s7 = sld [smem:[#allocation0]]
  $region42: #{transformer_forward.29} parent=0
    _
  %s9 = ssub.s32 1, %s7
  %s10 = scalar_select 0, %s9, %s7
  // Predicated region
  $region2: #{transformer_forward.29} parent=0 // pred_check
    _
  $region3: #{transformer_forward.29} parent=0 // pred_check_branch
    %12 = sbr.rel (0) target = $region5
  $region4: #{transformer_forward.29} parent=0 // pred_region
    _
  $region5: #{transformer_forward.29} parent=0 // pred_fallthru
    _
  // Predicated region
  $region6: #{transformer_forward.29} parent=0 // pred_check
    _
  $region7: #{transformer_forward.29} parent=0 // pred_check_branch
    %14 = sbr.rel (0) target = $region9
  $region8: #{transformer_forward.29} parent=0 // pred_region
    _
  $region9: #{transformer_forward.29} parent=0 // pred_fallthru
    _
  // Predicated region
  $region10: #{transformer_forward.29} parent=0 // pred_check
    _
  $region11: #{transformer_forward.29} parent=0 // pred_check_branch
    %16 = sbr.rel (0) target = $region13
  $region12: #{transformer_forward.29} parent=0 // pred_region
    _
  $region13: #{transformer_forward.29} parent=0 // pred_fallthru
    _
  // Predicated region
  $region14: #{transformer_forward.29} parent=0 // pred_check
    _
  $region15: #{transformer_forward.29} parent=0 // pred_check_branch
    %18 = sbr.rel (0) target = $region17
  $region16: #{transformer_forward.29} parent=0 // pred_region
    _
  $region17: #{transformer_forward.29} parent=0 // pred_fallthru
    _
  // Predicated region
  $region18: #{transformer_forward.29} parent=0 // pred_check
    _
  $region19: #{transformer_forward.29} parent=0 // pred_check_branch
    %20 = sbr.rel (0) target = $region21
  $region20: #{transformer_forward.29} parent=0 // pred_region
    _
  $region21: #{transformer_forward.29} parent=0 // pred_fallthru
    _
  // Predicated region
  $region22: #{transformer_forward.29} parent=0 // pred_check
    _
  $region23: #{transformer_forward.29} parent=0 // pred_check_branch
    %22 = sbr.rel (0) target = $region25
  $region24: #{transformer_forward.29} parent=0 // pred_region
    _
  $region25: #{transformer_forward.29} parent=0 // pred_fallthru
    _
  %p24 = scmp.eq.s32.totalorder 0, 0
  // Predicated region
  $region26: #{transformer_forward.29} parent=0 // pred_check
    %p25 = pneg %p24
  $region27: #{transformer_forward.29} parent=0 // pred_check_branch
    %27 = sbr.rel (%p25) target = $region29
  $region28: #{transformer_forward.29} parent=0 // pred_region
    %vm28 = vcmask 261120
    %29 = vst.msk [vmem:[%s6] sm:$0xff] %vm28, 0.0
    %30 = vst.msk [vmem:[%s6 + $0x8] sm:$0xff] %vm28, 0.0
  $region29: #{transformer_forward.29} parent=0 // pred_fallthru
    _
  %v31 = vld [vmem:[%s0] sm:$0xf]
  %v32 = vld [vmem:[%s0 + $0x4] sm:$0xf]
  %v33 = vld [vmem:[%s6] sm:$0xff]
  %v34 = vld [vmem:[%s6 + $0x8] sm:$0xff]
  %v35 = vld [vmem:[%s1] sm:$0xf]
  %v36 = vld [vmem:[%s1 + $0x4] sm:$0xf]
  %v37 = vld [vmem:[%s1 + $0x8] sm:$0xf]
  %v38 = vld [vmem:[%s1 + $0xc] sm:$0xf]
  %v41 = vunpack.c.l.b16 %v31
  %v42 = vunpack.c.l.b16 %v32
  %v43 = vpack.c.b16 %v42, %v41
  %v48 = vunpack.c.l.b16 %v35
  %v49 = vunpack.c.l.b16 %v36
  %v50 = vunpack.c.l.b16 %v37
  %v51 = vunpack.c.l.b16 %v38
  %v52 = vpack.c.b16 %v49, %v48
  %v53 = vpack.c.b16 %v51, %v50
  %vm56 = vcmask 261120
  %v58 = vsel %vm56, %v43, 0
  %60 = vmatpush.bf16.msra.mxu0 0
  %61 = vmatpush.bf16.msra.mxu0 0
  %62 = vmatpush.bf16.msra.mxu0 0
  %63 = vmatpush.bf16.msra.mxu0 0
  %64 = vmatpush.bf16.msra.mxu0 0
  %65 = vmatpush.bf16.msra.mxu0 0
  %66 = vmatpush.bf16.msra.mxu0 %v53
  %67 = vmatpush.bf16.msra.mxu0 %v52
  %68 = vmatmul.bf16.gmra.mxu0 %v58
  %v69 = vpop.f32.mrf.mxu0
  %v70 = vadd.f32 0.0, %v69
  %v71 = vpop.f32.mrf.mxu0
  %v72 = vadd.f32 0.0, %v71
  %73 = vdwg.mxu0
  %v74 = vadd.f32 %v33, %v70
  %v75 = vadd.f32 %v34, %v72
  %76 = vst.msk [vmem:[%s6] sm:$0xff] %vm56, %v74
  %77 = vst.msk [vmem:[%s6 + $0x8] sm:$0xff] %vm56, %v75
  // Predicated region
  $region30: #{transformer_forward.29} parent=0 // pred_check
    %p78 = pneg %p24
  $region31: #{transformer_forward.29} parent=0 // pred_check_branch
    %80 = sbr.rel (%p78) target = $region33
  $region32: #{transformer_forward.29} parent=0 // pred_region
    %v81 = vld [vmem:[%s6] sm:$0xff]
    %v82 = vld [vmem:[%s6 + $0x8] sm:$0xff]
    %v83 = vld [vmem:[%s2] sm:$0x1]
    %v85 = vperm.slane %v83, 0
    %v87 = vadd.f32 %v81, %v85
    %v88 = vadd.f32 %v82, %v85
    %v89 = vld [vmem:[%s3] sm:$0xff]
    %v90 = vld [vmem:[%s3 + $0x8] sm:$0xff]
    %v91 = vadd.f32 %v87, %v89
    %v92 = vadd.f32 %v88, %v90
    %v93 = vsel %vm56, %v91, 0.0
    %94 = vadd.xlane.f32.xlu0 %v93
    %v95 = vpop.xlane.xlu0 %94
    %v96 = vsel %vm56, %v92, 0.0
    %97 = vadd.xlane.f32.xlu0 %v96
    %v98 = vpop.xlane.xlu0 %97
    %v99 = vrcp.pop 32.0
    %v100 = vmul.f32 32.0, %v99
    %v101 = vsub.f32 1.0, %v100
    %v102 = vmul.f32 %v99, %v101
    %v103 = vadd.f32 %v99, %v102
    %vm104 = vweird.f32 %v99
    %v105 = vsel %vm104, %v99, %v103
    %v106 = vmul.f32 %v95, %v105
    %v107 = vmul.f32 %v98, %v105
    %v108 = vsub.f32 %v91, %v106
    %v109 = vsub.f32 %v92, %v107
    %v110 = vmul.f32 %v108, %v108
    %v111 = vmul.f32 %v109, %v109
    %v112 = vsel %vm56, %v110, 0.0
    %113 = vadd.xlane.f32.xlu0 %v112
    %v114 = vpop.xlane.xlu0 %113
    %v115 = vsel %vm56, %v111, 0.0
    %116 = vadd.xlane.f32.xlu0 %v115
    %v117 = vpop.xlane.xlu0 %116
    %v118 = vmul.f32 %v114, %v105
    %v119 = vmul.f32 %v117, %v105
    %v120 = vadd.f32 %v118, 1e-05
    %v121 = vadd.f32 %v119, 1e-05
    %v122 = vrsqrt.pop %v120
    %v123 = vmul.f32 %v122, %v120
    %v124 = vmul.f32 %v123, %v122
    %v125 = vmul.f32 0.5, %v124
    %v126 = vsub.f32 1.5, %v125
    %v127 = vmul.f32 %v122, %v126
    %vm128 = vweird.f32 %v120
    %vm129 = vweird.f32 %v122
    %vm130 = vmor %vm128, %vm129
    %v131 = vsel %vm130, %v122, %v127
    %v132 = vrsqrt.pop %v121
    %v133 = vmul.f32 %v132, %v121
    %v134 = vmul.f32 %v133, %v132
    %v135 = vmul.f32 0.5, %v134
    %v136 = vsub.f32 1.5, %v135
    %v137 = vmul.f32 %v132, %v136
    %vm138 = vweird.f32 %v121
    %vm139 = vweird.f32 %v132
    %vm140 = vmor %vm138, %vm139
    %v141 = vsel %vm140, %v132, %v137
    %v142 = vmul.f32 %v108, %v131
    %v143 = vmul.f32 %v109, %v141
    %v144 = vld [vmem:[%s4] sm:$0x1]
    %v146 = vperm.slane %v144, 0
    %v148 = vmul.f32 %v142, %v146
    %v149 = vmul.f32 %v143, %v146
    %v150 = vld [vmem:[%s5] sm:$0x1]
    %v152 = vperm.slane %v150, 0
    %v154 = vadd.f32 %v148, %v152
    %v155 = vadd.f32 %v149, %v152
    %156 = vst.msk [vmem:[%s6] sm:$0xff] %vm56, %v154
    %157 = vst.msk [vmem:[%s6 + $0x8] sm:$0xff] %vm56, %v155
  $region33: #{transformer_forward.29} parent=0 // pred_fallthru
    _
  // Predicated region
  $region34: #{transformer_forward.29} parent=0 // pred_check
    _
  $region35: #{transformer_forward.29} parent=0 // pred_check_branch
    %159 = sbr.rel (0) target = $region37
  $region36: #{transformer_forward.29} parent=0 // pred_region
    _
  $region37: #{transformer_forward.29} parent=0 // pred_fallthru
    _
  // Predicated region
  $region38: #{transformer_forward.29} parent=0 // pred_check
    _
  $region39: #{transformer_forward.29} parent=0 // pred_check_branch
    %161 = sbr.rel (0) target = $region41
  $region40: #{transformer_forward.29} parent=0 // pred_region
    _
  $region41: #{transformer_forward.29} parent=0 // pred_fallthru
    _

// kernel: transformer_forward.33
$region0: #{transformer_forward.33}
  #allocation0 [shape = 'u32[]', space=smem, size = 0x4, offset = 0x4, fixed_abs, tag = 'smem constant byte address 0x4 - core index']
  #allocation1 [shape = 'u32[72,128]{1,0:T(1,128)}', space=vmem, size = 0x9000, scoped, tag = 'internal scratch']
  %s0 = inlined_call_operand.vmem [shape: bf16[16,32], index: 0, kind: input, shape index: {}]
  %s1 = inlined_call_operand.vmem [shape: bf16[32,32], index: 1, kind: input, shape index: {}]
  %s2 = inlined_call_operand.vmem [shape: f32[1,32], index: 2, kind: input, shape index: {}]
  %s3 = inlined_call_operand.vmem [shape: f32[16,32], index: 3, kind: input, shape index: {}]
  %s4 = inlined_call_operand.hbm [shape: f32[1,32], index: 4, kind: input, shape index: {}]
  %s5 = inlined_call_operand.hbm [shape: f32[1,32], index: 5, kind: input, shape index: {}]
  %s6 = inlined_call_operand.vmem [shape: f32[16,32], index: 6, kind: output, shape index: {}]
  %s7 = sld [smem:[#allocation0]]
  $region50: #{transformer_forward.33} parent=0
    _
  %s9 = ssub.s32 1, %s7
  %s10 = scalar_select 0, %s9, %s7
  $region1: #{transformer_forward.33} parent=0
    #allocation2 [shape = 'u8[512]{0}', space=vmem, size = 0x400, scoped, tag = 'input window, operand 4, single buffered']
    #allocation3 [shape = 's32[1]{0}', space=sflag, size = 0x4, scoped, tag = 'scoped memory for transformer_forward.33']
    #allocation4 [shape = 'u8[512]{0}', space=vmem, size = 0x400, scoped, tag = 'input window, operand 5, single buffered']
    #allocation5 [shape = 's32[1]{0}', space=sflag, size = 0x4, scoped, tag = 'scoped memory for transformer_forward.33']
    %11 = vsyncpa [#allocation3], 0
    %12 = vsyncpa [#allocation5], 0
    // Predicated region
    $region2: #{transformer_forward.33} parent=1 // pred_check
      _
    $region3: #{transformer_forward.33} parent=1 // pred_check_branch
      %14 = sbr.rel (0) target = $region5
    $region4: #{transformer_forward.33} parent=1 // pred_region
      _
    $region5: #{transformer_forward.33} parent=1 // pred_fallthru
      _
    // Predicated region
    $region6: #{transformer_forward.33} parent=1 // pred_check
      _
    $region7: #{transformer_forward.33} parent=1 // pred_check_branch
      %16 = sbr.rel (0) target = $region9
    $region8: #{transformer_forward.33} parent=1 // pred_region
      _
    $region9: #{transformer_forward.33} parent=1 // pred_fallthru
      _
    // Predicated region
    $region10: #{transformer_forward.33} parent=1 // pred_check
      _
    $region11: #{transformer_forward.33} parent=1 // pred_check_branch
      %18 = sbr.rel (0) target = $region13
    $region12: #{transformer_forward.33} parent=1 // pred_region
      _
    $region13: #{transformer_forward.33} parent=1 // pred_fallthru
      _
    // Predicated region
    $region14: #{transformer_forward.33} parent=1 // pred_check
      _
    $region15: #{transformer_forward.33} parent=1 // pred_check_branch
      %20 = sbr.rel (0) target = $region17
    $region16: #{transformer_forward.33} parent=1 // pred_region
      _
    $region17: #{transformer_forward.33} parent=1 // pred_fallthru
      _
    // Predicated region
    $region18: #{transformer_forward.33} parent=1 // pred_check
      _
    $region19: #{transformer_forward.33} parent=1 // pred_check_branch
      %22 = sbr.rel (0) target = $region21
    $region20: #{transformer_forward.33} parent=1 // pred_region
      %24 = vsyncadd [#allocation3], 0
      %s26 = sshll.u32 %s4, 4
      %s27 = int_to_ptr.hbm [resolvable:$true] %s26
      %s28 = sshll.u32 [#allocation2], 4
      %s29 = int_to_ptr.vmem [resolvable:$true] %s28
      %31 = dma.hbm_to_vmem [thread:$0]  %s27, 16, %s29, [#allocation3]
    $region21: #{transformer_forward.33} parent=1 // pred_fallthru
      _
    // Predicated region
    $region22: #{transformer_forward.33} parent=1 // pred_check
      _
    $region23: #{transformer_forward.33} parent=1 // pred_check_branch
      %33 = sbr.rel (0) target = $region25
    $region24: #{transformer_forward.33} parent=1 // pred_region
      %35 = vsyncadd [#allocation5], 0
      %s37 = sshll.u32 %s5, 4
      %s38 = int_to_ptr.hbm [resolvable:$true] %s37
      %s39 = sshll.u32 [#allocation4], 4
      %s40 = int_to_ptr.vmem [resolvable:$true] %s39
      %42 = dma.hbm_to_vmem [thread:$0]  %s38, 16, %s40, [#allocation5]
    $region25: #{transformer_forward.33} parent=1 // pred_fallthru
      _
    // Predicated region
    $region26: #{transformer_forward.33} parent=1 // pred_check
      _
    $region27: #{transformer_forward.33} parent=1 // pred_check_branch
      %44 = sbr.rel (0) target = $region29
    $region28: #{transformer_forward.33} parent=1 // pred_region
      %46 = dma.done [#allocation3], 16
    $region29: #{transformer_forward.33} parent=1 // pred_fallthru
      _
    // Predicated region
    $region30: #{transformer_forward.33} parent=1 // pred_check
      _
    $region31: #{transformer_forward.33} parent=1 // pred_check_branch
      %48 = sbr.rel (0) target = $region33
    $region32: #{transformer_forward.33} parent=1 // pred_region
      %50 = dma.done [#allocation5], 16
    $region33: #{transformer_forward.33} parent=1 // pred_fallthru
      _
    %p52 = scmp.eq.s32.totalorder 0, 0
    // Predicated region
    $region34: #{transformer_forward.33} parent=1 // pred_check
      %p53 = pneg %p52
    $region35: #{transformer_forward.33} parent=1 // pred_check_branch
      %55 = sbr.rel (%p53) target = $region37
    $region36: #{transformer_forward.33} parent=1 // pred_region
      %vm56 = vcmask 261120
      %57 = vst.msk [vmem:[%s6] sm:$0xff] %vm56, 0.0
      %58 = vst.msk [vmem:[%s6 + $0x8] sm:$0xff] %vm56, 0.0
    $region37: #{transformer_forward.33} parent=1 // pred_fallthru
      _
    %v59 = vld [vmem:[%s0] sm:$0xf]
    %v60 = vld [vmem:[%s0 + $0x4] sm:$0xf]
    %v61 = vld [vmem:[%s6] sm:$0xff]
    %v62 = vld [vmem:[%s6 + $0x8] sm:$0xff]
    %v63 = vld [vmem:[%s1] sm:$0xf]
    %v64 = vld [vmem:[%s1 + $0x4] sm:$0xf]
    %v65 = vld [vmem:[%s1 + $0x8] sm:$0xf]
    %v66 = vld [vmem:[%s1 + $0xc] sm:$0xf]
    %v69 = vunpack.c.l.b16 %v59
    %v70 = vunpack.c.l.b16 %v60
    %v71 = vpack.c.b16 %v70, %v69
    %v76 = vunpack.c.l.b16 %v63
    %v77 = vunpack.c.l.b16 %v64
    %v78 = vunpack.c.l.b16 %v65
    %v79 = vunpack.c.l.b16 %v66
    %v80 = vpack.c.b16 %v77, %v76
    %v81 = vpack.c.b16 %v79, %v78
    %vm84 = vcmask 261120
    %v86 = vsel %vm84, %v71, 0
    %88 = vmatpush.bf16.msra.mxu0 0
    %89 = vmatpush.bf16.msra.mxu0 0
    %90 = vmatpush.bf16.msra.mxu0 0
    %91 = vmatpush.bf16.msra.mxu0 0
    %92 = vmatpush.bf16.msra.mxu0 0
    %93 = vmatpush.bf16.msra.mxu0 0
    %94 = vmatpush.bf16.msra.mxu0 %v81
    %95 = vmatpush.bf16.msra.mxu0 %v80
    %96 = vmatmul.bf16.gmra.mxu0 %v86
    %v97 = vpop.f32.mrf.mxu0
    %v98 = vadd.f32 0.0, %v97
    %v99 = vpop.f32.mrf.mxu0
    %v100 = vadd.f32 0.0, %v99
    %101 = vdwg.mxu0
    %v102 = vadd.f32 %v61, %v98
    %v103 = vadd.f32 %v62, %v100
    %104 = vst.msk [vmem:[%s6] sm:$0xff] %vm84, %v102
    %105 = vst.msk [vmem:[%s6 + $0x8] sm:$0xff] %vm84, %v103
    // Predicated region
    $region38: #{transformer_forward.33} parent=1 // pred_check
      %p106 = pneg %p52
    $region39: #{transformer_forward.33} parent=1 // pred_check_branch
      %108 = sbr.rel (%p106) target = $region41
    $region40: #{transformer_forward.33} parent=1 // pred_region
      %v109 = vld [vmem:[%s6] sm:$0xff]
      %v110 = vld [vmem:[%s6 + $0x8] sm:$0xff]
      %v111 = vld [vmem:[%s2] sm:$0x1]
      %v113 = vperm.slane %v111, 0
      %v115 = vadd.f32 %v109, %v113
      %v116 = vadd.f32 %v110, %v113
      %v117 = vld [vmem:[%s3] sm:$0xff]
      %v118 = vld [vmem:[%s3 + $0x8] sm:$0xff]
      %v119 = vadd.f32 %v115, %v117
      %v120 = vadd.f32 %v116, %v118
      %v121 = vsel %vm84, %v119, 0.0
      %122 = vadd.xlane.f32.xlu0 %v121
      %v123 = vpop.xlane.xlu0 %122
      %v124 = vsel %vm84, %v120, 0.0
      %125 = vadd.xlane.f32.xlu0 %v124
      %v126 = vpop.xlane.xlu0 %125
      %v127 = vrcp.pop 32.0
      %v128 = vmul.f32 32.0, %v127
      %v129 = vsub.f32 1.0, %v128
      %v130 = vmul.f32 %v127, %v129
      %v131 = vadd.f32 %v127, %v130
      %vm132 = vweird.f32 %v127
      %v133 = vsel %vm132, %v127, %v131
      %v134 = vmul.f32 %v123, %v133
      %v135 = vmul.f32 %v126, %v133
      %v136 = vsub.f32 %v119, %v134
      %v137 = vsub.f32 %v120, %v135
      %v138 = vmul.f32 %v136, %v136
      %v139 = vmul.f32 %v137, %v137
      %v140 = vsel %vm84, %v138, 0.0
      %141 = vadd.xlane.f32.xlu0 %v140
      %v142 = vpop.xlane.xlu0 %141
      %v143 = vsel %vm84, %v139, 0.0
      %144 = vadd.xlane.f32.xlu0 %v143
      %v145 = vpop.xlane.xlu0 %144
      %v146 = vmul.f32 %v142, %v133
      %v147 = vmul.f32 %v145, %v133
      %v148 = vadd.f32 %v146, 1e-05
      %v149 = vadd.f32 %v147, 1e-05
      %v150 = vrsqrt.pop %v148
      %v151 = vmul.f32 %v150, %v148
      %v152 = vmul.f32 %v151, %v150
      %v153 = vmul.f32 0.5, %v152
      %v154 = vsub.f32 1.5, %v153
      %v155 = vmul.f32 %v150, %v154
      %vm156 = vweird.f32 %v148
      %vm157 = vweird.f32 %v150
      %vm158 = vmor %vm156, %vm157
      %v159 = vsel %vm158, %v150, %v155
      %v160 = vrsqrt.pop %v149
      %v161 = vmul.f32 %v160, %v149
      %v162 = vmul.f32 %v161, %v160
      %v163 = vmul.f32 0.5, %v162
      %v164 = vsub.f32 1.5, %v163
      %v165 = vmul.f32 %v160, %v164
      %vm166 = vweird.f32 %v149
      %vm167 = vweird.f32 %v160
      %vm168 = vmor %vm166, %vm167
      %v169 = vsel %vm168, %v160, %v165
      %v170 = vmul.f32 %v136, %v159
      %v171 = vmul.f32 %v137, %v169
      %v172 = vld [vmem:[#allocation2] sm:$0x1]
      %v174 = vperm.slane %v172, 0
      %v176 = vmul.f32 %v170, %v174
      %v177 = vmul.f32 %v171, %v174
      %v178 = vld [vmem:[#allocation4] sm:$0x1]
      %v180 = vperm.slane %v178, 0
      %v182 = vadd.f32 %v176, %v180
      %v183 = vadd.f32 %v177, %v180
      %184 = vst.msk [vmem:[%s6] sm:$0xff] %vm84, %v182
      %185 = vst.msk [vmem:[%s6 + $0x8] sm:$0xff] %vm84, %v183
    $region41: #{transformer_forward.33} parent=1 // pred_fallthru
      _
    // Predicated region
    $region42: #{transformer_forward.33} parent=1 // pred_check
      _
    $region43: #{transformer_forward.33} parent=1 // pred_check_branch
      %187 = sbr.rel (0) target = $region45
    $region44: #{transformer_forward.33} parent=1 // pred_region
      _
    $region45: #{transformer_forward.33} parent=1 // pred_fallthru
      _
    // Predicated region
    $region46: #{transformer_forward.33} parent=1 // pred_check
      _
    $region47: #{transformer_forward.33} parent=1 // pred_check_branch
      %189 = sbr.rel (0) target = $region49
    $region48: #{transformer_forward.33} parent=1 // pred_region
      _
    $region49: #{transformer_forward.33} parent=1 // pred_fallthru
      _
    %190 = vsyncpa [#allocation3], 1
    %191 = vsyncpa [#allocation5], 1

// kernel: transformer_forward.45
$region0: #{transformer_forward.45}
  #allocation0 [shape = 'u32[]', space=smem, size = 0x4, offset = 0x4, fixed_abs, tag = 'smem constant byte address 0x4 - core index']
  #allocation1 [shape = 'u32[72,128]{1,0:T(1,128)}', space=vmem, size = 0x9000, scoped, tag = 'internal scratch']
  #allocation2 [shape = 'f32[16,64]{1,0:T(8,128)}', space=vmem, size = 0x2000, scoped, tag = 'scratch operand']
  %s0 = inlined_call_operand.vmem [shape: f32[16,32], index: 0, kind: input, shape index: {}]
  %s1 = inlined_call_operand.vmem [shape: bf16[32,64], index: 1, kind: input, shape index: {}]
  %s2 = inlined_call_operand.hbm [shape: f32[1,64], index: 2, kind: input, shape index: {}]
  %s3 = inlined_call_operand.vmem [shape: bf16[16,64], index: 3, kind: output, shape index: {}]
  %s4 = sld [smem:[#allocation0]]
  $region34: #{transformer_forward.45} parent=0
    _
  %s6 = ssub.s32 1, %s4
  %s7 = scalar_select 0, %s6, %s4
  $region1: #{transformer_forward.45} parent=0
    #allocation3 [shape = 'u8[512]{0}', space=vmem, size = 0x400, scoped, tag = 'input window, operand 2, single buffered']
    #allocation4 [shape = 's32[1]{0}', space=sflag, size = 0x4, scoped, tag = 'scoped memory for transformer_forward.45']
    %8 = vsyncpa [#allocation4], 0
    // Predicated region
    $region2: #{transformer_forward.45} parent=1 // pred_check
      _
    $region3: #{transformer_forward.45} parent=1 // pred_check_branch
      %10 = sbr.rel (0) target = $region5
    $region4: #{transformer_forward.45} parent=1 // pred_region
      _
    $region5: #{transformer_forward.45} parent=1 // pred_fallthru
      _
    // Predicated region
    $region6: #{transformer_forward.45} parent=1 // pred_check
      _
    $region7: #{transformer_forward.45} parent=1 // pred_check_branch
      %12 = sbr.rel (0) target = $region9
    $region8: #{transformer_forward.45} parent=1 // pred_region
      _
    $region9: #{transformer_forward.45} parent=1 // pred_fallthru
      _
    // Predicated region
    $region10: #{transformer_forward.45} parent=1 // pred_check
      _
    $region11: #{transformer_forward.45} parent=1 // pred_check_branch
      %14 = sbr.rel (0) target = $region13
    $region12: #{transformer_forward.45} parent=1 // pred_region
      %16 = vsyncadd [#allocation4], 0
      %s18 = sshll.u32 %s2, 4
      %s19 = int_to_ptr.hbm [resolvable:$true] %s18
      %s20 = sshll.u32 [#allocation3], 4
      %s21 = int_to_ptr.vmem [resolvable:$true] %s20
      %23 = dma.hbm_to_vmem [thread:$0]  %s19, 16, %s21, [#allocation4]
    $region13: #{transformer_forward.45} parent=1 // pred_fallthru
      _
    // Predicated region
    $region14: #{transformer_forward.45} parent=1 // pred_check
      _
    $region15: #{transformer_forward.45} parent=1 // pred_check_branch
      %25 = sbr.rel (0) target = $region17
    $region16: #{transformer_forward.45} parent=1 // pred_region
      %27 = dma.done [#allocation4], 16
    $region17: #{transformer_forward.45} parent=1 // pred_fallthru
      _
    %p29 = scmp.eq.s32.totalorder 0, 0
    // Predicated region
    $region18: #{transformer_forward.45} parent=1 // pred_check
      %p30 = pneg %p29
    $region19: #{transformer_forward.45} parent=1 // pred_check_branch
      %32 = sbr.rel (%p30) target = $region21
    $region20: #{transformer_forward.45} parent=1 // pred_region
      %vm33 = vcmask 523264
      %34 = vst.msk [vmem:[#allocation2] sm:$0xff] %vm33, 0.0
      %35 = vst.msk [vmem:[#allocation2 + $0x8] sm:$0xff] %vm33, 0.0
    $region21: #{transformer_forward.45} parent=1 // pred_fallthru
      _
    %v36 = vld [vmem:[%s0] sm:$0xff]
    %v37 = vld [vmem:[%s0 + $0x8] sm:$0xff]
    %v38 = vpack.c.bf16 %v37, %v36
    %v39 = vld [vmem:[#allocation2] sm:$0xff]
    %v40 = vld [vmem:[#allocation2 + $0x8] sm:$0xff]
    %v41 = vld [vmem:[%s1] sm:$0xf]
    %v42 = vld [vmem:[%s1 + $0x4] sm:$0xf]
    %v43 = vld [vmem:[%s1 + $0x8] sm:$0xf]
    %v44 = vld [vmem:[%s1 + $0xc] sm:$0xf]
    %v49 = vunpack.c.l.b16 %v41
    %v50 = vunpack.c.l.b16 %v42
    %v51 = vunpack.c.l.b16 %v43
    %v52 = vunpack.c.l.b16 %v44
    %v53 = vpack.c.b16 %v50, %v49
    %v54 = vpack.c.b16 %v52, %v51
    %vm57 = vcmask 261120
    %v59 = vsel %vm57, %v38, 0
    %61 = vmatpush.bf16.msra.mxu0 0
    %62 = vmatpush.bf16.msra.mxu0 0
    %63 = vmatpush.bf16.msra.mxu0 0
    %64 = vmatpush.bf16.msra.mxu0 0
    %65 = vmatpush.bf16.msra.mxu0 0
    %66 = vmatpush.bf16.msra.mxu0 0
    %67 = vmatpush.bf16.msra.mxu0 %v54
    %68 = vmatpush.bf16.msra.mxu0 %v53
    %69 = vmatmul.bf16.gmra.mxu0 %v59
    %v70 = vpop.f32.mrf.mxu0
    %v71 = vadd.f32 0.0, %v70
    %v72 = vpop.f32.mrf.mxu0
    %v73 = vadd.f32 0.0, %v72
    %74 = vdwg.mxu0
    %v75 = vadd.f32 %v39, %v71
    %v76 = vadd.f32 %v40, %v73
    %vm77 = vcmask 523264
    %78 = vst.msk [vmem:[#allocation2] sm:$0xff] %vm77, %v75
    %79 = vst.msk [vmem:[#allocation2 + $0x8] sm:$0xff] %vm77, %v76
    // Predicated region
    $region22: #{transformer_forward.45} parent=1 // pred_check
      %p80 = pneg %p29
    $region23: #{transformer_forward.45} parent=1 // pred_check_branch
      %82 = sbr.rel (%p80) target = $region25
    $region24: #{transformer_forward.45} parent=1 // pred_region
      %v83 = vld [vmem:[#allocation2] sm:$0xff]
      %v84 = vld [vmem:[#allocation2 + $0x8] sm:$0xff]
      %v85 = vld [vmem:[#allocation3] sm:$0x1]
      %v87 = vperm.slane %v85, 0
      %v89 = vadd.f32 %v83, %v87
      %v90 = vadd.f32 %v84, %v87
      %v91 = vpack.c.bf16 %v89, %v89
      %v92 = vpack.c.bf16 %v90, %v90
      %vm93 = vcmask 519168
      %94 = vst.msk [vmem:[%s3] sm:$0xf] %vm93, %v91
      %95 = vst.msk [vmem:[%s3 + $0x4] sm:$0xf] %vm93, %v92
    $region25: #{transformer_forward.45} parent=1 // pred_fallthru
      _
    // Predicated region
    $region26: #{transformer_forward.45} parent=1 // pred_check
      _
    $region27: #{transformer_forward.45} parent=1 // pred_check_branch
      %97 = sbr.rel (0) target = $region29
    $region28: #{transformer_forward.45} parent=1 // pred_region
      _
    $region29: #{transformer_forward.45} parent=1 // pred_fallthru
      _
    // Predicated region
    $region30: #{transformer_forward.45} parent=1 // pred_check
      _
    $region31: #{transformer_forward.45} parent=1 // pred_check_branch
      %99 = sbr.rel (0) target = $region33
    $region32: #{transformer_forward.45} parent=1 // pred_region
      _
    $region33: #{transformer_forward.45} parent=1 // pred_fallthru
      _
    %100 = vsyncpa [#allocation4], 1

// kernel: transformer_forward.35
$region0: #{transformer_forward.35}
  #allocation0 [shape = 'u32[]', space=smem, size = 0x4, offset = 0x4, fixed_abs, tag = 'smem constant byte address 0x4 - core index']
  #allocation1 [shape = 'u32[72,128]{1,0:T(1,128)}', space=vmem, size = 0x9000, scoped, tag = 'internal scratch']
  #allocation2 [shape = 'f32[16,96]{1,0:T(8,128)}', space=vmem, size = 0x2000, scoped, tag = 'scratch operand']
  %s0 = inlined_call_operand.vmem [shape: f32[16,32], index: 0, kind: input, shape index: {}]
  %s1 = inlined_call_operand.vmem [shape: bf16[32,96], index: 1, kind: input, shape index: {}]
  %s2 = inlined_call_operand.hbm [shape: f32[1,96], index: 2, kind: input, shape index: {}]
  %s3 = inlined_call_operand.vmem [shape: bf16[16,96], index: 3, kind: output, shape index: {}]
  %s4 = sld [smem:[#allocation0]]
  $region34: #{transformer_forward.35} parent=0
    _
  %s6 = ssub.s32 1, %s4
  %s7 = scalar_select 0, %s6, %s4
  $region1: #{transformer_forward.35} parent=0
    #allocation3 [shape = 'u8[512]{0}', space=vmem, size = 0x400, scoped, tag = 'input window, operand 2, single buffered']
    #allocation4 [shape = 's32[1]{0}', space=sflag, size = 0x4, scoped, tag = 'scoped memory for transformer_forward.35']
    %8 = vsyncpa [#allocation4], 0
    // Predicated region
    $region2: #{transformer_forward.35} parent=1 // pred_check
      _
    $region3: #{transformer_forward.35} parent=1 // pred_check_branch
      %10 = sbr.rel (0) target = $region5
    $region4: #{transformer_forward.35} parent=1 // pred_region
      _
    $region5: #{transformer_forward.35} parent=1 // pred_fallthru
      _
    // Predicated region
    $region6: #{transformer_forward.35} parent=1 // pred_check
      _
    $region7: #{transformer_forward.35} parent=1 // pred_check_branch
      %12 = sbr.rel (0) target = $region9
    $region8: #{transformer_forward.35} parent=1 // pred_region
      _
    $region9: #{transformer_forward.35} parent=1 // pred_fallthru
      _
    // Predicated region
    $region10: #{transformer_forward.35} parent=1 // pred_check
      _
    $region11: #{transformer_forward.35} parent=1 // pred_check_branch
      %14 = sbr.rel (0) target = $region13
    $region12: #{transformer_forward.35} parent=1 // pred_region
      %16 = vsyncadd [#allocation4], 0
      %s18 = sshll.u32 %s2, 4
      %s19 = int_to_ptr.hbm [resolvable:$true] %s18
      %s20 = sshll.u32 [#allocation3], 4
      %s21 = int_to_ptr.vmem [resolvable:$true] %s20
      %23 = dma.hbm_to_vmem [thread:$0]  %s19, 16, %s21, [#allocation4]
    $region13: #{transformer_forward.35} parent=1 // pred_fallthru
      _
    // Predicated region
    $region14: #{transformer_forward.35} parent=1 // pred_check
      _
    $region15: #{transformer_forward.35} parent=1 // pred_check_branch
      %25 = sbr.rel (0) target = $region17
    $region16: #{transformer_forward.35} parent=1 // pred_region
      %27 = dma.done [#allocation4], 16
    $region17: #{transformer_forward.35} parent=1 // pred_fallthru
      _
    %p29 = scmp.eq.s32.totalorder 0, 0
    // Predicated region
    $region18: #{transformer_forward.35} parent=1 // pred_check
      %p30 = pneg %p29
    $region19: #{transformer_forward.35} parent=1 // pred_check_branch
      %32 = sbr.rel (%p30) target = $region21
    $region20: #{transformer_forward.35} parent=1 // pred_region
      %vm33 = vcmask 785408
      %34 = vst.msk [vmem:[#allocation2] sm:$0xff] %vm33, 0.0
      %35 = vst.msk [vmem:[#allocation2 + $0x8] sm:$0xff] %vm33, 0.0
    $region21: #{transformer_forward.35} parent=1 // pred_fallthru
      _
    %v36 = vld [vmem:[%s0] sm:$0xff]
    %v37 = vld [vmem:[%s0 + $0x8] sm:$0xff]
    %v38 = vpack.c.bf16 %v37, %v36
    %v39 = vld [vmem:[#allocation2] sm:$0xff]
    %v40 = vld [vmem:[#allocation2 + $0x8] sm:$0xff]
    %v41 = vld [vmem:[%s1] sm:$0xf]
    %v42 = vld [vmem:[%s1 + $0x4] sm:$0xf]
    %v43 = vld [vmem:[%s1 + $0x8] sm:$0xf]
    %v44 = vld [vmem:[%s1 + $0xc] sm:$0xf]
    %v49 = vunpack.c.l.b16 %v41
    %v50 = vunpack.c.l.b16 %v42
    %v51 = vunpack.c.l.b16 %v43
    %v52 = vunpack.c.l.b16 %v44
    %v53 = vpack.c.b16 %v50, %v49
    %v54 = vpack.c.b16 %v52, %v51
    %vm57 = vcmask 261120
    %v59 = vsel %vm57, %v38, 0
    %61 = vmatpush.bf16.msra.mxu0 0
    %62 = vmatpush.bf16.msra.mxu0 0
    %63 = vmatpush.bf16.msra.mxu0 0
    %64 = vmatpush.bf16.msra.mxu0 0
    %65 = vmatpush.bf16.msra.mxu0 0
    %66 = vmatpush.bf16.msra.mxu0 0
    %67 = vmatpush.bf16.msra.mxu0 %v54
    %68 = vmatpush.bf16.msra.mxu0 %v53
    %69 = vmatmul.bf16.gmra.mxu0 %v59
    %v70 = vpop.f32.mrf.mxu0
    %v71 = vadd.f32 0.0, %v70
    %v72 = vpop.f32.mrf.mxu0
    %v73 = vadd.f32 0.0, %v72
    %74 = vdwg.mxu0
    %v75 = vadd.f32 %v39, %v71
    %v76 = vadd.f32 %v40, %v73
    %vm77 = vcmask 785408
    %78 = vst.msk [vmem:[#allocation2] sm:$0xff] %vm77, %v75
    %79 = vst.msk [vmem:[#allocation2 + $0x8] sm:$0xff] %vm77, %v76
    // Predicated region
    $region22: #{transformer_forward.35} parent=1 // pred_check
      %p80 = pneg %p29
    $region23: #{transformer_forward.35} parent=1 // pred_check_branch
      %82 = sbr.rel (%p80) target = $region25
    $region24: #{transformer_forward.35} parent=1 // pred_region
      %v83 = vld [vmem:[#allocation2] sm:$0xff]
      %v84 = vld [vmem:[#allocation2 + $0x8] sm:$0xff]
      %v85 = vld [vmem:[#allocation3] sm:$0x1]
      %v87 = vperm.slane %v85, 0
      %v89 = vadd.f32 %v83, %v87
      %v90 = vadd.f32 %v84, %v87
      %v91 = vpack.c.bf16 %v89, %v89
      %v92 = vpack.c.bf16 %v90, %v90
      %vm93 = vcmask 781312
      %94 = vst.msk [vmem:[%s3] sm:$0xf] %vm93, %v91
      %95 = vst.msk [vmem:[%s3 + $0x4] sm:$0xf] %vm93, %v92
    $region25: #{transformer_forward.35} parent=1 // pred_fallthru
      _
    // Predicated region
    $region26: #{transformer_forward.35} parent=1 // pred_check
      _
    $region27: #{transformer_forward.35} parent=1 // pred_check_branch
      %97 = sbr.rel (0) target = $region29
    $region28: #{transformer_forward.35} parent=1 // pred_region
      _
    $region29: #{transformer_forward.35} parent=1 // pred_fallthru
      _
    // Predicated region
    $region30: #{transformer_forward.35} parent=1 // pred_check
      _
    $region31: #{transformer_forward.35} parent=1 // pred_check_branch
      %99 = sbr.rel (0) target = $region33
    $region32: #{transformer_forward.35} parent=1 // pred_region
      _
    $region33: #{transformer_forward.35} parent=1 // pred_fallthru
      _
    %100 = vsyncpa [#allocation4], 1

// kernel: transformer_forward.37
$region0: #{transformer_forward.37}
  #allocation0 [shape = 'u32[]', space=smem, size = 0x4, offset = 0x4, fixed_abs, tag = 'smem constant byte address 0x4 - core index']
  #allocation1 [shape = 'u32[72,128]{1,0:T(1,128)}', space=vmem, size = 0x9000, scoped, tag = 'internal scratch']
  #allocation2 [shape = 'f32[16,32]{1,0:T(8,128)}', space=vmem, size = 0x2000, scoped, tag = 'scratch operand']
  %s0 = inlined_call_operand.vmem [shape: f32[16,32], index: 0, kind: input, shape index: {}]
  %s1 = inlined_call_operand.vmem [shape: bf16[32,32], index: 1, kind: input, shape index: {}]
  %s2 = inlined_call_operand.hbm [shape: f32[1,32], index: 2, kind: input, shape index: {}]
  %s3 = inlined_call_operand.vmem [shape: bf16[16,32], index: 3, kind: output, shape index: {}]
  %s4 = sld [smem:[#allocation0]]
  $region34: #{transformer_forward.37} parent=0
    _
  %s6 = ssub.s32 1, %s4
  %s7 = scalar_select 0, %s6, %s4
  $region1: #{transformer_forward.37} parent=0
    #allocation3 [shape = 'u8[512]{0}', space=vmem, size = 0x400, scoped, tag = 'input window, operand 2, single buffered']
    #allocation4 [shape = 's32[1]{0}', space=sflag, size = 0x4, scoped, tag = 'scoped memory for transformer_forward.37']
    %8 = vsyncpa [#allocation4], 0
    // Predicated region
    $region2: #{transformer_forward.37} parent=1 // pred_check
      _
    $region3: #{transformer_forward.37} parent=1 // pred_check_branch
      %10 = sbr.rel (0) target = $region5
    $region4: #{transformer_forward.37} parent=1 // pred_region
      _
    $region5: #{transformer_forward.37} parent=1 // pred_fallthru
      _
    // Predicated region
    $region6: #{transformer_forward.37} parent=1 // pred_check
      _
    $region7: #{transformer_forward.37} parent=1 // pred_check_branch
      %12 = sbr.rel (0) target = $region9
    $region8: #{transformer_forward.37} parent=1 // pred_region
      _
    $region9: #{transformer_forward.37} parent=1 // pred_fallthru
      _
    // Predicated region
    $region10: #{transformer_forward.37} parent=1 // pred_check
      _
    $region11: #{transformer_forward.37} parent=1 // pred_check_branch
      %14 = sbr.rel (0) target = $region13
    $region12: #{transformer_forward.37} parent=1 // pred_region
      %16 = vsyncadd [#allocation4], 0
      %s18 = sshll.u32 %s2, 4
      %s19 = int_to_ptr.hbm [resolvable:$true] %s18
      %s20 = sshll.u32 [#allocation3], 4
      %s21 = int_to_ptr.vmem [resolvable:$true] %s20
      %23 = dma.hbm_to_vmem [thread:$0]  %s19, 16, %s21, [#allocation4]
    $region13: #{transformer_forward.37} parent=1 // pred_fallthru
      _
    // Predicated region
    $region14: #{transformer_forward.37} parent=1 // pred_check
      _
    $region15: #{transformer_forward.37} parent=1 // pred_check_branch
      %25 = sbr.rel (0) target = $region17
    $region16: #{transformer_forward.37} parent=1 // pred_region
      %27 = dma.done [#allocation4], 16
    $region17: #{transformer_forward.37} parent=1 // pred_fallthru
      _
    %p29 = scmp.eq.s32.totalorder 0, 0
    // Predicated region
    $region18: #{transformer_forward.37} parent=1 // pred_check
      %p30 = pneg %p29
    $region19: #{transformer_forward.37} parent=1 // pred_check_branch
      %32 = sbr.rel (%p30) target = $region21
    $region20: #{transformer_forward.37} parent=1 // pred_region
      %vm33 = vcmask 261120
      %34 = vst.msk [vmem:[#allocation2] sm:$0xff] %vm33, 0.0
      %35 = vst.msk [vmem:[#allocation2 + $0x8] sm:$0xff] %vm33, 0.0
    $region21: #{transformer_forward.37} parent=1 // pred_fallthru
      _
    %v36 = vld [vmem:[%s0] sm:$0xff]
    %v37 = vld [vmem:[%s0 + $0x8] sm:$0xff]
    %v38 = vpack.c.bf16 %v37, %v36
    %v39 = vld [vmem:[#allocation2] sm:$0xff]
    %v40 = vld [vmem:[#allocation2 + $0x8] sm:$0xff]
    %v41 = vld [vmem:[%s1] sm:$0xf]
    %v42 = vld [vmem:[%s1 + $0x4] sm:$0xf]
    %v43 = vld [vmem:[%s1 + $0x8] sm:$0xf]
    %v44 = vld [vmem:[%s1 + $0xc] sm:$0xf]
    %v49 = vunpack.c.l.b16 %v41
    %v50 = vunpack.c.l.b16 %v42
    %v51 = vunpack.c.l.b16 %v43
    %v52 = vunpack.c.l.b16 %v44
    %v53 = vpack.c.b16 %v50, %v49
    %v54 = vpack.c.b16 %v52, %v51
    %vm57 = vcmask 261120
    %v59 = vsel %vm57, %v38, 0
    %61 = vmatpush.bf16.msra.mxu0 0
    %62 = vmatpush.bf16.msra.mxu0 0
    %63 = vmatpush.bf16.msra.mxu0 0
    %64 = vmatpush.bf16.msra.mxu0 0
    %65 = vmatpush.bf16.msra.mxu0 0
    %66 = vmatpush.bf16.msra.mxu0 0
    %67 = vmatpush.bf16.msra.mxu0 %v54
    %68 = vmatpush.bf16.msra.mxu0 %v53
    %69 = vmatmul.bf16.gmra.mxu0 %v59
    %v70 = vpop.f32.mrf.mxu0
    %v71 = vadd.f32 0.0, %v70
    %v72 = vpop.f32.mrf.mxu0
    %v73 = vadd.f32 0.0, %v72
    %74 = vdwg.mxu0
    %v75 = vadd.f32 %v39, %v71
    %v76 = vadd.f32 %v40, %v73
    %77 = vst.msk [vmem:[#allocation2] sm:$0xff] %vm57, %v75
    %78 = vst.msk [vmem:[#allocation2 + $0x8] sm:$0xff] %vm57, %v76
    // Predicated region
    $region22: #{transformer_forward.37} parent=1 // pred_check
      %p79 = pneg %p29
    $region23: #{transformer_forward.37} parent=1 // pred_check_branch
      %81 = sbr.rel (%p79) target = $region25
    $region24: #{transformer_forward.37} parent=1 // pred_region
      %v82 = vld [vmem:[#allocation2] sm:$0xff]
      %v83 = vld [vmem:[#allocation2 + $0x8] sm:$0xff]
      %v84 = vld [vmem:[#allocation3] sm:$0x1]
      %v86 = vperm.slane %v84, 0
      %v88 = vadd.f32 %v82, %v86
      %v89 = vadd.f32 %v83, %v86
      %v90 = vpack.c.bf16 %v88, %v88
      %v91 = vpack.c.bf16 %v89, %v89
      %vm92 = vcmask 257024
      %93 = vst.msk [vmem:[%s3] sm:$0xf] %vm92, %v90
      %94 = vst.msk [vmem:[%s3 + $0x4] sm:$0xf] %vm92, %v91
    $region25: #{transformer_forward.37} parent=1 // pred_fallthru
      _
    // Predicated region
    $region26: #{transformer_forward.37} parent=1 // pred_check
      _
    $region27: #{transformer_forward.37} parent=1 // pred_check_branch
      %96 = sbr.rel (0) target = $region29
    $region28: #{transformer_forward.37} parent=1 // pred_region
      _
    $region29: #{transformer_forward.37} parent=1 // pred_fallthru
      _
    // Predicated region
    $region30: #{transformer_forward.37} parent=1 // pred_check
      _
    $region31: #{transformer_forward.37} parent=1 // pred_check_branch
      %98 = sbr.rel (0) target = $region33
    $region32: #{transformer_forward.37} parent=1 // pred_region
      _
    $region33: #{transformer_forward.37} parent=1 // pred_fallthru
      _
    %99 = vsyncpa [#allocation4], 1

// kernel: transformer_forward.40
$region0: #{transformer_forward.40}
  #allocation0 [shape = 'u32[]', space=smem, size = 0x4, offset = 0x4, fixed_abs, tag = 'smem constant byte address 0x4 - core index']
  #allocation1 [shape = 'u32[72,128]{1,0:T(1,128)}', space=vmem, size = 0x9000, scoped, tag = 'internal scratch']
  #allocation2 [shape = 'f32[16,32]{1,0:T(8,128)}', space=vmem, size = 0x2000, scoped, tag = 'scratch operand']
  %s0 = inlined_call_operand.vmem [shape: f32[16,32], index: 0, kind: input, shape index: {}]
  %s1 = inlined_call_operand.vmem [shape: bf16[32,32], index: 1, kind: input, shape index: {}]
  %s2 = inlined_call_operand.hbm [shape: f32[1,32], index: 2, kind: input, shape index: {}]
  %s3 = inlined_call_operand.vmem [shape: bf16[16,32], index: 3, kind: output, shape index: {}]
  %s4 = sld [smem:[#allocation0]]
  $region34: #{transformer_forward.40} parent=0
    _
  %s6 = ssub.s32 1, %s4
  %s7 = scalar_select 0, %s6, %s4
  $region1: #{transformer_forward.40} parent=0
    #allocation3 [shape = 'u8[512]{0}', space=vmem, size = 0x400, scoped, tag = 'input window, operand 2, single buffered']
    #allocation4 [shape = 's32[1]{0}', space=sflag, size = 0x4, scoped, tag = 'scoped memory for transformer_forward.40']
    %8 = vsyncpa [#allocation4], 0
    // Predicated region
    $region2: #{transformer_forward.40} parent=1 // pred_check
      _
    $region3: #{transformer_forward.40} parent=1 // pred_check_branch
      %10 = sbr.rel (0) target = $region5
    $region4: #{transformer_forward.40} parent=1 // pred_region
      _
    $region5: #{transformer_forward.40} parent=1 // pred_fallthru
      _
    // Predicated region
    $region6: #{transformer_forward.40} parent=1 // pred_check
      _
    $region7: #{transformer_forward.40} parent=1 // pred_check_branch
      %12 = sbr.rel (0) target = $region9
    $region8: #{transformer_forward.40} parent=1 // pred_region
      _
    $region9: #{transformer_forward.40} parent=1 // pred_fallthru
      _
    // Predicated region
    $region10: #{transformer_forward.40} parent=1 // pred_check
      _
    $region11: #{transformer_forward.40} parent=1 // pred_check_branch
      %14 = sbr.rel (0) target = $region13
    $region12: #{transformer_forward.40} parent=1 // pred_region
      %16 = vsyncadd [#allocation4], 0
      %s18 = sshll.u32 %s2, 4
      %s19 = int_to_ptr.hbm [resolvable:$true] %s18
      %s20 = sshll.u32 [#allocation3], 4
      %s21 = int_to_ptr.vmem [resolvable:$true] %s20
      %23 = dma.hbm_to_vmem [thread:$0]  %s19, 16, %s21, [#allocation4]
    $region13: #{transformer_forward.40} parent=1 // pred_fallthru
      _
    // Predicated region
    $region14: #{transformer_forward.40} parent=1 // pred_check
      _
    $region15: #{transformer_forward.40} parent=1 // pred_check_branch
      %25 = sbr.rel (0) target = $region17
    $region16: #{transformer_forward.40} parent=1 // pred_region
      %27 = dma.done [#allocation4], 16
    $region17: #{transformer_forward.40} parent=1 // pred_fallthru
      _
    %p29 = scmp.eq.s32.totalorder 0, 0
    // Predicated region
    $region18: #{transformer_forward.40} parent=1 // pred_check
      %p30 = pneg %p29
    $region19: #{transformer_forward.40} parent=1 // pred_check_branch
      %32 = sbr.rel (%p30) target = $region21
    $region20: #{transformer_forward.40} parent=1 // pred_region
      %vm33 = vcmask 261120
      %34 = vst.msk [vmem:[#allocation2] sm:$0xff] %vm33, 0.0
      %35 = vst.msk [vmem:[#allocation2 + $0x8] sm:$0xff] %vm33, 0.0
    $region21: #{transformer_forward.40} parent=1 // pred_fallthru
      _
    %v36 = vld [vmem:[%s0] sm:$0xff]
    %v37 = vld [vmem:[%s0 + $0x8] sm:$0xff]
    %v38 = vpack.c.bf16 %v37, %v36
    %v39 = vld [vmem:[#allocation2] sm:$0xff]
    %v40 = vld [vmem:[#allocation2 + $0x8] sm:$0xff]
    %v41 = vld [vmem:[%s1] sm:$0xf]
    %v42 = vld [vmem:[%s1 + $0x4] sm:$0xf]
    %v43 = vld [vmem:[%s1 + $0x8] sm:$0xf]
    %v44 = vld [vmem:[%s1 + $0xc] sm:$0xf]
    %v49 = vunpack.c.l.b16 %v41
    %v50 = vunpack.c.l.b16 %v42
    %v51 = vunpack.c.l.b16 %v43
    %v52 = vunpack.c.l.b16 %v44
    %v53 = vpack.c.b16 %v50, %v49
    %v54 = vpack.c.b16 %v52, %v51
    %vm57 = vcmask 261120
    %v59 = vsel %vm57, %v38, 0
    %61 = vmatpush.bf16.msra.mxu0 0
    %62 = vmatpush.bf16.msra.mxu0 0
    %63 = vmatpush.bf16.msra.mxu0 0
    %64 = vmatpush.bf16.msra.mxu0 0
    %65 = vmatpush.bf16.msra.mxu0 0
    %66 = vmatpush.bf16.msra.mxu0 0
    %67 = vmatpush.bf16.msra.mxu0 %v54
    %68 = vmatpush.bf16.msra.mxu0 %v53
    %69 = vmatmul.bf16.gmra.mxu0 %v59
    %v70 = vpop.f32.mrf.mxu0
    %v71 = vadd.f32 0.0, %v70
    %v72 = vpop.f32.mrf.mxu0
    %v73 = vadd.f32 0.0, %v72
    %74 = vdwg.mxu0
    %v75 = vadd.f32 %v39, %v71
    %v76 = vadd.f32 %v40, %v73
    %77 = vst.msk [vmem:[#allocation2] sm:$0xff] %vm57, %v75
    %78 = vst.msk [vmem:[#allocation2 + $0x8] sm:$0xff] %vm57, %v76
    // Predicated region
    $region22: #{transformer_forward.40} parent=1 // pred_check
      %p79 = pneg %p29
    $region23: #{transformer_forward.40} parent=1 // pred_check_branch
      %81 = sbr.rel (%p79) target = $region25
    $region24: #{transformer_forward.40} parent=1 // pred_region
      %v82 = vld [vmem:[#allocation2] sm:$0xff]
      %v83 = vld [vmem:[#allocation2 + $0x8] sm:$0xff]
      %v84 = vld [vmem:[#allocation3] sm:$0x1]
      %v86 = vperm.slane %v84, 0
      %v88 = vadd.f32 %v82, %v86
      %v89 = vadd.f32 %v83, %v86
      %v90 = vmul.f32 %v88, 0.5
      %v91 = vmul.f32 %v89, 0.5
      %v92 = vmul.f32 %v88, 0.70710677
      %v93 = vmul.f32 %v89, 0.70710677
      %v94 = vmul.f32 %v92, %v92
      %v95 = vmin.f32 16.0, %v94
      %v96 = vmul.f32 %v95, 2.1237322e-06
      %v97 = vadd.f32 %v96, 0.00028619796
      %v98 = vmul.f32 %v95, %v97
      %v99 = vadd.f32 %v98, 0.0036580483
      %v100 = vmul.f32 %v95, %v99
      %v101 = vadd.f32 %v100, 0.05243302
      %v102 = vmul.f32 %v95, %v101
      %v103 = vadd.f32 %v102, 0.18741608
      %v104 = vmul.f32 %v95, %v103
      %v105 = vadd.f32 %v104, 1.1283791
      %v106 = vmul.f32 %v92, %v105
      %v107 = vmul.f32 %v95, 3.8918573e-05
      %v108 = vadd.f32 %v107, 0.001143296
      %v109 = vmul.f32 %v95, %v108
      %v110 = vadd.f32 %v109, 0.014752088
      %v111 = vmul.f32 %v95, %v110
      %v112 = vadd.f32 %v111, 0.112945676
      %v113 = vmul.f32 %v95, %v112
      %v114 = vadd.f32 %v113, 0.4994258
      %v115 = vmul.f32 %v95, %v114
      %v116 = vadd.f32 %v115, 1.0
      %v117 = vrcp.pop %v116
      %v118 = vmul.f32 %v116, %v117
      %v119 = vsub.f32 1.0, %v118
      %v120 = vmul.f32 %v117, %v119
      %v121 = vadd.f32 %v117, %v120
      %vm122 = vweird.f32 %v116
      %vm123 = vweird.f32 %v117
      %vm124 = vmor %vm122, %vm123
      %v125 = vsel %vm124, %v117, %v121
      %v126 = vand.u32 2147483647, %v116
      %vm127 = vcmp.eq.f32.partialorder %v126, 8.507059e+37
      %v128 = vand.u32 %v116, 2147483648
      %v129 = vor.u32 1.1754944e-38, %v128
      %v130 = vsel %vm127, %v129, %v125
      %v131 = vmul.f32 %v106, %v130
      %v132 = vmin.f32 %v131, 1.0
      %v133 = vmax.f32 %v132, -1.0
      %v134 = vmul.f32 %v93, %v93
      %v135 = vmin.f32 16.0, %v134
      %v136 = vmul.f32 %v135, 2.1237322e-06
      %v137 = vadd.f32 %v136, 0.00028619796
      %v138 = vmul.f32 %v135, %v137
      %v139 = vadd.f32 %v138, 0.0036580483
      %v140 = vmul.f32 %v135, %v139
      %v141 = vadd.f32 %v140, 0.05243302
      %v142 = vmul.f32 %v135, %v141
      %v143 = vadd.f32 %v142, 0.18741608
      %v144 = vmul.f32 %v135, %v143
      %v145 = vadd.f32 %v144, 1.1283791
      %v146 = vmul.f32 %v93, %v145
      %v147 = vmul.f32 %v135, 3.8918573e-05
      %v148 = vadd.f32 %v147, 0.001143296
      %v149 = vmul.f32 %v135, %v148
      %v150 = vadd.f32 %v149, 0.014752088
      %v151 = vmul.f32 %v135, %v150
      %v152 = vadd.f32 %v151, 0.112945676
      %v153 = vmul.f32 %v135, %v152
      %v154 = vadd.f32 %v153, 0.4994258
      %v155 = vmul.f32 %v135, %v154
      %v156 = vadd.f32 %v155, 1.0
      %v157 = vrcp.pop %v156
      %v158 = vmul.f32 %v156, %v157
      %v159 = vsub.f32 1.0, %v158
      %v160 = vmul.f32 %v157, %v159
      %v161 = vadd.f32 %v157, %v160
      %vm162 = vweird.f32 %v156
      %vm163 = vweird.f32 %v157
      %vm164 = vmor %vm162, %vm163
      %v165 = vsel %vm164, %v157, %v161
      %v166 = vand.u32 2147483647, %v156
      %vm167 = vcmp.eq.f32.partialorder %v166, 8.507059e+37
      %v168 = vand.u32 %v156, 2147483648
      %v169 = vor.u32 1.1754944e-38, %v168
      %v170 = vsel %vm167, %v169, %v165
      %v171 = vmul.f32 %v146, %v170
      %v172 = vmin.f32 %v171, 1.0
      %v173 = vmax.f32 %v172, -1.0
      %v174 = vadd.f32 %v133, 1.0
      %v175 = vadd.f32 %v173, 1.0
      %v176 = vmul.f32 %v90, %v174
      %v177 = vmul.f32 %v91, %v175
      %v178 = vpack.c.bf16 %v176, %v176
      %v179 = vpack.c.bf16 %v177, %v177
      %vm180 = vcmask 257024
      %181 = vst.msk [vmem:[%s3] sm:$0xf] %vm180, %v178
      %182 = vst.msk [vmem:[%s3 + $0x4] sm:$0xf] %vm180, %v179
    $region25: #{transformer_forward.40} parent=1 // pred_fallthru
      _
    // Predicated region
    $region26: #{transformer_forward.40} parent=1 // pred_check
      _
    $region27: #{transformer_forward.40} parent=1 // pred_check_branch
      %184 = sbr.rel (0) target = $region29
    $region28: #{transformer_forward.40} parent=1 // pred_region
      _
    $region29: #{transformer_forward.40} parent=1 // pred_fallthru
      _
    // Predicated region
    $region30: #{transformer_forward.40} parent=1 // pred_check
      _
    $region31: #{transformer_forward.40} parent=1 // pred_check_branch
      %186 = sbr.rel (0) target = $region33
    $region32: #{transformer_forward.40} parent=1 // pred_region
      _
    $region33: #{transformer_forward.40} parent=1 // pred_fallthru
      _
    %187 = vsyncpa [#allocation4], 1

// kernel: transformer_forward.36
$region0: #{transformer_forward.36}
  #allocation0 [shape = 'u32[]', space=smem, size = 0x4, offset = 0x4, fixed_abs, tag = 'smem constant byte address 0x4 - core index']
  #allocation1 [shape = 'u32[72,128]{1,0:T(1,128)}', space=vmem, size = 0x9000, scoped, tag = 'internal scratch']
  %s0 = inlined_call_operand.vmem [shape: s32[2,1,8], index: 0, kind: input, shape index: {}]
  %s1 = inlined_call_operand.vmem [shape: bf16[2,8,96], index: 1, kind: input, shape index: {}]
  %s2 = inlined_call_operand.vmem [shape: bf16[32,32], index: 2, kind: input, shape index: {}]
  %s3 = inlined_call_operand.hbm [shape: f32[1,32], index: 3, kind: input, shape index: {}]
  %s4 = inlined_call_operand.vmem [shape: f32[2,8,32], index: 4, kind: input, shape index: {}]
  %s5 = inlined_call_operand.hbm [shape: f32[1,32], index: 5, kind: input, shape index: {}]
  %s6 = inlined_call_operand.hbm [shape: f32[1,32], index: 6, kind: input, shape index: {}]
  %s7 = inlined_call_operand.vmem [shape: f32[2,8,32], index: 7, kind: output, shape index: {}]
  %s8 = sld [smem:[#allocation0]]
  $region73: #{transformer_forward.36} parent=0
    _
  %s10 = ssub.s32 1, %s8
  %s11 = scalar_select 0, %s10, %s8
  $region1: #{transformer_forward.36} parent=0
    #allocation2 [shape = 'u8[512]{0}', space=vmem, size = 0x400, scoped, tag = 'input window, operand 3, single buffered']
    #allocation3 [shape = 's32[2]{0}', space=sflag, size = 0x8, scoped, tag = 'scoped memory for transformer_forward.36']
    #allocation4 [shape = 'u8[512]{0}', space=vmem, size = 0x400, scoped, tag = 'input window, operand 5, single buffered']
    #allocation5 [shape = 's32[1]{0}', space=sflag, size = 0x4, scoped, tag = 'scoped memory for transformer_forward.36']
    #allocation6 [shape = 'u8[512]{0}', space=vmem, size = 0x400, scoped, tag = 'input window, operand 6, single buffered']
    %12 = vsyncpa [#allocation3], 0
    %13 = vsyncpa [#allocation5], 0
    loop: start=0, step=1, limit=4
    $region2: #{transformer_forward.36} parent=1 // loop_pre_header
      _
    $region3: #{transformer_forward.36} parent=1 // loop_header
      %s15 = sphi 0, %s19
      %p16 = scmp.ge.s32.totalorder %s15, 4
      %s25 = sphi 0, %s27
      %s28 = sphi 0, %s25
      %s29 = sphi 0, %s28
      %s45 = sphi 0, %s29
      %s51 = sphi 0, %s53
      %s54 = sphi 0, %s51
      %s55 = sphi 0, %s54
      %s71 = sphi 0, %s55
      %s75 = sphi 0, %s75
      %s77 = sphi 0, %s75
      %s78 = sphi 0, %s77
      %s92 = sphi 0, %s78
      %s96 = sphi 0, %s96
      %s98 = sphi 0, %s96
      %s99 = sphi 0, %s98
      %s113 = sphi 0, %s99
      %s119 = sphi 0, %s121
      %s122 = sphi 0, %s119
      %s123 = sphi 0, %s122
      %s139 = sphi 0, %s123
      %s143 = sphi 0, %s143
      %s145 = sphi 0, %s143
      %s146 = sphi 0, %s145
      %s160 = sphi 0, %s146
      %s164 = sphi 0, %s164
      %s166 = sphi 0, %s164
      %s167 = sphi 0, %s166
      %s181 = sphi 0, %s167
      %s187 = sphi 0, %s189
      %s190 = sphi 0, %s187
      %s191 = sphi 0, %s190
      %s207 = sphi 0, %s191
    $region4: #{transformer_forward.36} parent=1 // loop_header_branch
      %18 = sbr.rel (%p16) target = $region8
    $region5: #{transformer_forward.36} parent=1 // loop_body
      %s20 = ssub.s32 %s15, 1
      %s21 = ssub.s32 %s15, 2
      %s22 = sadd.s32 %s15, 1
      %s23 = ssub.s32 %s15, %s22
      %p24 = scmp.eq.s32.totalorder %s23, 0
      %s26 = sadd.s32 %s25, 1
      %s27 = scalar_select %p24, %s25, %s26
      %p30 = pneg %p24
      %p31 = scmp.eq.s32.totalorder %s15, 1
      %p32 = por %p30, %p31
      %p33 = scmp.ne.s32.totalorder %s25, %s28
      %p34 = scmp.eq.s32.totalorder %s15, 0
      %p35 = por %p33, %p34
      %p36 = scmp.ne.s32.totalorder %s25, %s28
      %p37 = scmp.eq.s32.totalorder %s20, 1
      %p38 = por %p36, %p37
      %p39 = scmp.ne.s32.totalorder %s28, %s29
      %p40 = scmp.eq.s32.totalorder %s20, 0
      %p41 = por %p39, %p40
      %p42 = scmp.ne.s32.totalorder %s28, %s29
      %p43 = scmp.eq.s32.totalorder %s21, 1
      %p44 = por %p42, %p43
      %p46 = scmp.ne.s32.totalorder %s29, %s45
      %p47 = scmp.eq.s32.totalorder %s21, 0
      %p48 = por %p46, %p47
      %s49 = ssub.s32 %s15, %s22
      %p50 = scmp.eq.s32.totalorder %s49, 0
      %s52 = sadd.s32 %s51, 1
      %s53 = scalar_select %p50, %s51, %s52
      %p56 = pneg %p50
      %p57 = scmp.eq.s32.totalorder %s15, 1
      %p58 = por %p56, %p57
      %p59 = scmp.ne.s32.totalorder %s51, %s54
      %p60 = scmp.eq.s32.totalorder %s15, 0
      %p61 = por %p59, %p60
      %p62 = scmp.ne.s32.totalorder %s51, %s54
      %p63 = scmp.eq.s32.totalorder %s20, 1
      %p64 = por %p62, %p63
      %p65 = scmp.ne.s32.totalorder %s54, %s55
      %p66 = scmp.eq.s32.totalorder %s20, 0
      %p67 = por %p65, %p66
      %p68 = scmp.ne.s32.totalorder %s54, %s55
      %p69 = scmp.eq.s32.totalorder %s21, 1
      %p70 = por %p68, %p69
      %p72 = scmp.ne.s32.totalorder %s55, %s71
      %p73 = scmp.eq.s32.totalorder %s21, 0
      %p74 = por %p72, %p73
      %s76 = sadd.s32 %s75, 1
      %p79 = scmp.eq.s32.totalorder %s15, 1
      %p80 = scmp.ne.s32.totalorder %s75, %s77
      %p81 = scmp.eq.s32.totalorder %s15, 0
      %p82 = por %p80, %p81
      %p83 = scmp.ne.s32.totalorder %s75, %s77
      %p84 = scmp.eq.s32.totalorder %s20, 1
      %p85 = por %p83, %p84
      %p86 = scmp.ne.s32.totalorder %s77, %s78
      %p87 = scmp.eq.s32.totalorder %s20, 0
      %p88 = por %p86, %p87
      %p89 = scmp.ne.s32.totalorder %s77, %s78
      %p90 = scmp.eq.s32.totalorder %s21, 1
      %p91 = por %p89, %p90
      %p93 = scmp.ne.s32.totalorder %s78, %s92
      %p94 = scmp.eq.s32.totalorder %s21, 0
      %p95 = por %p93, %p94
      %s97 = sadd.s32 %s96, 1
      %p100 = scmp.eq.s32.totalorder %s15, 1
      %p101 = scmp.ne.s32.totalorder %s96, %s98
      %p102 = scmp.eq.s32.totalorder %s15, 0
      %p103 = por %p101, %p102
      %p104 = scmp.ne.s32.totalorder %s96, %s98
      %p105 = scmp.eq.s32.totalorder %s20, 1
      %p106 = por %p104, %p105
      %p107 = scmp.ne.s32.totalorder %s98, %s99
      %p108 = scmp.eq.s32.totalorder %s20, 0
      %p109 = por %p107, %p108
      %p110 = scmp.ne.s32.totalorder %s98, %s99
      %p111 = scmp.eq.s32.totalorder %s21, 1
      %p112 = por %p110, %p111
      %p114 = scmp.ne.s32.totalorder %s99, %s113
      %p115 = scmp.eq.s32.totalorder %s21, 0
      %p116 = por %p114, %p115
      %s117 = ssub.s32 %s15, %s22
      %p118 = scmp.eq.s32.totalorder %s117, 0
      %s120 = sadd.s32 %s119, 1
      %s121 = scalar_select %p118, %s119, %s120
      %p124 = pneg %p118
      %p125 = scmp.eq.s32.totalorder %s15, 1
      %p126 = por %p124, %p125
      %p127 = scmp.ne.s32.totalorder %s119, %s122
      %p128 = scmp.eq.s32.totalorder %s15, 0
      %p129 = por %p127, %p128
      %p130 = scmp.ne.s32.totalorder %s119, %s122
      %p131 = scmp.eq.s32.totalorder %s20, 1
      %p132 = por %p130, %p131
      %p133 = scmp.ne.s32.totalorder %s122, %s123
      %p134 = scmp.eq.s32.totalorder %s20, 0
      %p135 = por %p133, %p134
      %p136 = scmp.ne.s32.totalorder %s122, %s123
      %p137 = scmp.eq.s32.totalorder %s21, 1
      %p138 = por %p136, %p137
      %p140 = scmp.ne.s32.totalorder %s123, %s139
      %p141 = scmp.eq.s32.totalorder %s21, 0
      %p142 = por %p140, %p141
      %s144 = sadd.s32 %s143, 1
      %p147 = scmp.eq.s32.totalorder %s15, 1
      %p148 = scmp.ne.s32.totalorder %s143, %s145
      %p149 = scmp.eq.s32.totalorder %s15, 0
      %p150 = por %p148, %p149
      %p151 = scmp.ne.s32.totalorder %s143, %s145
      %p152 = scmp.eq.s32.totalorder %s20, 1
      %p153 = por %p151, %p152
      %p154 = scmp.ne.s32.totalorder %s145, %s146
      %p155 = scmp.eq.s32.totalorder %s20, 0
      %p156 = por %p154, %p155
      %p157 = scmp.ne.s32.totalorder %s145, %s146
      %p158 = scmp.eq.s32.totalorder %s21, 1
      %p159 = por %p157, %p158
      %p161 = scmp.ne.s32.totalorder %s146, %s160
      %p162 = scmp.eq.s32.totalorder %s21, 0
      %p163 = por %p161, %p162
      %s165 = sadd.s32 %s164, 1
      %p168 = scmp.eq.s32.totalorder %s15, 1
      %p169 = scmp.ne.s32.totalorder %s164, %s166
      %p170 = scmp.eq.s32.totalorder %s15, 0
      %p171 = por %p169, %p170
      %p172 = scmp.ne.s32.totalorder %s164, %s166
      %p173 = scmp.eq.s32.totalorder %s20, 1
      %p174 = por %p172, %p173
      %p175 = scmp.ne.s32.totalorder %s166, %s167
      %p176 = scmp.eq.s32.totalorder %s20, 0
      %p177 = por %p175, %p176
      %p178 = scmp.ne.s32.totalorder %s166, %s167
      %p179 = scmp.eq.s32.totalorder %s21, 1
      %p180 = por %p178, %p179
      %p182 = scmp.ne.s32.totalorder %s167, %s181
      %p183 = scmp.eq.s32.totalorder %s21, 0
      %p184 = por %p182, %p183
      %s185 = ssub.s32 %s15, %s22
      %p186 = scmp.eq.s32.totalorder %s185, 0
      %s188 = sadd.s32 %s187, 1
      %s189 = scalar_select %p186, %s187, %s188
      %p192 = pneg %p186
      %p193 = scmp.eq.s32.totalorder %s15, 1
      %p194 = por %p192, %p193
      %p195 = scmp.ne.s32.totalorder %s187, %s190
      %p196 = scmp.eq.s32.totalorder %s15, 0
      %p197 = por %p195, %p196
      %p198 = scmp.ne.s32.totalorder %s187, %s190
      %p199 = scmp.eq.s32.totalorder %s20, 1
      %p200 = por %p198, %p199
      %p201 = scmp.ne.s32.totalorder %s190, %s191
      %p202 = scmp.eq.s32.totalorder %s20, 0
      %p203 = por %p201, %p202
      %p204 = scmp.ne.s32.totalorder %s190, %s191
      %p205 = scmp.eq.s32.totalorder %s21, 1
      %p206 = por %p204, %p205
      %p208 = scmp.ne.s32.totalorder %s191, %s207
      %p209 = scmp.eq.s32.totalorder %s21, 0
      %p210 = por %p208, %p209
      %p211 = scmp.le.s32.totalorder 1, %s15
      %p212 = scmp.lt.s32.totalorder %s15, 3
      %p213 = pnand %p211, %p212
      %p214 = pneg %p213
      // Predicated region
      $region9: #{transformer_forward.36} parent=5 // pred_check
        _
      $region10: #{transformer_forward.36} parent=5 // pred_check_branch
        %216 = sbr.rel (%p213) target = $region12
      $region11: #{transformer_forward.36} parent=5 // pred_region
        %s217 = ssub.s32 %s15, 1
        // Predicated region
        $region13: #{transformer_forward.36} parent=11 // pred_check
          %p218 = pneg %p88
        $region14: #{transformer_forward.36} parent=11 // pred_check_branch
          %220 = sbr.rel (%p218) target = $region16
        $region15: #{transformer_forward.36} parent=11 // pred_region
          _
        $region16: #{transformer_forward.36} parent=11 // pred_fallthru
          _
        // Predicated region
        $region17: #{transformer_forward.36} parent=11 // pred_check
          %p221 = pneg %p109
        $region18: #{transformer_forward.36} parent=11 // pred_check_branch
          %223 = sbr.rel (%p221) target = $region20
        $region19: #{transformer_forward.36} parent=11 // pred_region
          %225 = vsyncadd [#allocation3], 0
          %s227 = sshll.u32 %s3, 4
          %s228 = int_to_ptr.hbm [resolvable:$true] %s227
          %s229 = sshll.u32 [#allocation2], 4
          %s230 = int_to_ptr.vmem [resolvable:$true] %s229
          %232 = dma.hbm_to_vmem [thread:$0]  %s228, 16, %s230, [#allocation3]
        $region20: #{transformer_forward.36} parent=11 // pred_fallthru
          _
        // Predicated region
        $region21: #{transformer_forward.36} parent=11 // pred_check
          %p233 = pneg %p156
        $region22: #{transformer_forward.36} parent=11 // pred_check_branch
          %235 = sbr.rel (%p233) target = $region24
        $region23: #{transformer_forward.36} parent=11 // pred_region
          %237 = vsyncadd [#allocation5], 0
          %s239 = sshll.u32 %s5, 4
          %s240 = int_to_ptr.hbm [resolvable:$true] %s239
          %s241 = sshll.u32 [#allocation4], 4
          %s242 = int_to_ptr.vmem [resolvable:$true] %s241
          %244 = dma.hbm_to_vmem [thread:$0]  %s240, 16, %s242, [#allocation5]
        $region24: #{transformer_forward.36} parent=11 // pred_fallthru
          _
        // Predicated region
        $region25: #{transformer_forward.36} parent=11 // pred_check
          %p245 = pneg %p177
        $region26: #{transformer_forward.36} parent=11 // pred_check_branch
          %247 = sbr.rel (%p245) target = $region28
        $region27: #{transformer_forward.36} parent=11 // pred_region
          %249 = vsyncadd [#allocation5], 0
          %s251 = sshll.u32 %s6, 4
          %s252 = int_to_ptr.hbm [resolvable:$true] %s251
          %s253 = sshll.u32 [#allocation6], 4
          %s254 = int_to_ptr.vmem [resolvable:$true] %s253
          %256 = dma.hbm_to_vmem [thread:$0]  %s252, 16, %s254, [#allocation5]
        $region28: #{transformer_forward.36} parent=11 // pred_fallthru
          _
      $region12: #{transformer_forward.36} parent=5 // pred_fallthru
        _
      %p257 = scmp.lt.s32.totalorder %s15, 2
      // Predicated region
      $region29: #{transformer_forward.36} parent=5 // pred_check
        %p258 = pneg %p257
      $region30: #{transformer_forward.36} parent=5 // pred_check_branch
        %260 = sbr.rel (%p258) target = $region32
      $region31: #{transformer_forward.36} parent=5 // pred_region
        // Predicated region
        $region33: #{transformer_forward.36} parent=31 // pred_check
          %p261 = pneg %p35
        $region34: #{transformer_forward.36} parent=31 // pred_check_branch
          %263 = sbr.rel (%p261) target = $region36
        $region35: #{transformer_forward.36} parent=31 // pred_region
          %p264 = scmp.lt.s32.totalorder %s15, 1
          %s265 = scalar_select %p264, %s15, 1
          %s266 = scalar_lea.vmem %s0, %s265
        $region36: #{transformer_forward.36} parent=31 // pred_fallthru
          _
        // Predicated region
        $region37: #{transformer_forward.36} parent=31 // pred_check
          %p267 = pneg %p61
        $region38: #{transformer_forward.36} parent=31 // pred_check_branch
          %269 = sbr.rel (%p267) target = $region40
        $region39: #{transformer_forward.36} parent=31 // pred_region
          %p270 = scmp.lt.s32.totalorder %s15, 1
          %s271 = scalar_select %p270, %s15, 1
          %s272 = smul.addr %s271, 4
          %s273 = scalar_lea.vmem %s1, %s272
        $region40: #{transformer_forward.36} parent=31 // pred_fallthru
          _
        // Predicated region
        $region41: #{transformer_forward.36} parent=31 // pred_check
          %p274 = pneg %p129
        $region42: #{transformer_forward.36} parent=31 // pred_check_branch
          %276 = sbr.rel (%p274) target = $region44
        $region43: #{transformer_forward.36} parent=31 // pred_region
          %p277 = scmp.lt.s32.totalorder %s15, 1
          %s278 = scalar_select %p277, %s15, 1
          %s279 = smul.addr %s278, 8
          %s280 = scalar_lea.vmem %s4, %s279
        $region44: #{transformer_forward.36} parent=31 // pred_fallthru
          _
      $region32: #{transformer_forward.36} parent=5 // pred_fallthru
        _
      %p281 = scmp.le.s32.totalorder 1, %s15
      %p282 = scmp.lt.s32.totalorder %s15, 3
      %p283 = pnand %p281, %p282
      %p284 = pneg %p283
      // Predicated region
      $region45: #{transformer_forward.36} parent=5 // pred_check
        _
      $region46: #{transformer_forward.36} parent=5 // pred_check_branch
        %286 = sbr.rel (%p283) target = $region48
      $region47: #{transformer_forward.36} parent=5 // pred_region
        %s287 = ssub.s32 %s15, 1
        // Predicated region
        $region49: #{transformer_forward.36} parent=47 // pred_check
          %p288 = pneg %p109
        $region50: #{transformer_forward.36} parent=47 // pred_check_branch
          %290 = sbr.rel (%p288) target = $region52
        $region51: #{transformer_forward.36} parent=47 // pred_region
          %292 = dma.done [#allocation3], 16
        $region52: #{transformer_forward.36} parent=47 // pred_fallthru
          _
        // Predicated region
        $region53: #{transformer_forward.36} parent=47 // pred_check
          %p293 = pneg %p156
        $region54: #{transformer_forward.36} parent=47 // pred_check_branch
          %295 = sbr.rel (%p293) target = $region56
        $region55: #{transformer_forward.36} parent=47 // pred_region
          %297 = dma.done [#allocation5], 16
        $region56: #{transformer_forward.36} parent=47 // pred_fallthru
          _
        // Predicated region
        $region57: #{transformer_forward.36} parent=47 // pred_check
          %p298 = pneg %p177
        $region58: #{transformer_forward.36} parent=47 // pred_check_branch
          %300 = sbr.rel (%p298) target = $region60
        $region59: #{transformer_forward.36} parent=47 // pred_region
          %302 = dma.done [#allocation5], 16
        $region60: #{transformer_forward.36} parent=47 // pred_fallthru
          _
        %p303 = scmp.lt.s32.totalorder %s20, 1
        %s304 = scalar_select %p303, %s20, 1
        %s305 = scalar_lea.vmem %s0, %s304
        %p306 = pneg %p41
        %p307 = pneg %p38
        %p308 = scmp.lt.s32.totalorder %s20, 1
        %s309 = scalar_select %p308, %s20, 1
        %s310 = smul.addr %s309, 4
        %s311 = scalar_lea.vmem %s1, %s310
        %p312 = pneg %p67
        %p313 = pneg %p64
        %p314 = pneg %p88
        %p315 = pneg %p85
        %p316 = pneg %p109
        %p317 = pneg %p106
        %p318 = scmp.lt.s32.totalorder %s20, 1
        %s319 = scalar_select %p318, %s20, 1
        %s320 = smul.addr %s319, 8
        %s321 = scalar_lea.vmem %s4, %s320
        %p322 = pneg %p135
        %p323 = pneg %p132
        %p324 = pneg %p156
        %p325 = pneg %p153
        %p326 = pneg %p177
        %p327 = pneg %p174
        %p328 = pneg %p203
        %p329 = pneg %p200
        %p330 = scmp.lt.s32.totalorder %s20, 1
        %s331 = scalar_select %p330, %s20, 1
        %s332 = smul.addr %s331, 8
        %s333 = scalar_lea.vmem %s7, %s332
        %p334 = scmp.lt.s32.totalorder %s20, 1
        %s335 = scalar_select %p334, %s20, 1
        %s336 = scalar_lea.vmem %s0, %s335
        %p337 = scmp.lt.s32.totalorder %s20, 1
        %s338 = scalar_select %p337, %s20, 1
        %s339 = smul.addr %s338, 4
        %s340 = scalar_lea.vmem %s1, %s339
        %p341 = scmp.lt.s32.totalorder %s20, 1
        %s342 = scalar_select %p341, %s20, 1
        %s343 = smul.addr %s342, 8
        %s344 = scalar_lea.vmem %s4, %s343
        %p345 = scmp.lt.s32.totalorder %s20, 1
        %s346 = scalar_select %p345, %s20, 1
        %s347 = smul.addr %s346, 8
        %s348 = scalar_lea.vmem %s7, %s347
        %v350 = vld [vmem:[%s340] sm:$0xf]
        %v351 = vld [vmem:[%s336] sm:$0x1]
        %vm352 = vcmp.ne.s32.totalorder %v351, 0
        %v353 = vsel %vm352, -1e+09, 0.0
        %v354 = vlaneseq
        %v355 = vshrl.u32 %v354, 7
        %v356 = vlaneseq
        %v357 = vand.u32 %v356, 127
        %vm358 = vcmp.gt.s32.totalorder %v357, %v355
        %v359 = vsel %vm358, -1e+09, 0.0
        %v361 = vperm.slane %v353, 0
        %v363 = vadd.f32 %v361, %v359
        %v365 = vunpack.c.l.b16 %v350
        %v366 = vpack.c.b16 %v365, %v365
        %367 = vrot.lane.b32.xlu0 %v366, 96
        %v368 = vpop.permute.xlu0 %367
        %vm369 = vcmask 64512
        %v371 = vsel %vm369, %v350, 0
        %v374 = vsel %vm369, %v368, 0
        %376 = vmatpush.bf16.xpose.msra.mxu0 0
        %377 = vmatpush.bf16.xpose.msra.mxu0 0
        %378 = vmatpush.bf16.xpose.msra.mxu0 0
        %379 = vmatpush.bf16.xpose.msra.mxu0 0
        %380 = vmatpush.bf16.xpose.msra.mxu0 0
        %381 = vmatpush.bf16.xpose.msra.mxu0 0
        %382 = vmatpush.bf16.xpose.msra.mxu0 0
        %383 = vmatpush.bf16.xpose.msra.mxu0 %v374
        %384 = vmatmul.bf16.gmra.mxu0 %v371
        %v385 = vpop.f32.mrf.mxu0
        %v386 = vadd.f32 0.0, %v385
        %v387 = vpop.f32.mrf.mxu0
        %388 = vdwg.mxu0
        %v389 = vmul.f32 %v386, 0.35355338
        %v390 = vadd.f32 %v389, %v363
        %v391 = vsel %vm369, %v390, -inf
        %392 = vmax.xlane.f32.xlu0 %v391
        %v393 = vpop.xlane.xlu0 %392
        %v394 = vsub.f32 %v390, %v393
        %v395 = vmul.f32 %v394, 1.442695
        %v396 = vpow.pop %v395
        %v397 = vsel %vm369, %v396, 0.0
        %398 = vadd.xlane.f32.xlu0 %v397
        %v399 = vpop.xlane.xlu0 %398
        %v400 = vrcp.pop %v399
        %v401 = vmul.f32 %v399, %v400
        %v402 = vsub.f32 1.0, %v401
        %v403 = vmul.f32 %v400, %v402
        %v404 = vadd.f32 %v400, %v403
        %vm405 = vweird.f32 %v399
        %vm406 = vweird.f32 %v400
        %vm407 = vmor %vm405, %vm406
        %v408 = vsel %vm407, %v400, %v404
        %v409 = vand.u32 2147483647, %v399
        %vm410 = vcmp.eq.f32.partialorder %v409, 8.507059e+37
        %v411 = vand.u32 %v399, 2147483648
        %v412 = vor.u32 1.1754944e-38, %v411
        %v413 = vsel %vm410, %v412, %v408
        %v414 = vmul.f32 %v396, %v413
        %v415 = vpack.c.bf16 %v414, %v414
        %416 = vrot.lane.b32.xlu0 %v366, 64
        %v417 = vpop.permute.xlu0 %416
        %v419 = vsel %vm369, %v415, 0
        %vm421 = vcmask 1043456
        %v423 = vsel %vm421, %v417, 0
        %425 = vmatpush.bf16.msra.mxu0 0
        %426 = vmatpush.bf16.msra.mxu0 0
        %427 = vmatpush.bf16.msra.mxu0 0
        %428 = vmatpush.bf16.msra.mxu0 0
        %429 = vmatpush.bf16.msra.mxu0 0
        %430 = vmatpush.bf16.msra.mxu0 0
        %431 = vmatpush.bf16.msra.mxu0 0
        %432 = vmatpush.bf16.msra.mxu0 %v423
        %433 = vmatmul.bf16.gmra.mxu0 %v419
        %v434 = vpop.f32.mrf.mxu0
        %v435 = vadd.f32 0.0, %v434
        %v436 = vpop.f32.mrf.mxu0
        %437 = vdwg.mxu0
        %438 = vrot.lane.b32.xlu0 %v366, 120
        %v439 = vpop.permute.xlu0 %438
        %440 = vrot.lane.b32.xlu0 %v366, 88
        %v441 = vpop.permute.xlu0 %440
        %v443 = vsel %vm369, %v439, 0
        %v446 = vsel %vm369, %v441, 0
        %448 = vmatpush.bf16.xpose.msra.mxu0 0
        %449 = vmatpush.bf16.xpose.msra.mxu0 0
        %450 = vmatpush.bf16.xpose.msra.mxu0 0
        %451 = vmatpush.bf16.xpose.msra.mxu0 0
        %452 = vmatpush.bf16.xpose.msra.mxu0 0
        %453 = vmatpush.bf16.xpose.msra.mxu0 0
        %454 = vmatpush.bf16.xpose.msra.mxu0 0
        %455 = vmatpush.bf16.xpose.msra.mxu0 %v446
        %456 = vmatmul.bf16.gmra.mxu0 %v443
        %v457 = vpop.f32.mrf.mxu0
        %v458 = vadd.f32 0.0, %v457
        %v459 = vpop.f32.mrf.mxu0
        %460 = vdwg.mxu0
        %v461 = vmul.f32 %v458, 0.35355338
        %v462 = vadd.f32 %v461, %v363
        %v463 = vsel %vm369, %v462, -inf
        %464 = vmax.xlane.f32.xlu0 %v463
        %v465 = vpop.xlane.xlu0 %464
        %v466 = vsub.f32 %v462, %v465
        %v467 = vmul.f32 %v466, 1.442695
        %v468 = vpow.pop %v467
        %v469 = vsel %vm369, %v468, 0.0
        %470 = vadd.xlane.f32.xlu0 %v469
        %v471 = vpop.xlane.xlu0 %470
        %v472 = vrcp.pop %v471
        %v473 = vmul.f32 %v471, %v472
        %v474 = vsub.f32 1.0, %v473
        %v475 = vmul.f32 %v472, %v474
        %v476 = vadd.f32 %v472, %v475
        %vm477 = vweird.f32 %v471
        %vm478 = vweird.f32 %v472
        %vm479 = vmor %vm477, %vm478
        %v480 = vsel %vm479, %v472, %v476
        %v481 = vand.u32 2147483647, %v471
        %vm482 = vcmp.eq.f32.partialorder %v481, 8.507059e+37
        %v483 = vand.u32 %v471, 2147483648
        %v484 = vor.u32 1.1754944e-38, %v483
        %v485 = vsel %vm482, %v484, %v480
        %v486 = vmul.f32 %v468, %v485
        %v487 = vpack.c.bf16 %v486, %v486
        %488 = vrot.lane.b32.xlu0 %v366, 56
        %v489 = vpop.permute.xlu0 %488
        %v491 = vsel %vm369, %v487, 0
        %v494 = vsel %vm421, %v489, 0
        %496 = vmatpush.bf16.msra.mxu0 0
        %497 = vmatpush.bf16.msra.mxu0 0
        %498 = vmatpush.bf16.msra.mxu0 0
        %499 = vmatpush.bf16.msra.mxu0 0
        %500 = vmatpush.bf16.msra.mxu0 0
        %501 = vmatpush.bf16.msra.mxu0 0
        %502 = vmatpush.bf16.msra.mxu0 0
        %503 = vmatpush.bf16.msra.mxu0 %v494
        %504 = vmatmul.bf16.gmra.mxu0 %v491
        %v505 = vpop.f32.mrf.mxu0
        %v506 = vadd.f32 0.0, %v505
        %v507 = vpop.f32.mrf.mxu0
        %508 = vdwg.mxu0
        %509 = vrot.lane.b32.xlu0 %v366, 112
        %v510 = vpop.permute.xlu0 %509
        %511 = vrot.lane.b32.xlu0 %v366, 80
        %v512 = vpop.permute.xlu0 %511
        %v514 = vsel %vm369, %v510, 0
        %v517 = vsel %vm369, %v512, 0
        %519 = vmatpush.bf16.xpose.msra.mxu0 0
        %520 = vmatpush.bf16.xpose.msra.mxu0 0
        %521 = vmatpush.bf16.xpose.msra.mxu0 0
        %522 = vmatpush.bf16.xpose.msra.mxu0 0
        %523 = vmatpush.bf16.xpose.msra.mxu0 0
        %524 = vmatpush.bf16.xpose.msra.mxu0 0
        %525 = vmatpush.bf16.xpose.msra.mxu0 0
        %526 = vmatpush.bf16.xpose.msra.mxu0 %v517
        %527 = vmatmul.bf16.gmra.mxu0 %v514
        %v528 = vpop.f32.mrf.mxu0
        %v529 = vadd.f32 0.0, %v528
        %v530 = vpop.f32.mrf.mxu0
        %531 = vdwg.mxu0
        %v532 = vmul.f32 %v529, 0.35355338
        %v533 = vadd.f32 %v532, %v363
        %v534 = vsel %vm369, %v533, -inf
        %535 = vmax.xlane.f32.xlu0 %v534
        %v536 = vpop.xlane.xlu0 %535
        %v537 = vsub.f32 %v533, %v536
        %v538 = vmul.f32 %v537, 1.442695
        %v539 = vpow.pop %v538
        %v540 = vsel %vm369, %v539, 0.0
        %541 = vadd.xlane.f32.xlu0 %v540
        %v542 = vpop.xlane.xlu0 %541
        %v543 = vrcp.pop %v542
        %v544 = vmul.f32 %v542, %v543
        %v545 = vsub.f32 1.0, %v544
        %v546 = vmul.f32 %v543, %v545
        %v547 = vadd.f32 %v543, %v546
        %vm548 = vweird.f32 %v542
        %vm549 = vweird.f32 %v543
        %vm550 = vmor %vm548, %vm549
        %v551 = vsel %vm550, %v543, %v547
        %v552 = vand.u32 2147483647, %v542
        %vm553 = vcmp.eq.f32.partialorder %v552, 8.507059e+37
        %v554 = vand.u32 %v542, 2147483648
        %v555 = vor.u32 1.1754944e-38, %v554
        %v556 = vsel %vm553, %v555, %v551
        %v557 = vmul.f32 %v539, %v556
        %v558 = vpack.c.bf16 %v557, %v557
        %559 = vrot.lane.b32.xlu0 %v366, 48
        %v560 = vpop.permute.xlu0 %559
        %v562 = vsel %vm369, %v558, 0
        %v565 = vsel %vm421, %v560, 0
        %567 = vmatpush.bf16.msra.mxu0 0
        %568 = vmatpush.bf16.msra.mxu0 0
        %569 = vmatpush.bf16.msra.mxu0 0
        %570 = vmatpush.bf16.msra.mxu0 0
        %571 = vmatpush.bf16.msra.mxu0 0
        %572 = vmatpush.bf16.msra.mxu0 0
        %573 = vmatpush.bf16.msra.mxu0 0
        %574 = vmatpush.bf16.msra.mxu0 %v565
        %575 = vmatmul.bf16.gmra.mxu0 %v562
        %v576 = vpop.f32.mrf.mxu0
        %v577 = vadd.f32 0.0, %v576
        %v578 = vpop.f32.mrf.mxu0
        %579 = vdwg.mxu0
        %580 = vrot.lane.b32.xlu0 %v366, 104
        %v581 = vpop.permute.xlu0 %580
        %582 = vrot.lane.b32.xlu0 %v366, 72
        %v583 = vpop.permute.xlu0 %582
        %v585 = vsel %vm369, %v581, 0
        %v588 = vsel %vm369, %v583, 0
        %590 = vmatpush.bf16.xpose.msra.mxu0 0
        %591 = vmatpush.bf16.xpose.msra.mxu0 0
        %592 = vmatpush.bf16.xpose.msra.mxu0 0
        %593 = vmatpush.bf16.xpose.msra.mxu0 0
        %594 = vmatpush.bf16.xpose.msra.mxu0 0
        %595 = vmatpush.bf16.xpose.msra.mxu0 0
        %596 = vmatpush.bf16.xpose.msra.mxu0 0
        %597 = vmatpush.bf16.xpose.msra.mxu0 %v588
        %598 = vmatmul.bf16.gmra.mxu0 %v585
        %v599 = vpop.f32.mrf.mxu0
        %v600 = vadd.f32 0.0, %v599
        %v601 = vpop.f32.mrf.mxu0
        %602 = vdwg.mxu0
        %v603 = vmul.f32 %v600, 0.35355338
        %v604 = vadd.f32 %v603, %v363
        %v605 = vsel %vm369, %v604, -inf
        %606 = vmax.xlane.f32.xlu0 %v605
        %v607 = vpop.xlane.xlu0 %606
        %v608 = vsub.f32 %v604, %v607
        %v609 = vmul.f32 %v608, 1.442695
        %v610 = vpow.pop %v609
        %v611 = vsel %vm369, %v610, 0.0
        %612 = vadd.xlane.f32.xlu0 %v611
        %v613 = vpop.xlane.xlu0 %612
        %v614 = vrcp.pop %v613
        %v615 = vmul.f32 %v613, %v614
        %v616 = vsub.f32 1.0, %v615
        %v617 = vmul.f32 %v614, %v616
        %v618 = vadd.f32 %v614, %v617
        %vm619 = vweird.f32 %v613
        %vm620 = vweird.f32 %v614
        %vm621 = vmor %vm619, %vm620
        %v622 = vsel %vm621, %v614, %v618
        %v623 = vand.u32 2147483647, %v613
        %vm624 = vcmp.eq.f32.partialorder %v623, 8.507059e+37
        %v625 = vand.u32 %v613, 2147483648
        %v626 = vor.u32 1.1754944e-38, %v625
        %v627 = vsel %vm624, %v626, %v622
        %v628 = vmul.f32 %v610, %v627
        %v629 = vpack.c.bf16 %v628, %v628
        %630 = vrot.lane.b32.xlu0 %v366, 40
        %v631 = vpop.permute.xlu0 %630
        %v633 = vsel %vm369, %v629, 0
        %v636 = vsel %vm421, %v631, 0
        %638 = vmatpush.bf16.msra.mxu0 0
        %639 = vmatpush.bf16.msra.mxu0 0
        %640 = vmatpush.bf16.msra.mxu0 0
        %641 = vmatpush.bf16.msra.mxu0 0
        %642 = vmatpush.bf16.msra.mxu0 0
        %643 = vmatpush.bf16.msra.mxu0 0
        %644 = vmatpush.bf16.msra.mxu0 0
        %645 = vmatpush.bf16.msra.mxu0 %v636
        %646 = vmatmul.bf16.gmra.mxu0 %v633
        %v647 = vpop.f32.mrf.mxu0
        %v648 = vadd.f32 0.0, %v647
        %v649 = vpop.f32.mrf.mxu0
        %650 = vdwg.mxu0
        %652 = vrot.lane.b32.xlu0 %v506, 8
        %v653 = vpop.permute.xlu0 %652
        %656 = vrot.lane.b32.xlu0 %v577, 16
        %v657 = vpop.permute.xlu0 %656
        %660 = vrot.lane.b32.xlu0 %v648, 24
        %v661 = vpop.permute.xlu0 %660
        %v663 = vsel %vm369, %v435, %v653
        %vm664 = vcmask 130048
        %v665 = vsel %vm664, %v663, %v657
        %vm666 = vcmask 195584
        %v667 = vsel %vm666, %v665, %v661
        %v668 = vpack.c.bf16 %v667, %v667
        %v669 = vld [vmem:[%s2] sm:$0xf]
        %v670 = vld [vmem:[%s2 + $0x4] sm:$0xf]
        %v671 = vld [vmem:[%s2 + $0x8] sm:$0xf]
        %v672 = vld [vmem:[%s2 + $0xc] sm:$0xf]
        %v673 = vld [vmem:[#allocation2] sm:$0x1]
        %v675 = vperm.slane %v673, 0
        %v681 = vunpack.c.l.b16 %v669
        %v682 = vunpack.c.l.b16 %v670
        %v683 = vunpack.c.l.b16 %v671
        %v684 = vunpack.c.l.b16 %v672
        %v685 = vpack.c.b16 %v682, %v681
        %v686 = vpack.c.b16 %v684, %v683
        %vm689 = vcmask 261120
        %v691 = vsel %vm689, %v668, 0
        %693 = vmatpush.bf16.msra.mxu0 0
        %694 = vmatpush.bf16.msra.mxu0 0
        %695 = vmatpush.bf16.msra.mxu0 0
        %696 = vmatpush.bf16.msra.mxu0 0
        %697 = vmatpush.bf16.msra.mxu0 0
        %698 = vmatpush.bf16.msra.mxu0 0
        %699 = vmatpush.bf16.msra.mxu0 %v686
        %700 = vmatpush.bf16.msra.mxu0 %v685
        %701 = vmatmul.bf16.gmra.mxu0 %v691
        %v702 = vpop.f32.mrf.mxu0
        %v703 = vadd.f32 %v675, %v702
        %v704 = vpop.f32.mrf.mxu0
        %705 = vdwg.mxu0
        %v706 = vld [vmem:[%s344] sm:$0xff]
        %v707 = vadd.f32 %v703, %v706
        %v708 = vsel %vm689, %v707, 0.0
        %709 = vadd.xlane.f32.xlu0 %v708
        %v710 = vpop.xlane.xlu0 %709
        %v711 = vrcp.pop 32.0
        %v712 = vmul.f32 32.0, %v711
        %v713 = vsub.f32 1.0, %v712
        %v714 = vmul.f32 %v711, %v713
        %v715 = vadd.f32 %v711, %v714
        %vm716 = vweird.f32 %v711
        %v717 = vsel %vm716, %v711, %v715
        %v718 = vmul.f32 %v710, %v717
        %v719 = vsub.f32 %v707, %v718
        %v720 = vmul.f32 %v719, %v719
        %v721 = vsel %vm689, %v720, 0.0
        %722 = vadd.xlane.f32.xlu0 %v721
        %v723 = vpop.xlane.xlu0 %722
        %v724 = vmul.f32 %v723, %v717
        %v725 = vadd.f32 %v724, 1e-05
        %v726 = vrsqrt.pop %v725
        %v727 = vmul.f32 %v726, %v725
        %v728 = vmul.f32 %v727, %v726
        %v729 = vmul.f32 0.5, %v728
        %v730 = vsub.f32 1.5, %v729
        %v731 = vmul.f32 %v726, %v730
        %vm732 = vweird.f32 %v725
        %vm733 = vweird.f32 %v726
        %vm734 = vmor %vm732, %vm733
        %v735 = vsel %vm734, %v726, %v731
        %v736 = vmul.f32 %v719, %v735
        %v737 = vld [vmem:[#allocation4] sm:$0x1]
        %v739 = vperm.slane %v737, 0
        %v741 = vmul.f32 %v736, %v739
        %v742 = vld [vmem:[#allocation6] sm:$0x1]
        %v744 = vperm.slane %v742, 0
        %v746 = vadd.f32 %v741, %v744
        %747 = vst.msk [vmem:[%s348] sm:$0xff] %vm689, %v746
        %p748 = scmp.lt.s32.totalorder %s20, 1
        %s749 = scalar_select %p748, %s20, 1
        %s750 = smul.addr %s749, 8
        %s751 = scalar_lea.vmem %s7, %s750
        // Predicated region
        $region61: #{transformer_forward.36} parent=47 // pred_check
          %p752 = pneg %p200
        $region62: #{transformer_forward.36} parent=47 // pred_check_branch
          %754 = sbr.rel (%p752) target = $region64
        $region63: #{transformer_forward.36} parent=47 // pred_region
          _
        $region64: #{transformer_forward.36} parent=47 // pred_fallthru
          _
      $region48: #{transformer_forward.36} parent=5 // pred_fallthru
        _
      %p755 = scmp.le.s32.totalorder 2, %s15
      // Predicated region
      $region65: #{transformer_forward.36} parent=5 // pred_check
        %p756 = pneg %p755
      $region66: #{transformer_forward.36} parent=5 // pred_check_branch
        %758 = sbr.rel (%p756) target = $region68
      $region67: #{transformer_forward.36} parent=5 // pred_region
        %s759 = ssub.s32 %s15, 2
        // Predicated region
        $region69: #{transformer_forward.36} parent=67 // pred_check
          %p760 = pneg %p206
        $region70: #{transformer_forward.36} parent=67 // pred_check_branch
          %762 = sbr.rel (%p760) target = $region72
        $region71: #{transformer_forward.36} parent=67 // pred_region
          %p763 = scmp.lt.s32.totalorder %s21, 1
          %s764 = scalar_select %p763, %s21, 1
          %s765 = smul.addr %s764, 8
          %s766 = scalar_lea.vmem %s7, %s765
        $region72: #{transformer_forward.36} parent=67 // pred_fallthru
          _
      $region68: #{transformer_forward.36} parent=5 // pred_fallthru
        _
    $region6: #{transformer_forward.36} parent=1 // loop_footer
      %s19 = sadd.s32 1, %s15
    $region7: #{transformer_forward.36} parent=1 // loop_footer_branch
      %14 = sbr.rel target = $region3
    $region8: #{transformer_forward.36} parent=1 // loop_exit
      _
    %767 = vsyncpa [#allocation3], 1
    %s768 = scalar_lea.sflag [#allocation3], 1
    %769 = vsyncpa %s768, 1
    %770 = vsyncpa [#allocation5], 1

// kernel: transformer_forward.39
$region0: #{transformer_forward.39}
  #allocation0 [shape = 'u32[]', space=smem, size = 0x4, offset = 0x4, fixed_abs, tag = 'smem constant byte address 0x4 - core index']
  #allocation1 [shape = 'u32[72,128]{1,0:T(1,128)}', space=vmem, size = 0x9000, scoped, tag = 'internal scratch']
  %s0 = inlined_call_operand.vmem [shape: s32[2,1,8], index: 0, kind: input, shape index: {}]
  %s1 = inlined_call_operand.vmem [shape: bf16[2,8,32], index: 1, kind: input, shape index: {}]
  %s2 = inlined_call_operand.vmem [shape: bf16[2,8,64], index: 2, kind: input, shape index: {}]
  %s3 = inlined_call_operand.vmem [shape: bf16[32,32], index: 3, kind: input, shape index: {}]
  %s4 = inlined_call_operand.hbm [shape: f32[1,32], index: 4, kind: input, shape index: {}]
  %s5 = inlined_call_operand.vmem [shape: f32[2,8,32], index: 5, kind: input, shape index: {}]
  %s6 = inlined_call_operand.hbm [shape: f32[1,32], index: 6, kind: input, shape index: {}]
  %s7 = inlined_call_operand.hbm [shape: f32[1,32], index: 7, kind: input, shape index: {}]
  %s8 = inlined_call_operand.vmem [shape: f32[2,8,32], index: 8, kind: output, shape index: {}]
  %s9 = sld [smem:[#allocation0]]
  $region77: #{transformer_forward.39} parent=0
    _
  %s11 = ssub.s32 1, %s9
  %s12 = scalar_select 0, %s11, %s9
  $region1: #{transformer_forward.39} parent=0
    #allocation2 [shape = 'u8[512]{0}', space=vmem, size = 0x400, scoped, tag = 'input window, operand 4, single buffered']
    #allocation3 [shape = 's32[2]{0}', space=sflag, size = 0x8, scoped, tag = 'scoped memory for transformer_forward.39']
    #allocation4 [shape = 'u8[512]{0}', space=vmem, size = 0x400, scoped, tag = 'input window, operand 6, single buffered']
    #allocation5 [shape = 's32[1]{0}', space=sflag, size = 0x4, scoped, tag = 'scoped memory for transformer_forward.39']
    #allocation6 [shape = 'u8[512]{0}', space=vmem, size = 0x400, scoped, tag = 'input window, operand 7, single buffered']
    %13 = vsyncpa [#allocation3], 0
    %14 = vsyncpa [#allocation5], 0
    loop: start=0, step=1, limit=4
    $region2: #{transformer_forward.39} parent=1 // loop_pre_header
      _
    $region3: #{transformer_forward.39} parent=1 // loop_header
      %s16 = sphi 0, %s20
      %p17 = scmp.ge.s32.totalorder %s16, 4
      %s26 = sphi 0, %s28
      %s29 = sphi 0, %s26
      %s30 = sphi 0, %s29
      %s46 = sphi 0, %s30
      %s52 = sphi 0, %s54
      %s55 = sphi 0, %s52
      %s56 = sphi 0, %s55
      %s72 = sphi 0, %s56
      %s78 = sphi 0, %s80
      %s81 = sphi 0, %s78
      %s82 = sphi 0, %s81
      %s98 = sphi 0, %s82
      %s102 = sphi 0, %s102
      %s104 = sphi 0, %s102
      %s105 = sphi 0, %s104
      %s119 = sphi 0, %s105
      %s123 = sphi 0, %s123
      %s125 = sphi 0, %s123
      %s126 = sphi 0, %s125
      %s140 = sphi 0, %s126
      %s146 = sphi 0, %s148
      %s149 = sphi 0, %s146
      %s150 = sphi 0, %s149
      %s166 = sphi 0, %s150
      %s170 = sphi 0, %s170
      %s172 = sphi 0, %s170
      %s173 = sphi 0, %s172
      %s187 = sphi 0, %s173
      %s191 = sphi 0, %s191
      %s193 = sphi 0, %s191
      %s194 = sphi 0, %s193
      %s208 = sphi 0, %s194
      %s214 = sphi 0, %s216
      %s217 = sphi 0, %s214
      %s218 = sphi 0, %s217
      %s234 = sphi 0, %s218
    $region4: #{transformer_forward.39} parent=1 // loop_header_branch
      %19 = sbr.rel (%p17) target = $region8
    $region5: #{transformer_forward.39} parent=1 // loop_body
      %s21 = ssub.s32 %s16, 1
      %s22 = ssub.s32 %s16, 2
      %s23 = sadd.s32 %s16, 1
      %s24 = ssub.s32 %s16, %s23
      %p25 = scmp.eq.s32.totalorder %s24, 0
      %s27 = sadd.s32 %s26, 1
      %s28 = scalar_select %p25, %s26, %s27
      %p31 = pneg %p25
      %p32 = scmp.eq.s32.totalorder %s16, 1
      %p33 = por %p31, %p32
      %p34 = scmp.ne.s32.totalorder %s26, %s29
      %p35 = scmp.eq.s32.totalorder %s16, 0
      %p36 = por %p34, %p35
      %p37 = scmp.ne.s32.totalorder %s26, %s29
      %p38 = scmp.eq.s32.totalorder %s21, 1
      %p39 = por %p37, %p38
      %p40 = scmp.ne.s32.totalorder %s29, %s30
      %p41 = scmp.eq.s32.totalorder %s21, 0
      %p42 = por %p40, %p41
      %p43 = scmp.ne.s32.totalorder %s29, %s30
      %p44 = scmp.eq.s32.totalorder %s22, 1
      %p45 = por %p43, %p44
      %p47 = scmp.ne.s32.totalorder %s30, %s46
      %p48 = scmp.eq.s32.totalorder %s22, 0
      %p49 = por %p47, %p48
      %s50 = ssub.s32 %s16, %s23
      %p51 = scmp.eq.s32.totalorder %s50, 0
      %s53 = sadd.s32 %s52, 1
      %s54 = scalar_select %p51, %s52, %s53
      %p57 = pneg %p51
      %p58 = scmp.eq.s32.totalorder %s16, 1
      %p59 = por %p57, %p58
      %p60 = scmp.ne.s32.totalorder %s52, %s55
      %p61 = scmp.eq.s32.totalorder %s16, 0
      %p62 = por %p60, %p61
      %p63 = scmp.ne.s32.totalorder %s52, %s55
      %p64 = scmp.eq.s32.totalorder %s21, 1
      %p65 = por %p63, %p64
      %p66 = scmp.ne.s32.totalorder %s55, %s56
      %p67 = scmp.eq.s32.totalorder %s21, 0
      %p68 = por %p66, %p67
      %p69 = scmp.ne.s32.totalorder %s55, %s56
      %p70 = scmp.eq.s32.totalorder %s22, 1
      %p71 = por %p69, %p70
      %p73 = scmp.ne.s32.totalorder %s56, %s72
      %p74 = scmp.eq.s32.totalorder %s22, 0
      %p75 = por %p73, %p74
      %s76 = ssub.s32 %s16, %s23
      %p77 = scmp.eq.s32.totalorder %s76, 0
      %s79 = sadd.s32 %s78, 1
      %s80 = scalar_select %p77, %s78, %s79
      %p83 = pneg %p77
      %p84 = scmp.eq.s32.totalorder %s16, 1
      %p85 = por %p83, %p84
      %p86 = scmp.ne.s32.totalorder %s78, %s81
      %p87 = scmp.eq.s32.totalorder %s16, 0
      %p88 = por %p86, %p87
      %p89 = scmp.ne.s32.totalorder %s78, %s81
      %p90 = scmp.eq.s32.totalorder %s21, 1
      %p91 = por %p89, %p90
      %p92 = scmp.ne.s32.totalorder %s81, %s82
      %p93 = scmp.eq.s32.totalorder %s21, 0
      %p94 = por %p92, %p93
      %p95 = scmp.ne.s32.totalorder %s81, %s82
      %p96 = scmp.eq.s32.totalorder %s22, 1
      %p97 = por %p95, %p96
      %p99 = scmp.ne.s32.totalorder %s82, %s98
      %p100 = scmp.eq.s32.totalorder %s22, 0
      %p101 = por %p99, %p100
      %s103 = sadd.s32 %s102, 1
      %p106 = scmp.eq.s32.totalorder %s16, 1
      %p107 = scmp.ne.s32.totalorder %s102, %s104
      %p108 = scmp.eq.s32.totalorder %s16, 0
      %p109 = por %p107, %p108
      %p110 = scmp.ne.s32.totalorder %s102, %s104
      %p111 = scmp.eq.s32.totalorder %s21, 1
      %p112 = por %p110, %p111
      %p113 = scmp.ne.s32.totalorder %s104, %s105
      %p114 = scmp.eq.s32.totalorder %s21, 0
      %p115 = por %p113, %p114
      %p116 = scmp.ne.s32.totalorder %s104, %s105
      %p117 = scmp.eq.s32.totalorder %s22, 1
      %p118 = por %p116, %p117
      %p120 = scmp.ne.s32.totalorder %s105, %s119
      %p121 = scmp.eq.s32.totalorder %s22, 0
      %p122 = por %p120, %p121
      %s124 = sadd.s32 %s123, 1
      %p127 = scmp.eq.s32.totalorder %s16, 1
      %p128 = scmp.ne.s32.totalorder %s123, %s125
      %p129 = scmp.eq.s32.totalorder %s16, 0
      %p130 = por %p128, %p129
      %p131 = scmp.ne.s32.totalorder %s123, %s125
      %p132 = scmp.eq.s32.totalorder %s21, 1
      %p133 = por %p131, %p132
      %p134 = scmp.ne.s32.totalorder %s125, %s126
      %p135 = scmp.eq.s32.totalorder %s21, 0
      %p136 = por %p134, %p135
      %p137 = scmp.ne.s32.totalorder %s125, %s126
      %p138 = scmp.eq.s32.totalorder %s22, 1
      %p139 = por %p137, %p138
      %p141 = scmp.ne.s32.totalorder %s126, %s140
      %p142 = scmp.eq.s32.totalorder %s22, 0
      %p143 = por %p141, %p142
      %s144 = ssub.s32 %s16, %s23
      %p145 = scmp.eq.s32.totalorder %s144, 0
      %s147 = sadd.s32 %s146, 1
      %s148 = scalar_select %p145, %s146, %s147
      %p151 = pneg %p145
      %p152 = scmp.eq.s32.totalorder %s16, 1
      %p153 = por %p151, %p152
      %p154 = scmp.ne.s32.totalorder %s146, %s149
      %p155 = scmp.eq.s32.totalorder %s16, 0
      %p156 = por %p154, %p155
      %p157 = scmp.ne.s32.totalorder %s146, %s149
      %p158 = scmp.eq.s32.totalorder %s21, 1
      %p159 = por %p157, %p158
      %p160 = scmp.ne.s32.totalorder %s149, %s150
      %p161 = scmp.eq.s32.totalorder %s21, 0
      %p162 = por %p160, %p161
      %p163 = scmp.ne.s32.totalorder %s149, %s150
      %p164 = scmp.eq.s32.totalorder %s22, 1
      %p165 = por %p163, %p164
      %p167 = scmp.ne.s32.totalorder %s150, %s166
      %p168 = scmp.eq.s32.totalorder %s22, 0
      %p169 = por %p167, %p168
      %s171 = sadd.s32 %s170, 1
      %p174 = scmp.eq.s32.totalorder %s16, 1
      %p175 = scmp.ne.s32.totalorder %s170, %s172
      %p176 = scmp.eq.s32.totalorder %s16, 0
      %p177 = por %p175, %p176
      %p178 = scmp.ne.s32.totalorder %s170, %s172
      %p179 = scmp.eq.s32.totalorder %s21, 1
      %p180 = por %p178, %p179
      %p181 = scmp.ne.s32.totalorder %s172, %s173
      %p182 = scmp.eq.s32.totalorder %s21, 0
      %p183 = por %p181, %p182
      %p184 = scmp.ne.s32.totalorder %s172, %s173
      %p185 = scmp.eq.s32.totalorder %s22, 1
      %p186 = por %p184, %p185
      %p188 = scmp.ne.s32.totalorder %s173, %s187
      %p189 = scmp.eq.s32.totalorder %s22, 0
      %p190 = por %p188, %p189
      %s192 = sadd.s32 %s191, 1
      %p195 = scmp.eq.s32.totalorder %s16, 1
      %p196 = scmp.ne.s32.totalorder %s191, %s193
      %p197 = scmp.eq.s32.totalorder %s16, 0
      %p198 = por %p196, %p197
      %p199 = scmp.ne.s32.totalorder %s191, %s193
      %p200 = scmp.eq.s32.totalorder %s21, 1
      %p201 = por %p199, %p200
      %p202 = scmp.ne.s32.totalorder %s193, %s194
      %p203 = scmp.eq.s32.totalorder %s21, 0
      %p204 = por %p202, %p203
      %p205 = scmp.ne.s32.totalorder %s193, %s194
      %p206 = scmp.eq.s32.totalorder %s22, 1
      %p207 = por %p205, %p206
      %p209 = scmp.ne.s32.totalorder %s194, %s208
      %p210 = scmp.eq.s32.totalorder %s22, 0
      %p211 = por %p209, %p210
      %s212 = ssub.s32 %s16, %s23
      %p213 = scmp.eq.s32.totalorder %s212, 0
      %s215 = sadd.s32 %s214, 1
      %s216 = scalar_select %p213, %s214, %s215
      %p219 = pneg %p213
      %p220 = scmp.eq.s32.totalorder %s16, 1
      %p221 = por %p219, %p220
      %p222 = scmp.ne.s32.totalorder %s214, %s217
      %p223 = scmp.eq.s32.totalorder %s16, 0
      %p224 = por %p222, %p223
      %p225 = scmp.ne.s32.totalorder %s214, %s217
      %p226 = scmp.eq.s32.totalorder %s21, 1
      %p227 = por %p225, %p226
      %p228 = scmp.ne.s32.totalorder %s217, %s218
      %p229 = scmp.eq.s32.totalorder %s21, 0
      %p230 = por %p228, %p229
      %p231 = scmp.ne.s32.totalorder %s217, %s218
      %p232 = scmp.eq.s32.totalorder %s22, 1
      %p233 = por %p231, %p232
      %p235 = scmp.ne.s32.totalorder %s218, %s234
      %p236 = scmp.eq.s32.totalorder %s22, 0
      %p237 = por %p235, %p236
      %p238 = scmp.le.s32.totalorder 1, %s16
      %p239 = scmp.lt.s32.totalorder %s16, 3
      %p240 = pnand %p238, %p239
      %p241 = pneg %p240
      // Predicated region
      $region9: #{transformer_forward.39} parent=5 // pred_check
        _
      $region10: #{transformer_forward.39} parent=5 // pred_check_branch
        %243 = sbr.rel (%p240) target = $region12
      $region11: #{transformer_forward.39} parent=5 // pred_region
        %s244 = ssub.s32 %s16, 1
        // Predicated region
        $region13: #{transformer_forward.39} parent=11 // pred_check
          %p245 = pneg %p115
        $region14: #{transformer_forward.39} parent=11 // pred_check_branch
          %247 = sbr.rel (%p245) target = $region16
        $region15: #{transformer_forward.39} parent=11 // pred_region
          _
        $region16: #{transformer_forward.39} parent=11 // pred_fallthru
          _
        // Predicated region
        $region17: #{transformer_forward.39} parent=11 // pred_check
          %p248 = pneg %p136
        $region18: #{transformer_forward.39} parent=11 // pred_check_branch
          %250 = sbr.rel (%p248) target = $region20
        $region19: #{transformer_forward.39} parent=11 // pred_region
          %252 = vsyncadd [#allocation3], 0
          %s254 = sshll.u32 %s4, 4
          %s255 = int_to_ptr.hbm [resolvable:$true] %s254
          %s256 = sshll.u32 [#allocation2], 4
          %s257 = int_to_ptr.vmem [resolvable:$true] %s256
          %259 = dma.hbm_to_vmem [thread:$0]  %s255, 16, %s257, [#allocation3]
        $region20: #{transformer_forward.39} parent=11 // pred_fallthru
          _
        // Predicated region
        $region21: #{transformer_forward.39} parent=11 // pred_check
          %p260 = pneg %p183
        $region22: #{transformer_forward.39} parent=11 // pred_check_branch
          %262 = sbr.rel (%p260) target = $region24
        $region23: #{transformer_forward.39} parent=11 // pred_region
          %264 = vsyncadd [#allocation5], 0
          %s266 = sshll.u32 %s6, 4
          %s267 = int_to_ptr.hbm [resolvable:$true] %s266
          %s268 = sshll.u32 [#allocation4], 4
          %s269 = int_to_ptr.vmem [resolvable:$true] %s268
          %271 = dma.hbm_to_vmem [thread:$0]  %s267, 16, %s269, [#allocation5]
        $region24: #{transformer_forward.39} parent=11 // pred_fallthru
          _
        // Predicated region
        $region25: #{transformer_forward.39} parent=11 // pred_check
          %p272 = pneg %p204
        $region26: #{transformer_forward.39} parent=11 // pred_check_branch
          %274 = sbr.rel (%p272) target = $region28
        $region27: #{transformer_forward.39} parent=11 // pred_region
          %276 = vsyncadd [#allocation5], 0
          %s278 = sshll.u32 %s7, 4
          %s279 = int_to_ptr.hbm [resolvable:$true] %s278
          %s280 = sshll.u32 [#allocation6], 4
          %s281 = int_to_ptr.vmem [resolvable:$true] %s280
          %283 = dma.hbm_to_vmem [thread:$0]  %s279, 16, %s281, [#allocation5]
        $region28: #{transformer_forward.39} parent=11 // pred_fallthru
          _
      $region12: #{transformer_forward.39} parent=5 // pred_fallthru
        _
      %p284 = scmp.lt.s32.totalorder %s16, 2
      // Predicated region
      $region29: #{transformer_forward.39} parent=5 // pred_check
        %p285 = pneg %p284
      $region30: #{transformer_forward.39} parent=5 // pred_check_branch
        %287 = sbr.rel (%p285) target = $region32
      $region31: #{transformer_forward.39} parent=5 // pred_region
        // Predicated region
        $region33: #{transformer_forward.39} parent=31 // pred_check
          %p288 = pneg %p36
        $region34: #{transformer_forward.39} parent=31 // pred_check_branch
          %290 = sbr.rel (%p288) target = $region36
        $region35: #{transformer_forward.39} parent=31 // pred_region
          %p291 = scmp.lt.s32.totalorder %s16, 1
          %s292 = scalar_select %p291, %s16, 1
          %s293 = scalar_lea.vmem %s0, %s292
        $region36: #{transformer_forward.39} parent=31 // pred_fallthru
          _
        // Predicated region
        $region37: #{transformer_forward.39} parent=31 // pred_check
          %p294 = pneg %p62
        $region38: #{transformer_forward.39} parent=31 // pred_check_branch
          %296 = sbr.rel (%p294) target = $region40
        $region39: #{transformer_forward.39} parent=31 // pred_region
          %p297 = scmp.lt.s32.totalorder %s16, 1
          %s298 = scalar_select %p297, %s16, 1
          %s299 = smul.addr %s298, 4
          %s300 = scalar_lea.vmem %s1, %s299
        $region40: #{transformer_forward.39} parent=31 // pred_fallthru
          _
        // Predicated region
        $region41: #{transformer_forward.39} parent=31 // pred_check
          %p301 = pneg %p88
        $region42: #{transformer_forward.39} parent=31 // pred_check_branch
          %303 = sbr.rel (%p301) target = $region44
        $region43: #{transformer_forward.39} parent=31 // pred_region
          %p304 = scmp.lt.s32.totalorder %s16, 1
          %s305 = scalar_select %p304, %s16, 1
          %s306 = smul.addr %s305, 4
          %s307 = scalar_lea.vmem %s2, %s306
        $region44: #{transformer_forward.39} parent=31 // pred_fallthru
          _
        // Predicated region
        $region45: #{transformer_forward.39} parent=31 // pred_check
          %p308 = pneg %p156
        $region46: #{transformer_forward.39} parent=31 // pred_check_branch
          %310 = sbr.rel (%p308) target = $region48
        $region47: #{transformer_forward.39} parent=31 // pred_region
          %p311 = scmp.lt.s32.totalorder %s16, 1
          %s312 = scalar_select %p311, %s16, 1
          %s313 = smul.addr %s312, 8
          %s314 = scalar_lea.vmem %s5, %s313
        $region48: #{transformer_forward.39} parent=31 // pred_fallthru
          _
      $region32: #{transformer_forward.39} parent=5 // pred_fallthru
        _
      %p315 = scmp.le.s32.totalorder 1, %s16
      %p316 = scmp.lt.s32.totalorder %s16, 3
      %p317 = pnand %p315, %p316
      %p318 = pneg %p317
      // Predicated region
      $region49: #{transformer_forward.39} parent=5 // pred_check
        _
      $region50: #{transformer_forward.39} parent=5 // pred_check_branch
        %320 = sbr.rel (%p317) target = $region52
      $region51: #{transformer_forward.39} parent=5 // pred_region
        %s321 = ssub.s32 %s16, 1
        // Predicated region
        $region53: #{transformer_forward.39} parent=51 // pred_check
          %p322 = pneg %p136
        $region54: #{transformer_forward.39} parent=51 // pred_check_branch
          %324 = sbr.rel (%p322) target = $region56
        $region55: #{transformer_forward.39} parent=51 // pred_region
          %326 = dma.done [#allocation3], 16
        $region56: #{transformer_forward.39} parent=51 // pred_fallthru
          _
        // Predicated region
        $region57: #{transformer_forward.39} parent=51 // pred_check
          %p327 = pneg %p183
        $region58: #{transformer_forward.39} parent=51 // pred_check_branch
          %329 = sbr.rel (%p327) target = $region60
        $region59: #{transformer_forward.39} parent=51 // pred_region
          %331 = dma.done [#allocation5], 16
        $region60: #{transformer_forward.39} parent=51 // pred_fallthru
          _
        // Predicated region
        $region61: #{transformer_forward.39} parent=51 // pred_check
          %p332 = pneg %p204
        $region62: #{transformer_forward.39} parent=51 // pred_check_branch
          %334 = sbr.rel (%p332) target = $region64
        $region63: #{transformer_forward.39} parent=51 // pred_region
          %336 = dma.done [#allocation5], 16
        $region64: #{transformer_forward.39} parent=51 // pred_fallthru
          _
        %p337 = scmp.lt.s32.totalorder %s21, 1
        %s338 = scalar_select %p337, %s21, 1
        %s339 = scalar_lea.vmem %s0, %s338
        %p340 = pneg %p42
        %p341 = pneg %p39
        %p342 = scmp.lt.s32.totalorder %s21, 1
        %s343 = scalar_select %p342, %s21, 1
        %s344 = smul.addr %s343, 4
        %s345 = scalar_lea.vmem %s1, %s344
        %p346 = pneg %p68
        %p347 = pneg %p65
        %p348 = scmp.lt.s32.totalorder %s21, 1
        %s349 = scalar_select %p348, %s21, 1
        %s350 = smul.addr %s349, 4
        %s351 = scalar_lea.vmem %s2, %s350
        %p352 = pneg %p94
        %p353 = pneg %p91
        %p354 = pneg %p115
        %p355 = pneg %p112
        %p356 = pneg %p136
        %p357 = pneg %p133
        %p358 = scmp.lt.s32.totalorder %s21, 1
        %s359 = scalar_select %p358, %s21, 1
        %s360 = smul.addr %s359, 8
        %s361 = scalar_lea.vmem %s5, %s360
        %p362 = pneg %p162
        %p363 = pneg %p159
        %p364 = pneg %p183
        %p365 = pneg %p180
        %p366 = pneg %p204
        %p367 = pneg %p201
        %p368 = pneg %p230
        %p369 = pneg %p227
        %p370 = scmp.lt.s32.totalorder %s21, 1
        %s371 = scalar_select %p370, %s21, 1
        %s372 = smul.addr %s371, 8
        %s373 = scalar_lea.vmem %s8, %s372
        %p374 = scmp.lt.s32.totalorder %s21, 1
        %s375 = scalar_select %p374, %s21, 1
        %s376 = scalar_lea.vmem %s0, %s375
        %p377 = scmp.lt.s32.totalorder %s21, 1
        %s378 = scalar_select %p377, %s21, 1
        %s379 = smul.addr %s378, 4
        %s380 = scalar_lea.vmem %s1, %s379
        %p381 = scmp.lt.s32.totalorder %s21, 1
        %s382 = scalar_select %p381, %s21, 1
        %s383 = smul.addr %s382, 4
        %s384 = scalar_lea.vmem %s2, %s383
        %p385 = scmp.lt.s32.totalorder %s21, 1
        %s386 = scalar_select %p385, %s21, 1
        %s387 = smul.addr %s386, 8
        %s388 = scalar_lea.vmem %s5, %s387
        %p389 = scmp.lt.s32.totalorder %s21, 1
        %s390 = scalar_select %p389, %s21, 1
        %s391 = smul.addr %s390, 8
        %s392 = scalar_lea.vmem %s8, %s391
        %v394 = vld [vmem:[%s384] sm:$0xf]
        %v395 = vld [vmem:[%s376] sm:$0x1]
        %vm396 = vcmp.ne.s32.totalorder %v395, 0
        %v397 = vsel %vm396, -1e+09, 0.0
        %v398 = vld [vmem:[%s380] sm:$0xf]
        %vm399 = vcmask 64512
        %v401 = vsel %vm399, %v398, 0
        %v404 = vsel %vm399, %v394, 0
        %406 = vmatpush.bf16.xpose.msra.mxu0 0
        %407 = vmatpush.bf16.xpose.msra.mxu0 0
        %408 = vmatpush.bf16.xpose.msra.mxu0 0
        %409 = vmatpush.bf16.xpose.msra.mxu0 0
        %410 = vmatpush.bf16.xpose.msra.mxu0 0
        %411 = vmatpush.bf16.xpose.msra.mxu0 0
        %412 = vmatpush.bf16.xpose.msra.mxu0 0
        %413 = vmatpush.bf16.xpose.msra.mxu0 %v404
        %414 = vmatmul.bf16.gmra.mxu0 %v401
        %v415 = vpop.f32.mrf.mxu0
        %v416 = vadd.f32 0.0, %v415
        %v417 = vpop.f32.mrf.mxu0
        %418 = vdwg.mxu0
        %v419 = vmul.f32 %v416, 0.35355338
        %v421 = vperm.slane %v397, 0
        %v423 = vadd.f32 %v419, %v421
        %v424 = vsel %vm399, %v423, -inf
        %425 = vmax.xlane.f32.xlu0 %v424
        %v426 = vpop.xlane.xlu0 %425
        %v427 = vsub.f32 %v423, %v426
        %v428 = vmul.f32 %v427, 1.442695
        %v429 = vpow.pop %v428
        %v430 = vsel %vm399, %v429, 0.0
        %431 = vadd.xlane.f32.xlu0 %v430
        %v432 = vpop.xlane.xlu0 %431
        %v433 = vrcp.pop %v432
        %v434 = vmul.f32 %v432, %v433
        %v435 = vsub.f32 1.0, %v434
        %v436 = vmul.f32 %v433, %v435
        %v437 = vadd.f32 %v433, %v436
        %vm438 = vweird.f32 %v432
        %vm439 = vweird.f32 %v433
        %vm440 = vmor %vm438, %vm439
        %v441 = vsel %vm440, %v433, %v437
        %v442 = vand.u32 2147483647, %v432
        %vm443 = vcmp.eq.f32.partialorder %v442, 8.507059e+37
        %v444 = vand.u32 %v432, 2147483648
        %v445 = vor.u32 1.1754944e-38, %v444
        %v446 = vsel %vm443, %v445, %v441
        %v447 = vmul.f32 %v429, %v446
        %v448 = vpack.c.bf16 %v447, %v447
        %v450 = vunpack.c.l.b16 %v394
        %v451 = vpack.c.b16 %v450, %v450
        %452 = vrot.lane.b32.xlu0 %v451, 96
        %v453 = vpop.permute.xlu0 %452
        %v455 = vsel %vm399, %v448, 0
        %vm457 = vcmask 1043456
        %v459 = vsel %vm457, %v453, 0
        %461 = vmatpush.bf16.msra.mxu0 0
        %462 = vmatpush.bf16.msra.mxu0 0
        %463 = vmatpush.bf16.msra.mxu0 0
        %464 = vmatpush.bf16.msra.mxu0 0
        %465 = vmatpush.bf16.msra.mxu0 0
        %466 = vmatpush.bf16.msra.mxu0 0
        %467 = vmatpush.bf16.msra.mxu0 0
        %468 = vmatpush.bf16.msra.mxu0 %v459
        %469 = vmatmul.bf16.gmra.mxu0 %v455
        %v470 = vpop.f32.mrf.mxu0
        %v471 = vadd.f32 0.0, %v470
        %v472 = vpop.f32.mrf.mxu0
        %473 = vdwg.mxu0
        %v475 = vunpack.c.l.b16 %v398
        %v476 = vpack.c.b16 %v475, %v475
        %477 = vrot.lane.b32.xlu0 %v476, 120
        %v478 = vpop.permute.xlu0 %477
        %479 = vrot.lane.b32.xlu0 %v451, 120
        %v480 = vpop.permute.xlu0 %479
        %v482 = vsel %vm399, %v478, 0
        %v485 = vsel %vm399, %v480, 0
        %487 = vmatpush.bf16.xpose.msra.mxu0 0
        %488 = vmatpush.bf16.xpose.msra.mxu0 0
        %489 = vmatpush.bf16.xpose.msra.mxu0 0
        %490 = vmatpush.bf16.xpose.msra.mxu0 0
        %491 = vmatpush.bf16.xpose.msra.mxu0 0
        %492 = vmatpush.bf16.xpose.msra.mxu0 0
        %493 = vmatpush.bf16.xpose.msra.mxu0 0
        %494 = vmatpush.bf16.xpose.msra.mxu0 %v485
        %495 = vmatmul.bf16.gmra.mxu0 %v482
        %v496 = vpop.f32.mrf.mxu0
        %v497 = vadd.f32 0.0, %v496
        %v498 = vpop.f32.mrf.mxu0
        %499 = vdwg.mxu0
        %v500 = vmul.f32 %v497, 0.35355338
        %v501 = vadd.f32 %v500, %v421
        %v502 = vsel %vm399, %v501, -inf
        %503 = vmax.xlane.f32.xlu0 %v502
        %v504 = vpop.xlane.xlu0 %503
        %v505 = vsub.f32 %v501, %v504
        %v506 = vmul.f32 %v505, 1.442695
        %v507 = vpow.pop %v506
        %v508 = vsel %vm399, %v507, 0.0
        %509 = vadd.xlane.f32.xlu0 %v508
        %v510 = vpop.xlane.xlu0 %509
        %v511 = vrcp.pop %v510
        %v512 = vmul.f32 %v510, %v511
        %v513 = vsub.f32 1.0, %v512
        %v514 = vmul.f32 %v511, %v513
        %v515 = vadd.f32 %v511, %v514
        %vm516 = vweird.f32 %v510
        %vm517 = vweird.f32 %v511
        %vm518 = vmor %vm516, %vm517
        %v519 = vsel %vm518, %v511, %v515
        %v520 = vand.u32 2147483647, %v510
        %vm521 = vcmp.eq.f32.partialorder %v520, 8.507059e+37
        %v522 = vand.u32 %v510, 2147483648
        %v523 = vor.u32 1.1754944e-38, %v522
        %v524 = vsel %vm521, %v523, %v519
        %v525 = vmul.f32 %v507, %v524
        %v526 = vpack.c.bf16 %v525, %v525
        %527 = vrot.lane.b32.xlu0 %v451, 88
        %v528 = vpop.permute.xlu0 %527
        %v530 = vsel %vm399, %v526, 0
        %v533 = vsel %vm457, %v528, 0
        %535 = vmatpush.bf16.msra.mxu0 0
        %536 = vmatpush.bf16.msra.mxu0 0
        %537 = vmatpush.bf16.msra.mxu0 0
        %538 = vmatpush.bf16.msra.mxu0 0
        %539 = vmatpush.bf16.msra.mxu0 0
        %540 = vmatpush.bf16.msra.mxu0 0
        %541 = vmatpush.bf16.msra.mxu0 0
        %542 = vmatpush.bf16.msra.mxu0 %v533
        %543 = vmatmul.bf16.gmra.mxu0 %v530
        %v544 = vpop.f32.mrf.mxu0
        %v545 = vadd.f32 0.0, %v544
        %v546 = vpop.f32.mrf.mxu0
        %547 = vdwg.mxu0
        %548 = vrot.lane.b32.xlu0 %v476, 112
        %v549 = vpop.permute.xlu0 %548
        %550 = vrot.lane.b32.xlu0 %v451, 112
        %v551 = vpop.permute.xlu0 %550
        %v553 = vsel %vm399, %v549, 0
        %v556 = vsel %vm399, %v551, 0
        %558 = vmatpush.bf16.xpose.msra.mxu0 0
        %559 = vmatpush.bf16.xpose.msra.mxu0 0
        %560 = vmatpush.bf16.xpose.msra.mxu0 0
        %561 = vmatpush.bf16.xpose.msra.mxu0 0
        %562 = vmatpush.bf16.xpose.msra.mxu0 0
        %563 = vmatpush.bf16.xpose.msra.mxu0 0
        %564 = vmatpush.bf16.xpose.msra.mxu0 0
        %565 = vmatpush.bf16.xpose.msra.mxu0 %v556
        %566 = vmatmul.bf16.gmra.mxu0 %v553
        %v567 = vpop.f32.mrf.mxu0
        %v568 = vadd.f32 0.0, %v567
        %v569 = vpop.f32.mrf.mxu0
        %570 = vdwg.mxu0
        %v571 = vmul.f32 %v568, 0.35355338
        %v572 = vadd.f32 %v571, %v421
        %v573 = vsel %vm399, %v572, -inf
        %574 = vmax.xlane.f32.xlu0 %v573
        %v575 = vpop.xlane.xlu0 %574
        %v576 = vsub.f32 %v572, %v575
        %v577 = vmul.f32 %v576, 1.442695
        %v578 = vpow.pop %v577
        %v579 = vsel %vm399, %v578, 0.0
        %580 = vadd.xlane.f32.xlu0 %v579
        %v581 = vpop.xlane.xlu0 %580
        %v582 = vrcp.pop %v581
        %v583 = vmul.f32 %v581, %v582
        %v584 = vsub.f32 1.0, %v583
        %v585 = vmul.f32 %v582, %v584
        %v586 = vadd.f32 %v582, %v585
        %vm587 = vweird.f32 %v581
        %vm588 = vweird.f32 %v582
        %vm589 = vmor %vm587, %vm588
        %v590 = vsel %vm589, %v582, %v586
        %v591 = vand.u32 2147483647, %v581
        %vm592 = vcmp.eq.f32.partialorder %v591, 8.507059e+37
        %v593 = vand.u32 %v581, 2147483648
        %v594 = vor.u32 1.1754944e-38, %v593
        %v595 = vsel %vm592, %v594, %v590
        %v596 = vmul.f32 %v578, %v595
        %v597 = vpack.c.bf16 %v596, %v596
        %598 = vrot.lane.b32.xlu0 %v451, 80
        %v599 = vpop.permute.xlu0 %598
        %v601 = vsel %vm399, %v597, 0
        %v604 = vsel %vm457, %v599, 0
        %606 = vmatpush.bf16.msra.mxu0 0
        %607 = vmatpush.bf16.msra.mxu0 0
        %608 = vmatpush.bf16.msra.mxu0 0
        %609 = vmatpush.bf16.msra.mxu0 0
        %610 = vmatpush.bf16.msra.mxu0 0
        %611 = vmatpush.bf16.msra.mxu0 0
        %612 = vmatpush.bf16.msra.mxu0 0
        %613 = vmatpush.bf16.msra.mxu0 %v604
        %614 = vmatmul.bf16.gmra.mxu0 %v601
        %v615 = vpop.f32.mrf.mxu0
        %v616 = vadd.f32 0.0, %v615
        %v617 = vpop.f32.mrf.mxu0
        %618 = vdwg.mxu0
        %619 = vrot.lane.b32.xlu0 %v476, 104
        %v620 = vpop.permute.xlu0 %619
        %621 = vrot.lane.b32.xlu0 %v451, 104
        %v622 = vpop.permute.xlu0 %621
        %v624 = vsel %vm399, %v620, 0
        %v627 = vsel %vm399, %v622, 0
        %629 = vmatpush.bf16.xpose.msra.mxu0 0
        %630 = vmatpush.bf16.xpose.msra.mxu0 0
        %631 = vmatpush.bf16.xpose.msra.mxu0 0
        %632 = vmatpush.bf16.xpose.msra.mxu0 0
        %633 = vmatpush.bf16.xpose.msra.mxu0 0
        %634 = vmatpush.bf16.xpose.msra.mxu0 0
        %635 = vmatpush.bf16.xpose.msra.mxu0 0
        %636 = vmatpush.bf16.xpose.msra.mxu0 %v627
        %637 = vmatmul.bf16.gmra.mxu0 %v624
        %v638 = vpop.f32.mrf.mxu0
        %v639 = vadd.f32 0.0, %v638
        %v640 = vpop.f32.mrf.mxu0
        %641 = vdwg.mxu0
        %v642 = vmul.f32 %v639, 0.35355338
        %v643 = vadd.f32 %v642, %v421
        %v644 = vsel %vm399, %v643, -inf
        %645 = vmax.xlane.f32.xlu0 %v644
        %v646 = vpop.xlane.xlu0 %645
        %v647 = vsub.f32 %v643, %v646
        %v648 = vmul.f32 %v647, 1.442695
        %v649 = vpow.pop %v648
        %v650 = vsel %vm399, %v649, 0.0
        %651 = vadd.xlane.f32.xlu0 %v650
        %v652 = vpop.xlane.xlu0 %651
        %v653 = vrcp.pop %v652
        %v654 = vmul.f32 %v652, %v653
        %v655 = vsub.f32 1.0, %v654
        %v656 = vmul.f32 %v653, %v655
        %v657 = vadd.f32 %v653, %v656
        %vm658 = vweird.f32 %v652
        %vm659 = vweird.f32 %v653
        %vm660 = vmor %vm658, %vm659
        %v661 = vsel %vm660, %v653, %v657
        %v662 = vand.u32 2147483647, %v652
        %vm663 = vcmp.eq.f32.partialorder %v662, 8.507059e+37
        %v664 = vand.u32 %v652, 2147483648
        %v665 = vor.u32 1.1754944e-38, %v664
        %v666 = vsel %vm663, %v665, %v661
        %v667 = vmul.f32 %v649, %v666
        %v668 = vpack.c.bf16 %v667, %v667
        %669 = vrot.lane.b32.xlu0 %v451, 72
        %v670 = vpop.permute.xlu0 %669
        %v672 = vsel %vm399, %v668, 0
        %v675 = vsel %vm457, %v670, 0
        %677 = vmatpush.bf16.msra.mxu0 0
        %678 = vmatpush.bf16.msra.mxu0 0
        %679 = vmatpush.bf16.msra.mxu0 0
        %680 = vmatpush.bf16.msra.mxu0 0
        %681 = vmatpush.bf16.msra.mxu0 0
        %682 = vmatpush.bf16.msra.mxu0 0
        %683 = vmatpush.bf16.msra.mxu0 0
        %684 = vmatpush.bf16.msra.mxu0 %v675
        %685 = vmatmul.bf16.gmra.mxu0 %v672
        %v686 = vpop.f32.mrf.mxu0
        %v687 = vadd.f32 0.0, %v686
        %v688 = vpop.f32.mrf.mxu0
        %689 = vdwg.mxu0
        %691 = vrot.lane.b32.xlu0 %v545, 8
        %v692 = vpop.permute.xlu0 %691
        %695 = vrot.lane.b32.xlu0 %v616, 16
        %v696 = vpop.permute.xlu0 %695
        %699 = vrot.lane.b32.xlu0 %v687, 24
        %v700 = vpop.permute.xlu0 %699
        %v702 = vsel %vm399, %v471, %v692
        %vm703 = vcmask 130048
        %v704 = vsel %vm703, %v702, %v696
        %vm705 = vcmask 195584
        %v706 = vsel %vm705, %v704, %v700
        %v707 = vpack.c.bf16 %v706, %v706
        %v708 = vld [vmem:[%s3] sm:$0xf]
        %v709 = vld [vmem:[%s3 + $0x4] sm:$0xf]
        %v710 = vld [vmem:[%s3 + $0x8] sm:$0xf]
        %v711 = vld [vmem:[%s3 + $0xc] sm:$0xf]
        %v712 = vld [vmem:[#allocation2] sm:$0x1]
        %v714 = vperm.slane %v712, 0
        %v720 = vunpack.c.l.b16 %v708
        %v721 = vunpack.c.l.b16 %v709
        %v722 = vunpack.c.l.b16 %v710
        %v723 = vunpack.c.l.b16 %v711
        %v724 = vpack.c.b16 %v721, %v720
        %v725 = vpack.c.b16 %v723, %v722
        %vm728 = vcmask 261120
        %v730 = vsel %vm728, %v707, 0
        %732 = vmatpush.bf16.msra.mxu0 0
        %733 = vmatpush.bf16.msra.mxu0 0
        %734 = vmatpush.bf16.msra.mxu0 0
        %735 = vmatpush.bf16.msra.mxu0 0
        %736 = vmatpush.bf16.msra.mxu0 0
        %737 = vmatpush.bf16.msra.mxu0 0
        %738 = vmatpush.bf16.msra.mxu0 %v725
        %739 = vmatpush.bf16.msra.mxu0 %v724
        %740 = vmatmul.bf16.gmra.mxu0 %v730
        %v741 = vpop.f32.mrf.mxu0
        %v742 = vadd.f32 %v714, %v741
        %v743 = vpop.f32.mrf.mxu0
        %744 = vdwg.mxu0
        %v745 = vld [vmem:[%s388] sm:$0xff]
        %v746 = vadd.f32 %v742, %v745
        %v747 = vsel %vm728, %v746, 0.0
        %748 = vadd.xlane.f32.xlu0 %v747
        %v749 = vpop.xlane.xlu0 %748
        %v750 = vrcp.pop 32.0
        %v751 = vmul.f32 32.0, %v750
        %v752 = vsub.f32 1.0, %v751
        %v753 = vmul.f32 %v750, %v752
        %v754 = vadd.f32 %v750, %v753
        %vm755 = vweird.f32 %v750
        %v756 = vsel %vm755, %v750, %v754
        %v757 = vmul.f32 %v749, %v756
        %v758 = vsub.f32 %v746, %v757
        %v759 = vmul.f32 %v758, %v758
        %v760 = vsel %vm728, %v759, 0.0
        %761 = vadd.xlane.f32.xlu0 %v760
        %v762 = vpop.xlane.xlu0 %761
        %v763 = vmul.f32 %v762, %v756
        %v764 = vadd.f32 %v763, 1e-05
        %v765 = vrsqrt.pop %v764
        %v766 = vmul.f32 %v765, %v764
        %v767 = vmul.f32 %v766, %v765
        %v768 = vmul.f32 0.5, %v767
        %v769 = vsub.f32 1.5, %v768
        %v770 = vmul.f32 %v765, %v769
        %vm771 = vweird.f32 %v764
        %vm772 = vweird.f32 %v765
        %vm773 = vmor %vm771, %vm772
        %v774 = vsel %vm773, %v765, %v770
        %v775 = vmul.f32 %v758, %v774
        %v776 = vld [vmem:[#allocation4] sm:$0x1]
        %v778 = vperm.slane %v776, 0
        %v780 = vmul.f32 %v775, %v778
        %v781 = vld [vmem:[#allocation6] sm:$0x1]
        %v783 = vperm.slane %v781, 0
        %v785 = vadd.f32 %v780, %v783
        %786 = vst.msk [vmem:[%s392] sm:$0xff] %vm728, %v785
        %p787 = scmp.lt.s32.totalorder %s21, 1
        %s788 = scalar_select %p787, %s21, 1
        %s789 = smul.addr %s788, 8
        %s790 = scalar_lea.vmem %s8, %s789
        // Predicated region
        $region65: #{transformer_forward.39} parent=51 // pred_check
          %p791 = pneg %p227
        $region66: #{transformer_forward.39} parent=51 // pred_check_branch
          %793 = sbr.rel (%p791) target = $region68
        $region67: #{transformer_forward.39} parent=51 // pred_region
          _
        $region68: #{transformer_forward.39} parent=51 // pred_fallthru
          _
      $region52: #{transformer_forward.39} parent=5 // pred_fallthru
        _
      %p794 = scmp.le.s32.totalorder 2, %s16
      // Predicated region
      $region69: #{transformer_forward.39} parent=5 // pred_check
        %p795 = pneg %p794
      $region70: #{transformer_forward.39} parent=5 // pred_check_branch
        %797 = sbr.rel (%p795) target = $region72
      $region71: #{transformer_forward.39} parent=5 // pred_region
        %s798 = ssub.s32 %s16, 2
        // Predicated region
        $region73: #{transformer_forward.39} parent=71 // pred_check
          %p799 = pneg %p233
        $region74: #{transformer_forward.39} parent=71 // pred_check_branch
          %801 = sbr.rel (%p799) target = $region76
        $region75: #{transformer_forward.39} parent=71 // pred_region
          %p802 = scmp.lt.s32.totalorder %s22, 1
          %s803 = scalar_select %p802, %s22, 1
          %s804 = smul.addr %s803, 8
          %s805 = scalar_lea.vmem %s8, %s804
        $region76: #{transformer_forward.39} parent=71 // pred_fallthru
          _
      $region72: #{transformer_forward.39} parent=5 // pred_fallthru
        _
    $region6: #{transformer_forward.39} parent=1 // loop_footer
      %s20 = sadd.s32 1, %s16
    $region7: #{transformer_forward.39} parent=1 // loop_footer_branch
      %15 = sbr.rel target = $region3
    $region8: #{transformer_forward.39} parent=1 // loop_exit
      _
    %806 = vsyncpa [#allocation3], 1
    %s807 = scalar_lea.sflag [#allocation3], 1
    %808 = vsyncpa %s807, 1
    %809 = vsyncpa [#allocation5], 1

// kernel: transformer_forward.41
$region0: #{transformer_forward.41}
  #allocation0 [shape = 'u32[]', space=smem, size = 0x4, offset = 0x4, fixed_abs, tag = 'smem constant byte address 0x4 - core index']
  #allocation1 [shape = 'u32[72,128]{1,0:T(1,128)}', space=vmem, size = 0x9000, scoped, tag = 'internal scratch']
  %s0 = inlined_call_operand.vmem [shape: bf16[16,32], index: 0, kind: input, shape index: {}]
  %s1 = inlined_call_operand.vmem [shape: bf16[32,32], index: 1, kind: input, shape index: {}]
  %s2 = inlined_call_operand.hbm [shape: f32[1,32], index: 2, kind: input, shape index: {}]
  %s3 = inlined_call_operand.vmem [shape: f32[16,32], index: 3, kind: input, shape index: {}]
  %s4 = inlined_call_operand.hbm [shape: f32[1,32], index: 4, kind: input, shape index: {}]
  %s5 = inlined_call_operand.hbm [shape: f32[1,32], index: 5, kind: input, shape index: {}]
  %s6 = inlined_call_operand.vmem [shape: f32[16,32], index: 6, kind: output, shape index: {}]
  %s7 = sld [smem:[#allocation0]]
  $region54: #{transformer_forward.41} parent=0
    _
  %s9 = ssub.s32 1, %s7
  %s10 = scalar_select 0, %s9, %s7
  $region1: #{transformer_forward.41} parent=0
    #allocation2 [shape = 'u8[512]{0}', space=vmem, size = 0x400, scoped, tag = 'input window, operand 2, single buffered']
    #allocation3 [shape = 's32[1]{0}', space=sflag, size = 0x4, scoped, tag = 'scoped memory for transformer_forward.41']
    #allocation4 [shape = 'u8[512]{0}', space=vmem, size = 0x400, scoped, tag = 'input window, operand 4, single buffered']
    #allocation5 [shape = 's32[1]{0}', space=sflag, size = 0x4, scoped, tag = 'scoped memory for transformer_forward.41']
    #allocation6 [shape = 'u8[512]{0}', space=vmem, size = 0x400, scoped, tag = 'input window, operand 5, single buffered']
    %11 = vsyncpa [#allocation3], 0
    %12 = vsyncpa [#allocation5], 0
    // Predicated region
    $region2: #{transformer_forward.41} parent=1 // pred_check
      _
    $region3: #{transformer_forward.41} parent=1 // pred_check_branch
      %14 = sbr.rel (0) target = $region5
    $region4: #{transformer_forward.41} parent=1 // pred_region
      _
    $region5: #{transformer_forward.41} parent=1 // pred_fallthru
      _
    // Predicated region
    $region6: #{transformer_forward.41} parent=1 // pred_check
      _
    $region7: #{transformer_forward.41} parent=1 // pred_check_branch
      %16 = sbr.rel (0) target = $region9
    $region8: #{transformer_forward.41} parent=1 // pred_region
      _
    $region9: #{transformer_forward.41} parent=1 // pred_fallthru
      _
    // Predicated region
    $region10: #{transformer_forward.41} parent=1 // pred_check
      _
    $region11: #{transformer_forward.41} parent=1 // pred_check_branch
      %18 = sbr.rel (0) target = $region13
    $region12: #{transformer_forward.41} parent=1 // pred_region
      %20 = vsyncadd [#allocation3], 0
      %s22 = sshll.u32 %s2, 4
      %s23 = int_to_ptr.hbm [resolvable:$true] %s22
      %s24 = sshll.u32 [#allocation2], 4
      %s25 = int_to_ptr.vmem [resolvable:$true] %s24
      %27 = dma.hbm_to_vmem [thread:$0]  %s23, 16, %s25, [#allocation3]
    $region13: #{transformer_forward.41} parent=1 // pred_fallthru
      _
    // Predicated region
    $region14: #{transformer_forward.41} parent=1 // pred_check
      _
    $region15: #{transformer_forward.41} parent=1 // pred_check_branch
      %29 = sbr.rel (0) target = $region17
    $region16: #{transformer_forward.41} parent=1 // pred_region
      _
    $region17: #{transformer_forward.41} parent=1 // pred_fallthru
      _
    // Predicated region
    $region18: #{transformer_forward.41} parent=1 // pred_check
      _
    $region19: #{transformer_forward.41} parent=1 // pred_check_branch
      %31 = sbr.rel (0) target = $region21
    $region20: #{transformer_forward.41} parent=1 // pred_region
      %33 = vsyncadd [#allocation5], 0
      %s35 = sshll.u32 %s4, 4
      %s36 = int_to_ptr.hbm [resolvable:$true] %s35
      %s37 = sshll.u32 [#allocation4], 4
      %s38 = int_to_ptr.vmem [resolvable:$true] %s37
      %40 = dma.hbm_to_vmem [thread:$0]  %s36, 16, %s38, [#allocation5]
    $region21: #{transformer_forward.41} parent=1 // pred_fallthru
      _
    // Predicated region
    $region22: #{transformer_forward.41} parent=1 // pred_check
      _
    $region23: #{transformer_forward.41} parent=1 // pred_check_branch
      %42 = sbr.rel (0) target = $region25
    $region24: #{transformer_forward.41} parent=1 // pred_region
      %44 = vsyncadd [#allocation5], 0
      %s46 = sshll.u32 %s5, 4
      %s47 = int_to_ptr.hbm [resolvable:$true] %s46
      %s48 = sshll.u32 [#allocation6], 4
      %s49 = int_to_ptr.vmem [resolvable:$true] %s48
      %51 = dma.hbm_to_vmem [thread:$0]  %s47, 16, %s49, [#allocation5]
    $region25: #{transformer_forward.41} parent=1 // pred_fallthru
      _
    // Predicated region
    $region26: #{transformer_forward.41} parent=1 // pred_check
      _
    $region27: #{transformer_forward.41} parent=1 // pred_check_branch
      %53 = sbr.rel (0) target = $region29
    $region28: #{transformer_forward.41} parent=1 // pred_region
      %55 = dma.done [#allocation3], 16
    $region29: #{transformer_forward.41} parent=1 // pred_fallthru
      _
    // Predicated region
    $region30: #{transformer_forward.41} parent=1 // pred_check
      _
    $region31: #{transformer_forward.41} parent=1 // pred_check_branch
      %57 = sbr.rel (0) target = $region33
    $region32: #{transformer_forward.41} parent=1 // pred_region
      %59 = dma.done [#allocation5], 16
    $region33: #{transformer_forward.41} parent=1 // pred_fallthru
      _
    // Predicated region
    $region34: #{transformer_forward.41} parent=1 // pred_check
      _
    $region35: #{transformer_forward.41} parent=1 // pred_check_branch
      %61 = sbr.rel (0) target = $region37
    $region36: #{transformer_forward.41} parent=1 // pred_region
      %63 = dma.done [#allocation5], 16
    $region37: #{transformer_forward.41} parent=1 // pred_fallthru
      _
    %p65 = scmp.eq.s32.totalorder 0, 0
    // Predicated region
    $region38: #{transformer_forward.41} parent=1 // pred_check
      %p66 = pneg %p65
    $region39: #{transformer_forward.41} parent=1 // pred_check_branch
      %68 = sbr.rel (%p66) target = $region41
    $region40: #{transformer_forward.41} parent=1 // pred_region
      %vm69 = vcmask 261120
      %70 = vst.msk [vmem:[%s6] sm:$0xff] %vm69, 0.0
      %71 = vst.msk [vmem:[%s6 + $0x8] sm:$0xff] %vm69, 0.0
    $region41: #{transformer_forward.41} parent=1 // pred_fallthru
      _
    %v72 = vld [vmem:[%s0] sm:$0xf]
    %v73 = vld [vmem:[%s0 + $0x4] sm:$0xf]
    %v74 = vld [vmem:[%s6] sm:$0xff]
    %v75 = vld [vmem:[%s6 + $0x8] sm:$0xff]
    %v76 = vld [vmem:[%s1] sm:$0xf]
    %v77 = vld [vmem:[%s1 + $0x4] sm:$0xf]
    %v78 = vld [vmem:[%s1 + $0x8] sm:$0xf]
    %v79 = vld [vmem:[%s1 + $0xc] sm:$0xf]
    %v82 = vunpack.c.l.b16 %v72
    %v83 = vunpack.c.l.b16 %v73
    %v84 = vpack.c.b16 %v83, %v82
    %v89 = vunpack.c.l.b16 %v76
    %v90 = vunpack.c.l.b16 %v77
    %v91 = vunpack.c.l.b16 %v78
    %v92 = vunpack.c.l.b16 %v79
    %v93 = vpack.c.b16 %v90, %v89
    %v94 = vpack.c.b16 %v92, %v91
    %vm97 = vcmask 261120
    %v99 = vsel %vm97, %v84, 0
    %101 = vmatpush.bf16.msra.mxu0 0
    %102 = vmatpush.bf16.msra.mxu0 0
    %103 = vmatpush.bf16.msra.mxu0 0
    %104 = vmatpush.bf16.msra.mxu0 0
    %105 = vmatpush.bf16.msra.mxu0 0
    %106 = vmatpush.bf16.msra.mxu0 0
    %107 = vmatpush.bf16.msra.mxu0 %v94
    %108 = vmatpush.bf16.msra.mxu0 %v93
    %109 = vmatmul.bf16.gmra.mxu0 %v99
    %v110 = vpop.f32.mrf.mxu0
    %v111 = vadd.f32 0.0, %v110
    %v112 = vpop.f32.mrf.mxu0
    %v113 = vadd.f32 0.0, %v112
    %114 = vdwg.mxu0
    %v115 = vadd.f32 %v74, %v111
    %v116 = vadd.f32 %v75, %v113
    %117 = vst.msk [vmem:[%s6] sm:$0xff] %vm97, %v115
    %118 = vst.msk [vmem:[%s6 + $0x8] sm:$0xff] %vm97, %v116
    // Predicated region
    $region42: #{transformer_forward.41} parent=1 // pred_check
      %p119 = pneg %p65
    $region43: #{transformer_forward.41} parent=1 // pred_check_branch
      %121 = sbr.rel (%p119) target = $region45
    $region44: #{transformer_forward.41} parent=1 // pred_region
      %v122 = vld [vmem:[%s6] sm:$0xff]
      %v123 = vld [vmem:[%s6 + $0x8] sm:$0xff]
      %v124 = vld [vmem:[#allocation2] sm:$0x1]
      %v126 = vperm.slane %v124, 0
      %v128 = vadd.f32 %v122, %v126
      %v129 = vadd.f32 %v123, %v126
      %v130 = vld [vmem:[%s3] sm:$0xff]
      %v131 = vld [vmem:[%s3 + $0x8] sm:$0xff]
      %v132 = vadd.f32 %v128, %v130
      %v133 = vadd.f32 %v129, %v131
      %v134 = vsel %vm97, %v132, 0.0
      %135 = vadd.xlane.f32.xlu0 %v134
      %v136 = vpop.xlane.xlu0 %135
      %v137 = vsel %vm97, %v133, 0.0
      %138 = vadd.xlane.f32.xlu0 %v137
      %v139 = vpop.xlane.xlu0 %138
      %v140 = vrcp.pop 32.0
      %v141 = vmul.f32 32.0, %v140
      %v142 = vsub.f32 1.0, %v141
      %v143 = vmul.f32 %v140, %v142
      %v144 = vadd.f32 %v140, %v143
      %vm145 = vweird.f32 %v140
      %v146 = vsel %vm145, %v140, %v144
      %v147 = vmul.f32 %v136, %v146
      %v148 = vmul.f32 %v139, %v146
      %v149 = vsub.f32 %v132, %v147
      %v150 = vsub.f32 %v133, %v148
      %v151 = vmul.f32 %v149, %v149
      %v152 = vmul.f32 %v150, %v150
      %v153 = vsel %vm97, %v151, 0.0
      %154 = vadd.xlane.f32.xlu0 %v153
      %v155 = vpop.xlane.xlu0 %154
      %v156 = vsel %vm97, %v152, 0.0
      %157 = vadd.xlane.f32.xlu0 %v156
      %v158 = vpop.xlane.xlu0 %157
      %v159 = vmul.f32 %v155, %v146
      %v160 = vmul.f32 %v158, %v146
      %v161 = vadd.f32 %v159, 1e-05
      %v162 = vadd.f32 %v160, 1e-05
      %v163 = vrsqrt.pop %v161
      %v164 = vmul.f32 %v163, %v161
      %v165 = vmul.f32 %v164, %v163
      %v166 = vmul.f32 0.5, %v165
      %v167 = vsub.f32 1.5, %v166
      %v168 = vmul.f32 %v163, %v167
      %vm169 = vweird.f32 %v161
      %vm170 = vweird.f32 %v163
      %vm171 = vmor %vm169, %vm170
      %v172 = vsel %vm171, %v163, %v168
      %v173 = vrsqrt.pop %v162
      %v174 = vmul.f32 %v173, %v162
      %v175 = vmul.f32 %v174, %v173
      %v176 = vmul.f32 0.5, %v175
      %v177 = vsub.f32 1.5, %v176
      %v178 = vmul.f32 %v173, %v177
      %vm179 = vweird.f32 %v162
      %vm180 = vweird.f32 %v173
      %vm181 = vmor %vm179, %vm180
      %v182 = vsel %vm181, %v173, %v178
      %v183 = vmul.f32 %v149, %v172
      %v184 = vmul.f32 %v150, %v182
      %v185 = vld [vmem:[#allocation4] sm:$0x1]
      %v187 = vperm.slane %v185, 0
      %v189 = vmul.f32 %v183, %v187
      %v190 = vmul.f32 %v184, %v187
      %v191 = vld [vmem:[#allocation6] sm:$0x1]
      %v193 = vperm.slane %v191, 0
      %v195 = vadd.f32 %v189, %v193
      %v196 = vadd.f32 %v190, %v193
      %197 = vst.msk [vmem:[%s6] sm:$0xff] %vm97, %v195
      %198 = vst.msk [vmem:[%s6 + $0x8] sm:$0xff] %vm97, %v196
    $region45: #{transformer_forward.41} parent=1 // pred_fallthru
      _
    // Predicated region
    $region46: #{transformer_forward.41} parent=1 // pred_check
      _
    $region47: #{transformer_forward.41} parent=1 // pred_check_branch
      %200 = sbr.rel (0) target = $region49
    $region48: #{transformer_forward.41} parent=1 // pred_region
      _
    $region49: #{transformer_forward.41} parent=1 // pred_fallthru
      _
    // Predicated region
    $region50: #{transformer_forward.41} parent=1 // pred_check
      _
    $region51: #{transformer_forward.41} parent=1 // pred_check_branch
      %202 = sbr.rel (0) target = $region53
    $region52: #{transformer_forward.41} parent=1 // pred_region
      _
    $region53: #{transformer_forward.41} parent=1 // pred_fallthru
      _
    %203 = vsyncpa [#allocation3], 1
    %204 = vsyncpa [#allocation5], 1

// kernel: transformer_forward.44
$region0: #{transformer_forward.44}
  #allocation0 [shape = 'u32[]', space=smem, size = 0x4, offset = 0x4, fixed_abs, tag = 'smem constant byte address 0x4 - core index']
  #allocation1 [shape = 'u32[72,128]{1,0:T(1,128)}', space=vmem, size = 0x9000, scoped, tag = 'internal scratch']
  #allocation2 [shape = 'f32[16,32]{1,0:T(8,128)}', space=vmem, size = 0x2000, scoped, tag = 'scratch operand']
  %s0 = inlined_call_operand.vmem [shape: f32[16,32], index: 0, kind: input, shape index: {}]
  %s1 = inlined_call_operand.vmem [shape: bf16[32,32], index: 1, kind: input, shape index: {}]
  %s2 = inlined_call_operand.vmem [shape: f32[1,32], index: 2, kind: input, shape index: {}]
  %s3 = inlined_call_operand.vmem [shape: bf16[16,32], index: 3, kind: output, shape index: {}]
  %s4 = sld [smem:[#allocation0]]
  $region30: #{transformer_forward.44} parent=0
    _
  %s6 = ssub.s32 1, %s4
  %s7 = scalar_select 0, %s6, %s4
  // Predicated region
  $region2: #{transformer_forward.44} parent=0 // pred_check
    _
  $region3: #{transformer_forward.44} parent=0 // pred_check_branch
    %9 = sbr.rel (0) target = $region5
  $region4: #{transformer_forward.44} parent=0 // pred_region
    _
  $region5: #{transformer_forward.44} parent=0 // pred_fallthru
    _
  // Predicated region
  $region6: #{transformer_forward.44} parent=0 // pred_check
    _
  $region7: #{transformer_forward.44} parent=0 // pred_check_branch
    %11 = sbr.rel (0) target = $region9
  $region8: #{transformer_forward.44} parent=0 // pred_region
    _
  $region9: #{transformer_forward.44} parent=0 // pred_fallthru
    _
  // Predicated region
  $region10: #{transformer_forward.44} parent=0 // pred_check
    _
  $region11: #{transformer_forward.44} parent=0 // pred_check_branch
    %13 = sbr.rel (0) target = $region13
  $region12: #{transformer_forward.44} parent=0 // pred_region
    _
  $region13: #{transformer_forward.44} parent=0 // pred_fallthru
    _
  %p15 = scmp.eq.s32.totalorder 0, 0
  // Predicated region
  $region14: #{transformer_forward.44} parent=0 // pred_check
    %p16 = pneg %p15
  $region15: #{transformer_forward.44} parent=0 // pred_check_branch
    %18 = sbr.rel (%p16) target = $region17
  $region16: #{transformer_forward.44} parent=0 // pred_region
    %vm19 = vcmask 261120
    %20 = vst.msk [vmem:[#allocation2] sm:$0xff] %vm19, 0.0
    %21 = vst.msk [vmem:[#allocation2 + $0x8] sm:$0xff] %vm19, 0.0
  $region17: #{transformer_forward.44} parent=0 // pred_fallthru
    _
  %v22 = vld [vmem:[%s0] sm:$0xff]
  %v23 = vld [vmem:[%s0 + $0x8] sm:$0xff]
  %v24 = vpack.c.bf16 %v23, %v22
  %v25 = vld [vmem:[#allocation2] sm:$0xff]
  %v26 = vld [vmem:[#allocation2 + $0x8] sm:$0xff]
  %v27 = vld [vmem:[%s1] sm:$0xf]
  %v28 = vld [vmem:[%s1 + $0x4] sm:$0xf]
  %v29 = vld [vmem:[%s1 + $0x8] sm:$0xf]
  %v30 = vld [vmem:[%s1 + $0xc] sm:$0xf]
  %v35 = vunpack.c.l.b16 %v27
  %v36 = vunpack.c.l.b16 %v28
  %v37 = vunpack.c.l.b16 %v29
  %v38 = vunpack.c.l.b16 %v30
  %v39 = vpack.c.b16 %v36, %v35
  %v40 = vpack.c.b16 %v38, %v37
  %vm43 = vcmask 261120
  %v45 = vsel %vm43, %v24, 0
  %47 = vmatpush.bf16.msra.mxu0 0
  %48 = vmatpush.bf16.msra.mxu0 0
  %49 = vmatpush.bf16.msra.mxu0 0
  %50 = vmatpush.bf16.msra.mxu0 0
  %51 = vmatpush.bf16.msra.mxu0 0
  %52 = vmatpush.bf16.msra.mxu0 0
  %53 = vmatpush.bf16.msra.mxu0 %v40
  %54 = vmatpush.bf16.msra.mxu0 %v39
  %55 = vmatmul.bf16.gmra.mxu0 %v45
  %v56 = vpop.f32.mrf.mxu0
  %v57 = vadd.f32 0.0, %v56
  %v58 = vpop.f32.mrf.mxu0
  %v59 = vadd.f32 0.0, %v58
  %60 = vdwg.mxu0
  %v61 = vadd.f32 %v25, %v57
  %v62 = vadd.f32 %v26, %v59
  %63 = vst.msk [vmem:[#allocation2] sm:$0xff] %vm43, %v61
  %64 = vst.msk [vmem:[#allocation2 + $0x8] sm:$0xff] %vm43, %v62
  // Predicated region
  $region18: #{transformer_forward.44} parent=0 // pred_check
    %p65 = pneg %p15
  $region19: #{transformer_forward.44} parent=0 // pred_check_branch
    %67 = sbr.rel (%p65) target = $region21
  $region20: #{transformer_forward.44} parent=0 // pred_region
    %v68 = vld [vmem:[#allocation2] sm:$0xff]
    %v69 = vld [vmem:[#allocation2 + $0x8] sm:$0xff]
    %v70 = vld [vmem:[%s2] sm:$0x1]
    %v72 = vperm.slane %v70, 0
    %v74 = vadd.f32 %v68, %v72
    %v75 = vadd.f32 %v69, %v72
    %v76 = vpack.c.bf16 %v74, %v74
    %v77 = vpack.c.bf16 %v75, %v75
    %vm78 = vcmask 257024
    %79 = vst.msk [vmem:[%s3] sm:$0xf] %vm78, %v76
    %80 = vst.msk [vmem:[%s3 + $0x4] sm:$0xf] %vm78, %v77
  $region21: #{transformer_forward.44} parent=0 // pred_fallthru
    _
  // Predicated region
  $region22: #{transformer_forward.44} parent=0 // pred_check
    _
  $region23: #{transformer_forward.44} parent=0 // pred_check_branch
    %82 = sbr.rel (0) target = $region25
  $region24: #{transformer_forward.44} parent=0 // pred_region
    _
  $region25: #{transformer_forward.44} parent=0 // pred_fallthru
    _
  // Predicated region
  $region26: #{transformer_forward.44} parent=0 // pred_check
    _
  $region27: #{transformer_forward.44} parent=0 // pred_check_branch
    %84 = sbr.rel (0) target = $region29
  $region28: #{transformer_forward.44} parent=0 // pred_region
    _
  $region29: #{transformer_forward.44} parent=0 // pred_fallthru
    _

// kernel: transformer_forward.43
$region0: #{transformer_forward.43}
  #allocation0 [shape = 'u32[]', space=smem, size = 0x4, offset = 0x4, fixed_abs, tag = 'smem constant byte address 0x4 - core index']
  #allocation1 [shape = 'u32[72,128]{1,0:T(1,128)}', space=vmem, size = 0x9000, scoped, tag = 'internal scratch']
  %s0 = inlined_call_operand.vmem [shape: s32[2,1,8], index: 0, kind: input, shape index: {}]
  %s1 = inlined_call_operand.vmem [shape: bf16[2,8,96], index: 1, kind: input, shape index: {}]
  %s2 = inlined_call_operand.vmem [shape: bf16[32,32], index: 2, kind: input, shape index: {}]
  %s3 = inlined_call_operand.vmem [shape: f32[1,32], index: 3, kind: input, shape index: {}]
  %s4 = inlined_call_operand.vmem [shape: f32[2,8,32], index: 4, kind: input, shape index: {}]
  %s5 = inlined_call_operand.vmem [shape: f32[1,32], index: 5, kind: input, shape index: {}]
  %s6 = inlined_call_operand.hbm [shape: f32[1,32], index: 6, kind: input, shape index: {}]
  %s7 = inlined_call_operand.vmem [shape: f32[2,8,32], index: 7, kind: output, shape index: {}]
  %s8 = sld [smem:[#allocation0]]
  $region65: #{transformer_forward.43} parent=0
    _
  %s10 = ssub.s32 1, %s8
  %s11 = scalar_select 0, %s10, %s8
  $region1: #{transformer_forward.43} parent=0
    #allocation2 [shape = 'u8[512]{0}', space=vmem, size = 0x400, scoped, tag = 'input window, operand 6, single buffered']
    #allocation3 [shape = 's32[2]{0}', space=sflag, size = 0x8, scoped, tag = 'scoped memory for transformer_forward.43']
    %12 = vsyncpa [#allocation3], 0
    loop: start=0, step=1, limit=4
    $region2: #{transformer_forward.43} parent=1 // loop_pre_header
      _
    $region3: #{transformer_forward.43} parent=1 // loop_header
      %s14 = sphi 0, %s18
      %p15 = scmp.ge.s32.totalorder %s14, 4
      %s24 = sphi 0, %s26
      %s27 = sphi 0, %s24
      %s28 = sphi 0, %s27
      %s44 = sphi 0, %s28
      %s50 = sphi 0, %s52
      %s53 = sphi 0, %s50
      %s54 = sphi 0, %s53
      %s70 = sphi 0, %s54
      %s74 = sphi 0, %s74
      %s76 = sphi 0, %s74
      %s77 = sphi 0, %s76
      %s91 = sphi 0, %s77
      %s95 = sphi 0, %s95
      %s97 = sphi 0, %s95
      %s98 = sphi 0, %s97
      %s112 = sphi 0, %s98
      %s118 = sphi 0, %s120
      %s121 = sphi 0, %s118
      %s122 = sphi 0, %s121
      %s138 = sphi 0, %s122
      %s142 = sphi 0, %s142
      %s144 = sphi 0, %s142
      %s145 = sphi 0, %s144
      %s159 = sphi 0, %s145
      %s163 = sphi 0, %s163
      %s165 = sphi 0, %s163
      %s166 = sphi 0, %s165
      %s180 = sphi 0, %s166
      %s186 = sphi 0, %s188
      %s189 = sphi 0, %s186
      %s190 = sphi 0, %s189
      %s206 = sphi 0, %s190
    $region4: #{transformer_forward.43} parent=1 // loop_header_branch
      %17 = sbr.rel (%p15) target = $region8
    $region5: #{transformer_forward.43} parent=1 // loop_body
      %s19 = ssub.s32 %s14, 1
      %s20 = ssub.s32 %s14, 2
      %s21 = sadd.s32 %s14, 1
      %s22 = ssub.s32 %s14, %s21
      %p23 = scmp.eq.s32.totalorder %s22, 0
      %s25 = sadd.s32 %s24, 1
      %s26 = scalar_select %p23, %s24, %s25
      %p29 = pneg %p23
      %p30 = scmp.eq.s32.totalorder %s14, 1
      %p31 = por %p29, %p30
      %p32 = scmp.ne.s32.totalorder %s24, %s27
      %p33 = scmp.eq.s32.totalorder %s14, 0
      %p34 = por %p32, %p33
      %p35 = scmp.ne.s32.totalorder %s24, %s27
      %p36 = scmp.eq.s32.totalorder %s19, 1
      %p37 = por %p35, %p36
      %p38 = scmp.ne.s32.totalorder %s27, %s28
      %p39 = scmp.eq.s32.totalorder %s19, 0
      %p40 = por %p38, %p39
      %p41 = scmp.ne.s32.totalorder %s27, %s28
      %p42 = scmp.eq.s32.totalorder %s20, 1
      %p43 = por %p41, %p42
      %p45 = scmp.ne.s32.totalorder %s28, %s44
      %p46 = scmp.eq.s32.totalorder %s20, 0
      %p47 = por %p45, %p46
      %s48 = ssub.s32 %s14, %s21
      %p49 = scmp.eq.s32.totalorder %s48, 0
      %s51 = sadd.s32 %s50, 1
      %s52 = scalar_select %p49, %s50, %s51
      %p55 = pneg %p49
      %p56 = scmp.eq.s32.totalorder %s14, 1
      %p57 = por %p55, %p56
      %p58 = scmp.ne.s32.totalorder %s50, %s53
      %p59 = scmp.eq.s32.totalorder %s14, 0
      %p60 = por %p58, %p59
      %p61 = scmp.ne.s32.totalorder %s50, %s53
      %p62 = scmp.eq.s32.totalorder %s19, 1
      %p63 = por %p61, %p62
      %p64 = scmp.ne.s32.totalorder %s53, %s54
      %p65 = scmp.eq.s32.totalorder %s19, 0
      %p66 = por %p64, %p65
      %p67 = scmp.ne.s32.totalorder %s53, %s54
      %p68 = scmp.eq.s32.totalorder %s20, 1
      %p69 = por %p67, %p68
      %p71 = scmp.ne.s32.totalorder %s54, %s70
      %p72 = scmp.eq.s32.totalorder %s20, 0
      %p73 = por %p71, %p72
      %s75 = sadd.s32 %s74, 1
      %p78 = scmp.eq.s32.totalorder %s14, 1
      %p79 = scmp.ne.s32.totalorder %s74, %s76
      %p80 = scmp.eq.s32.totalorder %s14, 0
      %p81 = por %p79, %p80
      %p82 = scmp.ne.s32.totalorder %s74, %s76
      %p83 = scmp.eq.s32.totalorder %s19, 1
      %p84 = por %p82, %p83
      %p85 = scmp.ne.s32.totalorder %s76, %s77
      %p86 = scmp.eq.s32.totalorder %s19, 0
      %p87 = por %p85, %p86
      %p88 = scmp.ne.s32.totalorder %s76, %s77
      %p89 = scmp.eq.s32.totalorder %s20, 1
      %p90 = por %p88, %p89
      %p92 = scmp.ne.s32.totalorder %s77, %s91
      %p93 = scmp.eq.s32.totalorder %s20, 0
      %p94 = por %p92, %p93
      %s96 = sadd.s32 %s95, 1
      %p99 = scmp.eq.s32.totalorder %s14, 1
      %p100 = scmp.ne.s32.totalorder %s95, %s97
      %p101 = scmp.eq.s32.totalorder %s14, 0
      %p102 = por %p100, %p101
      %p103 = scmp.ne.s32.totalorder %s95, %s97
      %p104 = scmp.eq.s32.totalorder %s19, 1
      %p105 = por %p103, %p104
      %p106 = scmp.ne.s32.totalorder %s97, %s98
      %p107 = scmp.eq.s32.totalorder %s19, 0
      %p108 = por %p106, %p107
      %p109 = scmp.ne.s32.totalorder %s97, %s98
      %p110 = scmp.eq.s32.totalorder %s20, 1
      %p111 = por %p109, %p110
      %p113 = scmp.ne.s32.totalorder %s98, %s112
      %p114 = scmp.eq.s32.totalorder %s20, 0
      %p115 = por %p113, %p114
      %s116 = ssub.s32 %s14, %s21
      %p117 = scmp.eq.s32.totalorder %s116, 0
      %s119 = sadd.s32 %s118, 1
      %s120 = scalar_select %p117, %s118, %s119
      %p123 = pneg %p117
      %p124 = scmp.eq.s32.totalorder %s14, 1
      %p125 = por %p123, %p124
      %p126 = scmp.ne.s32.totalorder %s118, %s121
      %p127 = scmp.eq.s32.totalorder %s14, 0
      %p128 = por %p126, %p127
      %p129 = scmp.ne.s32.totalorder %s118, %s121
      %p130 = scmp.eq.s32.totalorder %s19, 1
      %p131 = por %p129, %p130
      %p132 = scmp.ne.s32.totalorder %s121, %s122
      %p133 = scmp.eq.s32.totalorder %s19, 0
      %p134 = por %p132, %p133
      %p135 = scmp.ne.s32.totalorder %s121, %s122
      %p136 = scmp.eq.s32.totalorder %s20, 1
      %p137 = por %p135, %p136
      %p139 = scmp.ne.s32.totalorder %s122, %s138
      %p140 = scmp.eq.s32.totalorder %s20, 0
      %p141 = por %p139, %p140
      %s143 = sadd.s32 %s142, 1
      %p146 = scmp.eq.s32.totalorder %s14, 1
      %p147 = scmp.ne.s32.totalorder %s142, %s144
      %p148 = scmp.eq.s32.totalorder %s14, 0
      %p149 = por %p147, %p148
      %p150 = scmp.ne.s32.totalorder %s142, %s144
      %p151 = scmp.eq.s32.totalorder %s19, 1
      %p152 = por %p150, %p151
      %p153 = scmp.ne.s32.totalorder %s144, %s145
      %p154 = scmp.eq.s32.totalorder %s19, 0
      %p155 = por %p153, %p154
      %p156 = scmp.ne.s32.totalorder %s144, %s145
      %p157 = scmp.eq.s32.totalorder %s20, 1
      %p158 = por %p156, %p157
      %p160 = scmp.ne.s32.totalorder %s145, %s159
      %p161 = scmp.eq.s32.totalorder %s20, 0
      %p162 = por %p160, %p161
      %s164 = sadd.s32 %s163, 1
      %p167 = scmp.eq.s32.totalorder %s14, 1
      %p168 = scmp.ne.s32.totalorder %s163, %s165
      %p169 = scmp.eq.s32.totalorder %s14, 0
      %p170 = por %p168, %p169
      %p171 = scmp.ne.s32.totalorder %s163, %s165
      %p172 = scmp.eq.s32.totalorder %s19, 1
      %p173 = por %p171, %p172
      %p174 = scmp.ne.s32.totalorder %s165, %s166
      %p175 = scmp.eq.s32.totalorder %s19, 0
      %p176 = por %p174, %p175
      %p177 = scmp.ne.s32.totalorder %s165, %s166
      %p178 = scmp.eq.s32.totalorder %s20, 1
      %p179 = por %p177, %p178
      %p181 = scmp.ne.s32.totalorder %s166, %s180
      %p182 = scmp.eq.s32.totalorder %s20, 0
      %p183 = por %p181, %p182
      %s184 = ssub.s32 %s14, %s21
      %p185 = scmp.eq.s32.totalorder %s184, 0
      %s187 = sadd.s32 %s186, 1
      %s188 = scalar_select %p185, %s186, %s187
      %p191 = pneg %p185
      %p192 = scmp.eq.s32.totalorder %s14, 1
      %p193 = por %p191, %p192
      %p194 = scmp.ne.s32.totalorder %s186, %s189
      %p195 = scmp.eq.s32.totalorder %s14, 0
      %p196 = por %p194, %p195
      %p197 = scmp.ne.s32.totalorder %s186, %s189
      %p198 = scmp.eq.s32.totalorder %s19, 1
      %p199 = por %p197, %p198
      %p200 = scmp.ne.s32.totalorder %s189, %s190
      %p201 = scmp.eq.s32.totalorder %s19, 0
      %p202 = por %p200, %p201
      %p203 = scmp.ne.s32.totalorder %s189, %s190
      %p204 = scmp.eq.s32.totalorder %s20, 1
      %p205 = por %p203, %p204
      %p207 = scmp.ne.s32.totalorder %s190, %s206
      %p208 = scmp.eq.s32.totalorder %s20, 0
      %p209 = por %p207, %p208
      %p210 = scmp.le.s32.totalorder 1, %s14
      %p211 = scmp.lt.s32.totalorder %s14, 3
      %p212 = pnand %p210, %p211
      %p213 = pneg %p212
      // Predicated region
      $region9: #{transformer_forward.43} parent=5 // pred_check
        _
      $region10: #{transformer_forward.43} parent=5 // pred_check_branch
        %215 = sbr.rel (%p212) target = $region12
      $region11: #{transformer_forward.43} parent=5 // pred_region
        %s216 = ssub.s32 %s14, 1
        // Predicated region
        $region13: #{transformer_forward.43} parent=11 // pred_check
          %p217 = pneg %p87
        $region14: #{transformer_forward.43} parent=11 // pred_check_branch
          %219 = sbr.rel (%p217) target = $region16
        $region15: #{transformer_forward.43} parent=11 // pred_region
          _
        $region16: #{transformer_forward.43} parent=11 // pred_fallthru
          _
        // Predicated region
        $region17: #{transformer_forward.43} parent=11 // pred_check
          %p220 = pneg %p108
        $region18: #{transformer_forward.43} parent=11 // pred_check_branch
          %222 = sbr.rel (%p220) target = $region20
        $region19: #{transformer_forward.43} parent=11 // pred_region
          _
        $region20: #{transformer_forward.43} parent=11 // pred_fallthru
          _
        // Predicated region
        $region21: #{transformer_forward.43} parent=11 // pred_check
          %p223 = pneg %p155
        $region22: #{transformer_forward.43} parent=11 // pred_check_branch
          %225 = sbr.rel (%p223) target = $region24
        $region23: #{transformer_forward.43} parent=11 // pred_region
          _
        $region24: #{transformer_forward.43} parent=11 // pred_fallthru
          _
        // Predicated region
        $region25: #{transformer_forward.43} parent=11 // pred_check
          %p226 = pneg %p176
        $region26: #{transformer_forward.43} parent=11 // pred_check_branch
          %228 = sbr.rel (%p226) target = $region28
        $region27: #{transformer_forward.43} parent=11 // pred_region
          %230 = vsyncadd [#allocation3], 0
          %s232 = sshll.u32 %s6, 4
          %s233 = int_to_ptr.hbm [resolvable:$true] %s232
          %s234 = sshll.u32 [#allocation2], 4
          %s235 = int_to_ptr.vmem [resolvable:$true] %s234
          %237 = dma.hbm_to_vmem [thread:$0]  %s233, 16, %s235, [#allocation3]
        $region28: #{transformer_forward.43} parent=11 // pred_fallthru
          _
      $region12: #{transformer_forward.43} parent=5 // pred_fallthru
        _
      %p238 = scmp.lt.s32.totalorder %s14, 2
      // Predicated region
      $region29: #{transformer_forward.43} parent=5 // pred_check
        %p239 = pneg %p238
      $region30: #{transformer_forward.43} parent=5 // pred_check_branch
        %241 = sbr.rel (%p239) target = $region32
      $region31: #{transformer_forward.43} parent=5 // pred_region
        // Predicated region
        $region33: #{transformer_forward.43} parent=31 // pred_check
          %p242 = pneg %p34
        $region34: #{transformer_forward.43} parent=31 // pred_check_branch
          %244 = sbr.rel (%p242) target = $region36
        $region35: #{transformer_forward.43} parent=31 // pred_region
          %p245 = scmp.lt.s32.totalorder %s14, 1
          %s246 = scalar_select %p245, %s14, 1
          %s247 = scalar_lea.vmem %s0, %s246
        $region36: #{transformer_forward.43} parent=31 // pred_fallthru
          _
        // Predicated region
        $region37: #{transformer_forward.43} parent=31 // pred_check
          %p248 = pneg %p60
        $region38: #{transformer_forward.43} parent=31 // pred_check_branch
          %250 = sbr.rel (%p248) target = $region40
        $region39: #{transformer_forward.43} parent=31 // pred_region
          %p251 = scmp.lt.s32.totalorder %s14, 1
          %s252 = scalar_select %p251, %s14, 1
          %s253 = smul.addr %s252, 4
          %s254 = scalar_lea.vmem %s1, %s253
        $region40: #{transformer_forward.43} parent=31 // pred_fallthru
          _
        // Predicated region
        $region41: #{transformer_forward.43} parent=31 // pred_check
          %p255 = pneg %p128
        $region42: #{transformer_forward.43} parent=31 // pred_check_branch
          %257 = sbr.rel (%p255) target = $region44
        $region43: #{transformer_forward.43} parent=31 // pred_region
          %p258 = scmp.lt.s32.totalorder %s14, 1
          %s259 = scalar_select %p258, %s14, 1
          %s260 = smul.addr %s259, 8
          %s261 = scalar_lea.vmem %s4, %s260
        $region44: #{transformer_forward.43} parent=31 // pred_fallthru
          _
      $region32: #{transformer_forward.43} parent=5 // pred_fallthru
        _
      %p262 = scmp.le.s32.totalorder 1, %s14
      %p263 = scmp.lt.s32.totalorder %s14, 3
      %p264 = pnand %p262, %p263
      %p265 = pneg %p264
      // Predicated region
      $region45: #{transformer_forward.43} parent=5 // pred_check
        _
      $region46: #{transformer_forward.43} parent=5 // pred_check_branch
        %267 = sbr.rel (%p264) target = $region48
      $region47: #{transformer_forward.43} parent=5 // pred_region
        %s268 = ssub.s32 %s14, 1
        // Predicated region
        $region49: #{transformer_forward.43} parent=47 // pred_check
          %p269 = pneg %p176
        $region50: #{transformer_forward.43} parent=47 // pred_check_branch
          %271 = sbr.rel (%p269) target = $region52
        $region51: #{transformer_forward.43} parent=47 // pred_region
          %273 = dma.done [#allocation3], 16
        $region52: #{transformer_forward.43} parent=47 // pred_fallthru
          _
        %p274 = scmp.lt.s32.totalorder %s19, 1
        %s275 = scalar_select %p274, %s19, 1
        %s276 = scalar_lea.vmem %s0, %s275
        %p277 = pneg %p40
        %p278 = pneg %p37
        %p279 = scmp.lt.s32.totalorder %s19, 1
        %s280 = scalar_select %p279, %s19, 1
        %s281 = smul.addr %s280, 4
        %s282 = scalar_lea.vmem %s1, %s281
        %p283 = pneg %p66
        %p284 = pneg %p63
        %p285 = pneg %p87
        %p286 = pneg %p84
        %p287 = pneg %p108
        %p288 = pneg %p105
        %p289 = scmp.lt.s32.totalorder %s19, 1
        %s290 = scalar_select %p289, %s19, 1
        %s291 = smul.addr %s290, 8
        %s292 = scalar_lea.vmem %s4, %s291
        %p293 = pneg %p134
        %p294 = pneg %p131
        %p295 = pneg %p155
        %p296 = pneg %p152
        %p297 = pneg %p176
        %p298 = pneg %p173
        %p299 = pneg %p202
        %p300 = pneg %p199
        %p301 = scmp.lt.s32.totalorder %s19, 1
        %s302 = scalar_select %p301, %s19, 1
        %s303 = smul.addr %s302, 8
        %s304 = scalar_lea.vmem %s7, %s303
        %p305 = scmp.lt.s32.totalorder %s19, 1
        %s306 = scalar_select %p305, %s19, 1
        %s307 = scalar_lea.vmem %s0, %s306
        %p308 = scmp.lt.s32.totalorder %s19, 1
        %s309 = scalar_select %p308, %s19, 1
        %s310 = smul.addr %s309, 4
        %s311 = scalar_lea.vmem %s1, %s310
        %p312 = scmp.lt.s32.totalorder %s19, 1
        %s313 = scalar_select %p312, %s19, 1
        %s314 = smul.addr %s313, 8
        %s315 = scalar_lea.vmem %s4, %s314
        %p316 = scmp.lt.s32.totalorder %s19, 1
        %s317 = scalar_select %p316, %s19, 1
        %s318 = smul.addr %s317, 8
        %s319 = scalar_lea.vmem %s7, %s318
        %v321 = vld [vmem:[%s311] sm:$0xf]
        %v322 = vld [vmem:[%s307] sm:$0x1]
        %vm323 = vcmp.ne.s32.totalorder %v322, 0
        %v324 = vsel %vm323, -1e+09, 0.0
        %v325 = vlaneseq
        %v326 = vshrl.u32 %v325, 7
        %v327 = vlaneseq
        %v328 = vand.u32 %v327, 127
        %vm329 = vcmp.gt.s32.totalorder %v328, %v326
        %v330 = vsel %vm329, -1e+09, 0.0
        %v332 = vperm.slane %v324, 0
        %v334 = vadd.f32 %v332, %v330
        %v336 = vunpack.c.l.b16 %v321
        %v337 = vpack.c.b16 %v336, %v336
        %338 = vrot.lane.b32.xlu0 %v337, 96
        %v339 = vpop.permute.xlu0 %338
        %vm340 = vcmask 64512
        %v342 = vsel %vm340, %v321, 0
        %v345 = vsel %vm340, %v339, 0
        %347 = vmatpush.bf16.xpose.msra.mxu0 0
        %348 = vmatpush.bf16.xpose.msra.mxu0 0
        %349 = vmatpush.bf16.xpose.msra.mxu0 0
        %350 = vmatpush.bf16.xpose.msra.mxu0 0
        %351 = vmatpush.bf16.xpose.msra.mxu0 0
        %352 = vmatpush.bf16.xpose.msra.mxu0 0
        %353 = vmatpush.bf16.xpose.msra.mxu0 0
        %354 = vmatpush.bf16.xpose.msra.mxu0 %v345
        %355 = vmatmul.bf16.gmra.mxu0 %v342
        %v356 = vpop.f32.mrf.mxu0
        %v357 = vadd.f32 0.0, %v356
        %v358 = vpop.f32.mrf.mxu0
        %359 = vdwg.mxu0
        %v360 = vmul.f32 %v357, 0.35355338
        %v361 = vadd.f32 %v360, %v334
        %v362 = vsel %vm340, %v361, -inf
        %363 = vmax.xlane.f32.xlu0 %v362
        %v364 = vpop.xlane.xlu0 %363
        %v365 = vsub.f32 %v361, %v364
        %v366 = vmul.f32 %v365, 1.442695
        %v367 = vpow.pop %v366
        %v368 = vsel %vm340, %v367, 0.0
        %369 = vadd.xlane.f32.xlu0 %v368
        %v370 = vpop.xlane.xlu0 %369
        %v371 = vrcp.pop %v370
        %v372 = vmul.f32 %v370, %v371
        %v373 = vsub.f32 1.0, %v372
        %v374 = vmul.f32 %v371, %v373
        %v375 = vadd.f32 %v371, %v374
        %vm376 = vweird.f32 %v370
        %vm377 = vweird.f32 %v371
        %vm378 = vmor %vm376, %vm377
        %v379 = vsel %vm378, %v371, %v375
        %v380 = vand.u32 2147483647, %v370
        %vm381 = vcmp.eq.f32.partialorder %v380, 8.507059e+37
        %v382 = vand.u32 %v370, 2147483648
        %v383 = vor.u32 1.1754944e-38, %v382
        %v384 = vsel %vm381, %v383, %v379
        %v385 = vmul.f32 %v367, %v384
        %v386 = vpack.c.bf16 %v385, %v385
        %387 = vrot.lane.b32.xlu0 %v337, 64
        %v388 = vpop.permute.xlu0 %387
        %v390 = vsel %vm340, %v386, 0
        %vm392 = vcmask 1043456
        %v394 = vsel %vm392, %v388, 0
        %396 = vmatpush.bf16.msra.mxu0 0
        %397 = vmatpush.bf16.msra.mxu0 0
        %398 = vmatpush.bf16.msra.mxu0 0
        %399 = vmatpush.bf16.msra.mxu0 0
        %400 = vmatpush.bf16.msra.mxu0 0
        %401 = vmatpush.bf16.msra.mxu0 0
        %402 = vmatpush.bf16.msra.mxu0 0
        %403 = vmatpush.bf16.msra.mxu0 %v394
        %404 = vmatmul.bf16.gmra.mxu0 %v390
        %v405 = vpop.f32.mrf.mxu0
        %v406 = vadd.f32 0.0, %v405
        %v407 = vpop.f32.mrf.mxu0
        %408 = vdwg.mxu0
        %409 = vrot.lane.b32.xlu0 %v337, 120
        %v410 = vpop.permute.xlu0 %409
        %411 = vrot.lane.b32.xlu0 %v337, 88
        %v412 = vpop.permute.xlu0 %411
        %v414 = vsel %vm340, %v410, 0
        %v417 = vsel %vm340, %v412, 0
        %419 = vmatpush.bf16.xpose.msra.mxu0 0
        %420 = vmatpush.bf16.xpose.msra.mxu0 0
        %421 = vmatpush.bf16.xpose.msra.mxu0 0
        %422 = vmatpush.bf16.xpose.msra.mxu0 0
        %423 = vmatpush.bf16.xpose.msra.mxu0 0
        %424 = vmatpush.bf16.xpose.msra.mxu0 0
        %425 = vmatpush.bf16.xpose.msra.mxu0 0
        %426 = vmatpush.bf16.xpose.msra.mxu0 %v417
        %427 = vmatmul.bf16.gmra.mxu0 %v414
        %v428 = vpop.f32.mrf.mxu0
        %v429 = vadd.f32 0.0, %v428
        %v430 = vpop.f32.mrf.mxu0
        %431 = vdwg.mxu0
        %v432 = vmul.f32 %v429, 0.35355338
        %v433 = vadd.f32 %v432, %v334
        %v434 = vsel %vm340, %v433, -inf
        %435 = vmax.xlane.f32.xlu0 %v434
        %v436 = vpop.xlane.xlu0 %435
        %v437 = vsub.f32 %v433, %v436
        %v438 = vmul.f32 %v437, 1.442695
        %v439 = vpow.pop %v438
        %v440 = vsel %vm340, %v439, 0.0
        %441 = vadd.xlane.f32.xlu0 %v440
        %v442 = vpop.xlane.xlu0 %441
        %v443 = vrcp.pop %v442
        %v444 = vmul.f32 %v442, %v443
        %v445 = vsub.f32 1.0, %v444
        %v446 = vmul.f32 %v443, %v445
        %v447 = vadd.f32 %v443, %v446
        %vm448 = vweird.f32 %v442
        %vm449 = vweird.f32 %v443
        %vm450 = vmor %vm448, %vm449
        %v451 = vsel %vm450, %v443, %v447
        %v452 = vand.u32 2147483647, %v442
        %vm453 = vcmp.eq.f32.partialorder %v452, 8.507059e+37
        %v454 = vand.u32 %v442, 2147483648
        %v455 = vor.u32 1.1754944e-38, %v454
        %v456 = vsel %vm453, %v455, %v451
        %v457 = vmul.f32 %v439, %v456
        %v458 = vpack.c.bf16 %v457, %v457
        %459 = vrot.lane.b32.xlu0 %v337, 56
        %v460 = vpop.permute.xlu0 %459
        %v462 = vsel %vm340, %v458, 0
        %v465 = vsel %vm392, %v460, 0
        %467 = vmatpush.bf16.msra.mxu0 0
        %468 = vmatpush.bf16.msra.mxu0 0
        %469 = vmatpush.bf16.msra.mxu0 0
        %470 = vmatpush.bf16.msra.mxu0 0
        %471 = vmatpush.bf16.msra.mxu0 0
        %472 = vmatpush.bf16.msra.mxu0 0
        %473 = vmatpush.bf16.msra.mxu0 0
        %474 = vmatpush.bf16.msra.mxu0 %v465
        %475 = vmatmul.bf16.gmra.mxu0 %v462
        %v476 = vpop.f32.mrf.mxu0
        %v477 = vadd.f32 0.0, %v476
        %v478 = vpop.f32.mrf.mxu0
        %479 = vdwg.mxu0
        %480 = vrot.lane.b32.xlu0 %v337, 112
        %v481 = vpop.permute.xlu0 %480
        %482 = vrot.lane.b32.xlu0 %v337, 80
        %v483 = vpop.permute.xlu0 %482
        %v485 = vsel %vm340, %v481, 0
        %v488 = vsel %vm340, %v483, 0
        %490 = vmatpush.bf16.xpose.msra.mxu0 0
        %491 = vmatpush.bf16.xpose.msra.mxu0 0
        %492 = vmatpush.bf16.xpose.msra.mxu0 0
        %493 = vmatpush.bf16.xpose.msra.mxu0 0
        %494 = vmatpush.bf16.xpose.msra.mxu0 0
        %495 = vmatpush.bf16.xpose.msra.mxu0 0
        %496 = vmatpush.bf16.xpose.msra.mxu0 0
        %497 = vmatpush.bf16.xpose.msra.mxu0 %v488
        %498 = vmatmul.bf16.gmra.mxu0 %v485
        %v499 = vpop.f32.mrf.mxu0
        %v500 = vadd.f32 0.0, %v499
        %v501 = vpop.f32.mrf.mxu0
        %502 = vdwg.mxu0
        %v503 = vmul.f32 %v500, 0.35355338
        %v504 = vadd.f32 %v503, %v334
        %v505 = vsel %vm340, %v504, -inf
        %506 = vmax.xlane.f32.xlu0 %v505
        %v507 = vpop.xlane.xlu0 %506
        %v508 = vsub.f32 %v504, %v507
        %v509 = vmul.f32 %v508, 1.442695
        %v510 = vpow.pop %v509
        %v511 = vsel %vm340, %v510, 0.0
        %512 = vadd.xlane.f32.xlu0 %v511
        %v513 = vpop.xlane.xlu0 %512
        %v514 = vrcp.pop %v513
        %v515 = vmul.f32 %v513, %v514
        %v516 = vsub.f32 1.0, %v515
        %v517 = vmul.f32 %v514, %v516
        %v518 = vadd.f32 %v514, %v517
        %vm519 = vweird.f32 %v513
        %vm520 = vweird.f32 %v514
        %vm521 = vmor %vm519, %vm520
        %v522 = vsel %vm521, %v514, %v518
        %v523 = vand.u32 2147483647, %v513
        %vm524 = vcmp.eq.f32.partialorder %v523, 8.507059e+37
        %v525 = vand.u32 %v513, 2147483648
        %v526 = vor.u32 1.1754944e-38, %v525
        %v527 = vsel %vm524, %v526, %v522
        %v528 = vmul.f32 %v510, %v527
        %v529 = vpack.c.bf16 %v528, %v528
        %530 = vrot.lane.b32.xlu0 %v337, 48
        %v531 = vpop.permute.xlu0 %530
        %v533 = vsel %vm340, %v529, 0
        %v536 = vsel %vm392, %v531, 0
        %538 = vmatpush.bf16.msra.mxu0 0
        %539 = vmatpush.bf16.msra.mxu0 0
        %540 = vmatpush.bf16.msra.mxu0 0
        %541 = vmatpush.bf16.msra.mxu0 0
        %542 = vmatpush.bf16.msra.mxu0 0
        %543 = vmatpush.bf16.msra.mxu0 0
        %544 = vmatpush.bf16.msra.mxu0 0
        %545 = vmatpush.bf16.msra.mxu0 %v536
        %546 = vmatmul.bf16.gmra.mxu0 %v533
        %v547 = vpop.f32.mrf.mxu0
        %v548 = vadd.f32 0.0, %v547
        %v549 = vpop.f32.mrf.mxu0
        %550 = vdwg.mxu0
        %551 = vrot.lane.b32.xlu0 %v337, 104
        %v552 = vpop.permute.xlu0 %551
        %553 = vrot.lane.b32.xlu0 %v337, 72
        %v554 = vpop.permute.xlu0 %553
        %v556 = vsel %vm340, %v552, 0
        %v559 = vsel %vm340, %v554, 0
        %561 = vmatpush.bf16.xpose.msra.mxu0 0
        %562 = vmatpush.bf16.xpose.msra.mxu0 0
        %563 = vmatpush.bf16.xpose.msra.mxu0 0
        %564 = vmatpush.bf16.xpose.msra.mxu0 0
        %565 = vmatpush.bf16.xpose.msra.mxu0 0
        %566 = vmatpush.bf16.xpose.msra.mxu0 0
        %567 = vmatpush.bf16.xpose.msra.mxu0 0
        %568 = vmatpush.bf16.xpose.msra.mxu0 %v559
        %569 = vmatmul.bf16.gmra.mxu0 %v556
        %v570 = vpop.f32.mrf.mxu0
        %v571 = vadd.f32 0.0, %v570
        %v572 = vpop.f32.mrf.mxu0
        %573 = vdwg.mxu0
        %v574 = vmul.f32 %v571, 0.35355338
        %v575 = vadd.f32 %v574, %v334
        %v576 = vsel %vm340, %v575, -inf
        %577 = vmax.xlane.f32.xlu0 %v576
        %v578 = vpop.xlane.xlu0 %577
        %v579 = vsub.f32 %v575, %v578
        %v580 = vmul.f32 %v579, 1.442695
        %v581 = vpow.pop %v580
        %v582 = vsel %vm340, %v581, 0.0
        %583 = vadd.xlane.f32.xlu0 %v582
        %v584 = vpop.xlane.xlu0 %583
        %v585 = vrcp.pop %v584
        %v586 = vmul.f32 %v584, %v585
        %v587 = vsub.f32 1.0, %v586
        %v588 = vmul.f32 %v585, %v587
        %v589 = vadd.f32 %v585, %v588
        %vm590 = vweird.f32 %v584
        %vm591 = vweird.f32 %v585
        %vm592 = vmor %vm590, %vm591
        %v593 = vsel %vm592, %v585, %v589
        %v594 = vand.u32 2147483647, %v584
        %vm595 = vcmp.eq.f32.partialorder %v594, 8.507059e+37
        %v596 = vand.u32 %v584, 2147483648
        %v597 = vor.u32 1.1754944e-38, %v596
        %v598 = vsel %vm595, %v597, %v593
        %v599 = vmul.f32 %v581, %v598
        %v600 = vpack.c.bf16 %v599, %v599
        %601 = vrot.lane.b32.xlu0 %v337, 40
        %v602 = vpop.permute.xlu0 %601
        %v604 = vsel %vm340, %v600, 0
        %v607 = vsel %vm392, %v602, 0
        %609 = vmatpush.bf16.msra.mxu0 0
        %610 = vmatpush.bf16.msra.mxu0 0
        %611 = vmatpush.bf16.msra.mxu0 0
        %612 = vmatpush.bf16.msra.mxu0 0
        %613 = vmatpush.bf16.msra.mxu0 0
        %614 = vmatpush.bf16.msra.mxu0 0
        %615 = vmatpush.bf16.msra.mxu0 0
        %616 = vmatpush.bf16.msra.mxu0 %v607
        %617 = vmatmul.bf16.gmra.mxu0 %v604
        %v618 = vpop.f32.mrf.mxu0
        %v619 = vadd.f32 0.0, %v618
        %v620 = vpop.f32.mrf.mxu0
        %621 = vdwg.mxu0
        %623 = vrot.lane.b32.xlu0 %v477, 8
        %v624 = vpop.permute.xlu0 %623
        %627 = vrot.lane.b32.xlu0 %v548, 16
        %v628 = vpop.permute.xlu0 %627
        %631 = vrot.lane.b32.xlu0 %v619, 24
        %v632 = vpop.permute.xlu0 %631
        %v634 = vsel %vm340, %v406, %v624
        %vm635 = vcmask 130048
        %v636 = vsel %vm635, %v634, %v628
        %vm637 = vcmask 195584
        %v638 = vsel %vm637, %v636, %v632
        %v639 = vpack.c.bf16 %v638, %v638
        %v640 = vld [vmem:[%s2] sm:$0xf]
        %v641 = vld [vmem:[%s2 + $0x4] sm:$0xf]
        %v642 = vld [vmem:[%s2 + $0x8] sm:$0xf]
        %v643 = vld [vmem:[%s2 + $0xc] sm:$0xf]
        %v644 = vld [vmem:[%s3] sm:$0x1]
        %v646 = vperm.slane %v644, 0
        %v652 = vunpack.c.l.b16 %v640
        %v653 = vunpack.c.l.b16 %v641
        %v654 = vunpack.c.l.b16 %v642
        %v655 = vunpack.c.l.b16 %v643
        %v656 = vpack.c.b16 %v653, %v652
        %v657 = vpack.c.b16 %v655, %v654
        %vm660 = vcmask 261120
        %v662 = vsel %vm660, %v639, 0
        %664 = vmatpush.bf16.msra.mxu0 0
        %665 = vmatpush.bf16.msra.mxu0 0
        %666 = vmatpush.bf16.msra.mxu0 0
        %667 = vmatpush.bf16.msra.mxu0 0
        %668 = vmatpush.bf16.msra.mxu0 0
        %669 = vmatpush.bf16.msra.mxu0 0
        %670 = vmatpush.bf16.msra.mxu0 %v657
        %671 = vmatpush.bf16.msra.mxu0 %v656
        %672 = vmatmul.bf16.gmra.mxu0 %v662
        %v673 = vpop.f32.mrf.mxu0
        %v674 = vadd.f32 %v646, %v673
        %v675 = vpop.f32.mrf.mxu0
        %676 = vdwg.mxu0
        %v677 = vld [vmem:[%s315] sm:$0xff]
        %v678 = vadd.f32 %v674, %v677
        %v679 = vsel %vm660, %v678, 0.0
        %680 = vadd.xlane.f32.xlu0 %v679
        %v681 = vpop.xlane.xlu0 %680
        %v682 = vrcp.pop 32.0
        %v683 = vmul.f32 32.0, %v682
        %v684 = vsub.f32 1.0, %v683
        %v685 = vmul.f32 %v682, %v684
        %v686 = vadd.f32 %v682, %v685
        %vm687 = vweird.f32 %v682
        %v688 = vsel %vm687, %v682, %v686
        %v689 = vmul.f32 %v681, %v688
        %v690 = vsub.f32 %v678, %v689
        %v691 = vmul.f32 %v690, %v690
        %v692 = vsel %vm660, %v691, 0.0
        %693 = vadd.xlane.f32.xlu0 %v692
        %v694 = vpop.xlane.xlu0 %693
        %v695 = vmul.f32 %v694, %v688
        %v696 = vadd.f32 %v695, 1e-05
        %v697 = vrsqrt.pop %v696
        %v698 = vmul.f32 %v697, %v696
        %v699 = vmul.f32 %v698, %v697
        %v700 = vmul.f32 0.5, %v699
        %v701 = vsub.f32 1.5, %v700
        %v702 = vmul.f32 %v697, %v701
        %vm703 = vweird.f32 %v696
        %vm704 = vweird.f32 %v697
        %vm705 = vmor %vm703, %vm704
        %v706 = vsel %vm705, %v697, %v702
        %v707 = vmul.f32 %v690, %v706
        %v708 = vld [vmem:[%s5] sm:$0x1]
        %v710 = vperm.slane %v708, 0
        %v712 = vmul.f32 %v707, %v710
        %v713 = vld [vmem:[#allocation2] sm:$0x1]
        %v715 = vperm.slane %v713, 0
        %v717 = vadd.f32 %v712, %v715
        %718 = vst.msk [vmem:[%s319] sm:$0xff] %vm660, %v717
        %p719 = scmp.lt.s32.totalorder %s19, 1
        %s720 = scalar_select %p719, %s19, 1
        %s721 = smul.addr %s720, 8
        %s722 = scalar_lea.vmem %s7, %s721
        // Predicated region
        $region53: #{transformer_forward.43} parent=47 // pred_check
          %p723 = pneg %p199
        $region54: #{transformer_forward.43} parent=47 // pred_check_branch
          %725 = sbr.rel (%p723) target = $region56
        $region55: #{transformer_forward.43} parent=47 // pred_region
          _
        $region56: #{transformer_forward.43} parent=47 // pred_fallthru
          _
      $region48: #{transformer_forward.43} parent=5 // pred_fallthru
        _
      %p726 = scmp.le.s32.totalorder 2, %s14
      // Predicated region
      $region57: #{transformer_forward.43} parent=5 // pred_check
        %p727 = pneg %p726
      $region58: #{transformer_forward.43} parent=5 // pred_check_branch
        %729 = sbr.rel (%p727) target = $region60
      $region59: #{transformer_forward.43} parent=5 // pred_region
        %s730 = ssub.s32 %s14, 2
        // Predicated region
        $region61: #{transformer_forward.43} parent=59 // pred_check
          %p731 = pneg %p205
        $region62: #{transformer_forward.43} parent=59 // pred_check_branch
          %733 = sbr.rel (%p731) target = $region64
        $region63: #{transformer_forward.43} parent=59 // pred_region
          %p734 = scmp.lt.s32.totalorder %s20, 1
          %s735 = scalar_select %p734, %s20, 1
          %s736 = smul.addr %s735, 8
          %s737 = scalar_lea.vmem %s7, %s736
        $region64: #{transformer_forward.43} parent=59 // pred_fallthru
          _
      $region60: #{transformer_forward.43} parent=5 // pred_fallthru
        _
    $region6: #{transformer_forward.43} parent=1 // loop_footer
      %s18 = sadd.s32 1, %s14
    $region7: #{transformer_forward.43} parent=1 // loop_footer_branch
      %13 = sbr.rel target = $region3
    $region8: #{transformer_forward.43} parent=1 // loop_exit
      _
    %738 = vsyncpa [#allocation3], 1
    %s739 = scalar_lea.sflag [#allocation3], 1
    %740 = vsyncpa %s739, 1

// kernel: transformer_forward.46
$region0: #{transformer_forward.46}
  #allocation0 [shape = 'u32[]', space=smem, size = 0x4, offset = 0x4, fixed_abs, tag = 'smem constant byte address 0x4 - core index']
  #allocation1 [shape = 'u32[72,128]{1,0:T(1,128)}', space=vmem, size = 0x9000, scoped, tag = 'internal scratch']
  %s0 = inlined_call_operand.vmem [shape: s32[2,1,8], index: 0, kind: input, shape index: {}]
  %s1 = inlined_call_operand.vmem [shape: bf16[2,8,32], index: 1, kind: input, shape index: {}]
  %s2 = inlined_call_operand.vmem [shape: bf16[2,8,64], index: 2, kind: input, shape index: {}]
  %s3 = inlined_call_operand.vmem [shape: bf16[32,32], index: 3, kind: input, shape index: {}]
  %s4 = inlined_call_operand.vmem [shape: f32[1,32], index: 4, kind: input, shape index: {}]
  %s5 = inlined_call_operand.vmem [shape: f32[2,8,32], index: 5, kind: input, shape index: {}]
  %s6 = inlined_call_operand.hbm [shape: f32[1,32], index: 6, kind: input, shape index: {}]
  %s7 = inlined_call_operand.hbm [shape: f32[1,32], index: 7, kind: input, shape index: {}]
  %s8 = inlined_call_operand.vmem [shape: f32[2,8,32], index: 8, kind: output, shape index: {}]
  %s9 = sld [smem:[#allocation0]]
  $region73: #{transformer_forward.46} parent=0
    _
  %s11 = ssub.s32 1, %s9
  %s12 = scalar_select 0, %s11, %s9
  $region1: #{transformer_forward.46} parent=0
    #allocation2 [shape = 'u8[512]{0}', space=vmem, size = 0x400, scoped, tag = 'input window, operand 6, single buffered']
    #allocation3 [shape = 's32[2]{0}', space=sflag, size = 0x8, scoped, tag = 'scoped memory for transformer_forward.46']
    #allocation4 [shape = 'u8[512]{0}', space=vmem, size = 0x400, scoped, tag = 'input window, operand 7, single buffered']
    #allocation5 [shape = 's32[1]{0}', space=sflag, size = 0x4, scoped, tag = 'scoped memory for transformer_forward.46']
    %13 = vsyncpa [#allocation3], 0
    %14 = vsyncpa [#allocation5], 0
    loop: start=0, step=1, limit=4
    $region2: #{transformer_forward.46} parent=1 // loop_pre_header
      _
    $region3: #{transformer_forward.46} parent=1 // loop_header
      %s16 = sphi 0, %s20
      %p17 = scmp.ge.s32.totalorder %s16, 4
      %s26 = sphi 0, %s28
      %s29 = sphi 0, %s26
      %s30 = sphi 0, %s29
      %s46 = sphi 0, %s30
      %s52 = sphi 0, %s54
      %s55 = sphi 0, %s52
      %s56 = sphi 0, %s55
      %s72 = sphi 0, %s56
      %s78 = sphi 0, %s80
      %s81 = sphi 0, %s78
      %s82 = sphi 0, %s81
      %s98 = sphi 0, %s82
      %s102 = sphi 0, %s102
      %s104 = sphi 0, %s102
      %s105 = sphi 0, %s104
      %s119 = sphi 0, %s105
      %s123 = sphi 0, %s123
      %s125 = sphi 0, %s123
      %s126 = sphi 0, %s125
      %s140 = sphi 0, %s126
      %s146 = sphi 0, %s148
      %s149 = sphi 0, %s146
      %s150 = sphi 0, %s149
      %s166 = sphi 0, %s150
      %s170 = sphi 0, %s170
      %s172 = sphi 0, %s170
      %s173 = sphi 0, %s172
      %s187 = sphi 0, %s173
      %s191 = sphi 0, %s191
      %s193 = sphi 0, %s191
      %s194 = sphi 0, %s193
      %s208 = sphi 0, %s194
      %s214 = sphi 0, %s216
      %s217 = sphi 0, %s214
      %s218 = sphi 0, %s217
      %s234 = sphi 0, %s218
    $region4: #{transformer_forward.46} parent=1 // loop_header_branch
      %19 = sbr.rel (%p17) target = $region8
    $region5: #{transformer_forward.46} parent=1 // loop_body
      %s21 = ssub.s32 %s16, 1
      %s22 = ssub.s32 %s16, 2
      %s23 = sadd.s32 %s16, 1
      %s24 = ssub.s32 %s16, %s23
      %p25 = scmp.eq.s32.totalorder %s24, 0
      %s27 = sadd.s32 %s26, 1
      %s28 = scalar_select %p25, %s26, %s27
      %p31 = pneg %p25
      %p32 = scmp.eq.s32.totalorder %s16, 1
      %p33 = por %p31, %p32
      %p34 = scmp.ne.s32.totalorder %s26, %s29
      %p35 = scmp.eq.s32.totalorder %s16, 0
      %p36 = por %p34, %p35
      %p37 = scmp.ne.s32.totalorder %s26, %s29
      %p38 = scmp.eq.s32.totalorder %s21, 1
      %p39 = por %p37, %p38
      %p40 = scmp.ne.s32.totalorder %s29, %s30
      %p41 = scmp.eq.s32.totalorder %s21, 0
      %p42 = por %p40, %p41
      %p43 = scmp.ne.s32.totalorder %s29, %s30
      %p44 = scmp.eq.s32.totalorder %s22, 1
      %p45 = por %p43, %p44
      %p47 = scmp.ne.s32.totalorder %s30, %s46
      %p48 = scmp.eq.s32.totalorder %s22, 0
      %p49 = por %p47, %p48
      %s50 = ssub.s32 %s16, %s23
      %p51 = scmp.eq.s32.totalorder %s50, 0
      %s53 = sadd.s32 %s52, 1
      %s54 = scalar_select %p51, %s52, %s53
      %p57 = pneg %p51
      %p58 = scmp.eq.s32.totalorder %s16, 1
      %p59 = por %p57, %p58
      %p60 = scmp.ne.s32.totalorder %s52, %s55
      %p61 = scmp.eq.s32.totalorder %s16, 0
      %p62 = por %p60, %p61
      %p63 = scmp.ne.s32.totalorder %s52, %s55
      %p64 = scmp.eq.s32.totalorder %s21, 1
      %p65 = por %p63, %p64
      %p66 = scmp.ne.s32.totalorder %s55, %s56
      %p67 = scmp.eq.s32.totalorder %s21, 0
      %p68 = por %p66, %p67
      %p69 = scmp.ne.s32.totalorder %s55, %s56
      %p70 = scmp.eq.s32.totalorder %s22, 1
      %p71 = por %p69, %p70
      %p73 = scmp.ne.s32.totalorder %s56, %s72
      %p74 = scmp.eq.s32.totalorder %s22, 0
      %p75 = por %p73, %p74
      %s76 = ssub.s32 %s16, %s23
      %p77 = scmp.eq.s32.totalorder %s76, 0
      %s79 = sadd.s32 %s78, 1
      %s80 = scalar_select %p77, %s78, %s79
      %p83 = pneg %p77
      %p84 = scmp.eq.s32.totalorder %s16, 1
      %p85 = por %p83, %p84
      %p86 = scmp.ne.s32.totalorder %s78, %s81
      %p87 = scmp.eq.s32.totalorder %s16, 0
      %p88 = por %p86, %p87
      %p89 = scmp.ne.s32.totalorder %s78, %s81
      %p90 = scmp.eq.s32.totalorder %s21, 1
      %p91 = por %p89, %p90
      %p92 = scmp.ne.s32.totalorder %s81, %s82
      %p93 = scmp.eq.s32.totalorder %s21, 0
      %p94 = por %p92, %p93
      %p95 = scmp.ne.s32.totalorder %s81, %s82
      %p96 = scmp.eq.s32.totalorder %s22, 1
      %p97 = por %p95, %p96
      %p99 = scmp.ne.s32.totalorder %s82, %s98
      %p100 = scmp.eq.s32.totalorder %s22, 0
      %p101 = por %p99, %p100
      %s103 = sadd.s32 %s102, 1
      %p106 = scmp.eq.s32.totalorder %s16, 1
      %p107 = scmp.ne.s32.totalorder %s102, %s104
      %p108 = scmp.eq.s32.totalorder %s16, 0
      %p109 = por %p107, %p108
      %p110 = scmp.ne.s32.totalorder %s102, %s104
      %p111 = scmp.eq.s32.totalorder %s21, 1
      %p112 = por %p110, %p111
      %p113 = scmp.ne.s32.totalorder %s104, %s105
      %p114 = scmp.eq.s32.totalorder %s21, 0
      %p115 = por %p113, %p114
      %p116 = scmp.ne.s32.totalorder %s104, %s105
      %p117 = scmp.eq.s32.totalorder %s22, 1
      %p118 = por %p116, %p117
      %p120 = scmp.ne.s32.totalorder %s105, %s119
      %p121 = scmp.eq.s32.totalorder %s22, 0
      %p122 = por %p120, %p121
      %s124 = sadd.s32 %s123, 1
      %p127 = scmp.eq.s32.totalorder %s16, 1
      %p128 = scmp.ne.s32.totalorder %s123, %s125
      %p129 = scmp.eq.s32.totalorder %s16, 0
      %p130 = por %p128, %p129
      %p131 = scmp.ne.s32.totalorder %s123, %s125
      %p132 = scmp.eq.s32.totalorder %s21, 1
      %p133 = por %p131, %p132
      %p134 = scmp.ne.s32.totalorder %s125, %s126
      %p135 = scmp.eq.s32.totalorder %s21, 0
      %p136 = por %p134, %p135
      %p137 = scmp.ne.s32.totalorder %s125, %s126
      %p138 = scmp.eq.s32.totalorder %s22, 1
      %p139 = por %p137, %p138
      %p141 = scmp.ne.s32.totalorder %s126, %s140
      %p142 = scmp.eq.s32.totalorder %s22, 0
      %p143 = por %p141, %p142
      %s144 = ssub.s32 %s16, %s23
      %p145 = scmp.eq.s32.totalorder %s144, 0
      %s147 = sadd.s32 %s146, 1
      %s148 = scalar_select %p145, %s146, %s147
      %p151 = pneg %p145
      %p152 = scmp.eq.s32.totalorder %s16, 1
      %p153 = por %p151, %p152
      %p154 = scmp.ne.s32.totalorder %s146, %s149
      %p155 = scmp.eq.s32.totalorder %s16, 0
      %p156 = por %p154, %p155
      %p157 = scmp.ne.s32.totalorder %s146, %s149
      %p158 = scmp.eq.s32.totalorder %s21, 1
      %p159 = por %p157, %p158
      %p160 = scmp.ne.s32.totalorder %s149, %s150
      %p161 = scmp.eq.s32.totalorder %s21, 0
      %p162 = por %p160, %p161
      %p163 = scmp.ne.s32.totalorder %s149, %s150
      %p164 = scmp.eq.s32.totalorder %s22, 1
      %p165 = por %p163, %p164
      %p167 = scmp.ne.s32.totalorder %s150, %s166
      %p168 = scmp.eq.s32.totalorder %s22, 0
      %p169 = por %p167, %p168
      %s171 = sadd.s32 %s170, 1
      %p174 = scmp.eq.s32.totalorder %s16, 1
      %p175 = scmp.ne.s32.totalorder %s170, %s172
      %p176 = scmp.eq.s32.totalorder %s16, 0
      %p177 = por %p175, %p176
      %p178 = scmp.ne.s32.totalorder %s170, %s172
      %p179 = scmp.eq.s32.totalorder %s21, 1
      %p180 = por %p178, %p179
      %p181 = scmp.ne.s32.totalorder %s172, %s173
      %p182 = scmp.eq.s32.totalorder %s21, 0
      %p183 = por %p181, %p182
      %p184 = scmp.ne.s32.totalorder %s172, %s173
      %p185 = scmp.eq.s32.totalorder %s22, 1
      %p186 = por %p184, %p185
      %p188 = scmp.ne.s32.totalorder %s173, %s187
      %p189 = scmp.eq.s32.totalorder %s22, 0
      %p190 = por %p188, %p189
      %s192 = sadd.s32 %s191, 1
      %p195 = scmp.eq.s32.totalorder %s16, 1
      %p196 = scmp.ne.s32.totalorder %s191, %s193
      %p197 = scmp.eq.s32.totalorder %s16, 0
      %p198 = por %p196, %p197
      %p199 = scmp.ne.s32.totalorder %s191, %s193
      %p200 = scmp.eq.s32.totalorder %s21, 1
      %p201 = por %p199, %p200
      %p202 = scmp.ne.s32.totalorder %s193, %s194
      %p203 = scmp.eq.s32.totalorder %s21, 0
      %p204 = por %p202, %p203
      %p205 = scmp.ne.s32.totalorder %s193, %s194
      %p206 = scmp.eq.s32.totalorder %s22, 1
      %p207 = por %p205, %p206
      %p209 = scmp.ne.s32.totalorder %s194, %s208
      %p210 = scmp.eq.s32.totalorder %s22, 0
      %p211 = por %p209, %p210
      %s212 = ssub.s32 %s16, %s23
      %p213 = scmp.eq.s32.totalorder %s212, 0
      %s215 = sadd.s32 %s214, 1
      %s216 = scalar_select %p213, %s214, %s215
      %p219 = pneg %p213
      %p220 = scmp.eq.s32.totalorder %s16, 1
      %p221 = por %p219, %p220
      %p222 = scmp.ne.s32.totalorder %s214, %s217
      %p223 = scmp.eq.s32.totalorder %s16, 0
      %p224 = por %p222, %p223
      %p225 = scmp.ne.s32.totalorder %s214, %s217
      %p226 = scmp.eq.s32.totalorder %s21, 1
      %p227 = por %p225, %p226
      %p228 = scmp.ne.s32.totalorder %s217, %s218
      %p229 = scmp.eq.s32.totalorder %s21, 0
      %p230 = por %p228, %p229
      %p231 = scmp.ne.s32.totalorder %s217, %s218
      %p232 = scmp.eq.s32.totalorder %s22, 1
      %p233 = por %p231, %p232
      %p235 = scmp.ne.s32.totalorder %s218, %s234
      %p236 = scmp.eq.s32.totalorder %s22, 0
      %p237 = por %p235, %p236
      %p238 = scmp.le.s32.totalorder 1, %s16
      %p239 = scmp.lt.s32.totalorder %s16, 3
      %p240 = pnand %p238, %p239
      %p241 = pneg %p240
      // Predicated region
      $region9: #{transformer_forward.46} parent=5 // pred_check
        _
      $region10: #{transformer_forward.46} parent=5 // pred_check_branch
        %243 = sbr.rel (%p240) target = $region12
      $region11: #{transformer_forward.46} parent=5 // pred_region
        %s244 = ssub.s32 %s16, 1
        // Predicated region
        $region13: #{transformer_forward.46} parent=11 // pred_check
          %p245 = pneg %p115
        $region14: #{transformer_forward.46} parent=11 // pred_check_branch
          %247 = sbr.rel (%p245) target = $region16
        $region15: #{transformer_forward.46} parent=11 // pred_region
          _
        $region16: #{transformer_forward.46} parent=11 // pred_fallthru
          _
        // Predicated region
        $region17: #{transformer_forward.46} parent=11 // pred_check
          %p248 = pneg %p136
        $region18: #{transformer_forward.46} parent=11 // pred_check_branch
          %250 = sbr.rel (%p248) target = $region20
        $region19: #{transformer_forward.46} parent=11 // pred_region
          _
        $region20: #{transformer_forward.46} parent=11 // pred_fallthru
          _
        // Predicated region
        $region21: #{transformer_forward.46} parent=11 // pred_check
          %p251 = pneg %p183
        $region22: #{transformer_forward.46} parent=11 // pred_check_branch
          %253 = sbr.rel (%p251) target = $region24
        $region23: #{transformer_forward.46} parent=11 // pred_region
          %255 = vsyncadd [#allocation3], 0
          %s257 = sshll.u32 %s6, 4
          %s258 = int_to_ptr.hbm [resolvable:$true] %s257
          %s259 = sshll.u32 [#allocation2], 4
          %s260 = int_to_ptr.vmem [resolvable:$true] %s259
          %262 = dma.hbm_to_vmem [thread:$0]  %s258, 16, %s260, [#allocation3]
        $region24: #{transformer_forward.46} parent=11 // pred_fallthru
          _
        // Predicated region
        $region25: #{transformer_forward.46} parent=11 // pred_check
          %p263 = pneg %p204
        $region26: #{transformer_forward.46} parent=11 // pred_check_branch
          %265 = sbr.rel (%p263) target = $region28
        $region27: #{transformer_forward.46} parent=11 // pred_region
          %267 = vsyncadd [#allocation5], 0
          %s269 = sshll.u32 %s7, 4
          %s270 = int_to_ptr.hbm [resolvable:$true] %s269
          %s271 = sshll.u32 [#allocation4], 4
          %s272 = int_to_ptr.vmem [resolvable:$true] %s271
          %274 = dma.hbm_to_vmem [thread:$0]  %s270, 16, %s272, [#allocation5]
        $region28: #{transformer_forward.46} parent=11 // pred_fallthru
          _
      $region12: #{transformer_forward.46} parent=5 // pred_fallthru
        _
      %p275 = scmp.lt.s32.totalorder %s16, 2
      // Predicated region
      $region29: #{transformer_forward.46} parent=5 // pred_check
        %p276 = pneg %p275
      $region30: #{transformer_forward.46} parent=5 // pred_check_branch
        %278 = sbr.rel (%p276) target = $region32
      $region31: #{transformer_forward.46} parent=5 // pred_region
        // Predicated region
        $region33: #{transformer_forward.46} parent=31 // pred_check
          %p279 = pneg %p36
        $region34: #{transformer_forward.46} parent=31 // pred_check_branch
          %281 = sbr.rel (%p279) target = $region36
        $region35: #{transformer_forward.46} parent=31 // pred_region
          %p282 = scmp.lt.s32.totalorder %s16, 1
          %s283 = scalar_select %p282, %s16, 1
          %s284 = scalar_lea.vmem %s0, %s283
        $region36: #{transformer_forward.46} parent=31 // pred_fallthru
          _
        // Predicated region
        $region37: #{transformer_forward.46} parent=31 // pred_check
          %p285 = pneg %p62
        $region38: #{transformer_forward.46} parent=31 // pred_check_branch
          %287 = sbr.rel (%p285) target = $region40
        $region39: #{transformer_forward.46} parent=31 // pred_region
          %p288 = scmp.lt.s32.totalorder %s16, 1
          %s289 = scalar_select %p288, %s16, 1
          %s290 = smul.addr %s289, 4
          %s291 = scalar_lea.vmem %s1, %s290
        $region40: #{transformer_forward.46} parent=31 // pred_fallthru
          _
        // Predicated region
        $region41: #{transformer_forward.46} parent=31 // pred_check
          %p292 = pneg %p88
        $region42: #{transformer_forward.46} parent=31 // pred_check_branch
          %294 = sbr.rel (%p292) target = $region44
        $region43: #{transformer_forward.46} parent=31 // pred_region
          %p295 = scmp.lt.s32.totalorder %s16, 1
          %s296 = scalar_select %p295, %s16, 1
          %s297 = smul.addr %s296, 4
          %s298 = scalar_lea.vmem %s2, %s297
        $region44: #{transformer_forward.46} parent=31 // pred_fallthru
          _
        // Predicated region
        $region45: #{transformer_forward.46} parent=31 // pred_check
          %p299 = pneg %p156
        $region46: #{transformer_forward.46} parent=31 // pred_check_branch
          %301 = sbr.rel (%p299) target = $region48
        $region47: #{transformer_forward.46} parent=31 // pred_region
          %p302 = scmp.lt.s32.totalorder %s16, 1
          %s303 = scalar_select %p302, %s16, 1
          %s304 = smul.addr %s303, 8
          %s305 = scalar_lea.vmem %s5, %s304
        $region48: #{transformer_forward.46} parent=31 // pred_fallthru
          _
      $region32: #{transformer_forward.46} parent=5 // pred_fallthru
        _
      %p306 = scmp.le.s32.totalorder 1, %s16
      %p307 = scmp.lt.s32.totalorder %s16, 3
      %p308 = pnand %p306, %p307
      %p309 = pneg %p308
      // Predicated region
      $region49: #{transformer_forward.46} parent=5 // pred_check
        _
      $region50: #{transformer_forward.46} parent=5 // pred_check_branch
        %311 = sbr.rel (%p308) target = $region52
      $region51: #{transformer_forward.46} parent=5 // pred_region
        %s312 = ssub.s32 %s16, 1
        // Predicated region
        $region53: #{transformer_forward.46} parent=51 // pred_check
          %p313 = pneg %p183
        $region54: #{transformer_forward.46} parent=51 // pred_check_branch
          %315 = sbr.rel (%p313) target = $region56
        $region55: #{transformer_forward.46} parent=51 // pred_region
          %317 = dma.done [#allocation3], 16
        $region56: #{transformer_forward.46} parent=51 // pred_fallthru
          _
        // Predicated region
        $region57: #{transformer_forward.46} parent=51 // pred_check
          %p318 = pneg %p204
        $region58: #{transformer_forward.46} parent=51 // pred_check_branch
          %320 = sbr.rel (%p318) target = $region60
        $region59: #{transformer_forward.46} parent=51 // pred_region
          %322 = dma.done [#allocation5], 16
        $region60: #{transformer_forward.46} parent=51 // pred_fallthru
          _
        %p323 = scmp.lt.s32.totalorder %s21, 1
        %s324 = scalar_select %p323, %s21, 1
        %s325 = scalar_lea.vmem %s0, %s324
        %p326 = pneg %p42
        %p327 = pneg %p39
        %p328 = scmp.lt.s32.totalorder %s21, 1
        %s329 = scalar_select %p328, %s21, 1
        %s330 = smul.addr %s329, 4
        %s331 = scalar_lea.vmem %s1, %s330
        %p332 = pneg %p68
        %p333 = pneg %p65
        %p334 = scmp.lt.s32.totalorder %s21, 1
        %s335 = scalar_select %p334, %s21, 1
        %s336 = smul.addr %s335, 4
        %s337 = scalar_lea.vmem %s2, %s336
        %p338 = pneg %p94
        %p339 = pneg %p91
        %p340 = pneg %p115
        %p341 = pneg %p112
        %p342 = pneg %p136
        %p343 = pneg %p133
        %p344 = scmp.lt.s32.totalorder %s21, 1
        %s345 = scalar_select %p344, %s21, 1
        %s346 = smul.addr %s345, 8
        %s347 = scalar_lea.vmem %s5, %s346
        %p348 = pneg %p162
        %p349 = pneg %p159
        %p350 = pneg %p183
        %p351 = pneg %p180
        %p352 = pneg %p204
        %p353 = pneg %p201
        %p354 = pneg %p230
        %p355 = pneg %p227
        %p356 = scmp.lt.s32.totalorder %s21, 1
        %s357 = scalar_select %p356, %s21, 1
        %s358 = smul.addr %s357, 8
        %s359 = scalar_lea.vmem %s8, %s358
        %p360 = scmp.lt.s32.totalorder %s21, 1
        %s361 = scalar_select %p360, %s21, 1
        %s362 = scalar_lea.vmem %s0, %s361
        %p363 = scmp.lt.s32.totalorder %s21, 1
        %s364 = scalar_select %p363, %s21, 1
        %s365 = smul.addr %s364, 4
        %s366 = scalar_lea.vmem %s1, %s365
        %p367 = scmp.lt.s32.totalorder %s21, 1
        %s368 = scalar_select %p367, %s21, 1
        %s369 = smul.addr %s368, 4
        %s370 = scalar_lea.vmem %s2, %s369
        %p371 = scmp.lt.s32.totalorder %s21, 1
        %s372 = scalar_select %p371, %s21, 1
        %s373 = smul.addr %s372, 8
        %s374 = scalar_lea.vmem %s5, %s373
        %p375 = scmp.lt.s32.totalorder %s21, 1
        %s376 = scalar_select %p375, %s21, 1
        %s377 = smul.addr %s376, 8
        %s378 = scalar_lea.vmem %s8, %s377
        %v380 = vld [vmem:[%s370] sm:$0xf]
        %v381 = vld [vmem:[%s362] sm:$0x1]
        %vm382 = vcmp.ne.s32.totalorder %v381, 0
        %v383 = vsel %vm382, -1e+09, 0.0
        %v384 = vld [vmem:[%s366] sm:$0xf]
        %vm385 = vcmask 64512
        %v387 = vsel %vm385, %v384, 0
        %v390 = vsel %vm385, %v380, 0
        %392 = vmatpush.bf16.xpose.msra.mxu0 0
        %393 = vmatpush.bf16.xpose.msra.mxu0 0
        %394 = vmatpush.bf16.xpose.msra.mxu0 0
        %395 = vmatpush.bf16.xpose.msra.mxu0 0
        %396 = vmatpush.bf16.xpose.msra.mxu0 0
        %397 = vmatpush.bf16.xpose.msra.mxu0 0
        %398 = vmatpush.bf16.xpose.msra.mxu0 0
        %399 = vmatpush.bf16.xpose.msra.mxu0 %v390
        %400 = vmatmul.bf16.gmra.mxu0 %v387
        %v401 = vpop.f32.mrf.mxu0
        %v402 = vadd.f32 0.0, %v401
        %v403 = vpop.f32.mrf.mxu0
        %404 = vdwg.mxu0
        %v405 = vmul.f32 %v402, 0.35355338
        %v407 = vperm.slane %v383, 0
        %v409 = vadd.f32 %v405, %v407
        %v410 = vsel %vm385, %v409, -inf
        %411 = vmax.xlane.f32.xlu0 %v410
        %v412 = vpop.xlane.xlu0 %411
        %v413 = vsub.f32 %v409, %v412
        %v414 = vmul.f32 %v413, 1.442695
        %v415 = vpow.pop %v414
        %v416 = vsel %vm385, %v415, 0.0
        %417 = vadd.xlane.f32.xlu0 %v416
        %v418 = vpop.xlane.xlu0 %417
        %v419 = vrcp.pop %v418
        %v420 = vmul.f32 %v418, %v419
        %v421 = vsub.f32 1.0, %v420
        %v422 = vmul.f32 %v419, %v421
        %v423 = vadd.f32 %v419, %v422
        %vm424 = vweird.f32 %v418
        %vm425 = vweird.f32 %v419
        %vm426 = vmor %vm424, %vm425
        %v427 = vsel %vm426, %v419, %v423
        %v428 = vand.u32 2147483647, %v418
        %vm429 = vcmp.eq.f32.partialorder %v428, 8.507059e+37
        %v430 = vand.u32 %v418, 2147483648
        %v431 = vor.u32 1.1754944e-38, %v430
        %v432 = vsel %vm429, %v431, %v427
        %v433 = vmul.f32 %v415, %v432
        %v434 = vpack.c.bf16 %v433, %v433
        %v436 = vunpack.c.l.b16 %v380
        %v437 = vpack.c.b16 %v436, %v436
        %438 = vrot.lane.b32.xlu0 %v437, 96
        %v439 = vpop.permute.xlu0 %438
        %v441 = vsel %vm385, %v434, 0
        %vm443 = vcmask 1043456
        %v445 = vsel %vm443, %v439, 0
        %447 = vmatpush.bf16.msra.mxu0 0
        %448 = vmatpush.bf16.msra.mxu0 0
        %449 = vmatpush.bf16.msra.mxu0 0
        %450 = vmatpush.bf16.msra.mxu0 0
        %451 = vmatpush.bf16.msra.mxu0 0
        %452 = vmatpush.bf16.msra.mxu0 0
        %453 = vmatpush.bf16.msra.mxu0 0
        %454 = vmatpush.bf16.msra.mxu0 %v445
        %455 = vmatmul.bf16.gmra.mxu0 %v441
        %v456 = vpop.f32.mrf.mxu0
        %v457 = vadd.f32 0.0, %v456
        %v458 = vpop.f32.mrf.mxu0
        %459 = vdwg.mxu0
        %v461 = vunpack.c.l.b16 %v384
        %v462 = vpack.c.b16 %v461, %v461
        %463 = vrot.lane.b32.xlu0 %v462, 120
        %v464 = vpop.permute.xlu0 %463
        %465 = vrot.lane.b32.xlu0 %v437, 120
        %v466 = vpop.permute.xlu0 %465
        %v468 = vsel %vm385, %v464, 0
        %v471 = vsel %vm385, %v466, 0
        %473 = vmatpush.bf16.xpose.msra.mxu0 0
        %474 = vmatpush.bf16.xpose.msra.mxu0 0
        %475 = vmatpush.bf16.xpose.msra.mxu0 0
        %476 = vmatpush.bf16.xpose.msra.mxu0 0
        %477 = vmatpush.bf16.xpose.msra.mxu0 0
        %478 = vmatpush.bf16.xpose.msra.mxu0 0
        %479 = vmatpush.bf16.xpose.msra.mxu0 0
        %480 = vmatpush.bf16.xpose.msra.mxu0 %v471
        %481 = vmatmul.bf16.gmra.mxu0 %v468
        %v482 = vpop.f32.mrf.mxu0
        %v483 = vadd.f32 0.0, %v482
        %v484 = vpop.f32.mrf.mxu0
        %485 = vdwg.mxu0
        %v486 = vmul.f32 %v483, 0.35355338
        %v487 = vadd.f32 %v486, %v407
        %v488 = vsel %vm385, %v487, -inf
        %489 = vmax.xlane.f32.xlu0 %v488
        %v490 = vpop.xlane.xlu0 %489
        %v491 = vsub.f32 %v487, %v490
        %v492 = vmul.f32 %v491, 1.442695
        %v493 = vpow.pop %v492
        %v494 = vsel %vm385, %v493, 0.0
        %495 = vadd.xlane.f32.xlu0 %v494
        %v496 = vpop.xlane.xlu0 %495
        %v497 = vrcp.pop %v496
        %v498 = vmul.f32 %v496, %v497
        %v499 = vsub.f32 1.0, %v498
        %v500 = vmul.f32 %v497, %v499
        %v501 = vadd.f32 %v497, %v500
        %vm502 = vweird.f32 %v496
        %vm503 = vweird.f32 %v497
        %vm504 = vmor %vm502, %vm503
        %v505 = vsel %vm504, %v497, %v501
        %v506 = vand.u32 2147483647, %v496
        %vm507 = vcmp.eq.f32.partialorder %v506, 8.507059e+37
        %v508 = vand.u32 %v496, 2147483648
        %v509 = vor.u32 1.1754944e-38, %v508
        %v510 = vsel %vm507, %v509, %v505
        %v511 = vmul.f32 %v493, %v510
        %v512 = vpack.c.bf16 %v511, %v511
        %513 = vrot.lane.b32.xlu0 %v437, 88
        %v514 = vpop.permute.xlu0 %513
        %v516 = vsel %vm385, %v512, 0
        %v519 = vsel %vm443, %v514, 0
        %521 = vmatpush.bf16.msra.mxu0 0
        %522 = vmatpush.bf16.msra.mxu0 0
        %523 = vmatpush.bf16.msra.mxu0 0
        %524 = vmatpush.bf16.msra.mxu0 0
        %525 = vmatpush.bf16.msra.mxu0 0
        %526 = vmatpush.bf16.msra.mxu0 0
        %527 = vmatpush.bf16.msra.mxu0 0
        %528 = vmatpush.bf16.msra.mxu0 %v519
        %529 = vmatmul.bf16.gmra.mxu0 %v516
        %v530 = vpop.f32.mrf.mxu0
        %v531 = vadd.f32 0.0, %v530
        %v532 = vpop.f32.mrf.mxu0
        %533 = vdwg.mxu0
        %534 = vrot.lane.b32.xlu0 %v462, 112
        %v535 = vpop.permute.xlu0 %534
        %536 = vrot.lane.b32.xlu0 %v437, 112
        %v537 = vpop.permute.xlu0 %536
        %v539 = vsel %vm385, %v535, 0
        %v542 = vsel %vm385, %v537, 0
        %544 = vmatpush.bf16.xpose.msra.mxu0 0
        %545 = vmatpush.bf16.xpose.msra.mxu0 0
        %546 = vmatpush.bf16.xpose.msra.mxu0 0
        %547 = vmatpush.bf16.xpose.msra.mxu0 0
        %548 = vmatpush.bf16.xpose.msra.mxu0 0
        %549 = vmatpush.bf16.xpose.msra.mxu0 0
        %550 = vmatpush.bf16.xpose.msra.mxu0 0
        %551 = vmatpush.bf16.xpose.msra.mxu0 %v542
        %552 = vmatmul.bf16.gmra.mxu0 %v539
        %v553 = vpop.f32.mrf.mxu0
        %v554 = vadd.f32 0.0, %v553
        %v555 = vpop.f32.mrf.mxu0
        %556 = vdwg.mxu0
        %v557 = vmul.f32 %v554, 0.35355338
        %v558 = vadd.f32 %v557, %v407
        %v559 = vsel %vm385, %v558, -inf
        %560 = vmax.xlane.f32.xlu0 %v559
        %v561 = vpop.xlane.xlu0 %560
        %v562 = vsub.f32 %v558, %v561
        %v563 = vmul.f32 %v562, 1.442695
        %v564 = vpow.pop %v563
        %v565 = vsel %vm385, %v564, 0.0
        %566 = vadd.xlane.f32.xlu0 %v565
        %v567 = vpop.xlane.xlu0 %566
        %v568 = vrcp.pop %v567
        %v569 = vmul.f32 %v567, %v568
        %v570 = vsub.f32 1.0, %v569
        %v571 = vmul.f32 %v568, %v570
        %v572 = vadd.f32 %v568, %v571
        %vm573 = vweird.f32 %v567
        %vm574 = vweird.f32 %v568
        %vm575 = vmor %vm573, %vm574
        %v576 = vsel %vm575, %v568, %v572
        %v577 = vand.u32 2147483647, %v567
        %vm578 = vcmp.eq.f32.partialorder %v577, 8.507059e+37
        %v579 = vand.u32 %v567, 2147483648
        %v580 = vor.u32 1.1754944e-38, %v579
        %v581 = vsel %vm578, %v580, %v576
        %v582 = vmul.f32 %v564, %v581
        %v583 = vpack.c.bf16 %v582, %v582
        %584 = vrot.lane.b32.xlu0 %v437, 80
        %v585 = vpop.permute.xlu0 %584
        %v587 = vsel %vm385, %v583, 0
        %v590 = vsel %vm443, %v585, 0
        %592 = vmatpush.bf16.msra.mxu0 0
        %593 = vmatpush.bf16.msra.mxu0 0
        %594 = vmatpush.bf16.msra.mxu0 0
        %595 = vmatpush.bf16.msra.mxu0 0
        %596 = vmatpush.bf16.msra.mxu0 0
        %597 = vmatpush.bf16.msra.mxu0 0
        %598 = vmatpush.bf16.msra.mxu0 0
        %599 = vmatpush.bf16.msra.mxu0 %v590
        %600 = vmatmul.bf16.gmra.mxu0 %v587
        %v601 = vpop.f32.mrf.mxu0
        %v602 = vadd.f32 0.0, %v601
        %v603 = vpop.f32.mrf.mxu0
        %604 = vdwg.mxu0
        %605 = vrot.lane.b32.xlu0 %v462, 104
        %v606 = vpop.permute.xlu0 %605
        %607 = vrot.lane.b32.xlu0 %v437, 104
        %v608 = vpop.permute.xlu0 %607
        %v610 = vsel %vm385, %v606, 0
        %v613 = vsel %vm385, %v608, 0
        %615 = vmatpush.bf16.xpose.msra.mxu0 0
        %616 = vmatpush.bf16.xpose.msra.mxu0 0
        %617 = vmatpush.bf16.xpose.msra.mxu0 0
        %618 = vmatpush.bf16.xpose.msra.mxu0 0
        %619 = vmatpush.bf16.xpose.msra.mxu0 0
        %620 = vmatpush.bf16.xpose.msra.mxu0 0
        %621 = vmatpush.bf16.xpose.msra.mxu0 0
        %622 = vmatpush.bf16.xpose.msra.mxu0 %v613
        %623 = vmatmul.bf16.gmra.mxu0 %v610
        %v624 = vpop.f32.mrf.mxu0
        %v625 = vadd.f32 0.0, %v624
        %v626 = vpop.f32.mrf.mxu0
        %627 = vdwg.mxu0
        %v628 = vmul.f32 %v625, 0.35355338
        %v629 = vadd.f32 %v628, %v407
        %v630 = vsel %vm385, %v629, -inf
        %631 = vmax.xlane.f32.xlu0 %v630
        %v632 = vpop.xlane.xlu0 %631
        %v633 = vsub.f32 %v629, %v632
        %v634 = vmul.f32 %v633, 1.442695
        %v635 = vpow.pop %v634
        %v636 = vsel %vm385, %v635, 0.0
        %637 = vadd.xlane.f32.xlu0 %v636
        %v638 = vpop.xlane.xlu0 %637
        %v639 = vrcp.pop %v638
        %v640 = vmul.f32 %v638, %v639
        %v641 = vsub.f32 1.0, %v640
        %v642 = vmul.f32 %v639, %v641
        %v643 = vadd.f32 %v639, %v642
        %vm644 = vweird.f32 %v638
        %vm645 = vweird.f32 %v639
        %vm646 = vmor %vm644, %vm645
        %v647 = vsel %vm646, %v639, %v643
        %v648 = vand.u32 2147483647, %v638
        %vm649 = vcmp.eq.f32.partialorder %v648, 8.507059e+37
        %v650 = vand.u32 %v638, 2147483648
        %v651 = vor.u32 1.1754944e-38, %v650
        %v652 = vsel %vm649, %v651, %v647
        %v653 = vmul.f32 %v635, %v652
        %v654 = vpack.c.bf16 %v653, %v653
        %655 = vrot.lane.b32.xlu0 %v437, 72
        %v656 = vpop.permute.xlu0 %655
        %v658 = vsel %vm385, %v654, 0
        %v661 = vsel %vm443, %v656, 0
        %663 = vmatpush.bf16.msra.mxu0 0
        %664 = vmatpush.bf16.msra.mxu0 0
        %665 = vmatpush.bf16.msra.mxu0 0
        %666 = vmatpush.bf16.msra.mxu0 0
        %667 = vmatpush.bf16.msra.mxu0 0
        %668 = vmatpush.bf16.msra.mxu0 0
        %669 = vmatpush.bf16.msra.mxu0 0
        %670 = vmatpush.bf16.msra.mxu0 %v661
        %671 = vmatmul.bf16.gmra.mxu0 %v658
        %v672 = vpop.f32.mrf.mxu0
        %v673 = vadd.f32 0.0, %v672
        %v674 = vpop.f32.mrf.mxu0
        %675 = vdwg.mxu0
        %677 = vrot.lane.b32.xlu0 %v531, 8
        %v678 = vpop.permute.xlu0 %677
        %681 = vrot.lane.b32.xlu0 %v602, 16
        %v682 = vpop.permute.xlu0 %681
        %685 = vrot.lane.b32.xlu0 %v673, 24
        %v686 = vpop.permute.xlu0 %685
        %v688 = vsel %vm385, %v457, %v678
        %vm689 = vcmask 130048
        %v690 = vsel %vm689, %v688, %v682
        %vm691 = vcmask 195584
        %v692 = vsel %vm691, %v690, %v686
        %v693 = vpack.c.bf16 %v692, %v692
        %v694 = vld [vmem:[%s3] sm:$0xf]
        %v695 = vld [vmem:[%s3 + $0x4] sm:$0xf]
        %v696 = vld [vmem:[%s3 + $0x8] sm:$0xf]
        %v697 = vld [vmem:[%s3 + $0xc] sm:$0xf]
        %v698 = vld [vmem:[%s4] sm:$0x1]
        %v700 = vperm.slane %v698, 0
        %v706 = vunpack.c.l.b16 %v694
        %v707 = vunpack.c.l.b16 %v695
        %v708 = vunpack.c.l.b16 %v696
        %v709 = vunpack.c.l.b16 %v697
        %v710 = vpack.c.b16 %v707, %v706
        %v711 = vpack.c.b16 %v709, %v708
        %vm714 = vcmask 261120
        %v716 = vsel %vm714, %v693, 0
        %718 = vmatpush.bf16.msra.mxu0 0
        %719 = vmatpush.bf16.msra.mxu0 0
        %720 = vmatpush.bf16.msra.mxu0 0
        %721 = vmatpush.bf16.msra.mxu0 0
        %722 = vmatpush.bf16.msra.mxu0 0
        %723 = vmatpush.bf16.msra.mxu0 0
        %724 = vmatpush.bf16.msra.mxu0 %v711
        %725 = vmatpush.bf16.msra.mxu0 %v710
        %726 = vmatmul.bf16.gmra.mxu0 %v716
        %v727 = vpop.f32.mrf.mxu0
        %v728 = vadd.f32 %v700, %v727
        %v729 = vpop.f32.mrf.mxu0
        %730 = vdwg.mxu0
        %v731 = vld [vmem:[%s374] sm:$0xff]
        %v732 = vadd.f32 %v728, %v731
        %v733 = vsel %vm714, %v732, 0.0
        %734 = vadd.xlane.f32.xlu0 %v733
        %v735 = vpop.xlane.xlu0 %734
        %v736 = vrcp.pop 32.0
        %v737 = vmul.f32 32.0, %v736
        %v738 = vsub.f32 1.0, %v737
        %v739 = vmul.f32 %v736, %v738
        %v740 = vadd.f32 %v736, %v739
        %vm741 = vweird.f32 %v736
        %v742 = vsel %vm741, %v736, %v740
        %v743 = vmul.f32 %v735, %v742
        %v744 = vsub.f32 %v732, %v743
        %v745 = vmul.f32 %v744, %v744
        %v746 = vsel %vm714, %v745, 0.0
        %747 = vadd.xlane.f32.xlu0 %v746
        %v748 = vpop.xlane.xlu0 %747
        %v749 = vmul.f32 %v748, %v742
        %v750 = vadd.f32 %v749, 1e-05
        %v751 = vrsqrt.pop %v750
        %v752 = vmul.f32 %v751, %v750
        %v753 = vmul.f32 %v752, %v751
        %v754 = vmul.f32 0.5, %v753
        %v755 = vsub.f32 1.5, %v754
        %v756 = vmul.f32 %v751, %v755
        %vm757 = vweird.f32 %v750
        %vm758 = vweird.f32 %v751
        %vm759 = vmor %vm757, %vm758
        %v760 = vsel %vm759, %v751, %v756
        %v761 = vmul.f32 %v744, %v760
        %v762 = vld [vmem:[#allocation2] sm:$0x1]
        %v764 = vperm.slane %v762, 0
        %v766 = vmul.f32 %v761, %v764
        %v767 = vld [vmem:[#allocation4] sm:$0x1]
        %v769 = vperm.slane %v767, 0
        %v771 = vadd.f32 %v766, %v769
        %772 = vst.msk [vmem:[%s378] sm:$0xff] %vm714, %v771
        %p773 = scmp.lt.s32.totalorder %s21, 1
        %s774 = scalar_select %p773, %s21, 1
        %s775 = smul.addr %s774, 8
        %s776 = scalar_lea.vmem %s8, %s775
        // Predicated region
        $region61: #{transformer_forward.46} parent=51 // pred_check
          %p777 = pneg %p227
        $region62: #{transformer_forward.46} parent=51 // pred_check_branch
          %779 = sbr.rel (%p777) target = $region64
        $region63: #{transformer_forward.46} parent=51 // pred_region
          _
        $region64: #{transformer_forward.46} parent=51 // pred_fallthru
          _
      $region52: #{transformer_forward.46} parent=5 // pred_fallthru
        _
      %p780 = scmp.le.s32.totalorder 2, %s16
      // Predicated region
      $region65: #{transformer_forward.46} parent=5 // pred_check
        %p781 = pneg %p780
      $region66: #{transformer_forward.46} parent=5 // pred_check_branch
        %783 = sbr.rel (%p781) target = $region68
      $region67: #{transformer_forward.46} parent=5 // pred_region
        %s784 = ssub.s32 %s16, 2
        // Predicated region
        $region69: #{transformer_forward.46} parent=67 // pred_check
          %p785 = pneg %p233
        $region70: #{transformer_forward.46} parent=67 // pred_check_branch
          %787 = sbr.rel (%p785) target = $region72
        $region71: #{transformer_forward.46} parent=67 // pred_region
          %p788 = scmp.lt.s32.totalorder %s22, 1
          %s789 = scalar_select %p788, %s22, 1
          %s790 = smul.addr %s789, 8
          %s791 = scalar_lea.vmem %s8, %s790
        $region72: #{transformer_forward.46} parent=67 // pred_fallthru
          _
      $region68: #{transformer_forward.46} parent=5 // pred_fallthru
        _
    $region6: #{transformer_forward.46} parent=1 // loop_footer
      %s20 = sadd.s32 1, %s16
    $region7: #{transformer_forward.46} parent=1 // loop_footer_branch
      %15 = sbr.rel target = $region3
    $region8: #{transformer_forward.46} parent=1 // loop_exit
      _
    %792 = vsyncpa [#allocation3], 1
    %s793 = scalar_lea.sflag [#allocation3], 1
    %794 = vsyncpa %s793, 1
    %795 = vsyncpa [#allocation5], 1

// kernel: transformer_forward.49
$region0: #{transformer_forward.49}
  #allocation0 [shape = 'u32[]', space=smem, size = 0x4, offset = 0x4, fixed_abs, tag = 'smem constant byte address 0x4 - core index']
  #allocation1 [shape = 'u32[72,128]{1,0:T(1,128)}', space=vmem, size = 0x9000, scoped, tag = 'internal scratch']
  %s0 = inlined_call_operand.vmem [shape: f32[16,32], index: 0, kind: input, shape index: {}]
  %s1 = inlined_call_operand.vmem [shape: bf16[32,64], index: 1, kind: input, shape index: {}]
  %s2 = inlined_call_operand.vmem [shape: f32[1,64], index: 2, kind: input, shape index: {}]
  %s3 = inlined_call_operand.hbm [shape: f32[16,64], index: 3, kind: output, shape index: {}]
  %s4 = sld [smem:[#allocation0]]
  $region30: #{transformer_forward.49} parent=0
    _
  %s6 = ssub.s32 1, %s4
  %s7 = scalar_select 0, %s6, %s4
  $region1: #{transformer_forward.49} parent=0
    #allocation2 [shape = 'u8[8192]{0}', space=vmem, size = 0x2000, scoped, tag = 'output window, operand 0, single buffered']
    #allocation3 [shape = 's32[1]{0}', space=sflag, size = 0x4, scoped, tag = 'scoped memory for transformer_forward.49']
    %8 = vsyncpa [#allocation3], 0
    // Predicated region
    $region2: #{transformer_forward.49} parent=1 // pred_check
      _
    $region3: #{transformer_forward.49} parent=1 // pred_check_branch
      %10 = sbr.rel (0) target = $region5
    $region4: #{transformer_forward.49} parent=1 // pred_region
      _
    $region5: #{transformer_forward.49} parent=1 // pred_fallthru
      _
    // Predicated region
    $region6: #{transformer_forward.49} parent=1 // pred_check
      _
    $region7: #{transformer_forward.49} parent=1 // pred_check_branch
      %12 = sbr.rel (0) target = $region9
    $region8: #{transformer_forward.49} parent=1 // pred_region
      _
    $region9: #{transformer_forward.49} parent=1 // pred_fallthru
      _
    // Predicated region
    $region10: #{transformer_forward.49} parent=1 // pred_check
      _
    $region11: #{transformer_forward.49} parent=1 // pred_check_branch
      %14 = sbr.rel (0) target = $region13
    $region12: #{transformer_forward.49} parent=1 // pred_region
      _
    $region13: #{transformer_forward.49} parent=1 // pred_fallthru
      _
    %p16 = scmp.eq.s32.totalorder 0, 0
    // Predicated region
    $region14: #{transformer_forward.49} parent=1 // pred_check
      %p17 = pneg %p16
    $region15: #{transformer_forward.49} parent=1 // pred_check_branch
      %19 = sbr.rel (%p17) target = $region17
    $region16: #{transformer_forward.49} parent=1 // pred_region
      %vm20 = vcmask 523264
      %21 = vst.msk [vmem:[#allocation2] sm:$0xff] %vm20, 0.0
      %22 = vst.msk [vmem:[#allocation2 + $0x8] sm:$0xff] %vm20, 0.0
    $region17: #{transformer_forward.49} parent=1 // pred_fallthru
      _
    %v23 = vld [vmem:[%s0] sm:$0xff]
    %v24 = vld [vmem:[%s0 + $0x8] sm:$0xff]
    %v25 = vpack.c.bf16 %v24, %v23
    %v26 = vld [vmem:[#allocation2] sm:$0xff]
    %v27 = vld [vmem:[#allocation2 + $0x8] sm:$0xff]
    %v28 = vld [vmem:[%s1] sm:$0xf]
    %v29 = vld [vmem:[%s1 + $0x4] sm:$0xf]
    %v30 = vld [vmem:[%s1 + $0x8] sm:$0xf]
    %v31 = vld [vmem:[%s1 + $0xc] sm:$0xf]
    %v36 = vunpack.c.l.b16 %v28
    %v37 = vunpack.c.l.b16 %v29
    %v38 = vunpack.c.l.b16 %v30
    %v39 = vunpack.c.l.b16 %v31
    %v40 = vpack.c.b16 %v37, %v36
    %v41 = vpack.c.b16 %v39, %v38
    %vm44 = vcmask 261120
    %v46 = vsel %vm44, %v25, 0
    %48 = vmatpush.bf16.msra.mxu0 0
    %49 = vmatpush.bf16.msra.mxu0 0
    %50 = vmatpush.bf16.msra.mxu0 0
    %51 = vmatpush.bf16.msra.mxu0 0
    %52 = vmatpush.bf16.msra.mxu0 0
    %53 = vmatpush.bf16.msra.mxu0 0
    %54 = vmatpush.bf16.msra.mxu0 %v41
    %55 = vmatpush.bf16.msra.mxu0 %v40
    %56 = vmatmul.bf16.gmra.mxu0 %v46
    %v57 = vpop.f32.mrf.mxu0
    %v58 = vadd.f32 0.0, %v57
    %v59 = vpop.f32.mrf.mxu0
    %v60 = vadd.f32 0.0, %v59
    %61 = vdwg.mxu0
    %v62 = vadd.f32 %v26, %v58
    %v63 = vadd.f32 %v27, %v60
    %vm64 = vcmask 523264
    %65 = vst.msk [vmem:[#allocation2] sm:$0xff] %vm64, %v62
    %66 = vst.msk [vmem:[#allocation2 + $0x8] sm:$0xff] %vm64, %v63
    // Predicated region
    $region18: #{transformer_forward.49} parent=1 // pred_check
      %p67 = pneg %p16
    $region19: #{transformer_forward.49} parent=1 // pred_check_branch
      %69 = sbr.rel (%p67) target = $region21
    $region20: #{transformer_forward.49} parent=1 // pred_region
      %v70 = vld [vmem:[#allocation2] sm:$0xff]
      %v71 = vld [vmem:[#allocation2 + $0x8] sm:$0xff]
      %v72 = vld [vmem:[%s2] sm:$0x1]
      %v74 = vperm.slane %v72, 0
      %v76 = vadd.f32 %v70, %v74
      %v77 = vadd.f32 %v71, %v74
      %78 = vst.msk [vmem:[#allocation2] sm:$0xff] %vm64, %v76
      %79 = vst.msk [vmem:[#allocation2 + $0x8] sm:$0xff] %vm64, %v77
    $region21: #{transformer_forward.49} parent=1 // pred_fallthru
      _
    // Predicated region
    $region22: #{transformer_forward.49} parent=1 // pred_check
      _
    $region23: #{transformer_forward.49} parent=1 // pred_check_branch
      %81 = sbr.rel (0) target = $region25
    $region24: #{transformer_forward.49} parent=1 // pred_region
      %83 = vsyncadd [#allocation3], 0
      %s84 = sshll.u32 [#allocation2], 4
      %s85 = int_to_ptr.vmem [resolvable:$true] %s84
      %s86 = sshll.u32 %s3, 4
      %s87 = int_to_ptr.hbm [resolvable:$true] %s86
      %92 = dma.vmem_to_hbm [thread:$0]  %s85, 256, %s87, [#allocation3], 128, 128, 8
    $region25: #{transformer_forward.49} parent=1 // pred_fallthru
      _
    // Predicated region
    $region26: #{transformer_forward.49} parent=1 // pred_check
      _
    $region27: #{transformer_forward.49} parent=1 // pred_check_branch
      %94 = sbr.rel (0) target = $region29
    $region28: #{transformer_forward.49} parent=1 // pred_region
      %96 = dma.done [#allocation3], 256
    $region29: #{transformer_forward.49} parent=1 // pred_fallthru
      _
    %97 = vsyncpa [#allocation3], 1

</llo_original>
